<compile_context>
chip_gen: v5e
topology: v5e:2x2
jax: 0.10.0
libtpu: 0.0.40
codegen_flags: <defaults>
</compile_context>

<pallas_src>
import functools
import math

import jax
import jax.numpy as jnp
from jax.experimental import pallas as pl
from jax.experimental.pallas import tpu as pltpu


# ===========================================================================
# In-kernel helpers (pure array functions traced inside the Pallas kernels)
# ===========================================================================

def _layer_norm(x, g, b):
    mu = jnp.mean(x, axis=-1, keepdims=True)
    var = jnp.mean((x - mu) ** 2, axis=-1, keepdims=True)
    return (x - mu) * jax.lax.rsqrt(var + 1e-5) * g + b


def _mha(x_q, x_kv_b, neg, wq, wk, wv, wo, bo, heads):
    """Multi-head attention with the head axis as a leading batch dimension.

    x_q   : (Lq, E)  f32   queries source (residual added by the caller)
    x_kv_b: (Lk, E)  bf16  keys/values source
    neg   : additive mask term (already * -1e9), broadcastable to (H, Lq, Lk)
    wq/wk/wv : (H, E, Dh) bf16   (1/sqrt(Dh) pre-folded into wq)
    wo    : (H, Dh, E) bf16
    bo    : (1, E) f32
    returns (Lq, E) f32 attention output (pre-residual / pre-LayerNorm).
    """
    Lq, E = x_q.shape
    Lk = x_kv_b.shape[0]
    xq_h = jnp.broadcast_to(x_q.astype(jnp.bfloat16)[None], (heads, Lq, E))
    xkv_h = jnp.broadcast_to(x_kv_b[None], (heads, Lk, E))

    batched = (((2,), (1,)), ((0,), (0,)))   # contract last dim of lhs w/ dim-1 of rhs
    q = jax.lax.dot_general(xq_h, wq, batched, preferred_element_type=jnp.float32)
    k = jax.lax.dot_general(xkv_h, wk, batched, preferred_element_type=jnp.float32)
    v = jax.lax.dot_general(xkv_h, wv, batched, preferred_element_type=jnp.float32)

    # Q @ K^T per head (contract Dh of both operands, batch over heads).
    s = jax.lax.dot_general(q.astype(jnp.bfloat16), k.astype(jnp.bfloat16),
                            (((2,), (2,)), ((0,), (0,))),
                            preferred_element_type=jnp.float32)          # (H,Lq,Lk)
    s = s + neg                      # faithful to reference: logits += mask * -1e9
    s = s - jnp.max(s, axis=-1, keepdims=True)
    p = jnp.exp(s)
    p = p / jnp.sum(p, axis=-1, keepdims=True)                           # f32 softmax

    o = jax.lax.dot_general(p.astype(jnp.bfloat16), v.astype(jnp.bfloat16),
                            batched, preferred_element_type=jnp.float32)  # (H,Lq,Dh)
    # concat_h(o_h) @ Wo  ==  sum_h  o_h @ Wo[h]
    proj = jax.lax.dot_general(o.astype(jnp.bfloat16), wo, batched,
                               preferred_element_type=jnp.float32)        # (H,Lq,E)
    return jnp.sum(proj, axis=0) + bo                                     # (Lq,E)


def _ffn(x, w1, b1, w2, b2):
    h = jnp.dot(x.astype(jnp.bfloat16), w1, preferred_element_type=jnp.float32) + b1
    h = jnp.maximum(h, 0.0)
    return jnp.dot(h.astype(jnp.bfloat16), w2, preferred_element_type=jnp.float32) + b2


# ===========================================================================
# Fused Pallas kernels (one per stack)
# ===========================================================================

def _encoder_stack_kernel(x_ref, mask_ref,
                          wq, wk, wv, wo, bo, ln1g, ln1b,
                          w1, b1, w2, b2, ln2g, ln2b,
                          o_ref, *, num_layers, heads):
    """All encoder layers for one batch element; intermediates stay on-chip."""
    x = x_ref[...]                                    # (Ls, E) f32
    neg = mask_ref[...] * (-1000000000.0)             # (1, Ls)
    for l in range(num_layers):                       # static unroll (small)
        a = _mha(x, x.astype(jnp.bfloat16), neg,
                 wq[l], wk[l], wv[l], wo[l], bo[l], heads)
        y = _layer_norm(a + x, ln1g[l], ln1b[l])
        f = _ffn(y, w1[l], b1[l], w2[l], b2[l])
        x = _layer_norm(f + y, ln2g[l], ln2b[l])
    o_ref[...] = x


def _decoder_stack_kernel(x_ref, enc_ref, smask_ref, tmask_ref,
                          sa_wq, sa_wk, sa_wv, sa_wo, sa_bo, ln0g, ln0b,
                          ca_wq, ca_wk, ca_wv, ca_wo, ca_bo, ln1g, ln1b,
                          w1, b1, w2, b2, ln2g, ln2b,
                          fcw, fcb,
                          o_ref, *, num_layers, heads):
    """All decoder layers + final vocab projection for one batch element."""
    x = x_ref[...]                                    # (Lt, E) f32
    enc_b = enc_ref[...].astype(jnp.bfloat16)         # (Ls, E) bf16 (K/V source)
    neg_t = tmask_ref[...] * (-1000000000.0)          # (Lt, Lt)
    neg_s = smask_ref[...] * (-1000000000.0)          # (1, Ls)
    for l in range(num_layers):                       # static unroll (small)
        a = _mha(x, x.astype(jnp.bfloat16), neg_t,
                 sa_wq[l], sa_wk[l], sa_wv[l], sa_wo[l], sa_bo[l], heads)
        query = _layer_norm(a + x, ln0g[l], ln0b[l])
        c = _mha(query, enc_b, neg_s,
                 ca_wq[l], ca_wk[l], ca_wv[l], ca_wo[l], ca_bo[l], heads)
        t = _layer_norm(c + query, ln1g[l], ln1b[l])
        f = _ffn(t, w1[l], b1[l], w2[l], b2[l])
        x = _layer_norm(f + t, ln2g[l], ln2b[l])
    # Final vocabulary projection fused into the same kernel (single HBM write).
    # TODO(synk): at production vocab sizes, tile this projection over the
    # vocab dimension with its own grid instead of one full (E, V) block.
    o_ref[...] = (jnp.dot(x.astype(jnp.bfloat16), fcw[...],
                          preferred_element_type=jnp.float32) + fcb[...])


# ===========================================================================
# pallas_call wrappers
# ===========================================================================

def _const_spec(arr):
    """Full-array block, same block for every grid step (weights/biases)."""
    # TODO(synk): at production sizes, use pipeline_mode=pl.Buffered(1) or a
    # one-time VMEM staging copy so constant weights are not double-buffered.
    zeros = (0,) * arr.ndim
    return pl.BlockSpec(arr.shape, lambda n, _z=zeros: _z)


_ENC_WEIGHT_ORDER = ('wq', 'wk', 'wv', 'wo', 'bo', 'ln1_g', 'ln1_b',
                     'ff_w1', 'ff_b1', 'ff_w2', 'ff_b2', 'ln2_g', 'ln2_b')

_DEC_WEIGHT_ORDER = ('sa_wq', 'sa_wk', 'sa_wv', 'sa_wo', 'sa_bo', 'ln0_g', 'ln0_b',
                     'ca_wq', 'ca_wk', 'ca_wv', 'ca_wo', 'ca_bo', 'ln1_g', 'ln1_b',
                     'ff_w1', 'ff_b1', 'ff_w2', 'ff_b2', 'ln2_g', 'ln2_b')


def encoder_pallas(x, src_mask, p, num_layers, heads):
    """x: (N, Ls, E) f32, src_mask: (N, 1, Ls) f32."""
    N, Ls, E = x.shape
    weights = [p[name] for name in _ENC_WEIGHT_ORDER]
    kernel = functools.partial(_encoder_stack_kernel,
                               num_layers=num_layers, heads=heads)
    return pl.pallas_call(
        kernel,
        out_shape=jax.ShapeDtypeStruct((N, Ls, E), jnp.float32),
        grid=(N,),
        in_specs=[pl.BlockSpec((None, Ls, E), lambda n: (n, 0, 0)),
                  pl.BlockSpec((None, 1, Ls), lambda n: (n, 0, 0))]
                 + [_const_spec(w) for w in weights],
        out_specs=pl.BlockSpec((None, Ls, E), lambda n: (n, 0, 0)),
        compiler_params=pltpu.CompilerParams(dimension_semantics=("parallel",)),
    )(x, src_mask, *weights)


def decoder_pallas(x, enc_out, src_mask, trg_mask, p, fc_w, fc_b,
                   num_layers, heads):
    """x: (N, Lt, E), enc_out: (N, Ls, E), src_mask: (N,1,Ls), trg_mask: (Lt,Lt)."""
    N, Lt, E = x.shape
    Ls = enc_out.shape[1]
    V = fc_w.shape[1]
    weights = [p[name] for name in _DEC_WEIGHT_ORDER] + [fc_w, fc_b]
    kernel = functools.partial(_decoder_stack_kernel,
                               num_layers=num_layers, heads=heads)
    return pl.pallas_call(
        kernel,
        out_shape=jax.ShapeDtypeStruct((N, Lt, V), jnp.float32),
        grid=(N,),
        in_specs=[pl.BlockSpec((None, Lt, E), lambda n: (n, 0, 0)),
                  pl.BlockSpec((None, Ls, E), lambda n: (n, 0, 0)),
                  pl.BlockSpec((None, 1, Ls), lambda n: (n, 0, 0)),
                  pl.BlockSpec((Lt, Lt), lambda n: (0, 0))]
                 + [_const_spec(w) for w in weights],
        out_specs=pl.BlockSpec((None, Lt, V), lambda n: (n, 0, 0)),
        compiler_params=pltpu.CompilerParams(dimension_semantics=("parallel",)),
    )(x, enc_out, src_mask, trg_mask, *weights)


# ===========================================================================
# Model glue (embedding / positional encoding) and forward pass
# ===========================================================================

def make_positional_encoding(max_len, d_model):
    position = jnp.arange(max_len, dtype=jnp.float32)[:, None]
    div_term = jnp.exp(jnp.arange(0, d_model, 2, dtype=jnp.float32)
                       * (-math.log(10000.0) / d_model))
    pe = jnp.zeros((max_len, d_model), jnp.float32)
    pe = pe.at[:, 0::2].set(jnp.sin(position * div_term))
    pe = pe.at[:, 1::2].set(jnp.cos(position * div_term))
    return pe


def transformer_forward(params, src, trg, src_pad_idx, heads, num_layers):
    # Faithful to the reference: src_mask = (src != pad), trg_mask = tril,
    # applied additively in-kernel as `logits += mask * -1e9` (same polarity
    # as the reference code, as written).
    src_mask = (src != src_pad_idx).astype(jnp.float32)[:, None, :]       # (N,1,Ls)
    Lt = trg.shape[1]
    trg_mask = jnp.tril(jnp.ones((Lt, Lt), jnp.float32))                  # (Lt,Lt)

    # TODO(synk): embedding gather + positional-encoding add stay as XLA glue
    # (data-dependent row gather has no clean small Pallas equivalent here);
    # dropout layers are identity (eval-mode).
    enc_in = jnp.take(params['enc_emb'], src, axis=0) + params['pe'][:src.shape[1]][None]
    dec_in = jnp.take(params['dec_emb'], trg, axis=0) + params['pe'][:Lt][None]

    enc_out = encoder_pallas(enc_in, src_mask, params['enc'], num_layers, heads)
    return decoder_pallas(dec_in, enc_out, src_mask, trg_mask, params['dec'],
                          params['fc_w'], params['fc_b'], num_layers, heads)


# ===========================================================================
# Deterministic parameter initialization
#   - matmul weights stored (in, out), per head where relevant, in bf16
#   - 1/sqrt(d_k) folded into wq
# ===========================================================================

_BF16_PARAMS = frozenset({
    'wq', 'wk', 'wv', 'wo', 'ff_w1', 'ff_w2',
    'sa_wq', 'sa_wk', 'sa_wv', 'sa_wo',
    'ca_wq', 'ca_wk', 'ca_wv', 'ca_wo',
})


def _normal(key, shape, scale=0.02):
    return jax.random.normal(key, shape, jnp.float32) * scale


def _init_attn(key, embed, heads):
    dh = embed // heads
    ks = jax.random.split(key, 5)
    return {
        'wq': _normal(ks[0], (heads, embed, dh)) * (1.0 / math.sqrt(dh)),  # scale folded
        'wk': _normal(ks[1], (heads, embed, dh)),
        'wv': _normal(ks[2], (heads, embed, dh)),
        'wo': _normal(ks[3], (heads, dh, embed)),
        'bo': _normal(ks[4], (1, embed)),
    }


def _init_ffn(key, embed, ff):
    ks = jax.random.split(key, 4)
    return {
        'ff_w1': _normal(ks[0], (embed, ff)), 'ff_b1': _normal(ks[1], (1, ff)),
        'ff_w2': _normal(ks[2], (ff, embed)), 'ff_b2': _normal(ks[3], (1, embed)),
    }


def _init_encoder_layer(key, embed, heads, ff):
    k_attn, k_ffn = jax.random.split(key)
    d = {}
    d.update(_init_attn(k_attn, embed, heads))
    d.update(_init_ffn(k_ffn, embed, ff))
    for name in ('ln1', 'ln2'):
        d[name + '_g'] = jnp.ones((1, embed), jnp.float32)
        d[name + '_b'] = jnp.zeros((1, embed), jnp.float32)
    return d


def _init_decoder_layer(key, embed, heads, ff):
    k_sa, k_ca, k_ffn = jax.random.split(key, 3)
    d = {}
    for pfx, k in (('sa_', k_sa), ('ca_', k_ca)):
        for name, val in _init_attn(k, embed, heads).items():
            d[pfx + name] = val
    d.update(_init_ffn(k_ffn, embed, ff))
    for name in ('ln0', 'ln1', 'ln2'):
        d[name + '_g'] = jnp.ones((1, embed), jnp.float32)
        d[name + '_b'] = jnp.zeros((1, embed), jnp.float32)
    return d


def _stack_layers(layer_dicts):
    out = {}
    for name in layer_dicts[0]:
        a = jnp.stack([lp[name] for lp in layer_dicts])
        out[name] = a.astype(jnp.bfloat16) if name in _BF16_PARAMS else a
    return out


def init_transformer(key, src_vocab, trg_vocab, embed, num_layers, heads,
                     forward_expansion, max_length):
    ff = forward_expansion * embed
    keys = jax.random.split(key, 2 * num_layers + 4)
    pe = make_positional_encoding(max_length, embed)
    enc_layers = [_init_encoder_layer(keys[2 + i], embed, heads, ff)
                  for i in range(num_layers)]
    dec_layers = [_init_decoder_layer(keys[2 + num_layers + i], embed, heads, ff)
                  for i in range(num_layers)]
    return {
        'enc_emb': _normal(keys[0], (src_vocab, embed), scale=1.0),
        'dec_emb': _normal(keys[1], (trg_vocab, embed), scale=1.0),
        'pe': pe,
        'enc': _stack_layers(enc_layers),
        'dec': _stack_layers(dec_layers),
        'fc_w': _normal(keys[-2], (embed, trg_vocab)).astype(jnp.bfloat16),
        'fc_b': _normal(keys[-1], (1, trg_vocab)),
    }


# ===========================================================================
# Main
# ===========================================================================

if __name__ == "__main__":
    SRC_VOCAB = 50
    TRG_VOCAB = 64
    SRC_PAD_IDX = 0
    EMBED = 32
    NUM_LAYERS = 2
    HEADS = 4
    FWD_EXP = 4
    MAX_LEN = 100
    N, SRC_LEN, TRG_LEN = 2, 8, 8

    root = jax.random.PRNGKey(0)
    k_params, k_src, k_trg = jax.random.split(root, 3)

    params = init_transformer(k_params, SRC_VOCAB, TRG_VOCAB, EMBED, NUM_LAYERS,
                              HEADS, FWD_EXP, MAX_LEN)

    src = jax.random.randint(k_src, (N, SRC_LEN), 0, SRC_VOCAB, dtype=jnp.int32)
    trg = jax.random.randint(k_trg, (N, TRG_LEN), 0, TRG_VOCAB, dtype=jnp.int32)

    fwd = jax.jit(lambda p, s, t: transformer_forward(p, s, t, SRC_PAD_IDX,
                                                      HEADS, NUM_LAYERS))
    out = fwd(params, src, trg)
    out = jax.block_until_ready(out)

    assert out.shape == (N, TRG_LEN, TRG_VOCAB)
    assert jnp.all(jnp.isfinite(out))
    print("KERNEL_OK")
</pallas_src>

<mosaic_0001>
module attributes {stable_mosaic.version = 11 : i64} {
  func.func @_encoder_stack_kernel(%arg0: i32, %arg1: memref<1x8x32xf32, #tpu.memory_space<vmem>>, %arg2: memref<1x1x8xf32, #tpu.memory_space<vmem>>, %arg3: memref<2x4x32x8xbf16, #tpu.memory_space<vmem>>, %arg4: memref<2x4x32x8xbf16, #tpu.memory_space<vmem>>, %arg5: memref<2x4x32x8xbf16, #tpu.memory_space<vmem>>, %arg6: memref<2x4x8x32xbf16, #tpu.memory_space<vmem>>, %arg7: memref<2x1x32xf32, #tpu.memory_space<vmem>>, %arg8: memref<2x1x32xf32, #tpu.memory_space<vmem>>, %arg9: memref<2x1x32xf32, #tpu.memory_space<vmem>>, %arg10: memref<2x32x128xbf16, #tpu.memory_space<vmem>>, %arg11: memref<2x1x128xf32, #tpu.memory_space<vmem>>, %arg12: memref<2x128x32xbf16, #tpu.memory_space<vmem>>, %arg13: memref<2x1x32xf32, #tpu.memory_space<vmem>>, %arg14: memref<2x1x32xf32, #tpu.memory_space<vmem>>, %arg15: memref<2x1x32xf32, #tpu.memory_space<vmem>>, %arg16: memref<1x8x32xf32, #tpu.memory_space<vmem>>) attributes {dimension_semantics = [#tpu.dimension_semantics<parallel>], iteration_bounds = array<i64: 2>, scalar_prefetch = 0 : i64, scratch_operands = 0 : i64, tpu.core_type = #tpu.core_type<tc>, window_params = [{transform_indices = @transform_0, window_bounds = array<i64: 1, 8, 32>}, {transform_indices = @transform_1, window_bounds = array<i64: 1, 1, 8>}, {pipeline_mode = #tpu.pipeline_mode<synchronous>, transform_indices = @transform_2, window_bounds = array<i64: 2, 4, 32, 8>}, {pipeline_mode = #tpu.pipeline_mode<synchronous>, transform_indices = @transform_3, window_bounds = array<i64: 2, 4, 32, 8>}, {pipeline_mode = #tpu.pipeline_mode<synchronous>, transform_indices = @transform_4, window_bounds = array<i64: 2, 4, 32, 8>}, {pipeline_mode = #tpu.pipeline_mode<synchronous>, transform_indices = @transform_5, window_bounds = array<i64: 2, 4, 8, 32>}, {pipeline_mode = #tpu.pipeline_mode<synchronous>, transform_indices = @transform_6, window_bounds = array<i64: 2, 1, 32>}, {pipeline_mode = #tpu.pipeline_mode<synchronous>, transform_indices = @transform_7, window_bounds = array<i64: 2, 1, 32>}, {pipeline_mode = #tpu.pipeline_mode<synchronous>, transform_indices = @transform_8, window_bounds = array<i64: 2, 1, 32>}, {pipeline_mode = #tpu.pipeline_mode<synchronous>, transform_indices = @transform_9, window_bounds = array<i64: 2, 32, 128>}, {pipeline_mode = #tpu.pipeline_mode<synchronous>, transform_indices = @transform_10, window_bounds = array<i64: 2, 1, 128>}, {pipeline_mode = #tpu.pipeline_mode<synchronous>, transform_indices = @transform_11, window_bounds = array<i64: 2, 128, 32>}, {pipeline_mode = #tpu.pipeline_mode<synchronous>, transform_indices = @transform_12, window_bounds = array<i64: 2, 1, 32>}, {pipeline_mode = #tpu.pipeline_mode<synchronous>, transform_indices = @transform_13, window_bounds = array<i64: 2, 1, 32>}, {pipeline_mode = #tpu.pipeline_mode<synchronous>, transform_indices = @transform_14, window_bounds = array<i64: 2, 1, 32>}, {transform_indices = @transform_15, window_bounds = array<i64: 1, 8, 32>}]} {
    %c0 = arith.constant 0 : index
    %c0_0 = arith.constant 0 : index
    %c0_1 = arith.constant 0 : index
    %0 = vector.load %arg1[%c0, %c0_0, %c0_1] : memref<1x8x32xf32, #tpu.memory_space<vmem>>, vector<1x8x32xf32>
    %1 = vector.shape_cast %0 : vector<1x8x32xf32> to vector<8x32xf32>
    %c0_2 = arith.constant 0 : index
    %c0_3 = arith.constant 0 : index
    %c0_4 = arith.constant 0 : index
    %2 = vector.load %arg2[%c0_2, %c0_3, %c0_4] : memref<1x1x8xf32, #tpu.memory_space<vmem>>, vector<1x1x8xf32>
    %3 = vector.shape_cast %2 : vector<1x1x8xf32> to vector<1x8xf32>
    %cst = arith.constant -1.000000e+09 : f32
    %4 = vector.broadcast %cst : f32 to vector<1x8xf32>
    %5 = arith.mulf %3, %4 : vector<1x8xf32>
    %6 = arith.truncf %1 : vector<8x32xf32> to vector<8x32xbf16>
    %c0_5 = arith.constant 0 : index
    %c0_6 = arith.constant 0 : index
    %c0_7 = arith.constant 0 : index
    %c0_8 = arith.constant 0 : index
    %7 = vector.load %arg3[%c0_5, %c0_6, %c0_7, %c0_8] : memref<2x4x32x8xbf16, #tpu.memory_space<vmem>>, vector<1x4x32x8xbf16>
    %8 = vector.shape_cast %7 : vector<1x4x32x8xbf16> to vector<4x32x8xbf16>
    %c0_9 = arith.constant 0 : index
    %c0_10 = arith.constant 0 : index
    %c0_11 = arith.constant 0 : index
    %c0_12 = arith.constant 0 : index
    %9 = vector.load %arg4[%c0_9, %c0_10, %c0_11, %c0_12] : memref<2x4x32x8xbf16, #tpu.memory_space<vmem>>, vector<1x4x32x8xbf16>
    %10 = vector.shape_cast %9 : vector<1x4x32x8xbf16> to vector<4x32x8xbf16>
    %c0_13 = arith.constant 0 : index
    %c0_14 = arith.constant 0 : index
    %c0_15 = arith.constant 0 : index
    %c0_16 = arith.constant 0 : index
    %11 = vector.load %arg5[%c0_13, %c0_14, %c0_15, %c0_16] : memref<2x4x32x8xbf16, #tpu.memory_space<vmem>>, vector<1x4x32x8xbf16>
    %12 = vector.shape_cast %11 : vector<1x4x32x8xbf16> to vector<4x32x8xbf16>
    %c0_17 = arith.constant 0 : index
    %c0_18 = arith.constant 0 : index
    %c0_19 = arith.constant 0 : index
    %c0_20 = arith.constant 0 : index
    %13 = vector.load %arg6[%c0_17, %c0_18, %c0_19, %c0_20] : memref<2x4x8x32xbf16, #tpu.memory_space<vmem>>, vector<1x4x8x32xbf16>
    %14 = vector.shape_cast %13 : vector<1x4x8x32xbf16> to vector<4x8x32xbf16>
    %c0_21 = arith.constant 0 : index
    %c0_22 = arith.constant 0 : index
    %c0_23 = arith.constant 0 : index
    %15 = vector.load %arg7[%c0_21, %c0_22, %c0_23] : memref<2x1x32xf32, #tpu.memory_space<vmem>>, vector<1x1x32xf32>
    %16 = vector.shape_cast %15 : vector<1x1x32xf32> to vector<1x32xf32>
    %17 = arith.truncf %1 : vector<8x32xf32> to vector<8x32xbf16>
    %18 = vector.shape_cast %17 : vector<8x32xbf16> to vector<1x8x32xbf16>
    %19 = vector.shape_cast %18 : vector<1x8x32xbf16> to vector<1x8x32xbf16>
    %20 = vector.broadcast %19 : vector<1x8x32xbf16> to vector<4x8x32xbf16>
    %21 = vector.shape_cast %6 : vector<8x32xbf16> to vector<1x8x32xbf16>
    %22 = vector.shape_cast %21 : vector<1x8x32xbf16> to vector<1x8x32xbf16>
    %23 = vector.broadcast %22 : vector<1x8x32xbf16> to vector<4x8x32xbf16>
    %cst_24 = arith.constant dense<0.000000e+00> : vector<4x8x8xf32>
    %24 = tpu.matmul %20, %8, %cst_24 {dimension_numbers = #tpu.dot_dimension_numbers<[2], [1], [1], [2], [0, 0, 0, 1, 1, 2], [0], [0]>} : vector<4x8x32xbf16>, vector<4x32x8xbf16>, vector<4x8x8xf32> -> vector<4x8x8xf32>
    %cst_25 = arith.constant dense<0.000000e+00> : vector<4x8x8xf32>
    %25 = tpu.matmul %23, %10, %cst_25 {dimension_numbers = #tpu.dot_dimension_numbers<[2], [1], [1], [2], [0, 0, 0, 1, 1, 2], [0], [0]>} : vector<4x8x32xbf16>, vector<4x32x8xbf16>, vector<4x8x8xf32> -> vector<4x8x8xf32>
    %cst_26 = arith.constant dense<0.000000e+00> : vector<4x8x8xf32>
    %26 = tpu.matmul %23, %12, %cst_26 {dimension_numbers = #tpu.dot_dimension_numbers<[2], [1], [1], [2], [0, 0, 0, 1, 1, 2], [0], [0]>} : vector<4x8x32xbf16>, vector<4x32x8xbf16>, vector<4x8x8xf32> -> vector<4x8x8xf32>
    %27 = arith.truncf %24 : vector<4x8x8xf32> to vector<4x8x8xbf16>
    %28 = arith.truncf %25 : vector<4x8x8xf32> to vector<4x8x8xbf16>
    %cst_27 = arith.constant dense<0.000000e+00> : vector<4x8x8xf32>
    %29 = tpu.matmul %27, %28, %cst_27 {dimension_numbers = #tpu.dot_dimension_numbers<[2], [2], [1], [1], [0, 0, 0, 1, 1, 1], [0], [0]>} : vector<4x8x8xbf16>, vector<4x8x8xbf16>, vector<4x8x8xf32> -> vector<4x8x8xf32>
    %30 = vector.shape_cast %5 : vector<1x8xf32> to vector<1x1x8xf32>
    %31 = vector.broadcast %30 : vector<1x1x8xf32> to vector<4x8x8xf32>
    %32 = arith.addf %29, %31 : vector<4x8x8xf32>
    %cst_28 = arith.constant dense<0xFF800000> : vector<4x8xf32>
    %33 = vector.multi_reduction <maximumf>, %32, %cst_28 [2] : vector<4x8x8xf32> to vector<4x8xf32>
    %34 = vector.shape_cast %33 : vector<4x8xf32> to vector<4x8x1xf32>
    %35 = vector.broadcast %34 : vector<4x8x1xf32> to vector<4x8x8xf32>
    %36 = arith.subf %32, %35 : vector<4x8x8xf32>
    %37 = math.exp %36 : vector<4x8x8xf32>
    %cst_29 = arith.constant dense<0.000000e+00> : vector<4x8xf32>
    %38 = vector.multi_reduction <add>, %37, %cst_29 [2] : vector<4x8x8xf32> to vector<4x8xf32>
    %39 = vector.shape_cast %38 : vector<4x8xf32> to vector<4x8x1xf32>
    %40 = vector.broadcast %39 : vector<4x8x1xf32> to vector<4x8x8xf32>
    %41 = arith.divf %37, %40 : vector<4x8x8xf32>
    %42 = arith.truncf %41 : vector<4x8x8xf32> to vector<4x8x8xbf16>
    %43 = arith.truncf %26 : vector<4x8x8xf32> to vector<4x8x8xbf16>
    %cst_30 = arith.constant dense<0.000000e+00> : vector<4x8x8xf32>
    %44 = tpu.matmul %42, %43, %cst_30 {dimension_numbers = #tpu.dot_dimension_numbers<[2], [1], [1], [2], [0, 0, 0, 1, 1, 2], [0], [0]>} : vector<4x8x8xbf16>, vector<4x8x8xbf16>, vector<4x8x8xf32> -> vector<4x8x8xf32>
    %45 = arith.truncf %44 : vector<4x8x8xf32> to vector<4x8x8xbf16>
    %cst_31 = arith.constant dense<0.000000e+00> : vector<4x8x32xf32>
    %46 = tpu.matmul %45, %14, %cst_31 {dimension_numbers = #tpu.dot_dimension_numbers<[2], [1], [1], [2], [0, 0, 0, 1, 1, 2], [0], [0]>} : vector<4x8x8xbf16>, vector<4x8x32xbf16>, vector<4x8x32xf32> -> vector<4x8x32xf32>
    %cst_32 = arith.constant dense<0.000000e+00> : vector<8x32xf32>
    %47 = vector.multi_reduction <add>, %46, %cst_32 [0] : vector<4x8x32xf32> to vector<8x32xf32>
    %48 = vector.broadcast %16 : vector<1x32xf32> to vector<8x32xf32>
    %49 = arith.addf %47, %48 : vector<8x32xf32>
    %50 = arith.addf %49, %1 : vector<8x32xf32>
    %c0_33 = arith.constant 0 : index
    %c0_34 = arith.constant 0 : index
    %c0_35 = arith.constant 0 : index
    %51 = vector.load %arg8[%c0_33, %c0_34, %c0_35] : memref<2x1x32xf32, #tpu.memory_space<vmem>>, vector<1x1x32xf32>
    %52 = vector.shape_cast %51 : vector<1x1x32xf32> to vector<1x32xf32>
    %c0_36 = arith.constant 0 : index
    %c0_37 = arith.constant 0 : index
    %c0_38 = arith.constant 0 : index
    %53 = vector.load %arg9[%c0_36, %c0_37, %c0_38] : memref<2x1x32xf32, #tpu.memory_space<vmem>>, vector<1x1x32xf32>
    %54 = vector.shape_cast %53 : vector<1x1x32xf32> to vector<1x32xf32>
    %cst_39 = arith.constant dense<0.000000e+00> : vector<8xf32>
    %55 = vector.multi_reduction <add>, %50, %cst_39 [1] : vector<8x32xf32> to vector<8xf32>
    %56 = vector.shape_cast %55 : vector<8xf32> to vector<8x1xf32>
    %cst_40 = arith.constant 3.200000e+01 : f32
    %57 = vector.broadcast %cst_40 : f32 to vector<8x1xf32>
    %58 = arith.divf %56, %57 : vector<8x1xf32>
    %59 = vector.broadcast %58 : vector<8x1xf32> to vector<8x32xf32>
    %60 = arith.subf %50, %59 : vector<8x32xf32>
    %61 = arith.mulf %60, %60 : vector<8x32xf32>
    %cst_41 = arith.constant dense<0.000000e+00> : vector<8xf32>
    %62 = vector.multi_reduction <add>, %61, %cst_41 [1] : vector<8x32xf32> to vector<8xf32>
    %63 = vector.shape_cast %62 : vector<8xf32> to vector<8x1xf32>
    %cst_42 = arith.constant 3.200000e+01 : f32
    %64 = vector.broadcast %cst_42 : f32 to vector<8x1xf32>
    %65 = arith.divf %63, %64 : vector<8x1xf32>
    %66 = vector.broadcast %58 : vector<8x1xf32> to vector<8x32xf32>
    %67 = arith.subf %50, %66 : vector<8x32xf32>
    %cst_43 = arith.constant 9.99999974E-6 : f32
    %68 = vector.broadcast %cst_43 : f32 to vector<8x1xf32>
    %69 = arith.addf %65, %68 : vector<8x1xf32>
    %70 = math.rsqrt %69 : vector<8x1xf32>
    %71 = vector.broadcast %70 : vector<8x1xf32> to vector<8x32xf32>
    %72 = arith.mulf %67, %71 : vector<8x32xf32>
    %73 = vector.broadcast %52 : vector<1x32xf32> to vector<8x32xf32>
    %74 = arith.mulf %72, %73 : vector<8x32xf32>
    %75 = vector.broadcast %54 : vector<1x32xf32> to vector<8x32xf32>
    %76 = arith.addf %74, %75 : vector<8x32xf32>
    %c0_44 = arith.constant 0 : index
    %c0_45 = arith.constant 0 : index
    %c0_46 = arith.constant 0 : index
    %77 = vector.load %arg10[%c0_44, %c0_45, %c0_46] : memref<2x32x128xbf16, #tpu.memory_space<vmem>>, vector<1x32x128xbf16>
    %78 = vector.shape_cast %77 : vector<1x32x128xbf16> to vector<32x128xbf16>
    %c0_47 = arith.constant 0 : index
    %c0_48 = arith.constant 0 : index
    %c0_49 = arith.constant 0 : index
    %79 = vector.load %arg11[%c0_47, %c0_48, %c0_49] : memref<2x1x128xf32, #tpu.memory_space<vmem>>, vector<1x1x128xf32>
    %80 = vector.shape_cast %79 : vector<1x1x128xf32> to vector<1x128xf32>
    %c0_50 = arith.constant 0 : index
    %c0_51 = arith.constant 0 : index
    %c0_52 = arith.constant 0 : index
    %81 = vector.load %arg12[%c0_50, %c0_51, %c0_52] : memref<2x128x32xbf16, #tpu.memory_space<vmem>>, vector<1x128x32xbf16>
    %82 = vector.shape_cast %81 : vector<1x128x32xbf16> to vector<128x32xbf16>
    %c0_53 = arith.constant 0 : index
    %c0_54 = arith.constant 0 : index
    %c0_55 = arith.constant 0 : index
    %83 = vector.load %arg13[%c0_53, %c0_54, %c0_55] : memref<2x1x32xf32, #tpu.memory_space<vmem>>, vector<1x1x32xf32>
    %84 = vector.shape_cast %83 : vector<1x1x32xf32> to vector<1x32xf32>
    %85 = arith.truncf %76 : vector<8x32xf32> to vector<8x32xbf16>
    %cst_56 = arith.constant dense<0.000000e+00> : vector<8x128xf32>
    %86 = tpu.matmul %85, %78, %cst_56 {dimension_numbers = #tpu.dot_dimension_numbers<[1], [0], [0], [1], [0, 0, 1, 1], [], []>} : vector<8x32xbf16>, vector<32x128xbf16>, vector<8x128xf32> -> vector<8x128xf32>
    %87 = vector.broadcast %80 : vector<1x128xf32> to vector<8x128xf32>
    %88 = arith.addf %86, %87 : vector<8x128xf32>
    %cst_57 = arith.constant 0.000000e+00 : f32
    %89 = vector.broadcast %cst_57 : f32 to vector<8x128xf32>
    %90 = arith.maximumf %88, %89 : vector<8x128xf32>
    %91 = arith.truncf %90 : vector<8x128xf32> to vector<8x128xbf16>
    %cst_58 = arith.constant dense<0.000000e+00> : vector<8x32xf32>
    %92 = tpu.matmul %91, %82, %cst_58 {dimension_numbers = #tpu.dot_dimension_numbers<[1], [0], [0], [1], [0, 0, 1, 1], [], []>} : vector<8x128xbf16>, vector<128x32xbf16>, vector<8x32xf32> -> vector<8x32xf32>
    %93 = vector.broadcast %84 : vector<1x32xf32> to vector<8x32xf32>
    %94 = arith.addf %92, %93 : vector<8x32xf32>
    %95 = arith.addf %94, %76 : vector<8x32xf32>
    %c0_59 = arith.constant 0 : index
    %c0_60 = arith.constant 0 : index
    %c0_61 = arith.constant 0 : index
    %96 = vector.load %arg14[%c0_59, %c0_60, %c0_61] : memref<2x1x32xf32, #tpu.memory_space<vmem>>, vector<1x1x32xf32>
    %97 = vector.shape_cast %96 : vector<1x1x32xf32> to vector<1x32xf32>
    %c0_62 = arith.constant 0 : index
    %c0_63 = arith.constant 0 : index
    %c0_64 = arith.constant 0 : index
    %98 = vector.load %arg15[%c0_62, %c0_63, %c0_64] : memref<2x1x32xf32, #tpu.memory_space<vmem>>, vector<1x1x32xf32>
    %99 = vector.shape_cast %98 : vector<1x1x32xf32> to vector<1x32xf32>
    %cst_65 = arith.constant dense<0.000000e+00> : vector<8xf32>
    %100 = vector.multi_reduction <add>, %95, %cst_65 [1] : vector<8x32xf32> to vector<8xf32>
    %101 = vector.shape_cast %100 : vector<8xf32> to vector<8x1xf32>
    %cst_66 = arith.constant 3.200000e+01 : f32
    %102 = vector.broadcast %cst_66 : f32 to vector<8x1xf32>
    %103 = arith.divf %101, %102 : vector<8x1xf32>
    %104 = vector.broadcast %103 : vector<8x1xf32> to vector<8x32xf32>
    %105 = arith.subf %95, %104 : vector<8x32xf32>
    %106 = arith.mulf %105, %105 : vector<8x32xf32>
    %cst_67 = arith.constant dense<0.000000e+00> : vector<8xf32>
    %107 = vector.multi_reduction <add>, %106, %cst_67 [1] : vector<8x32xf32> to vector<8xf32>
    %108 = vector.shape_cast %107 : vector<8xf32> to vector<8x1xf32>
    %cst_68 = arith.constant 3.200000e+01 : f32
    %109 = vector.broadcast %cst_68 : f32 to vector<8x1xf32>
    %110 = arith.divf %108, %109 : vector<8x1xf32>
    %111 = vector.broadcast %103 : vector<8x1xf32> to vector<8x32xf32>
    %112 = arith.subf %95, %111 : vector<8x32xf32>
    %cst_69 = arith.constant 9.99999974E-6 : f32
    %113 = vector.broadcast %cst_69 : f32 to vector<8x1xf32>
    %114 = arith.addf %110, %113 : vector<8x1xf32>
    %115 = math.rsqrt %114 : vector<8x1xf32>
    %116 = vector.broadcast %115 : vector<8x1xf32> to vector<8x32xf32>
    %117 = arith.mulf %112, %116 : vector<8x32xf32>
    %118 = vector.broadcast %97 : vector<1x32xf32> to vector<8x32xf32>
    %119 = arith.mulf %117, %118 : vector<8x32xf32>
    %120 = vector.broadcast %99 : vector<1x32xf32> to vector<8x32xf32>
    %121 = arith.addf %119, %120 : vector<8x32xf32>
    %122 = arith.truncf %121 : vector<8x32xf32> to vector<8x32xbf16>
    %c1 = arith.constant 1 : index
    %c0_70 = arith.constant 0 : index
    %c0_71 = arith.constant 0 : index
    %c0_72 = arith.constant 0 : index
    %123 = vector.load %arg3[%c1, %c0_70, %c0_71, %c0_72] : memref<2x4x32x8xbf16, #tpu.memory_space<vmem>>, vector<1x4x32x8xbf16>
    %124 = vector.shape_cast %123 : vector<1x4x32x8xbf16> to vector<4x32x8xbf16>
    %c1_73 = arith.constant 1 : index
    %c0_74 = arith.constant 0 : index
    %c0_75 = arith.constant 0 : index
    %c0_76 = arith.constant 0 : index
    %125 = vector.load %arg4[%c1_73, %c0_74, %c0_75, %c0_76] : memref<2x4x32x8xbf16, #tpu.memory_space<vmem>>, vector<1x4x32x8xbf16>
    %126 = vector.shape_cast %125 : vector<1x4x32x8xbf16> to vector<4x32x8xbf16>
    %c1_77 = arith.constant 1 : index
    %c0_78 = arith.constant 0 : index
    %c0_79 = arith.constant 0 : index
    %c0_80 = arith.constant 0 : index
    %127 = vector.load %arg5[%c1_77, %c0_78, %c0_79, %c0_80] : memref<2x4x32x8xbf16, #tpu.memory_space<vmem>>, vector<1x4x32x8xbf16>
    %128 = vector.shape_cast %127 : vector<1x4x32x8xbf16> to vector<4x32x8xbf16>
    %c1_81 = arith.constant 1 : index
    %c0_82 = arith.constant 0 : index
    %c0_83 = arith.constant 0 : index
    %c0_84 = arith.constant 0 : index
    %129 = vector.load %arg6[%c1_81, %c0_82, %c0_83, %c0_84] : memref<2x4x8x32xbf16, #tpu.memory_space<vmem>>, vector<1x4x8x32xbf16>
    %130 = vector.shape_cast %129 : vector<1x4x8x32xbf16> to vector<4x8x32xbf16>
    %c1_85 = arith.constant 1 : index
    %c0_86 = arith.constant 0 : index
    %c0_87 = arith.constant 0 : index
    %131 = vector.load %arg7[%c1_85, %c0_86, %c0_87] : memref<2x1x32xf32, #tpu.memory_space<vmem>>, vector<1x1x32xf32>
    %132 = vector.shape_cast %131 : vector<1x1x32xf32> to vector<1x32xf32>
    %133 = arith.truncf %121 : vector<8x32xf32> to vector<8x32xbf16>
    %134 = vector.shape_cast %133 : vector<8x32xbf16> to vector<1x8x32xbf16>
    %135 = vector.shape_cast %134 : vector<1x8x32xbf16> to vector<1x8x32xbf16>
    %136 = vector.broadcast %135 : vector<1x8x32xbf16> to vector<4x8x32xbf16>
    %137 = vector.shape_cast %122 : vector<8x32xbf16> to vector<1x8x32xbf16>
    %138 = vector.shape_cast %137 : vector<1x8x32xbf16> to vector<1x8x32xbf16>
    %139 = vector.broadcast %138 : vector<1x8x32xbf16> to vector<4x8x32xbf16>
    %cst_88 = arith.constant dense<0.000000e+00> : vector<4x8x8xf32>
    %140 = tpu.matmul %136, %124, %cst_88 {dimension_numbers = #tpu.dot_dimension_numbers<[2], [1], [1], [2], [0, 0, 0, 1, 1, 2], [0], [0]>} : vector<4x8x32xbf16>, vector<4x32x8xbf16>, vector<4x8x8xf32> -> vector<4x8x8xf32>
    %cst_89 = arith.constant dense<0.000000e+00> : vector<4x8x8xf32>
    %141 = tpu.matmul %139, %126, %cst_89 {dimension_numbers = #tpu.dot_dimension_numbers<[2], [1], [1], [2], [0, 0, 0, 1, 1, 2], [0], [0]>} : vector<4x8x32xbf16>, vector<4x32x8xbf16>, vector<4x8x8xf32> -> vector<4x8x8xf32>
    %cst_90 = arith.constant dense<0.000000e+00> : vector<4x8x8xf32>
    %142 = tpu.matmul %139, %128, %cst_90 {dimension_numbers = #tpu.dot_dimension_numbers<[2], [1], [1], [2], [0, 0, 0, 1, 1, 2], [0], [0]>} : vector<4x8x32xbf16>, vector<4x32x8xbf16>, vector<4x8x8xf32> -> vector<4x8x8xf32>
    %143 = arith.truncf %140 : vector<4x8x8xf32> to vector<4x8x8xbf16>
    %144 = arith.truncf %141 : vector<4x8x8xf32> to vector<4x8x8xbf16>
    %cst_91 = arith.constant dense<0.000000e+00> : vector<4x8x8xf32>
    %145 = tpu.matmul %143, %144, %cst_91 {dimension_numbers = #tpu.dot_dimension_numbers<[2], [2], [1], [1], [0, 0, 0, 1, 1, 1], [0], [0]>} : vector<4x8x8xbf16>, vector<4x8x8xbf16>, vector<4x8x8xf32> -> vector<4x8x8xf32>
    %146 = vector.shape_cast %5 : vector<1x8xf32> to vector<1x1x8xf32>
    %147 = vector.broadcast %146 : vector<1x1x8xf32> to vector<4x8x8xf32>
    %148 = arith.addf %145, %147 : vector<4x8x8xf32>
    %cst_92 = arith.constant dense<0xFF800000> : vector<4x8xf32>
    %149 = vector.multi_reduction <maximumf>, %148, %cst_92 [2] : vector<4x8x8xf32> to vector<4x8xf32>
    %150 = vector.shape_cast %149 : vector<4x8xf32> to vector<4x8x1xf32>
    %151 = vector.broadcast %150 : vector<4x8x1xf32> to vector<4x8x8xf32>
    %152 = arith.subf %148, %151 : vector<4x8x8xf32>
    %153 = math.exp %152 : vector<4x8x8xf32>
    %cst_93 = arith.constant dense<0.000000e+00> : vector<4x8xf32>
    %154 = vector.multi_reduction <add>, %153, %cst_93 [2] : vector<4x8x8xf32> to vector<4x8xf32>
    %155 = vector.shape_cast %154 : vector<4x8xf32> to vector<4x8x1xf32>
    %156 = vector.broadcast %155 : vector<4x8x1xf32> to vector<4x8x8xf32>
    %157 = arith.divf %153, %156 : vector<4x8x8xf32>
    %158 = arith.truncf %157 : vector<4x8x8xf32> to vector<4x8x8xbf16>
    %159 = arith.truncf %142 : vector<4x8x8xf32> to vector<4x8x8xbf16>
    %cst_94 = arith.constant dense<0.000000e+00> : vector<4x8x8xf32>
    %160 = tpu.matmul %158, %159, %cst_94 {dimension_numbers = #tpu.dot_dimension_numbers<[2], [1], [1], [2], [0, 0, 0, 1, 1, 2], [0], [0]>} : vector<4x8x8xbf16>, vector<4x8x8xbf16>, vector<4x8x8xf32> -> vector<4x8x8xf32>
    %161 = arith.truncf %160 : vector<4x8x8xf32> to vector<4x8x8xbf16>
    %cst_95 = arith.constant dense<0.000000e+00> : vector<4x8x32xf32>
    %162 = tpu.matmul %161, %130, %cst_95 {dimension_numbers = #tpu.dot_dimension_numbers<[2], [1], [1], [2], [0, 0, 0, 1, 1, 2], [0], [0]>} : vector<4x8x8xbf16>, vector<4x8x32xbf16>, vector<4x8x32xf32> -> vector<4x8x32xf32>
    %cst_96 = arith.constant dense<0.000000e+00> : vector<8x32xf32>
    %163 = vector.multi_reduction <add>, %162, %cst_96 [0] : vector<4x8x32xf32> to vector<8x32xf32>
    %164 = vector.broadcast %132 : vector<1x32xf32> to vector<8x32xf32>
    %165 = arith.addf %163, %164 : vector<8x32xf32>
    %166 = arith.addf %165, %121 : vector<8x32xf32>
    %c1_97 = arith.constant 1 : index
    %c0_98 = arith.constant 0 : index
    %c0_99 = arith.constant 0 : index
    %167 = vector.load %arg8[%c1_97, %c0_98, %c0_99] : memref<2x1x32xf32, #tpu.memory_space<vmem>>, vector<1x1x32xf32>
    %168 = vector.shape_cast %167 : vector<1x1x32xf32> to vector<1x32xf32>
    %c1_100 = arith.constant 1 : index
    %c0_101 = arith.constant 0 : index
    %c0_102 = arith.constant 0 : index
    %169 = vector.load %arg9[%c1_100, %c0_101, %c0_102] : memref<2x1x32xf32, #tpu.memory_space<vmem>>, vector<1x1x32xf32>
    %170 = vector.shape_cast %169 : vector<1x1x32xf32> to vector<1x32xf32>
    %cst_103 = arith.constant dense<0.000000e+00> : vector<8xf32>
    %171 = vector.multi_reduction <add>, %166, %cst_103 [1] : vector<8x32xf32> to vector<8xf32>
    %172 = vector.shape_cast %171 : vector<8xf32> to vector<8x1xf32>
    %cst_104 = arith.constant 3.200000e+01 : f32
    %173 = vector.broadcast %cst_104 : f32 to vector<8x1xf32>
    %174 = arith.divf %172, %173 : vector<8x1xf32>
    %175 = vector.broadcast %174 : vector<8x1xf32> to vector<8x32xf32>
    %176 = arith.subf %166, %175 : vector<8x32xf32>
    %177 = arith.mulf %176, %176 : vector<8x32xf32>
    %cst_105 = arith.constant dense<0.000000e+00> : vector<8xf32>
    %178 = vector.multi_reduction <add>, %177, %cst_105 [1] : vector<8x32xf32> to vector<8xf32>
    %179 = vector.shape_cast %178 : vector<8xf32> to vector<8x1xf32>
    %cst_106 = arith.constant 3.200000e+01 : f32
    %180 = vector.broadcast %cst_106 : f32 to vector<8x1xf32>
    %181 = arith.divf %179, %180 : vector<8x1xf32>
    %182 = vector.broadcast %174 : vector<8x1xf32> to vector<8x32xf32>
    %183 = arith.subf %166, %182 : vector<8x32xf32>
    %cst_107 = arith.constant 9.99999974E-6 : f32
    %184 = vector.broadcast %cst_107 : f32 to vector<8x1xf32>
    %185 = arith.addf %181, %184 : vector<8x1xf32>
    %186 = math.rsqrt %185 : vector<8x1xf32>
    %187 = vector.broadcast %186 : vector<8x1xf32> to vector<8x32xf32>
    %188 = arith.mulf %183, %187 : vector<8x32xf32>
    %189 = vector.broadcast %168 : vector<1x32xf32> to vector<8x32xf32>
    %190 = arith.mulf %188, %189 : vector<8x32xf32>
    %191 = vector.broadcast %170 : vector<1x32xf32> to vector<8x32xf32>
    %192 = arith.addf %190, %191 : vector<8x32xf32>
    %c1_108 = arith.constant 1 : index
    %c0_109 = arith.constant 0 : index
    %c0_110 = arith.constant 0 : index
    %193 = vector.load %arg10[%c1_108, %c0_109, %c0_110] : memref<2x32x128xbf16, #tpu.memory_space<vmem>>, vector<1x32x128xbf16>
    %194 = vector.shape_cast %193 : vector<1x32x128xbf16> to vector<32x128xbf16>
    %c1_111 = arith.constant 1 : index
    %c0_112 = arith.constant 0 : index
    %c0_113 = arith.constant 0 : index
    %195 = vector.load %arg11[%c1_111, %c0_112, %c0_113] : memref<2x1x128xf32, #tpu.memory_space<vmem>>, vector<1x1x128xf32>
    %196 = vector.shape_cast %195 : vector<1x1x128xf32> to vector<1x128xf32>
    %c1_114 = arith.constant 1 : index
    %c0_115 = arith.constant 0 : index
    %c0_116 = arith.constant 0 : index
    %197 = vector.load %arg12[%c1_114, %c0_115, %c0_116] : memref<2x128x32xbf16, #tpu.memory_space<vmem>>, vector<1x128x32xbf16>
    %198 = vector.shape_cast %197 : vector<1x128x32xbf16> to vector<128x32xbf16>
    %c1_117 = arith.constant 1 : index
    %c0_118 = arith.constant 0 : index
    %c0_119 = arith.constant 0 : index
    %199 = vector.load %arg13[%c1_117, %c0_118, %c0_119] : memref<2x1x32xf32, #tpu.memory_space<vmem>>, vector<1x1x32xf32>
    %200 = vector.shape_cast %199 : vector<1x1x32xf32> to vector<1x32xf32>
    %201 = arith.truncf %192 : vector<8x32xf32> to vector<8x32xbf16>
    %cst_120 = arith.constant dense<0.000000e+00> : vector<8x128xf32>
    %202 = tpu.matmul %201, %194, %cst_120 {dimension_numbers = #tpu.dot_dimension_numbers<[1], [0], [0], [1], [0, 0, 1, 1], [], []>} : vector<8x32xbf16>, vector<32x128xbf16>, vector<8x128xf32> -> vector<8x128xf32>
    %203 = vector.broadcast %196 : vector<1x128xf32> to vector<8x128xf32>
    %204 = arith.addf %202, %203 : vector<8x128xf32>
    %cst_121 = arith.constant 0.000000e+00 : f32
    %205 = vector.broadcast %cst_121 : f32 to vector<8x128xf32>
    %206 = arith.maximumf %204, %205 : vector<8x128xf32>
    %207 = arith.truncf %206 : vector<8x128xf32> to vector<8x128xbf16>
    %cst_122 = arith.constant dense<0.000000e+00> : vector<8x32xf32>
    %208 = tpu.matmul %207, %198, %cst_122 {dimension_numbers = #tpu.dot_dimension_numbers<[1], [0], [0], [1], [0, 0, 1, 1], [], []>} : vector<8x128xbf16>, vector<128x32xbf16>, vector<8x32xf32> -> vector<8x32xf32>
    %209 = vector.broadcast %200 : vector<1x32xf32> to vector<8x32xf32>
    %210 = arith.addf %208, %209 : vector<8x32xf32>
    %211 = arith.addf %210, %192 : vector<8x32xf32>
    %c1_123 = arith.constant 1 : index
    %c0_124 = arith.constant 0 : index
    %c0_125 = arith.constant 0 : index
    %212 = vector.load %arg14[%c1_123, %c0_124, %c0_125] : memref<2x1x32xf32, #tpu.memory_space<vmem>>, vector<1x1x32xf32>
    %213 = vector.shape_cast %212 : vector<1x1x32xf32> to vector<1x32xf32>
    %c1_126 = arith.constant 1 : index
    %c0_127 = arith.constant 0 : index
    %c0_128 = arith.constant 0 : index
    %214 = vector.load %arg15[%c1_126, %c0_127, %c0_128] : memref<2x1x32xf32, #tpu.memory_space<vmem>>, vector<1x1x32xf32>
    %215 = vector.shape_cast %214 : vector<1x1x32xf32> to vector<1x32xf32>
    %cst_129 = arith.constant dense<0.000000e+00> : vector<8xf32>
    %216 = vector.multi_reduction <add>, %211, %cst_129 [1] : vector<8x32xf32> to vector<8xf32>
    %217 = vector.shape_cast %216 : vector<8xf32> to vector<8x1xf32>
    %cst_130 = arith.constant 3.200000e+01 : f32
    %218 = vector.broadcast %cst_130 : f32 to vector<8x1xf32>
    %219 = arith.divf %217, %218 : vector<8x1xf32>
    %220 = vector.broadcast %219 : vector<8x1xf32> to vector<8x32xf32>
    %221 = arith.subf %211, %220 : vector<8x32xf32>
    %222 = arith.mulf %221, %221 : vector<8x32xf32>
    %cst_131 = arith.constant dense<0.000000e+00> : vector<8xf32>
    %223 = vector.multi_reduction <add>, %222, %cst_131 [1] : vector<8x32xf32> to vector<8xf32>
    %224 = vector.shape_cast %223 : vector<8xf32> to vector<8x1xf32>
    %cst_132 = arith.constant 3.200000e+01 : f32
    %225 = vector.broadcast %cst_132 : f32 to vector<8x1xf32>
    %226 = arith.divf %224, %225 : vector<8x1xf32>
    %227 = vector.broadcast %219 : vector<8x1xf32> to vector<8x32xf32>
    %228 = arith.subf %211, %227 : vector<8x32xf32>
    %cst_133 = arith.constant 9.99999974E-6 : f32
    %229 = vector.broadcast %cst_133 : f32 to vector<8x1xf32>
    %230 = arith.addf %226, %229 : vector<8x1xf32>
    %231 = math.rsqrt %230 : vector<8x1xf32>
    %232 = vector.broadcast %231 : vector<8x1xf32> to vector<8x32xf32>
    %233 = arith.mulf %228, %232 : vector<8x32xf32>
    %234 = vector.broadcast %213 : vector<1x32xf32> to vector<8x32xf32>
    %235 = arith.mulf %233, %234 : vector<8x32xf32>
    %236 = vector.broadcast %215 : vector<1x32xf32> to vector<8x32xf32>
    %237 = arith.addf %235, %236 : vector<8x32xf32>
    %c0_134 = arith.constant 0 : index
    %c0_135 = arith.constant 0 : index
    %c0_136 = arith.constant 0 : index
    %238 = vector.load %arg16[%c0_134, %c0_135, %c0_136] : memref<1x8x32xf32, #tpu.memory_space<vmem>>, vector<1x8x32xf32>
    %239 = vector.shape_cast %238 : vector<1x8x32xf32> to vector<8x32xf32>
    %240 = vector.shape_cast %237 : vector<8x32xf32> to vector<1x8x32xf32>
    tpu.vector_store %arg16[%c0_134, %c0_135, %c0_136], %240 {strides = array<i32>} : memref<1x8x32xf32, #tpu.memory_space<vmem>>, vector<1x8x32xf32>,
    return
  }
  func.func @transform_0(%arg0: i32) -> (i32, i32, i32) {
    %c0_i32 = arith.constant 0 : i32
    %c0_i32_0 = arith.constant 0 : i32
    %c0_i32_1 = arith.constant 0 : i32
    return %arg0, %c0_i32, %c0_i32_0 : i32, i32, i32
  }
  func.func @transform_1(%arg0: i32) -> (i32, i32, i32) {
    %c0_i32 = arith.constant 0 : i32
    %c0_i32_0 = arith.constant 0 : i32
    %c0_i32_1 = arith.constant 0 : i32
    return %arg0, %c0_i32, %c0_i32_0 : i32, i32, i32
  }
  func.func @transform_2(%arg0: i32) -> (i32, i32, i32, i32) {
    %c0_i32 = arith.constant 0 : i32
    %c0_i32_0 = arith.constant 0 : i32
    %c0_i32_1 = arith.constant 0 : i32
    %c0_i32_2 = arith.constant 0 : i32
    %c0_i32_3 = arith.constant 0 : i32
    return %c0_i32, %c0_i32_0, %c0_i32_1, %c0_i32_2 : i32, i32, i32, i32
  }
  func.func @transform_3(%arg0: i32) -> (i32, i32, i32, i32) {
    %c0_i32 = arith.constant 0 : i32
    %c0_i32_0 = arith.constant 0 : i32
    %c0_i32_1 = arith.constant 0 : i32
    %c0_i32_2 = arith.constant 0 : i32
    %c0_i32_3 = arith.constant 0 : i32
    return %c0_i32, %c0_i32_0, %c0_i32_1, %c0_i32_2 : i32, i32, i32, i32
  }
  func.func @transform_4(%arg0: i32) -> (i32, i32, i32, i32) {
    %c0_i32 = arith.constant 0 : i32
    %c0_i32_0 = arith.constant 0 : i32
    %c0_i32_1 = arith.constant 0 : i32
    %c0_i32_2 = arith.constant 0 : i32
    %c0_i32_3 = arith.constant 0 : i32
    return %c0_i32, %c0_i32_0, %c0_i32_1, %c0_i32_2 : i32, i32, i32, i32
  }
  func.func @transform_5(%arg0: i32) -> (i32, i32, i32, i32) {
    %c0_i32 = arith.constant 0 : i32
    %c0_i32_0 = arith.constant 0 : i32
    %c0_i32_1 = arith.constant 0 : i32
    %c0_i32_2 = arith.constant 0 : i32
    %c0_i32_3 = arith.constant 0 : i32
    return %c0_i32, %c0_i32_0, %c0_i32_1, %c0_i32_2 : i32, i32, i32, i32
  }
  func.func @transform_6(%arg0: i32) -> (i32, i32, i32) {
    %c0_i32 = arith.constant 0 : i32
    %c0_i32_0 = arith.constant 0 : i32
    %c0_i32_1 = arith.constant 0 : i32
    %c0_i32_2 = arith.constant 0 : i32
    return %c0_i32, %c0_i32_0, %c0_i32_1 : i32, i32, i32
  }
  func.func @transform_7(%arg0: i32) -> (i32, i32, i32) {
    %c0_i32 = arith.constant 0 : i32
    %c0_i32_0 = arith.constant 0 : i32
    %c0_i32_1 = arith.constant 0 : i32
    %c0_i32_2 = arith.constant 0 : i32
    return %c0_i32, %c0_i32_0, %c0_i32_1 : i32, i32, i32
  }
  func.func @transform_8(%arg0: i32) -> (i32, i32, i32) {
    %c0_i32 = arith.constant 0 : i32
    %c0_i32_0 = arith.constant 0 : i32
    %c0_i32_1 = arith.constant 0 : i32
    %c0_i32_2 = arith.constant 0 : i32
    return %c0_i32, %c0_i32_0, %c0_i32_1 : i32, i32, i32
  }
  func.func @transform_9(%arg0: i32) -> (i32, i32, i32) {
    %c0_i32 = arith.constant 0 : i32
    %c0_i32_0 = arith.constant 0 : i32
    %c0_i32_1 = arith.constant 0 : i32
    %c0_i32_2 = arith.constant 0 : i32
    return %c0_i32, %c0_i32_0, %c0_i32_1 : i32, i32, i32
  }
  func.func @transform_10(%arg0: i32) -> (i32, i32, i32) {
    %c0_i32 = arith.constant 0 : i32
    %c0_i32_0 = arith.constant 0 : i32
    %c0_i32_1 = arith.constant 0 : i32
    %c0_i32_2 = arith.constant 0 : i32
    return %c0_i32, %c0_i32_0, %c0_i32_1 : i32, i32, i32
  }
  func.func @transform_11(%arg0: i32) -> (i32, i32, i32) {
    %c0_i32 = arith.constant 0 : i32
    %c0_i32_0 = arith.constant 0 : i32
    %c0_i32_1 = arith.constant 0 : i32
    %c0_i32_2 = arith.constant 0 : i32
    return %c0_i32, %c0_i32_0, %c0_i32_1 : i32, i32, i32
  }
  func.func @transform_12(%arg0: i32) -> (i32, i32, i32) {
    %c0_i32 = arith.constant 0 : i32
    %c0_i32_0 = arith.constant 0 : i32
    %c0_i32_1 = arith.constant 0 : i32
    %c0_i32_2 = arith.constant 0 : i32
    return %c0_i32, %c0_i32_0, %c0_i32_1 : i32, i32, i32
  }
  func.func @transform_13(%arg0: i32) -> (i32, i32, i32) {
    %c0_i32 = arith.constant 0 : i32
    %c0_i32_0 = arith.constant 0 : i32
    %c0_i32_1 = arith.constant 0 : i32
    %c0_i32_2 = arith.constant 0 : i32
    return %c0_i32, %c0_i32_0, %c0_i32_1 : i32, i32, i32
  }
  func.func @transform_14(%arg0: i32) -> (i32, i32, i32) {
    %c0_i32 = arith.constant 0 : i32
    %c0_i32_0 = arith.constant 0 : i32
    %c0_i32_1 = arith.constant 0 : i32
    %c0_i32_2 = arith.constant 0 : i32
    return %c0_i32, %c0_i32_0, %c0_i32_1 : i32, i32, i32
  }
  func.func @transform_15(%arg0: i32) -> (i32, i32, i32) {
    %c0_i32 = arith.constant 0 : i32
    %c0_i32_0 = arith.constant 0 : i32
    %c0_i32_1 = arith.constant 0 : i32
    return %arg0, %c0_i32, %c0_i32_0 : i32, i32, i32
  }
}

module attributes {stable_mosaic.version = 11 : i64} {
  func.func @_decoder_stack_kernel(%arg0: i32, %arg1: memref<1x8x32xf32, #tpu.memory_space<vmem>>, %arg2: memref<1x8x32xf32, #tpu.memory_space<vmem>>, %arg3: memref<1x1x8xf32, #tpu.memory_space<vmem>>, %arg4: memref<8x8xf32, #tpu.memory_space<vmem>>, %arg5: memref<2x4x32x8xbf16, #tpu.memory_space<vmem>>, %arg6: memref<2x4x32x8xbf16, #tpu.memory_space<vmem>>, %arg7: memref<2x4x32x8xbf16, #tpu.memory_space<vmem>>, %arg8: memref<2x4x8x32xbf16, #tpu.memory_space<vmem>>, %arg9: memref<2x1x32xf32, #tpu.memory_space<vmem>>, %arg10: memref<2x1x32xf32, #tpu.memory_space<vmem>>, %arg11: memref<2x1x32xf32, #tpu.memory_space<vmem>>, %arg12: memref<2x4x32x8xbf16, #tpu.memory_space<vmem>>, %arg13: memref<2x4x32x8xbf16, #tpu.memory_space<vmem>>, %arg14: memref<2x4x32x8xbf16, #tpu.memory_space<vmem>>, %arg15: memref<2x4x8x32xbf16, #tpu.memory_space<vmem>>, %arg16: memref<2x1x32xf32, #tpu.memory_space<vmem>>, %arg17: memref<2x1x32xf32, #tpu.memory_space<vmem>>, %arg18: memref<2x1x32xf32, #tpu.memory_space<vmem>>, %arg19: memref<2x32x128xbf16, #tpu.memory_space<vmem>>, %arg20: memref<2x1x128xf32, #tpu.memory_space<vmem>>, %arg21: memref<2x128x32xbf16, #tpu.memory_space<vmem>>, %arg22: memref<2x1x32xf32, #tpu.memory_space<vmem>>, %arg23: memref<2x1x32xf32, #tpu.memory_space<vmem>>, %arg24: memref<2x1x32xf32, #tpu.memory_space<vmem>>, %arg25: memref<32x64xbf16, #tpu.memory_space<vmem>>, %arg26: memref<1x64xf32, #tpu.memory_space<vmem>>, %arg27: memref<1x8x64xf32, #tpu.memory_space<vmem>>) attributes {dimension_semantics = [#tpu.dimension_semantics<parallel>], iteration_bounds = array<i64: 2>, scalar_prefetch = 0 : i64, scratch_operands = 0 : i64, tpu.core_type = #tpu.core_type<tc>, window_params = [{transform_indices = @transform_0, window_bounds = array<i64: 1, 8, 32>}, {transform_indices = @transform_1, window_bounds = array<i64: 1, 8, 32>}, {transform_indices = @transform_2, window_bounds = array<i64: 1, 1, 8>}, {pipeline_mode = #tpu.pipeline_mode<synchronous>, transform_indices = @transform_3, window_bounds = array<i64: 8, 8>}, {pipeline_mode = #tpu.pipeline_mode<synchronous>, transform_indices = @transform_4, window_bounds = array<i64: 2, 4, 32, 8>}, {pipeline_mode = #tpu.pipeline_mode<synchronous>, transform_indices = @transform_5, window_bounds = array<i64: 2, 4, 32, 8>}, {pipeline_mode = #tpu.pipeline_mode<synchronous>, transform_indices = @transform_6, window_bounds = array<i64: 2, 4, 32, 8>}, {pipeline_mode = #tpu.pipeline_mode<synchronous>, transform_indices = @transform_7, window_bounds = array<i64: 2, 4, 8, 32>}, {pipeline_mode = #tpu.pipeline_mode<synchronous>, transform_indices = @transform_8, window_bounds = array<i64: 2, 1, 32>}, {pipeline_mode = #tpu.pipeline_mode<synchronous>, transform_indices = @transform_9, window_bounds = array<i64: 2, 1, 32>}, {pipeline_mode = #tpu.pipeline_mode<synchronous>, transform_indices = @transform_10, window_bounds = array<i64: 2, 1, 32>}, {pipeline_mode = #tpu.pipeline_mode<synchronous>, transform_indices = @transform_11, window_bounds = array<i64: 2, 4, 32, 8>}, {pipeline_mode = #tpu.pipeline_mode<synchronous>, transform_indices = @transform_12, window_bounds = array<i64: 2, 4, 32, 8>}, {pipeline_mode = #tpu.pipeline_mode<synchronous>, transform_indices = @transform_13, window_bounds = array<i64: 2, 4, 32, 8>}, {pipeline_mode = #tpu.pipeline_mode<synchronous>, transform_indices = @transform_14, window_bounds = array<i64: 2, 4, 8, 32>}, {pipeline_mode = #tpu.pipeline_mode<synchronous>, transform_indices = @transform_15, window_bounds = array<i64: 2, 1, 32>}, {pipeline_mode = #tpu.pipeline_mode<synchronous>, transform_indices = @transform_16, window_bounds = array<i64: 2, 1, 32>}, {pipeline_mode = #tpu.pipeline_mode<synchronous>, transform_indices = @transform_17, window_bounds = array<i64: 2, 1, 32>}, {pipeline_mode = #tpu.pipeline_mode<synchronous>, transform_indices = @transform_18, window_bounds = array<i64: 2, 32, 128>}, {pipeline_mode = #tpu.pipeline_mode<synchronous>, transform_indices = @transform_19, window_bounds = array<i64: 2, 1, 128>}, {pipeline_mode = #tpu.pipeline_mode<synchronous>, transform_indices = @transform_20, window_bounds = array<i64: 2, 128, 32>}, {pipeline_mode = #tpu.pipeline_mode<synchronous>, transform_indices = @transform_21, window_bounds = array<i64: 2, 1, 32>}, {pipeline_mode = #tpu.pipeline_mode<synchronous>, transform_indices = @transform_22, window_bounds = array<i64: 2, 1, 32>}, {pipeline_mode = #tpu.pipeline_mode<synchronous>, transform_indices = @transform_23, window_bounds = array<i64: 2, 1, 32>}, {pipeline_mode = #tpu.pipeline_mode<synchronous>, transform_indices = @transform_24, window_bounds = array<i64: 32, 64>}, {pipeline_mode = #tpu.pipeline_mode<synchronous>, transform_indices = @transform_25, window_bounds = array<i64: 1, 64>}, {transform_indices = @transform_26, window_bounds = array<i64: 1, 8, 64>}]} {
    %c0 = arith.constant 0 : index
    %c0_0 = arith.constant 0 : index
    %c0_1 = arith.constant 0 : index
    %0 = vector.load %arg1[%c0, %c0_0, %c0_1] : memref<1x8x32xf32, #tpu.memory_space<vmem>>, vector<1x8x32xf32>
    %1 = vector.shape_cast %0 : vector<1x8x32xf32> to vector<8x32xf32>
    %c0_2 = arith.constant 0 : index
    %c0_3 = arith.constant 0 : index
    %c0_4 = arith.constant 0 : index
    %2 = vector.load %arg2[%c0_2, %c0_3, %c0_4] : memref<1x8x32xf32, #tpu.memory_space<vmem>>, vector<1x8x32xf32>
    %3 = vector.shape_cast %2 : vector<1x8x32xf32> to vector<8x32xf32>
    %4 = arith.truncf %3 : vector<8x32xf32> to vector<8x32xbf16>
    %c0_5 = arith.constant 0 : index
    %c0_6 = arith.constant 0 : index
    %5 = vector.load %arg4[%c0_5, %c0_6] : memref<8x8xf32, #tpu.memory_space<vmem>>, vector<8x8xf32>
    %cst = arith.constant -1.000000e+09 : f32
    %6 = vector.broadcast %cst : f32 to vector<8x8xf32>
    %7 = arith.mulf %5, %6 : vector<8x8xf32>
    %c0_7 = arith.constant 0 : index
    %c0_8 = arith.constant 0 : index
    %c0_9 = arith.constant 0 : index
    %8 = vector.load %arg3[%c0_7, %c0_8, %c0_9] : memref<1x1x8xf32, #tpu.memory_space<vmem>>, vector<1x1x8xf32>
    %9 = vector.shape_cast %8 : vector<1x1x8xf32> to vector<1x8xf32>
    %cst_10 = arith.constant -1.000000e+09 : f32
    %10 = vector.broadcast %cst_10 : f32 to vector<1x8xf32>
    %11 = arith.mulf %9, %10 : vector<1x8xf32>
    %12 = arith.truncf %1 : vector<8x32xf32> to vector<8x32xbf16>
    %c0_11 = arith.constant 0 : index
    %c0_12 = arith.constant 0 : index
    %c0_13 = arith.constant 0 : index
    %c0_14 = arith.constant 0 : index
    %13 = vector.load %arg5[%c0_11, %c0_12, %c0_13, %c0_14] : memref<2x4x32x8xbf16, #tpu.memory_space<vmem>>, vector<1x4x32x8xbf16>
    %14 = vector.shape_cast %13 : vector<1x4x32x8xbf16> to vector<4x32x8xbf16>
    %c0_15 = arith.constant 0 : index
    %c0_16 = arith.constant 0 : index
    %c0_17 = arith.constant 0 : index
    %c0_18 = arith.constant 0 : index
    %15 = vector.load %arg6[%c0_15, %c0_16, %c0_17, %c0_18] : memref<2x4x32x8xbf16, #tpu.memory_space<vmem>>, vector<1x4x32x8xbf16>
    %16 = vector.shape_cast %15 : vector<1x4x32x8xbf16> to vector<4x32x8xbf16>
    %c0_19 = arith.constant 0 : index
    %c0_20 = arith.constant 0 : index
    %c0_21 = arith.constant 0 : index
    %c0_22 = arith.constant 0 : index
    %17 = vector.load %arg7[%c0_19, %c0_20, %c0_21, %c0_22] : memref<2x4x32x8xbf16, #tpu.memory_space<vmem>>, vector<1x4x32x8xbf16>
    %18 = vector.shape_cast %17 : vector<1x4x32x8xbf16> to vector<4x32x8xbf16>
    %c0_23 = arith.constant 0 : index
    %c0_24 = arith.constant 0 : index
    %c0_25 = arith.constant 0 : index
    %c0_26 = arith.constant 0 : index
    %19 = vector.load %arg8[%c0_23, %c0_24, %c0_25, %c0_26] : memref<2x4x8x32xbf16, #tpu.memory_space<vmem>>, vector<1x4x8x32xbf16>
    %20 = vector.shape_cast %19 : vector<1x4x8x32xbf16> to vector<4x8x32xbf16>
    %c0_27 = arith.constant 0 : index
    %c0_28 = arith.constant 0 : index
    %c0_29 = arith.constant 0 : index
    %21 = vector.load %arg9[%c0_27, %c0_28, %c0_29] : memref<2x1x32xf32, #tpu.memory_space<vmem>>, vector<1x1x32xf32>
    %22 = vector.shape_cast %21 : vector<1x1x32xf32> to vector<1x32xf32>
    %23 = arith.truncf %1 : vector<8x32xf32> to vector<8x32xbf16>
    %24 = vector.shape_cast %23 : vector<8x32xbf16> to vector<1x8x32xbf16>
    %25 = vector.shape_cast %24 : vector<1x8x32xbf16> to vector<1x8x32xbf16>
    %26 = vector.broadcast %25 : vector<1x8x32xbf16> to vector<4x8x32xbf16>
    %27 = vector.shape_cast %12 : vector<8x32xbf16> to vector<1x8x32xbf16>
    %28 = vector.shape_cast %27 : vector<1x8x32xbf16> to vector<1x8x32xbf16>
    %29 = vector.broadcast %28 : vector<1x8x32xbf16> to vector<4x8x32xbf16>
    %cst_30 = arith.constant dense<0.000000e+00> : vector<4x8x8xf32>
    %30 = tpu.matmul %26, %14, %cst_30 {dimension_numbers = #tpu.dot_dimension_numbers<[2], [1], [1], [2], [0, 0, 0, 1, 1, 2], [0], [0]>} : vector<4x8x32xbf16>, vector<4x32x8xbf16>, vector<4x8x8xf32> -> vector<4x8x8xf32>
    %cst_31 = arith.constant dense<0.000000e+00> : vector<4x8x8xf32>
    %31 = tpu.matmul %29, %16, %cst_31 {dimension_numbers = #tpu.dot_dimension_numbers<[2], [1], [1], [2], [0, 0, 0, 1, 1, 2], [0], [0]>} : vector<4x8x32xbf16>, vector<4x32x8xbf16>, vector<4x8x8xf32> -> vector<4x8x8xf32>
    %cst_32 = arith.constant dense<0.000000e+00> : vector<4x8x8xf32>
    %32 = tpu.matmul %29, %18, %cst_32 {dimension_numbers = #tpu.dot_dimension_numbers<[2], [1], [1], [2], [0, 0, 0, 1, 1, 2], [0], [0]>} : vector<4x8x32xbf16>, vector<4x32x8xbf16>, vector<4x8x8xf32> -> vector<4x8x8xf32>
    %33 = arith.truncf %30 : vector<4x8x8xf32> to vector<4x8x8xbf16>
    %34 = arith.truncf %31 : vector<4x8x8xf32> to vector<4x8x8xbf16>
    %cst_33 = arith.constant dense<0.000000e+00> : vector<4x8x8xf32>
    %35 = tpu.matmul %33, %34, %cst_33 {dimension_numbers = #tpu.dot_dimension_numbers<[2], [2], [1], [1], [0, 0, 0, 1, 1, 1], [0], [0]>} : vector<4x8x8xbf16>, vector<4x8x8xbf16>, vector<4x8x8xf32> -> vector<4x8x8xf32>
    %36 = vector.shape_cast %7 : vector<8x8xf32> to vector<1x8x8xf32>
    %37 = vector.broadcast %36 : vector<1x8x8xf32> to vector<4x8x8xf32>
    %38 = arith.addf %35, %37 : vector<4x8x8xf32>
    %cst_34 = arith.constant dense<0xFF800000> : vector<4x8xf32>
    %39 = vector.multi_reduction <maximumf>, %38, %cst_34 [2] : vector<4x8x8xf32> to vector<4x8xf32>
    %40 = vector.shape_cast %39 : vector<4x8xf32> to vector<4x8x1xf32>
    %41 = vector.broadcast %40 : vector<4x8x1xf32> to vector<4x8x8xf32>
    %42 = arith.subf %38, %41 : vector<4x8x8xf32>
    %43 = math.exp %42 : vector<4x8x8xf32>
    %cst_35 = arith.constant dense<0.000000e+00> : vector<4x8xf32>
    %44 = vector.multi_reduction <add>, %43, %cst_35 [2] : vector<4x8x8xf32> to vector<4x8xf32>
    %45 = vector.shape_cast %44 : vector<4x8xf32> to vector<4x8x1xf32>
    %46 = vector.broadcast %45 : vector<4x8x1xf32> to vector<4x8x8xf32>
    %47 = arith.divf %43, %46 : vector<4x8x8xf32>
    %48 = arith.truncf %47 : vector<4x8x8xf32> to vector<4x8x8xbf16>
    %49 = arith.truncf %32 : vector<4x8x8xf32> to vector<4x8x8xbf16>
    %cst_36 = arith.constant dense<0.000000e+00> : vector<4x8x8xf32>
    %50 = tpu.matmul %48, %49, %cst_36 {dimension_numbers = #tpu.dot_dimension_numbers<[2], [1], [1], [2], [0, 0, 0, 1, 1, 2], [0], [0]>} : vector<4x8x8xbf16>, vector<4x8x8xbf16>, vector<4x8x8xf32> -> vector<4x8x8xf32>
    %51 = arith.truncf %50 : vector<4x8x8xf32> to vector<4x8x8xbf16>
    %cst_37 = arith.constant dense<0.000000e+00> : vector<4x8x32xf32>
    %52 = tpu.matmul %51, %20, %cst_37 {dimension_numbers = #tpu.dot_dimension_numbers<[2], [1], [1], [2], [0, 0, 0, 1, 1, 2], [0], [0]>} : vector<4x8x8xbf16>, vector<4x8x32xbf16>, vector<4x8x32xf32> -> vector<4x8x32xf32>
    %cst_38 = arith.constant dense<0.000000e+00> : vector<8x32xf32>
    %53 = vector.multi_reduction <add>, %52, %cst_38 [0] : vector<4x8x32xf32> to vector<8x32xf32>
    %54 = vector.broadcast %22 : vector<1x32xf32> to vector<8x32xf32>
    %55 = arith.addf %53, %54 : vector<8x32xf32>
    %56 = arith.addf %55, %1 : vector<8x32xf32>
    %c0_39 = arith.constant 0 : index
    %c0_40 = arith.constant 0 : index
    %c0_41 = arith.constant 0 : index
    %57 = vector.load %arg10[%c0_39, %c0_40, %c0_41] : memref<2x1x32xf32, #tpu.memory_space<vmem>>, vector<1x1x32xf32>
    %58 = vector.shape_cast %57 : vector<1x1x32xf32> to vector<1x32xf32>
    %c0_42 = arith.constant 0 : index
    %c0_43 = arith.constant 0 : index
    %c0_44 = arith.constant 0 : index
    %59 = vector.load %arg11[%c0_42, %c0_43, %c0_44] : memref<2x1x32xf32, #tpu.memory_space<vmem>>, vector<1x1x32xf32>
    %60 = vector.shape_cast %59 : vector<1x1x32xf32> to vector<1x32xf32>
    %cst_45 = arith.constant dense<0.000000e+00> : vector<8xf32>
    %61 = vector.multi_reduction <add>, %56, %cst_45 [1] : vector<8x32xf32> to vector<8xf32>
    %62 = vector.shape_cast %61 : vector<8xf32> to vector<8x1xf32>
    %cst_46 = arith.constant 3.200000e+01 : f32
    %63 = vector.broadcast %cst_46 : f32 to vector<8x1xf32>
    %64 = arith.divf %62, %63 : vector<8x1xf32>
    %65 = vector.broadcast %64 : vector<8x1xf32> to vector<8x32xf32>
    %66 = arith.subf %56, %65 : vector<8x32xf32>
    %67 = arith.mulf %66, %66 : vector<8x32xf32>
    %cst_47 = arith.constant dense<0.000000e+00> : vector<8xf32>
    %68 = vector.multi_reduction <add>, %67, %cst_47 [1] : vector<8x32xf32> to vector<8xf32>
    %69 = vector.shape_cast %68 : vector<8xf32> to vector<8x1xf32>
    %cst_48 = arith.constant 3.200000e+01 : f32
    %70 = vector.broadcast %cst_48 : f32 to vector<8x1xf32>
    %71 = arith.divf %69, %70 : vector<8x1xf32>
    %72 = vector.broadcast %64 : vector<8x1xf32> to vector<8x32xf32>
    %73 = arith.subf %56, %72 : vector<8x32xf32>
    %cst_49 = arith.constant 9.99999974E-6 : f32
    %74 = vector.broadcast %cst_49 : f32 to vector<8x1xf32>
    %75 = arith.addf %71, %74 : vector<8x1xf32>
    %76 = math.rsqrt %75 : vector<8x1xf32>
    %77 = vector.broadcast %76 : vector<8x1xf32> to vector<8x32xf32>
    %78 = arith.mulf %73, %77 : vector<8x32xf32>
    %79 = vector.broadcast %58 : vector<1x32xf32> to vector<8x32xf32>
    %80 = arith.mulf %78, %79 : vector<8x32xf32>
    %81 = vector.broadcast %60 : vector<1x32xf32> to vector<8x32xf32>
    %82 = arith.addf %80, %81 : vector<8x32xf32>
    %c0_50 = arith.constant 0 : index
    %c0_51 = arith.constant 0 : index
    %c0_52 = arith.constant 0 : index
    %c0_53 = arith.constant 0 : index
    %83 = vector.load %arg12[%c0_50, %c0_51, %c0_52, %c0_53] : memref<2x4x32x8xbf16, #tpu.memory_space<vmem>>, vector<1x4x32x8xbf16>
    %84 = vector.shape_cast %83 : vector<1x4x32x8xbf16> to vector<4x32x8xbf16>
    %c0_54 = arith.constant 0 : index
    %c0_55 = arith.constant 0 : index
    %c0_56 = arith.constant 0 : index
    %c0_57 = arith.constant 0 : index
    %85 = vector.load %arg13[%c0_54, %c0_55, %c0_56, %c0_57] : memref<2x4x32x8xbf16, #tpu.memory_space<vmem>>, vector<1x4x32x8xbf16>
    %86 = vector.shape_cast %85 : vector<1x4x32x8xbf16> to vector<4x32x8xbf16>
    %c0_58 = arith.constant 0 : index
    %c0_59 = arith.constant 0 : index
    %c0_60 = arith.constant 0 : index
    %c0_61 = arith.constant 0 : index
    %87 = vector.load %arg14[%c0_58, %c0_59, %c0_60, %c0_61] : memref<2x4x32x8xbf16, #tpu.memory_space<vmem>>, vector<1x4x32x8xbf16>
    %88 = vector.shape_cast %87 : vector<1x4x32x8xbf16> to vector<4x32x8xbf16>
    %c0_62 = arith.constant 0 : index
    %c0_63 = arith.constant 0 : index
    %c0_64 = arith.constant 0 : index
    %c0_65 = arith.constant 0 : index
    %89 = vector.load %arg15[%c0_62, %c0_63, %c0_64, %c0_65] : memref<2x4x8x32xbf16, #tpu.memory_space<vmem>>, vector<1x4x8x32xbf16>
    %90 = vector.shape_cast %89 : vector<1x4x8x32xbf16> to vector<4x8x32xbf16>
    %c0_66 = arith.constant 0 : index
    %c0_67 = arith.constant 0 : index
    %c0_68 = arith.constant 0 : index
    %91 = vector.load %arg16[%c0_66, %c0_67, %c0_68] : memref<2x1x32xf32, #tpu.memory_space<vmem>>, vector<1x1x32xf32>
    %92 = vector.shape_cast %91 : vector<1x1x32xf32> to vector<1x32xf32>
    %93 = arith.truncf %82 : vector<8x32xf32> to vector<8x32xbf16>
    %94 = vector.shape_cast %93 : vector<8x32xbf16> to vector<1x8x32xbf16>
    %95 = vector.shape_cast %94 : vector<1x8x32xbf16> to vector<1x8x32xbf16>
    %96 = vector.broadcast %95 : vector<1x8x32xbf16> to vector<4x8x32xbf16>
    %97 = vector.shape_cast %4 : vector<8x32xbf16> to vector<1x8x32xbf16>
    %98 = vector.shape_cast %97 : vector<1x8x32xbf16> to vector<1x8x32xbf16>
    %99 = vector.broadcast %98 : vector<1x8x32xbf16> to vector<4x8x32xbf16>
    %cst_69 = arith.constant dense<0.000000e+00> : vector<4x8x8xf32>
    %100 = tpu.matmul %96, %84, %cst_69 {dimension_numbers = #tpu.dot_dimension_numbers<[2], [1], [1], [2], [0, 0, 0, 1, 1, 2], [0], [0]>} : vector<4x8x32xbf16>, vector<4x32x8xbf16>, vector<4x8x8xf32> -> vector<4x8x8xf32>
    %cst_70 = arith.constant dense<0.000000e+00> : vector<4x8x8xf32>
    %101 = tpu.matmul %99, %86, %cst_70 {dimension_numbers = #tpu.dot_dimension_numbers<[2], [1], [1], [2], [0, 0, 0, 1, 1, 2], [0], [0]>} : vector<4x8x32xbf16>, vector<4x32x8xbf16>, vector<4x8x8xf32> -> vector<4x8x8xf32>
    %cst_71 = arith.constant dense<0.000000e+00> : vector<4x8x8xf32>
    %102 = tpu.matmul %99, %88, %cst_71 {dimension_numbers = #tpu.dot_dimension_numbers<[2], [1], [1], [2], [0, 0, 0, 1, 1, 2], [0], [0]>} : vector<4x8x32xbf16>, vector<4x32x8xbf16>, vector<4x8x8xf32> -> vector<4x8x8xf32>
    %103 = arith.truncf %100 : vector<4x8x8xf32> to vector<4x8x8xbf16>
    %104 = arith.truncf %101 : vector<4x8x8xf32> to vector<4x8x8xbf16>
    %cst_72 = arith.constant dense<0.000000e+00> : vector<4x8x8xf32>
    %105 = tpu.matmul %103, %104, %cst_72 {dimension_numbers = #tpu.dot_dimension_numbers<[2], [2], [1], [1], [0, 0, 0, 1, 1, 1], [0], [0]>} : vector<4x8x8xbf16>, vector<4x8x8xbf16>, vector<4x8x8xf32> -> vector<4x8x8xf32>
    %106 = vector.shape_cast %11 : vector<1x8xf32> to vector<1x1x8xf32>
    %107 = vector.broadcast %106 : vector<1x1x8xf32> to vector<4x8x8xf32>
    %108 = arith.addf %105, %107 : vector<4x8x8xf32>
    %cst_73 = arith.constant dense<0xFF800000> : vector<4x8xf32>
    %109 = vector.multi_reduction <maximumf>, %108, %cst_73 [2] : vector<4x8x8xf32> to vector<4x8xf32>
    %110 = vector.shape_cast %109 : vector<4x8xf32> to vector<4x8x1xf32>
    %111 = vector.broadcast %110 : vector<4x8x1xf32> to vector<4x8x8xf32>
    %112 = arith.subf %108, %111 : vector<4x8x8xf32>
    %113 = math.exp %112 : vector<4x8x8xf32>
    %cst_74 = arith.constant dense<0.000000e+00> : vector<4x8xf32>
    %114 = vector.multi_reduction <add>, %113, %cst_74 [2] : vector<4x8x8xf32> to vector<4x8xf32>
    %115 = vector.shape_cast %114 : vector<4x8xf32> to vector<4x8x1xf32>
    %116 = vector.broadcast %115 : vector<4x8x1xf32> to vector<4x8x8xf32>
    %117 = arith.divf %113, %116 : vector<4x8x8xf32>
    %118 = arith.truncf %117 : vector<4x8x8xf32> to vector<4x8x8xbf16>
    %119 = arith.truncf %102 : vector<4x8x8xf32> to vector<4x8x8xbf16>
    %cst_75 = arith.constant dense<0.000000e+00> : vector<4x8x8xf32>
    %120 = tpu.matmul %118, %119, %cst_75 {dimension_numbers = #tpu.dot_dimension_numbers<[2], [1], [1], [2], [0, 0, 0, 1, 1, 2], [0], [0]>} : vector<4x8x8xbf16>, vector<4x8x8xbf16>, vector<4x8x8xf32> -> vector<4x8x8xf32>
    %121 = arith.truncf %120 : vector<4x8x8xf32> to vector<4x8x8xbf16>
    %cst_76 = arith.constant dense<0.000000e+00> : vector<4x8x32xf32>
    %122 = tpu.matmul %121, %90, %cst_76 {dimension_numbers = #tpu.dot_dimension_numbers<[2], [1], [1], [2], [0, 0, 0, 1, 1, 2], [0], [0]>} : vector<4x8x8xbf16>, vector<4x8x32xbf16>, vector<4x8x32xf32> -> vector<4x8x32xf32>
    %cst_77 = arith.constant dense<0.000000e+00> : vector<8x32xf32>
    %123 = vector.multi_reduction <add>, %122, %cst_77 [0] : vector<4x8x32xf32> to vector<8x32xf32>
    %124 = vector.broadcast %92 : vector<1x32xf32> to vector<8x32xf32>
    %125 = arith.addf %123, %124 : vector<8x32xf32>
    %126 = arith.addf %125, %82 : vector<8x32xf32>
    %c0_78 = arith.constant 0 : index
    %c0_79 = arith.constant 0 : index
    %c0_80 = arith.constant 0 : index
    %127 = vector.load %arg17[%c0_78, %c0_79, %c0_80] : memref<2x1x32xf32, #tpu.memory_space<vmem>>, vector<1x1x32xf32>
    %128 = vector.shape_cast %127 : vector<1x1x32xf32> to vector<1x32xf32>
    %c0_81 = arith.constant 0 : index
    %c0_82 = arith.constant 0 : index
    %c0_83 = arith.constant 0 : index
    %129 = vector.load %arg18[%c0_81, %c0_82, %c0_83] : memref<2x1x32xf32, #tpu.memory_space<vmem>>, vector<1x1x32xf32>
    %130 = vector.shape_cast %129 : vector<1x1x32xf32> to vector<1x32xf32>
    %cst_84 = arith.constant dense<0.000000e+00> : vector<8xf32>
    %131 = vector.multi_reduction <add>, %126, %cst_84 [1] : vector<8x32xf32> to vector<8xf32>
    %132 = vector.shape_cast %131 : vector<8xf32> to vector<8x1xf32>
    %cst_85 = arith.constant 3.200000e+01 : f32
    %133 = vector.broadcast %cst_85 : f32 to vector<8x1xf32>
    %134 = arith.divf %132, %133 : vector<8x1xf32>
    %135 = vector.broadcast %134 : vector<8x1xf32> to vector<8x32xf32>
    %136 = arith.subf %126, %135 : vector<8x32xf32>
    %137 = arith.mulf %136, %136 : vector<8x32xf32>
    %cst_86 = arith.constant dense<0.000000e+00> : vector<8xf32>
    %138 = vector.multi_reduction <add>, %137, %cst_86 [1] : vector<8x32xf32> to vector<8xf32>
    %139 = vector.shape_cast %138 : vector<8xf32> to vector<8x1xf32>
    %cst_87 = arith.constant 3.200000e+01 : f32
    %140 = vector.broadcast %cst_87 : f32 to vector<8x1xf32>
    %141 = arith.divf %139, %140 : vector<8x1xf32>
    %142 = vector.broadcast %134 : vector<8x1xf32> to vector<8x32xf32>
    %143 = arith.subf %126, %142 : vector<8x32xf32>
    %cst_88 = arith.constant 9.99999974E-6 : f32
    %144 = vector.broadcast %cst_88 : f32 to vector<8x1xf32>
    %145 = arith.addf %141, %144 : vector<8x1xf32>
    %146 = math.rsqrt %145 : vector<8x1xf32>
    %147 = vector.broadcast %146 : vector<8x1xf32> to vector<8x32xf32>
    %148 = arith.mulf %143, %147 : vector<8x32xf32>
    %149 = vector.broadcast %128 : vector<1x32xf32> to vector<8x32xf32>
    %150 = arith.mulf %148, %149 : vector<8x32xf32>
    %151 = vector.broadcast %130 : vector<1x32xf32> to vector<8x32xf32>
    %152 = arith.addf %150, %151 : vector<8x32xf32>
    %c0_89 = arith.constant 0 : index
    %c0_90 = arith.constant 0 : index
    %c0_91 = arith.constant 0 : index
    %153 = vector.load %arg19[%c0_89, %c0_90, %c0_91] : memref<2x32x128xbf16, #tpu.memory_space<vmem>>, vector<1x32x128xbf16>
    %154 = vector.shape_cast %153 : vector<1x32x128xbf16> to vector<32x128xbf16>
    %c0_92 = arith.constant 0 : index
    %c0_93 = arith.constant 0 : index
    %c0_94 = arith.constant 0 : index
    %155 = vector.load %arg20[%c0_92, %c0_93, %c0_94] : memref<2x1x128xf32, #tpu.memory_space<vmem>>, vector<1x1x128xf32>
    %156 = vector.shape_cast %155 : vector<1x1x128xf32> to vector<1x128xf32>
    %c0_95 = arith.constant 0 : index
    %c0_96 = arith.constant 0 : index
    %c0_97 = arith.constant 0 : index
    %157 = vector.load %arg21[%c0_95, %c0_96, %c0_97] : memref<2x128x32xbf16, #tpu.memory_space<vmem>>, vector<1x128x32xbf16>
    %158 = vector.shape_cast %157 : vector<1x128x32xbf16> to vector<128x32xbf16>
    %c0_98 = arith.constant 0 : index
    %c0_99 = arith.constant 0 : index
    %c0_100 = arith.constant 0 : index
    %159 = vector.load %arg22[%c0_98, %c0_99, %c0_100] : memref<2x1x32xf32, #tpu.memory_space<vmem>>, vector<1x1x32xf32>
    %160 = vector.shape_cast %159 : vector<1x1x32xf32> to vector<1x32xf32>
    %161 = arith.truncf %152 : vector<8x32xf32> to vector<8x32xbf16>
    %cst_101 = arith.constant dense<0.000000e+00> : vector<8x128xf32>
    %162 = tpu.matmul %161, %154, %cst_101 {dimension_numbers = #tpu.dot_dimension_numbers<[1], [0], [0], [1], [0, 0, 1, 1], [], []>} : vector<8x32xbf16>, vector<32x128xbf16>, vector<8x128xf32> -> vector<8x128xf32>
    %163 = vector.broadcast %156 : vector<1x128xf32> to vector<8x128xf32>
    %164 = arith.addf %162, %163 : vector<8x128xf32>
    %cst_102 = arith.constant 0.000000e+00 : f32
    %165 = vector.broadcast %cst_102 : f32 to vector<8x128xf32>
    %166 = arith.maximumf %164, %165 : vector<8x128xf32>
    %167 = arith.truncf %166 : vector<8x128xf32> to vector<8x128xbf16>
    %cst_103 = arith.constant dense<0.000000e+00> : vector<8x32xf32>
    %168 = tpu.matmul %167, %158, %cst_103 {dimension_numbers = #tpu.dot_dimension_numbers<[1], [0], [0], [1], [0, 0, 1, 1], [], []>} : vector<8x128xbf16>, vector<128x32xbf16>, vector<8x32xf32> -> vector<8x32xf32>
    %169 = vector.broadcast %160 : vector<1x32xf32> to vector<8x32xf32>
    %170 = arith.addf %168, %169 : vector<8x32xf32>
    %171 = arith.addf %170, %152 : vector<8x32xf32>
    %c0_104 = arith.constant 0 : index
    %c0_105 = arith.constant 0 : index
    %c0_106 = arith.constant 0 : index
    %172 = vector.load %arg23[%c0_104, %c0_105, %c0_106] : memref<2x1x32xf32, #tpu.memory_space<vmem>>, vector<1x1x32xf32>
    %173 = vector.shape_cast %172 : vector<1x1x32xf32> to vector<1x32xf32>
    %c0_107 = arith.constant 0 : index
    %c0_108 = arith.constant 0 : index
    %c0_109 = arith.constant 0 : index
    %174 = vector.load %arg24[%c0_107, %c0_108, %c0_109] : memref<2x1x32xf32, #tpu.memory_space<vmem>>, vector<1x1x32xf32>
    %175 = vector.shape_cast %174 : vector<1x1x32xf32> to vector<1x32xf32>
    %cst_110 = arith.constant dense<0.000000e+00> : vector<8xf32>
    %176 = vector.multi_reduction <add>, %171, %cst_110 [1] : vector<8x32xf32> to vector<8xf32>
    %177 = vector.shape_cast %176 : vector<8xf32> to vector<8x1xf32>
    %cst_111 = arith.constant 3.200000e+01 : f32
    %178 = vector.broadcast %cst_111 : f32 to vector<8x1xf32>
    %179 = arith.divf %177, %178 : vector<8x1xf32>
    %180 = vector.broadcast %179 : vector<8x1xf32> to vector<8x32xf32>
    %181 = arith.subf %171, %180 : vector<8x32xf32>
    %182 = arith.mulf %181, %181 : vector<8x32xf32>
    %cst_112 = arith.constant dense<0.000000e+00> : vector<8xf32>
    %183 = vector.multi_reduction <add>, %182, %cst_112 [1] : vector<8x32xf32> to vector<8xf32>
    %184 = vector.shape_cast %183 : vector<8xf32> to vector<8x1xf32>
    %cst_113 = arith.constant 3.200000e+01 : f32
    %185 = vector.broadcast %cst_113 : f32 to vector<8x1xf32>
    %186 = arith.divf %184, %185 : vector<8x1xf32>
    %187 = vector.broadcast %179 : vector<8x1xf32> to vector<8x32xf32>
    %188 = arith.subf %171, %187 : vector<8x32xf32>
    %cst_114 = arith.constant 9.99999974E-6 : f32
    %189 = vector.broadcast %cst_114 : f32 to vector<8x1xf32>
    %190 = arith.addf %186, %189 : vector<8x1xf32>
    %191 = math.rsqrt %190 : vector<8x1xf32>
    %192 = vector.broadcast %191 : vector<8x1xf32> to vector<8x32xf32>
    %193 = arith.mulf %188, %192 : vector<8x32xf32>
    %194 = vector.broadcast %173 : vector<1x32xf32> to vector<8x32xf32>
    %195 = arith.mulf %193, %194 : vector<8x32xf32>
    %196 = vector.broadcast %175 : vector<1x32xf32> to vector<8x32xf32>
    %197 = arith.addf %195, %196 : vector<8x32xf32>
    %198 = arith.truncf %197 : vector<8x32xf32> to vector<8x32xbf16>
    %c1 = arith.constant 1 : index
    %c0_115 = arith.constant 0 : index
    %c0_116 = arith.constant 0 : index
    %c0_117 = arith.constant 0 : index
    %199 = vector.load %arg5[%c1, %c0_115, %c0_116, %c0_117] : memref<2x4x32x8xbf16, #tpu.memory_space<vmem>>, vector<1x4x32x8xbf16>
    %200 = vector.shape_cast %199 : vector<1x4x32x8xbf16> to vector<4x32x8xbf16>
    %c1_118 = arith.constant 1 : index
    %c0_119 = arith.constant 0 : index
    %c0_120 = arith.constant 0 : index
    %c0_121 = arith.constant 0 : index
    %201 = vector.load %arg6[%c1_118, %c0_119, %c0_120, %c0_121] : memref<2x4x32x8xbf16, #tpu.memory_space<vmem>>, vector<1x4x32x8xbf16>
    %202 = vector.shape_cast %201 : vector<1x4x32x8xbf16> to vector<4x32x8xbf16>
    %c1_122 = arith.constant 1 : index
    %c0_123 = arith.constant 0 : index
    %c0_124 = arith.constant 0 : index
    %c0_125 = arith.constant 0 : index
    %203 = vector.load %arg7[%c1_122, %c0_123, %c0_124, %c0_125] : memref<2x4x32x8xbf16, #tpu.memory_space<vmem>>, vector<1x4x32x8xbf16>
    %204 = vector.shape_cast %203 : vector<1x4x32x8xbf16> to vector<4x32x8xbf16>
    %c1_126 = arith.constant 1 : index
    %c0_127 = arith.constant 0 : index
    %c0_128 = arith.constant 0 : index
    %c0_129 = arith.constant 0 : index
    %205 = vector.load %arg8[%c1_126, %c0_127, %c0_128, %c0_129] : memref<2x4x8x32xbf16, #tpu.memory_space<vmem>>, vector<1x4x8x32xbf16>
    %206 = vector.shape_cast %205 : vector<1x4x8x32xbf16> to vector<4x8x32xbf16>
    %c1_130 = arith.constant 1 : index
    %c0_131 = arith.constant 0 : index
    %c0_132 = arith.constant 0 : index
    %207 = vector.load %arg9[%c1_130, %c0_131, %c0_132] : memref<2x1x32xf32, #tpu.memory_space<vmem>>, vector<1x1x32xf32>
    %208 = vector.shape_cast %207 : vector<1x1x32xf32> to vector<1x32xf32>
    %209 = arith.truncf %197 : vector<8x32xf32> to vector<8x32xbf16>
    %210 = vector.shape_cast %209 : vector<8x32xbf16> to vector<1x8x32xbf16>
    %211 = vector.shape_cast %210 : vector<1x8x32xbf16> to vector<1x8x32xbf16>
    %212 = vector.broadcast %211 : vector<1x8x32xbf16> to vector<4x8x32xbf16>
    %213 = vector.shape_cast %198 : vector<8x32xbf16> to vector<1x8x32xbf16>
    %214 = vector.shape_cast %213 : vector<1x8x32xbf16> to vector<1x8x32xbf16>
    %215 = vector.broadcast %214 : vector<1x8x32xbf16> to vector<4x8x32xbf16>
    %cst_133 = arith.constant dense<0.000000e+00> : vector<4x8x8xf32>
    %216 = tpu.matmul %212, %200, %cst_133 {dimension_numbers = #tpu.dot_dimension_numbers<[2], [1], [1], [2], [0, 0, 0, 1, 1, 2], [0], [0]>} : vector<4x8x32xbf16>, vector<4x32x8xbf16>, vector<4x8x8xf32> -> vector<4x8x8xf32>
    %cst_134 = arith.constant dense<0.000000e+00> : vector<4x8x8xf32>
    %217 = tpu.matmul %215, %202, %cst_134 {dimension_numbers = #tpu.dot_dimension_numbers<[2], [1], [1], [2], [0, 0, 0, 1, 1, 2], [0], [0]>} : vector<4x8x32xbf16>, vector<4x32x8xbf16>, vector<4x8x8xf32> -> vector<4x8x8xf32>
    %cst_135 = arith.constant dense<0.000000e+00> : vector<4x8x8xf32>
    %218 = tpu.matmul %215, %204, %cst_135 {dimension_numbers = #tpu.dot_dimension_numbers<[2], [1], [1], [2], [0, 0, 0, 1, 1, 2], [0], [0]>} : vector<4x8x32xbf16>, vector<4x32x8xbf16>, vector<4x8x8xf32> -> vector<4x8x8xf32>
    %219 = arith.truncf %216 : vector<4x8x8xf32> to vector<4x8x8xbf16>
    %220 = arith.truncf %217 : vector<4x8x8xf32> to vector<4x8x8xbf16>
    %cst_136 = arith.constant dense<0.000000e+00> : vector<4x8x8xf32>
    %221 = tpu.matmul %219, %220, %cst_136 {dimension_numbers = #tpu.dot_dimension_numbers<[2], [2], [1], [1], [0, 0, 0, 1, 1, 1], [0], [0]>} : vector<4x8x8xbf16>, vector<4x8x8xbf16>, vector<4x8x8xf32> -> vector<4x8x8xf32>
    %222 = vector.shape_cast %7 : vector<8x8xf32> to vector<1x8x8xf32>
    %223 = vector.broadcast %222 : vector<1x8x8xf32> to vector<4x8x8xf32>
    %224 = arith.addf %221, %223 : vector<4x8x8xf32>
    %cst_137 = arith.constant dense<0xFF800000> : vector<4x8xf32>
    %225 = vector.multi_reduction <maximumf>, %224, %cst_137 [2] : vector<4x8x8xf32> to vector<4x8xf32>
    %226 = vector.shape_cast %225 : vector<4x8xf32> to vector<4x8x1xf32>
    %227 = vector.broadcast %226 : vector<4x8x1xf32> to vector<4x8x8xf32>
    %228 = arith.subf %224, %227 : vector<4x8x8xf32>
    %229 = math.exp %228 : vector<4x8x8xf32>
    %cst_138 = arith.constant dense<0.000000e+00> : vector<4x8xf32>
    %230 = vector.multi_reduction <add>, %229, %cst_138 [2] : vector<4x8x8xf32> to vector<4x8xf32>
    %231 = vector.shape_cast %230 : vector<4x8xf32> to vector<4x8x1xf32>
    %232 = vector.broadcast %231 : vector<4x8x1xf32> to vector<4x8x8xf32>
    %233 = arith.divf %229, %232 : vector<4x8x8xf32>
    %234 = arith.truncf %233 : vector<4x8x8xf32> to vector<4x8x8xbf16>
    %235 = arith.truncf %218 : vector<4x8x8xf32> to vector<4x8x8xbf16>
    %cst_139 = arith.constant dense<0.000000e+00> : vector<4x8x8xf32>
    %236 = tpu.matmul %234, %235, %cst_139 {dimension_numbers = #tpu.dot_dimension_numbers<[2], [1], [1], [2], [0, 0, 0, 1, 1, 2], [0], [0]>} : vector<4x8x8xbf16>, vector<4x8x8xbf16>, vector<4x8x8xf32> -> vector<4x8x8xf32>
    %237 = arith.truncf %236 : vector<4x8x8xf32> to vector<4x8x8xbf16>
    %cst_140 = arith.constant dense<0.000000e+00> : vector<4x8x32xf32>
    %238 = tpu.matmul %237, %206, %cst_140 {dimension_numbers = #tpu.dot_dimension_numbers<[2], [1], [1], [2], [0, 0, 0, 1, 1, 2], [0], [0]>} : vector<4x8x8xbf16>, vector<4x8x32xbf16>, vector<4x8x32xf32> -> vector<4x8x32xf32>
    %cst_141 = arith.constant dense<0.000000e+00> : vector<8x32xf32>
    %239 = vector.multi_reduction <add>, %238, %cst_141 [0] : vector<4x8x32xf32> to vector<8x32xf32>
    %240 = vector.broadcast %208 : vector<1x32xf32> to vector<8x32xf32>
    %241 = arith.addf %239, %240 : vector<8x32xf32>
    %242 = arith.addf %241, %197 : vector<8x32xf32>
    %c1_142 = arith.constant 1 : index
    %c0_143 = arith.constant 0 : index
    %c0_144 = arith.constant 0 : index
    %243 = vector.load %arg10[%c1_142, %c0_143, %c0_144] : memref<2x1x32xf32, #tpu.memory_space<vmem>>, vector<1x1x32xf32>
    %244 = vector.shape_cast %243 : vector<1x1x32xf32> to vector<1x32xf32>
    %c1_145 = arith.constant 1 : index
    %c0_146 = arith.constant 0 : index
    %c0_147 = arith.constant 0 : index
    %245 = vector.load %arg11[%c1_145, %c0_146, %c0_147] : memref<2x1x32xf32, #tpu.memory_space<vmem>>, vector<1x1x32xf32>
    %246 = vector.shape_cast %245 : vector<1x1x32xf32> to vector<1x32xf32>
    %cst_148 = arith.constant dense<0.000000e+00> : vector<8xf32>
    %247 = vector.multi_reduction <add>, %242, %cst_148 [1] : vector<8x32xf32> to vector<8xf32>
    %248 = vector.shape_cast %247 : vector<8xf32> to vector<8x1xf32>
    %cst_149 = arith.constant 3.200000e+01 : f32
    %249 = vector.broadcast %cst_149 : f32 to vector<8x1xf32>
    %250 = arith.divf %248, %249 : vector<8x1xf32>
    %251 = vector.broadcast %250 : vector<8x1xf32> to vector<8x32xf32>
    %252 = arith.subf %242, %251 : vector<8x32xf32>
    %253 = arith.mulf %252, %252 : vector<8x32xf32>
    %cst_150 = arith.constant dense<0.000000e+00> : vector<8xf32>
    %254 = vector.multi_reduction <add>, %253, %cst_150 [1] : vector<8x32xf32> to vector<8xf32>
    %255 = vector.shape_cast %254 : vector<8xf32> to vector<8x1xf32>
    %cst_151 = arith.constant 3.200000e+01 : f32
    %256 = vector.broadcast %cst_151 : f32 to vector<8x1xf32>
    %257 = arith.divf %255, %256 : vector<8x1xf32>
    %258 = vector.broadcast %250 : vector<8x1xf32> to vector<8x32xf32>
    %259 = arith.subf %242, %258 : vector<8x32xf32>
    %cst_152 = arith.constant 9.99999974E-6 : f32
    %260 = vector.broadcast %cst_152 : f32 to vector<8x1xf32>
    %261 = arith.addf %257, %260 : vector<8x1xf32>
    %262 = math.rsqrt %261 : vector<8x1xf32>
    %263 = vector.broadcast %262 : vector<8x1xf32> to vector<8x32xf32>
    %264 = arith.mulf %259, %263 : vector<8x32xf32>
    %265 = vector.broadcast %244 : vector<1x32xf32> to vector<8x32xf32>
    %266 = arith.mulf %264, %265 : vector<8x32xf32>
    %267 = vector.broadcast %246 : vector<1x32xf32> to vector<8x32xf32>
    %268 = arith.addf %266, %267 : vector<8x32xf32>
    %c1_153 = arith.constant 1 : index
    %c0_154 = arith.constant 0 : index
    %c0_155 = arith.constant 0 : index
    %c0_156 = arith.constant 0 : index
    %269 = vector.load %arg12[%c1_153, %c0_154, %c0_155, %c0_156] : memref<2x4x32x8xbf16, #tpu.memory_space<vmem>>, vector<1x4x32x8xbf16>
    %270 = vector.shape_cast %269 : vector<1x4x32x8xbf16> to vector<4x32x8xbf16>
    %c1_157 = arith.constant 1 : index
    %c0_158 = arith.constant 0 : index
    %c0_159 = arith.constant 0 : index
    %c0_160 = arith.constant 0 : index
    %271 = vector.load %arg13[%c1_157, %c0_158, %c0_159, %c0_160] : memref<2x4x32x8xbf16, #tpu.memory_space<vmem>>, vector<1x4x32x8xbf16>
    %272 = vector.shape_cast %271 : vector<1x4x32x8xbf16> to vector<4x32x8xbf16>
    %c1_161 = arith.constant 1 : index
    %c0_162 = arith.constant 0 : index
    %c0_163 = arith.constant 0 : index
    %c0_164 = arith.constant 0 : index
    %273 = vector.load %arg14[%c1_161, %c0_162, %c0_163, %c0_164] : memref<2x4x32x8xbf16, #tpu.memory_space<vmem>>, vector<1x4x32x8xbf16>
    %274 = vector.shape_cast %273 : vector<1x4x32x8xbf16> to vector<4x32x8xbf16>
    %c1_165 = arith.constant 1 : index
    %c0_166 = arith.constant 0 : index
    %c0_167 = arith.constant 0 : index
    %c0_168 = arith.constant 0 : index
    %275 = vector.load %arg15[%c1_165, %c0_166, %c0_167, %c0_168] : memref<2x4x8x32xbf16, #tpu.memory_space<vmem>>, vector<1x4x8x32xbf16>
    %276 = vector.shape_cast %275 : vector<1x4x8x32xbf16> to vector<4x8x32xbf16>
    %c1_169 = arith.constant 1 : index
    %c0_170 = arith.constant 0 : index
    %c0_171 = arith.constant 0 : index
    %277 = vector.load %arg16[%c1_169, %c0_170, %c0_171] : memref<2x1x32xf32, #tpu.memory_space<vmem>>, vector<1x1x32xf32>
    %278 = vector.shape_cast %277 : vector<1x1x32xf32> to vector<1x32xf32>
    %279 = arith.truncf %268 : vector<8x32xf32> to vector<8x32xbf16>
    %280 = vector.shape_cast %279 : vector<8x32xbf16> to vector<1x8x32xbf16>
    %281 = vector.shape_cast %280 : vector<1x8x32xbf16> to vector<1x8x32xbf16>
    %282 = vector.broadcast %281 : vector<1x8x32xbf16> to vector<4x8x32xbf16>
    %283 = vector.shape_cast %4 : vector<8x32xbf16> to vector<1x8x32xbf16>
    %284 = vector.shape_cast %283 : vector<1x8x32xbf16> to vector<1x8x32xbf16>
    %285 = vector.broadcast %284 : vector<1x8x32xbf16> to vector<4x8x32xbf16>
    %cst_172 = arith.constant dense<0.000000e+00> : vector<4x8x8xf32>
    %286 = tpu.matmul %282, %270, %cst_172 {dimension_numbers = #tpu.dot_dimension_numbers<[2], [1], [1], [2], [0, 0, 0, 1, 1, 2], [0], [0]>} : vector<4x8x32xbf16>, vector<4x32x8xbf16>, vector<4x8x8xf32> -> vector<4x8x8xf32>
    %cst_173 = arith.constant dense<0.000000e+00> : vector<4x8x8xf32>
    %287 = tpu.matmul %285, %272, %cst_173 {dimension_numbers = #tpu.dot_dimension_numbers<[2], [1], [1], [2], [0, 0, 0, 1, 1, 2], [0], [0]>} : vector<4x8x32xbf16>, vector<4x32x8xbf16>, vector<4x8x8xf32> -> vector<4x8x8xf32>
    %cst_174 = arith.constant dense<0.000000e+00> : vector<4x8x8xf32>
    %288 = tpu.matmul %285, %274, %cst_174 {dimension_numbers = #tpu.dot_dimension_numbers<[2], [1], [1], [2], [0, 0, 0, 1, 1, 2], [0], [0]>} : vector<4x8x32xbf16>, vector<4x32x8xbf16>, vector<4x8x8xf32> -> vector<4x8x8xf32>
    %289 = arith.truncf %286 : vector<4x8x8xf32> to vector<4x8x8xbf16>
    %290 = arith.truncf %287 : vector<4x8x8xf32> to vector<4x8x8xbf16>
    %cst_175 = arith.constant dense<0.000000e+00> : vector<4x8x8xf32>
    %291 = tpu.matmul %289, %290, %cst_175 {dimension_numbers = #tpu.dot_dimension_numbers<[2], [2], [1], [1], [0, 0, 0, 1, 1, 1], [0], [0]>} : vector<4x8x8xbf16>, vector<4x8x8xbf16>, vector<4x8x8xf32> -> vector<4x8x8xf32>
    %292 = vector.shape_cast %11 : vector<1x8xf32> to vector<1x1x8xf32>
    %293 = vector.broadcast %292 : vector<1x1x8xf32> to vector<4x8x8xf32>
    %294 = arith.addf %291, %293 : vector<4x8x8xf32>
    %cst_176 = arith.constant dense<0xFF800000> : vector<4x8xf32>
    %295 = vector.multi_reduction <maximumf>, %294, %cst_176 [2] : vector<4x8x8xf32> to vector<4x8xf32>
    %296 = vector.shape_cast %295 : vector<4x8xf32> to vector<4x8x1xf32>
    %297 = vector.broadcast %296 : vector<4x8x1xf32> to vector<4x8x8xf32>
    %298 = arith.subf %294, %297 : vector<4x8x8xf32>
    %299 = math.exp %298 : vector<4x8x8xf32>
    %cst_177 = arith.constant dense<0.000000e+00> : vector<4x8xf32>
    %300 = vector.multi_reduction <add>, %299, %cst_177 [2] : vector<4x8x8xf32> to vector<4x8xf32>
    %301 = vector.shape_cast %300 : vector<4x8xf32> to vector<4x8x1xf32>
    %302 = vector.broadcast %301 : vector<4x8x1xf32> to vector<4x8x8xf32>
    %303 = arith.divf %299, %302 : vector<4x8x8xf32>
    %304 = arith.truncf %303 : vector<4x8x8xf32> to vector<4x8x8xbf16>
    %305 = arith.truncf %288 : vector<4x8x8xf32> to vector<4x8x8xbf16>
    %cst_178 = arith.constant dense<0.000000e+00> : vector<4x8x8xf32>
    %306 = tpu.matmul %304, %305, %cst_178 {dimension_numbers = #tpu.dot_dimension_numbers<[2], [1], [1], [2], [0, 0, 0, 1, 1, 2], [0], [0]>} : vector<4x8x8xbf16>, vector<4x8x8xbf16>, vector<4x8x8xf32> -> vector<4x8x8xf32>
    %307 = arith.truncf %306 : vector<4x8x8xf32> to vector<4x8x8xbf16>
    %cst_179 = arith.constant dense<0.000000e+00> : vector<4x8x32xf32>
    %308 = tpu.matmul %307, %276, %cst_179 {dimension_numbers = #tpu.dot_dimension_numbers<[2], [1], [1], [2], [0, 0, 0, 1, 1, 2], [0], [0]>} : vector<4x8x8xbf16>, vector<4x8x32xbf16>, vector<4x8x32xf32> -> vector<4x8x32xf32>
    %cst_180 = arith.constant dense<0.000000e+00> : vector<8x32xf32>
    %309 = vector.multi_reduction <add>, %308, %cst_180 [0] : vector<4x8x32xf32> to vector<8x32xf32>
    %310 = vector.broadcast %278 : vector<1x32xf32> to vector<8x32xf32>
    %311 = arith.addf %309, %310 : vector<8x32xf32>
    %312 = arith.addf %311, %268 : vector<8x32xf32>
    %c1_181 = arith.constant 1 : index
    %c0_182 = arith.constant 0 : index
    %c0_183 = arith.constant 0 : index
    %313 = vector.load %arg17[%c1_181, %c0_182, %c0_183] : memref<2x1x32xf32, #tpu.memory_space<vmem>>, vector<1x1x32xf32>
    %314 = vector.shape_cast %313 : vector<1x1x32xf32> to vector<1x32xf32>
    %c1_184 = arith.constant 1 : index
    %c0_185 = arith.constant 0 : index
    %c0_186 = arith.constant 0 : index
    %315 = vector.load %arg18[%c1_184, %c0_185, %c0_186] : memref<2x1x32xf32, #tpu.memory_space<vmem>>, vector<1x1x32xf32>
    %316 = vector.shape_cast %315 : vector<1x1x32xf32> to vector<1x32xf32>
    %cst_187 = arith.constant dense<0.000000e+00> : vector<8xf32>
    %317 = vector.multi_reduction <add>, %312, %cst_187 [1] : vector<8x32xf32> to vector<8xf32>
    %318 = vector.shape_cast %317 : vector<8xf32> to vector<8x1xf32>
    %cst_188 = arith.constant 3.200000e+01 : f32
    %319 = vector.broadcast %cst_188 : f32 to vector<8x1xf32>
    %320 = arith.divf %318, %319 : vector<8x1xf32>
    %321 = vector.broadcast %320 : vector<8x1xf32> to vector<8x32xf32>
    %322 = arith.subf %312, %321 : vector<8x32xf32>
    %323 = arith.mulf %322, %322 : vector<8x32xf32>
    %cst_189 = arith.constant dense<0.000000e+00> : vector<8xf32>
    %324 = vector.multi_reduction <add>, %323, %cst_189 [1] : vector<8x32xf32> to vector<8xf32>
    %325 = vector.shape_cast %324 : vector<8xf32> to vector<8x1xf32>
    %cst_190 = arith.constant 3.200000e+01 : f32
    %326 = vector.broadcast %cst_190 : f32 to vector<8x1xf32>
    %327 = arith.divf %325, %326 : vector<8x1xf32>
    %328 = vector.broadcast %320 : vector<8x1xf32> to vector<8x32xf32>
    %329 = arith.subf %312, %328 : vector<8x32xf32>
    %cst_191 = arith.constant 9.99999974E-6 : f32
    %330 = vector.broadcast %cst_191 : f32 to vector<8x1xf32>
    %331 = arith.addf %327, %330 : vector<8x1xf32>
    %332 = math.rsqrt %331 : vector<8x1xf32>
    %333 = vector.broadcast %332 : vector<8x1xf32> to vector<8x32xf32>
    %334 = arith.mulf %329, %333 : vector<8x32xf32>
    %335 = vector.broadcast %314 : vector<1x32xf32> to vector<8x32xf32>
    %336 = arith.mulf %334, %335 : vector<8x32xf32>
    %337 = vector.broadcast %316 : vector<1x32xf32> to vector<8x32xf32>
    %338 = arith.addf %336, %337 : vector<8x32xf32>
    %c1_192 = arith.constant 1 : index
    %c0_193 = arith.constant 0 : index
    %c0_194 = arith.constant 0 : index
    %339 = vector.load %arg19[%c1_192, %c0_193, %c0_194] : memref<2x32x128xbf16, #tpu.memory_space<vmem>>, vector<1x32x128xbf16>
    %340 = vector.shape_cast %339 : vector<1x32x128xbf16> to vector<32x128xbf16>
    %c1_195 = arith.constant 1 : index
    %c0_196 = arith.constant 0 : index
    %c0_197 = arith.constant 0 : index
    %341 = vector.load %arg20[%c1_195, %c0_196, %c0_197] : memref<2x1x128xf32, #tpu.memory_space<vmem>>, vector<1x1x128xf32>
    %342 = vector.shape_cast %341 : vector<1x1x128xf32> to vector<1x128xf32>
    %c1_198 = arith.constant 1 : index
    %c0_199 = arith.constant 0 : index
    %c0_200 = arith.constant 0 : index
    %343 = vector.load %arg21[%c1_198, %c0_199, %c0_200] : memref<2x128x32xbf16, #tpu.memory_space<vmem>>, vector<1x128x32xbf16>
    %344 = vector.shape_cast %343 : vector<1x128x32xbf16> to vector<128x32xbf16>
    %c1_201 = arith.constant 1 : index
    %c0_202 = arith.constant 0 : index
    %c0_203 = arith.constant 0 : index
    %345 = vector.load %arg22[%c1_201, %c0_202, %c0_203] : memref<2x1x32xf32, #tpu.memory_space<vmem>>, vector<1x1x32xf32>
    %346 = vector.shape_cast %345 : vector<1x1x32xf32> to vector<1x32xf32>
    %347 = arith.truncf %338 : vector<8x32xf32> to vector<8x32xbf16>
    %cst_204 = arith.constant dense<0.000000e+00> : vector<8x128xf32>
    %348 = tpu.matmul %347, %340, %cst_204 {dimension_numbers = #tpu.dot_dimension_numbers<[1], [0], [0], [1], [0, 0, 1, 1], [], []>} : vector<8x32xbf16>, vector<32x128xbf16>, vector<8x128xf32> -> vector<8x128xf32>
    %349 = vector.broadcast %342 : vector<1x128xf32> to vector<8x128xf32>
    %350 = arith.addf %348, %349 : vector<8x128xf32>
    %cst_205 = arith.constant 0.000000e+00 : f32
    %351 = vector.broadcast %cst_205 : f32 to vector<8x128xf32>
    %352 = arith.maximumf %350, %351 : vector<8x128xf32>
    %353 = arith.truncf %352 : vector<8x128xf32> to vector<8x128xbf16>
    %cst_206 = arith.constant dense<0.000000e+00> : vector<8x32xf32>
    %354 = tpu.matmul %353, %344, %cst_206 {dimension_numbers = #tpu.dot_dimension_numbers<[1], [0], [0], [1], [0, 0, 1, 1], [], []>} : vector<8x128xbf16>, vector<128x32xbf16>, vector<8x32xf32> -> vector<8x32xf32>
    %355 = vector.broadcast %346 : vector<1x32xf32> to vector<8x32xf32>
    %356 = arith.addf %354, %355 : vector<8x32xf32>
    %357 = arith.addf %356, %338 : vector<8x32xf32>
    %c1_207 = arith.constant 1 : index
    %c0_208 = arith.constant 0 : index
    %c0_209 = arith.constant 0 : index
    %358 = vector.load %arg23[%c1_207, %c0_208, %c0_209] : memref<2x1x32xf32, #tpu.memory_space<vmem>>, vector<1x1x32xf32>
    %359 = vector.shape_cast %358 : vector<1x1x32xf32> to vector<1x32xf32>
    %c1_210 = arith.constant 1 : index
    %c0_211 = arith.constant 0 : index
    %c0_212 = arith.constant 0 : index
    %360 = vector.load %arg24[%c1_210, %c0_211, %c0_212] : memref<2x1x32xf32, #tpu.memory_space<vmem>>, vector<1x1x32xf32>
    %361 = vector.shape_cast %360 : vector<1x1x32xf32> to vector<1x32xf32>
    %cst_213 = arith.constant dense<0.000000e+00> : vector<8xf32>
    %362 = vector.multi_reduction <add>, %357, %cst_213 [1] : vector<8x32xf32> to vector<8xf32>
    %363 = vector.shape_cast %362 : vector<8xf32> to vector<8x1xf32>
    %cst_214 = arith.constant 3.200000e+01 : f32
    %364 = vector.broadcast %cst_214 : f32 to vector<8x1xf32>
    %365 = arith.divf %363, %364 : vector<8x1xf32>
    %366 = vector.broadcast %365 : vector<8x1xf32> to vector<8x32xf32>
    %367 = arith.subf %357, %366 : vector<8x32xf32>
    %368 = arith.mulf %367, %367 : vector<8x32xf32>
    %cst_215 = arith.constant dense<0.000000e+00> : vector<8xf32>
    %369 = vector.multi_reduction <add>, %368, %cst_215 [1] : vector<8x32xf32> to vector<8xf32>
    %370 = vector.shape_cast %369 : vector<8xf32> to vector<8x1xf32>
    %cst_216 = arith.constant 3.200000e+01 : f32
    %371 = vector.broadcast %cst_216 : f32 to vector<8x1xf32>
    %372 = arith.divf %370, %371 : vector<8x1xf32>
    %373 = vector.broadcast %365 : vector<8x1xf32> to vector<8x32xf32>
    %374 = arith.subf %357, %373 : vector<8x32xf32>
    %cst_217 = arith.constant 9.99999974E-6 : f32
    %375 = vector.broadcast %cst_217 : f32 to vector<8x1xf32>
    %376 = arith.addf %372, %375 : vector<8x1xf32>
    %377 = math.rsqrt %376 : vector<8x1xf32>
    %378 = vector.broadcast %377 : vector<8x1xf32> to vector<8x32xf32>
    %379 = arith.mulf %374, %378 : vector<8x32xf32>
    %380 = vector.broadcast %359 : vector<1x32xf32> to vector<8x32xf32>
    %381 = arith.mulf %379, %380 : vector<8x32xf32>
    %382 = vector.broadcast %361 : vector<1x32xf32> to vector<8x32xf32>
    %383 = arith.addf %381, %382 : vector<8x32xf32>
    %384 = arith.truncf %383 : vector<8x32xf32> to vector<8x32xbf16>
    %c0_218 = arith.constant 0 : index
    %c0_219 = arith.constant 0 : index
    %385 = vector.load %arg25[%c0_218, %c0_219] : memref<32x64xbf16, #tpu.memory_space<vmem>>, vector<32x64xbf16>
    %cst_220 = arith.constant dense<0.000000e+00> : vector<8x64xf32>
    %386 = tpu.matmul %384, %385, %cst_220 {dimension_numbers = #tpu.dot_dimension_numbers<[1], [0], [0], [1], [0, 0, 1, 1], [], []>} : vector<8x32xbf16>, vector<32x64xbf16>, vector<8x64xf32> -> vector<8x64xf32>
    %c0_221 = arith.constant 0 : index
    %c0_222 = arith.constant 0 : index
    %387 = vector.load %arg26[%c0_221, %c0_222] : memref<1x64xf32, #tpu.memory_space<vmem>>, vector<1x64xf32>
    %388 = vector.broadcast %387 : vector<1x64xf32> to vector<8x64xf32>
    %389 = arith.addf %386, %388 : vector<8x64xf32>
    %c0_223 = arith.constant 0 : index
    %c0_224 = arith.constant 0 : index
    %c0_225 = arith.constant 0 : index
    %390 = vector.load %arg27[%c0_223, %c0_224, %c0_225] : memref<1x8x64xf32, #tpu.memory_space<vmem>>, vector<1x8x64xf32>
    %391 = vector.shape_cast %390 : vector<1x8x64xf32> to vector<8x64xf32>
    %392 = vector.shape_cast %389 : vector<8x64xf32> to vector<1x8x64xf32>
    tpu.vector_store %arg27[%c0_223, %c0_224, %c0_225], %392 {strides = array<i32>} : memref<1x8x64xf32, #tpu.memory_space<vmem>>, vector<1x8x64xf32>,
    return
  }
  func.func @transform_0(%arg0: i32) -> (i32, i32, i32) {
    %c0_i32 = arith.constant 0 : i32
    %c0_i32_0 = arith.constant 0 : i32
    %c0_i32_1 = arith.constant 0 : i32
    return %arg0, %c0_i32, %c0_i32_0 : i32, i32, i32
  }
  func.func @transform_1(%arg0: i32) -> (i32, i32, i32) {
    %c0_i32 = arith.constant 0 : i32
    %c0_i32_0 = arith.constant 0 : i32
    %c0_i32_1 = arith.constant 0 : i32
    return %arg0, %c0_i32, %c0_i32_0 : i32, i32, i32
  }
  func.func @transform_2(%arg0: i32) -> (i32, i32, i32) {
    %c0_i32 = arith.constant 0 : i32
    %c0_i32_0 = arith.constant 0 : i32
    %c0_i32_1 = arith.constant 0 : i32
    return %arg0, %c0_i32, %c0_i32_0 : i32, i32, i32
  }
  func.func @transform_3(%arg0: i32) -> (i32, i32) {
    %c0_i32 = arith.constant 0 : i32
    %c0_i32_0 = arith.constant 0 : i32
    %c0_i32_1 = arith.constant 0 : i32
    return %c0_i32, %c0_i32_0 : i32, i32
  }
  func.func @transform_4(%arg0: i32) -> (i32, i32, i32, i32) {
    %c0_i32 = arith.constant 0 : i32
    %c0_i32_0 = arith.constant 0 : i32
    %c0_i32_1 = arith.constant 0 : i32
    %c0_i32_2 = arith.constant 0 : i32
    %c0_i32_3 = arith.constant 0 : i32
    return %c0_i32, %c0_i32_0, %c0_i32_1, %c0_i32_2 : i32, i32, i32, i32
  }
  func.func @transform_5(%arg0: i32) -> (i32, i32, i32, i32) {
    %c0_i32 = arith.constant 0 : i32
    %c0_i32_0 = arith.constant 0 : i32
    %c0_i32_1 = arith.constant 0 : i32
    %c0_i32_2 = arith.constant 0 : i32
    %c0_i32_3 = arith.constant 0 : i32
    return %c0_i32, %c0_i32_0, %c0_i32_1, %c0_i32_2 : i32, i32, i32, i32
  }
  func.func @transform_6(%arg0: i32) -> (i32, i32, i32, i32) {
    %c0_i32 = arith.constant 0 : i32
    %c0_i32_0 = arith.constant 0 : i32
    %c0_i32_1 = arith.constant 0 : i32
    %c0_i32_2 = arith.constant 0 : i32
    %c0_i32_3 = arith.constant 0 : i32
    return %c0_i32, %c0_i32_0, %c0_i32_1, %c0_i32_2 : i32, i32, i32, i32
  }
  func.func @transform_7(%arg0: i32) -> (i32, i32, i32, i32) {
    %c0_i32 = arith.constant 0 : i32
    %c0_i32_0 = arith.constant 0 : i32
    %c0_i32_1 = arith.constant 0 : i32
    %c0_i32_2 = arith.constant 0 : i32
    %c0_i32_3 = arith.constant 0 : i32
    return %c0_i32, %c0_i32_0, %c0_i32_1, %c0_i32_2 : i32, i32, i32, i32
  }
  func.func @transform_8(%arg0: i32) -> (i32, i32, i32) {
    %c0_i32 = arith.constant 0 : i32
    %c0_i32_0 = arith.constant 0 : i32
    %c0_i32_1 = arith.constant 0 : i32
    %c0_i32_2 = arith.constant 0 : i32
    return %c0_i32, %c0_i32_0, %c0_i32_1 : i32, i32, i32
  }
  func.func @transform_9(%arg0: i32) -> (i32, i32, i32) {
    %c0_i32 = arith.constant 0 : i32
    %c0_i32_0 = arith.constant 0 : i32
    %c0_i32_1 = arith.constant 0 : i32
    %c0_i32_2 = arith.constant 0 : i32
    return %c0_i32, %c0_i32_0, %c0_i32_1 : i32, i32, i32
  }
  func.func @transform_10(%arg0: i32) -> (i32, i32, i32) {
    %c0_i32 = arith.constant 0 : i32
    %c0_i32_0 = arith.constant 0 : i32
    %c0_i32_1 = arith.constant 0 : i32
    %c0_i32_2 = arith.constant 0 : i32
    return %c0_i32, %c0_i32_0, %c0_i32_1 : i32, i32, i32
  }
  func.func @transform_11(%arg0: i32) -> (i32, i32, i32, i32) {
    %c0_i32 = arith.constant 0 : i32
    %c0_i32_0 = arith.constant 0 : i32
    %c0_i32_1 = arith.constant 0 : i32
    %c0_i32_2 = arith.constant 0 : i32
    %c0_i32_3 = arith.constant 0 : i32
    return %c0_i32, %c0_i32_0, %c0_i32_1, %c0_i32_2 : i32, i32, i32, i32
  }
  func.func @transform_12(%arg0: i32) -> (i32, i32, i32, i32) {
    %c0_i32 = arith.constant 0 : i32
    %c0_i32_0 = arith.constant 0 : i32
    %c0_i32_1 = arith.constant 0 : i32
    %c0_i32_2 = arith.constant 0 : i32
    %c0_i32_3 = arith.constant 0 : i32
    return %c0_i32, %c0_i32_0, %c0_i32_1, %c0_i32_2 : i32, i32, i32, i32
  }
  func.func @transform_13(%arg0: i32) -> (i32, i32, i32, i32) {
    %c0_i32 = arith.constant 0 : i32
    %c0_i32_0 = arith.constant 0 : i32
    %c0_i32_1 = arith.constant 0 : i32
    %c0_i32_2 = arith.constant 0 : i32
    %c0_i32_3 = arith.constant 0 : i32
    return %c0_i32, %c0_i32_0, %c0_i32_1, %c0_i32_2 : i32, i32, i32, i32
  }
  func.func @transform_14(%arg0: i32) -> (i32, i32, i32, i32) {
    %c0_i32 = arith.constant 0 : i32
    %c0_i32_0 = arith.constant 0 : i32
    %c0_i32_1 = arith.constant 0 : i32
    %c0_i32_2 = arith.constant 0 : i32
    %c0_i32_3 = arith.constant 0 : i32
    return %c0_i32, %c0_i32_0, %c0_i32_1, %c0_i32_2 : i32, i32, i32, i32
  }
  func.func @transform_15(%arg0: i32) -> (i32, i32, i32) {
    %c0_i32 = arith.constant 0 : i32
    %c0_i32_0 = arith.constant 0 : i32
    %c0_i32_1 = arith.constant 0 : i32
    %c0_i32_2 = arith.constant 0 : i32
    return %c0_i32, %c0_i32_0, %c0_i32_1 : i32, i32, i32
  }
  func.func @transform_16(%arg0: i32) -> (i32, i32, i32) {
    %c0_i32 = arith.constant 0 : i32
    %c0_i32_0 = arith.constant 0 : i32
    %c0_i32_1 = arith.constant 0 : i32
    %c0_i32_2 = arith.constant 0 : i32
    return %c0_i32, %c0_i32_0, %c0_i32_1 : i32, i32, i32
  }
  func.func @transform_17(%arg0: i32) -> (i32, i32, i32) {
    %c0_i32 = arith.constant 0 : i32
    %c0_i32_0 = arith.constant 0 : i32
    %c0_i32_1 = arith.constant 0 : i32
    %c0_i32_2 = arith.constant 0 : i32
    return %c0_i32, %c0_i32_0, %c0_i32_1 : i32, i32, i32
  }
  func.func @transform_18(%arg0: i32) -> (i32, i32, i32) {
    %c0_i32 = arith.constant 0 : i32
    %c0_i32_0 = arith.constant 0 : i32
    %c0_i32_1 = arith.constant 0 : i32
    %c0_i32_2 = arith.constant 0 : i32
    return %c0_i32, %c0_i32_0, %c0_i32_1 : i32, i32, i32
  }
  func.func @transform_19(%arg0: i32) -> (i32, i32, i32) {
    %c0_i32 = arith.constant 0 : i32
    %c0_i32_0 = arith.constant 0 : i32
    %c0_i32_1 = arith.constant 0 : i32
    %c0_i32_2 = arith.constant 0 : i32
    return %c0_i32, %c0_i32_0, %c0_i32_1 : i32, i32, i32
  }
  func.func @transform_20(%arg0: i32) -> (i32, i32, i32) {
    %c0_i32 = arith.constant 0 : i32
    %c0_i32_0 = arith.constant 0 : i32
    %c0_i32_1 = arith.constant 0 : i32
    %c0_i32_2 = arith.constant 0 : i32
    return %c0_i32, %c0_i32_0, %c0_i32_1 : i32, i32, i32
  }
  func.func @transform_21(%arg0: i32) -> (i32, i32, i32) {
    %c0_i32 = arith.constant 0 : i32
    %c0_i32_0 = arith.constant 0 : i32
    %c0_i32_1 = arith.constant 0 : i32
    %c0_i32_2 = arith.constant 0 : i32
    return %c0_i32, %c0_i32_0, %c0_i32_1 : i32, i32, i32
  }
  func.func @transform_22(%arg0: i32) -> (i32, i32, i32) {
    %c0_i32 = arith.constant 0 : i32
    %c0_i32_0 = arith.constant 0 : i32
    %c0_i32_1 = arith.constant 0 : i32
    %c0_i32_2 = arith.constant 0 : i32
    return %c0_i32, %c0_i32_0, %c0_i32_1 : i32, i32, i32
  }
  func.func @transform_23(%arg0: i32) -> (i32, i32, i32) {
    %c0_i32 = arith.constant 0 : i32
    %c0_i32_0 = arith.constant 0 : i32
    %c0_i32_1 = arith.constant 0 : i32
    %c0_i32_2 = arith.constant 0 : i32
    return %c0_i32, %c0_i32_0, %c0_i32_1 : i32, i32, i32
  }
  func.func @transform_24(%arg0: i32) -> (i32, i32) {
    %c0_i32 = arith.constant 0 : i32
    %c0_i32_0 = arith.constant 0 : i32
    %c0_i32_1 = arith.constant 0 : i32
    return %c0_i32, %c0_i32_0 : i32, i32
  }
  func.func @transform_25(%arg0: i32) -> (i32, i32) {
    %c0_i32 = arith.constant 0 : i32
    %c0_i32_0 = arith.constant 0 : i32
    %c0_i32_1 = arith.constant 0 : i32
    return %c0_i32, %c0_i32_0 : i32, i32
  }
  func.func @transform_26(%arg0: i32) -> (i32, i32, i32) {
    %c0_i32 = arith.constant 0 : i32
    %c0_i32_0 = arith.constant 0 : i32
    %c0_i32_1 = arith.constant 0 : i32
    return %arg0, %c0_i32, %c0_i32_0 : i32, i32, i32
  }
}

</mosaic_0001>

<llo_original>
// kernel: _lambda_.2
$region0: #{_lambda_.2}
  #allocation0 [shape = 'u32[]', space=smem, size = 0x4, offset = 0x4, fixed_abs, tag = 'smem constant byte address 0x4 - core index']
  #allocation1 [shape = 'u32[72,128]{1,0:T(1,128)}', space=vmem, size = 0x9000, scoped, tag = 'internal scratch']
  %s0 = inlined_call_operand.vmem [shape: f32[2,8,32], index: 0, kind: input, shape index: {}]
  %s1 = inlined_call_operand.vmem [shape: f32[2,1,8], index: 1, kind: input, shape index: {}]
  %s2 = inlined_call_operand.vmem [shape: bf16[2,4,32,8], index: 2, kind: input, shape index: {}]
  %s3 = inlined_call_operand.vmem [shape: bf16[2,4,32,8], index: 3, kind: input, shape index: {}]
  %s4 = inlined_call_operand.vmem [shape: bf16[2,4,32,8], index: 4, kind: input, shape index: {}]
  %s5 = inlined_call_operand.vmem [shape: bf16[2,4,8,32], index: 5, kind: input, shape index: {}]
  %s6 = inlined_call_operand.vmem [shape: f32[2,1,32], index: 6, kind: input, shape index: {}]
  %s7 = inlined_call_operand.vmem [shape: f32[2,1,32], index: 7, kind: input, shape index: {}]
  %s8 = inlined_call_operand.vmem [shape: f32[2,1,32], index: 8, kind: input, shape index: {}]
  %s9 = inlined_call_operand.vmem [shape: bf16[2,32,128], index: 9, kind: input, shape index: {}]
  %s10 = inlined_call_operand.vmem [shape: f32[2,1,128], index: 10, kind: input, shape index: {}]
  %s11 = inlined_call_operand.vmem [shape: bf16[2,128,32], index: 11, kind: input, shape index: {}]
  %s12 = inlined_call_operand.vmem [shape: f32[2,1,32], index: 12, kind: input, shape index: {}]
  %s13 = inlined_call_operand.vmem [shape: f32[2,1,32], index: 13, kind: input, shape index: {}]
  %s14 = inlined_call_operand.vmem [shape: f32[2,1,32], index: 14, kind: input, shape index: {}]
  %s15 = inlined_call_operand.vmem [shape: f32[2,8,32], index: 15, kind: output, shape index: {}]
  %s16 = sld [smem:[#allocation0]]
  $region93: #{_lambda_.2} parent=0
    _
  %s18 = ssub.s32 1, %s16
  %s19 = scalar_select 0, %s18, %s16
  loop: start=0, step=1, limit=4
  $region2: #{_lambda_.2} parent=0 // loop_pre_header
    _
  $region3: #{_lambda_.2} parent=0 // loop_header
    %s21 = sphi 0, %s25
    %p22 = scmp.ge.s32.totalorder %s21, 4
    %s31 = sphi 0, %s33
    %s34 = sphi 0, %s31
    %s35 = sphi 0, %s34
    %s51 = sphi 0, %s35
    %s57 = sphi 0, %s59
    %s60 = sphi 0, %s57
    %s61 = sphi 0, %s60
    %s77 = sphi 0, %s61
    %s81 = sphi 0, %s81
    %s83 = sphi 0, %s81
    %s84 = sphi 0, %s83
    %s98 = sphi 0, %s84
    %s102 = sphi 0, %s102
    %s104 = sphi 0, %s102
    %s105 = sphi 0, %s104
    %s119 = sphi 0, %s105
    %s123 = sphi 0, %s123
    %s125 = sphi 0, %s123
    %s126 = sphi 0, %s125
    %s140 = sphi 0, %s126
    %s144 = sphi 0, %s144
    %s146 = sphi 0, %s144
    %s147 = sphi 0, %s146
    %s161 = sphi 0, %s147
    %s165 = sphi 0, %s165
    %s167 = sphi 0, %s165
    %s168 = sphi 0, %s167
    %s182 = sphi 0, %s168
    %s186 = sphi 0, %s186
    %s188 = sphi 0, %s186
    %s189 = sphi 0, %s188
    %s203 = sphi 0, %s189
    %s207 = sphi 0, %s207
    %s209 = sphi 0, %s207
    %s210 = sphi 0, %s209
    %s224 = sphi 0, %s210
    %s228 = sphi 0, %s228
    %s230 = sphi 0, %s228
    %s231 = sphi 0, %s230
    %s245 = sphi 0, %s231
    %s249 = sphi 0, %s249
    %s251 = sphi 0, %s249
    %s252 = sphi 0, %s251
    %s266 = sphi 0, %s252
    %s270 = sphi 0, %s270
    %s272 = sphi 0, %s270
    %s273 = sphi 0, %s272
    %s287 = sphi 0, %s273
    %s291 = sphi 0, %s291
    %s293 = sphi 0, %s291
    %s294 = sphi 0, %s293
    %s308 = sphi 0, %s294
    %s312 = sphi 0, %s312
    %s314 = sphi 0, %s312
    %s315 = sphi 0, %s314
    %s329 = sphi 0, %s315
    %s333 = sphi 0, %s333
    %s335 = sphi 0, %s333
    %s336 = sphi 0, %s335
    %s350 = sphi 0, %s336
    %s356 = sphi 0, %s358
    %s359 = sphi 0, %s356
    %s360 = sphi 0, %s359
    %s376 = sphi 0, %s360
  $region4: #{_lambda_.2} parent=0 // loop_header_branch
    %24 = sbr.rel (%p22) target = $region8
  $region5: #{_lambda_.2} parent=0 // loop_body
    %s26 = ssub.s32 %s21, 1
    %s27 = ssub.s32 %s21, 2
    %s28 = sadd.s32 %s21, 1
    %s29 = ssub.s32 %s21, %s28
    %p30 = scmp.eq.s32.totalorder %s29, 0
    %s32 = sadd.s32 %s31, 1
    %s33 = scalar_select %p30, %s31, %s32
    %p36 = pneg %p30
    %p37 = scmp.eq.s32.totalorder %s21, 1
    %p38 = por %p36, %p37
    %p39 = scmp.ne.s32.totalorder %s31, %s34
    %p40 = scmp.eq.s32.totalorder %s21, 0
    %p41 = por %p39, %p40
    %p42 = scmp.ne.s32.totalorder %s31, %s34
    %p43 = scmp.eq.s32.totalorder %s26, 1
    %p44 = por %p42, %p43
    %p45 = scmp.ne.s32.totalorder %s34, %s35
    %p46 = scmp.eq.s32.totalorder %s26, 0
    %p47 = por %p45, %p46
    %p48 = scmp.ne.s32.totalorder %s34, %s35
    %p49 = scmp.eq.s32.totalorder %s27, 1
    %p50 = por %p48, %p49
    %p52 = scmp.ne.s32.totalorder %s35, %s51
    %p53 = scmp.eq.s32.totalorder %s27, 0
    %p54 = por %p52, %p53
    %s55 = ssub.s32 %s21, %s28
    %p56 = scmp.eq.s32.totalorder %s55, 0
    %s58 = sadd.s32 %s57, 1
    %s59 = scalar_select %p56, %s57, %s58
    %p62 = pneg %p56
    %p63 = scmp.eq.s32.totalorder %s21, 1
    %p64 = por %p62, %p63
    %p65 = scmp.ne.s32.totalorder %s57, %s60
    %p66 = scmp.eq.s32.totalorder %s21, 0
    %p67 = por %p65, %p66
    %p68 = scmp.ne.s32.totalorder %s57, %s60
    %p69 = scmp.eq.s32.totalorder %s26, 1
    %p70 = por %p68, %p69
    %p71 = scmp.ne.s32.totalorder %s60, %s61
    %p72 = scmp.eq.s32.totalorder %s26, 0
    %p73 = por %p71, %p72
    %p74 = scmp.ne.s32.totalorder %s60, %s61
    %p75 = scmp.eq.s32.totalorder %s27, 1
    %p76 = por %p74, %p75
    %p78 = scmp.ne.s32.totalorder %s61, %s77
    %p79 = scmp.eq.s32.totalorder %s27, 0
    %p80 = por %p78, %p79
    %s82 = sadd.s32 %s81, 1
    %p85 = scmp.eq.s32.totalorder %s21, 1
    %p86 = scmp.ne.s32.totalorder %s81, %s83
    %p87 = scmp.eq.s32.totalorder %s21, 0
    %p88 = por %p86, %p87
    %p89 = scmp.ne.s32.totalorder %s81, %s83
    %p90 = scmp.eq.s32.totalorder %s26, 1
    %p91 = por %p89, %p90
    %p92 = scmp.ne.s32.totalorder %s83, %s84
    %p93 = scmp.eq.s32.totalorder %s26, 0
    %p94 = por %p92, %p93
    %p95 = scmp.ne.s32.totalorder %s83, %s84
    %p96 = scmp.eq.s32.totalorder %s27, 1
    %p97 = por %p95, %p96
    %p99 = scmp.ne.s32.totalorder %s84, %s98
    %p100 = scmp.eq.s32.totalorder %s27, 0
    %p101 = por %p99, %p100
    %s103 = sadd.s32 %s102, 1
    %p106 = scmp.eq.s32.totalorder %s21, 1
    %p107 = scmp.ne.s32.totalorder %s102, %s104
    %p108 = scmp.eq.s32.totalorder %s21, 0
    %p109 = por %p107, %p108
    %p110 = scmp.ne.s32.totalorder %s102, %s104
    %p111 = scmp.eq.s32.totalorder %s26, 1
    %p112 = por %p110, %p111
    %p113 = scmp.ne.s32.totalorder %s104, %s105
    %p114 = scmp.eq.s32.totalorder %s26, 0
    %p115 = por %p113, %p114
    %p116 = scmp.ne.s32.totalorder %s104, %s105
    %p117 = scmp.eq.s32.totalorder %s27, 1
    %p118 = por %p116, %p117
    %p120 = scmp.ne.s32.totalorder %s105, %s119
    %p121 = scmp.eq.s32.totalorder %s27, 0
    %p122 = por %p120, %p121
    %s124 = sadd.s32 %s123, 1
    %p127 = scmp.eq.s32.totalorder %s21, 1
    %p128 = scmp.ne.s32.totalorder %s123, %s125
    %p129 = scmp.eq.s32.totalorder %s21, 0
    %p130 = por %p128, %p129
    %p131 = scmp.ne.s32.totalorder %s123, %s125
    %p132 = scmp.eq.s32.totalorder %s26, 1
    %p133 = por %p131, %p132
    %p134 = scmp.ne.s32.totalorder %s125, %s126
    %p135 = scmp.eq.s32.totalorder %s26, 0
    %p136 = por %p134, %p135
    %p137 = scmp.ne.s32.totalorder %s125, %s126
    %p138 = scmp.eq.s32.totalorder %s27, 1
    %p139 = por %p137, %p138
    %p141 = scmp.ne.s32.totalorder %s126, %s140
    %p142 = scmp.eq.s32.totalorder %s27, 0
    %p143 = por %p141, %p142
    %s145 = sadd.s32 %s144, 1
    %p148 = scmp.eq.s32.totalorder %s21, 1
    %p149 = scmp.ne.s32.totalorder %s144, %s146
    %p150 = scmp.eq.s32.totalorder %s21, 0
    %p151 = por %p149, %p150
    %p152 = scmp.ne.s32.totalorder %s144, %s146
    %p153 = scmp.eq.s32.totalorder %s26, 1
    %p154 = por %p152, %p153
    %p155 = scmp.ne.s32.totalorder %s146, %s147
    %p156 = scmp.eq.s32.totalorder %s26, 0
    %p157 = por %p155, %p156
    %p158 = scmp.ne.s32.totalorder %s146, %s147
    %p159 = scmp.eq.s32.totalorder %s27, 1
    %p160 = por %p158, %p159
    %p162 = scmp.ne.s32.totalorder %s147, %s161
    %p163 = scmp.eq.s32.totalorder %s27, 0
    %p164 = por %p162, %p163
    %s166 = sadd.s32 %s165, 1
    %p169 = scmp.eq.s32.totalorder %s21, 1
    %p170 = scmp.ne.s32.totalorder %s165, %s167
    %p171 = scmp.eq.s32.totalorder %s21, 0
    %p172 = por %p170, %p171
    %p173 = scmp.ne.s32.totalorder %s165, %s167
    %p174 = scmp.eq.s32.totalorder %s26, 1
    %p175 = por %p173, %p174
    %p176 = scmp.ne.s32.totalorder %s167, %s168
    %p177 = scmp.eq.s32.totalorder %s26, 0
    %p178 = por %p176, %p177
    %p179 = scmp.ne.s32.totalorder %s167, %s168
    %p180 = scmp.eq.s32.totalorder %s27, 1
    %p181 = por %p179, %p180
    %p183 = scmp.ne.s32.totalorder %s168, %s182
    %p184 = scmp.eq.s32.totalorder %s27, 0
    %p185 = por %p183, %p184
    %s187 = sadd.s32 %s186, 1
    %p190 = scmp.eq.s32.totalorder %s21, 1
    %p191 = scmp.ne.s32.totalorder %s186, %s188
    %p192 = scmp.eq.s32.totalorder %s21, 0
    %p193 = por %p191, %p192
    %p194 = scmp.ne.s32.totalorder %s186, %s188
    %p195 = scmp.eq.s32.totalorder %s26, 1
    %p196 = por %p194, %p195
    %p197 = scmp.ne.s32.totalorder %s188, %s189
    %p198 = scmp.eq.s32.totalorder %s26, 0
    %p199 = por %p197, %p198
    %p200 = scmp.ne.s32.totalorder %s188, %s189
    %p201 = scmp.eq.s32.totalorder %s27, 1
    %p202 = por %p200, %p201
    %p204 = scmp.ne.s32.totalorder %s189, %s203
    %p205 = scmp.eq.s32.totalorder %s27, 0
    %p206 = por %p204, %p205
    %s208 = sadd.s32 %s207, 1
    %p211 = scmp.eq.s32.totalorder %s21, 1
    %p212 = scmp.ne.s32.totalorder %s207, %s209
    %p213 = scmp.eq.s32.totalorder %s21, 0
    %p214 = por %p212, %p213
    %p215 = scmp.ne.s32.totalorder %s207, %s209
    %p216 = scmp.eq.s32.totalorder %s26, 1
    %p217 = por %p215, %p216
    %p218 = scmp.ne.s32.totalorder %s209, %s210
    %p219 = scmp.eq.s32.totalorder %s26, 0
    %p220 = por %p218, %p219
    %p221 = scmp.ne.s32.totalorder %s209, %s210
    %p222 = scmp.eq.s32.totalorder %s27, 1
    %p223 = por %p221, %p222
    %p225 = scmp.ne.s32.totalorder %s210, %s224
    %p226 = scmp.eq.s32.totalorder %s27, 0
    %p227 = por %p225, %p226
    %s229 = sadd.s32 %s228, 1
    %p232 = scmp.eq.s32.totalorder %s21, 1
    %p233 = scmp.ne.s32.totalorder %s228, %s230
    %p234 = scmp.eq.s32.totalorder %s21, 0
    %p235 = por %p233, %p234
    %p236 = scmp.ne.s32.totalorder %s228, %s230
    %p237 = scmp.eq.s32.totalorder %s26, 1
    %p238 = por %p236, %p237
    %p239 = scmp.ne.s32.totalorder %s230, %s231
    %p240 = scmp.eq.s32.totalorder %s26, 0
    %p241 = por %p239, %p240
    %p242 = scmp.ne.s32.totalorder %s230, %s231
    %p243 = scmp.eq.s32.totalorder %s27, 1
    %p244 = por %p242, %p243
    %p246 = scmp.ne.s32.totalorder %s231, %s245
    %p247 = scmp.eq.s32.totalorder %s27, 0
    %p248 = por %p246, %p247
    %s250 = sadd.s32 %s249, 1
    %p253 = scmp.eq.s32.totalorder %s21, 1
    %p254 = scmp.ne.s32.totalorder %s249, %s251
    %p255 = scmp.eq.s32.totalorder %s21, 0
    %p256 = por %p254, %p255
    %p257 = scmp.ne.s32.totalorder %s249, %s251
    %p258 = scmp.eq.s32.totalorder %s26, 1
    %p259 = por %p257, %p258
    %p260 = scmp.ne.s32.totalorder %s251, %s252
    %p261 = scmp.eq.s32.totalorder %s26, 0
    %p262 = por %p260, %p261
    %p263 = scmp.ne.s32.totalorder %s251, %s252
    %p264 = scmp.eq.s32.totalorder %s27, 1
    %p265 = por %p263, %p264
    %p267 = scmp.ne.s32.totalorder %s252, %s266
    %p268 = scmp.eq.s32.totalorder %s27, 0
    %p269 = por %p267, %p268
    %s271 = sadd.s32 %s270, 1
    %p274 = scmp.eq.s32.totalorder %s21, 1
    %p275 = scmp.ne.s32.totalorder %s270, %s272
    %p276 = scmp.eq.s32.totalorder %s21, 0
    %p277 = por %p275, %p276
    %p278 = scmp.ne.s32.totalorder %s270, %s272
    %p279 = scmp.eq.s32.totalorder %s26, 1
    %p280 = por %p278, %p279
    %p281 = scmp.ne.s32.totalorder %s272, %s273
    %p282 = scmp.eq.s32.totalorder %s26, 0
    %p283 = por %p281, %p282
    %p284 = scmp.ne.s32.totalorder %s272, %s273
    %p285 = scmp.eq.s32.totalorder %s27, 1
    %p286 = por %p284, %p285
    %p288 = scmp.ne.s32.totalorder %s273, %s287
    %p289 = scmp.eq.s32.totalorder %s27, 0
    %p290 = por %p288, %p289
    %s292 = sadd.s32 %s291, 1
    %p295 = scmp.eq.s32.totalorder %s21, 1
    %p296 = scmp.ne.s32.totalorder %s291, %s293
    %p297 = scmp.eq.s32.totalorder %s21, 0
    %p298 = por %p296, %p297
    %p299 = scmp.ne.s32.totalorder %s291, %s293
    %p300 = scmp.eq.s32.totalorder %s26, 1
    %p301 = por %p299, %p300
    %p302 = scmp.ne.s32.totalorder %s293, %s294
    %p303 = scmp.eq.s32.totalorder %s26, 0
    %p304 = por %p302, %p303
    %p305 = scmp.ne.s32.totalorder %s293, %s294
    %p306 = scmp.eq.s32.totalorder %s27, 1
    %p307 = por %p305, %p306
    %p309 = scmp.ne.s32.totalorder %s294, %s308
    %p310 = scmp.eq.s32.totalorder %s27, 0
    %p311 = por %p309, %p310
    %s313 = sadd.s32 %s312, 1
    %p316 = scmp.eq.s32.totalorder %s21, 1
    %p317 = scmp.ne.s32.totalorder %s312, %s314
    %p318 = scmp.eq.s32.totalorder %s21, 0
    %p319 = por %p317, %p318
    %p320 = scmp.ne.s32.totalorder %s312, %s314
    %p321 = scmp.eq.s32.totalorder %s26, 1
    %p322 = por %p320, %p321
    %p323 = scmp.ne.s32.totalorder %s314, %s315
    %p324 = scmp.eq.s32.totalorder %s26, 0
    %p325 = por %p323, %p324
    %p326 = scmp.ne.s32.totalorder %s314, %s315
    %p327 = scmp.eq.s32.totalorder %s27, 1
    %p328 = por %p326, %p327
    %p330 = scmp.ne.s32.totalorder %s315, %s329
    %p331 = scmp.eq.s32.totalorder %s27, 0
    %p332 = por %p330, %p331
    %s334 = sadd.s32 %s333, 1
    %p337 = scmp.eq.s32.totalorder %s21, 1
    %p338 = scmp.ne.s32.totalorder %s333, %s335
    %p339 = scmp.eq.s32.totalorder %s21, 0
    %p340 = por %p338, %p339
    %p341 = scmp.ne.s32.totalorder %s333, %s335
    %p342 = scmp.eq.s32.totalorder %s26, 1
    %p343 = por %p341, %p342
    %p344 = scmp.ne.s32.totalorder %s335, %s336
    %p345 = scmp.eq.s32.totalorder %s26, 0
    %p346 = por %p344, %p345
    %p347 = scmp.ne.s32.totalorder %s335, %s336
    %p348 = scmp.eq.s32.totalorder %s27, 1
    %p349 = por %p347, %p348
    %p351 = scmp.ne.s32.totalorder %s336, %s350
    %p352 = scmp.eq.s32.totalorder %s27, 0
    %p353 = por %p351, %p352
    %s354 = ssub.s32 %s21, %s28
    %p355 = scmp.eq.s32.totalorder %s354, 0
    %s357 = sadd.s32 %s356, 1
    %s358 = scalar_select %p355, %s356, %s357
    %p361 = pneg %p355
    %p362 = scmp.eq.s32.totalorder %s21, 1
    %p363 = por %p361, %p362
    %p364 = scmp.ne.s32.totalorder %s356, %s359
    %p365 = scmp.eq.s32.totalorder %s21, 0
    %p366 = por %p364, %p365
    %p367 = scmp.ne.s32.totalorder %s356, %s359
    %p368 = scmp.eq.s32.totalorder %s26, 1
    %p369 = por %p367, %p368
    %p370 = scmp.ne.s32.totalorder %s359, %s360
    %p371 = scmp.eq.s32.totalorder %s26, 0
    %p372 = por %p370, %p371
    %p373 = scmp.ne.s32.totalorder %s359, %s360
    %p374 = scmp.eq.s32.totalorder %s27, 1
    %p375 = por %p373, %p374
    %p377 = scmp.ne.s32.totalorder %s360, %s376
    %p378 = scmp.eq.s32.totalorder %s27, 0
    %p379 = por %p377, %p378
    %p380 = scmp.le.s32.totalorder 1, %s21
    %p381 = scmp.lt.s32.totalorder %s21, 3
    %p382 = pnand %p380, %p381
    %p383 = pneg %p382
    // Predicated region
    $region9: #{_lambda_.2} parent=5 // pred_check
      _
    $region10: #{_lambda_.2} parent=5 // pred_check_branch
      %385 = sbr.rel (%p382) target = $region12
    $region11: #{_lambda_.2} parent=5 // pred_region
      %s386 = ssub.s32 %s21, 1
      // Predicated region
      $region13: #{_lambda_.2} parent=11 // pred_check
        %p387 = pneg %p94
      $region14: #{_lambda_.2} parent=11 // pred_check_branch
        %389 = sbr.rel (%p387) target = $region16
      $region15: #{_lambda_.2} parent=11 // pred_region
        _
      $region16: #{_lambda_.2} parent=11 // pred_fallthru
        _
      // Predicated region
      $region17: #{_lambda_.2} parent=11 // pred_check
        %p390 = pneg %p115
      $region18: #{_lambda_.2} parent=11 // pred_check_branch
        %392 = sbr.rel (%p390) target = $region20
      $region19: #{_lambda_.2} parent=11 // pred_region
        _
      $region20: #{_lambda_.2} parent=11 // pred_fallthru
        _
      // Predicated region
      $region21: #{_lambda_.2} parent=11 // pred_check
        %p393 = pneg %p136
      $region22: #{_lambda_.2} parent=11 // pred_check_branch
        %395 = sbr.rel (%p393) target = $region24
      $region23: #{_lambda_.2} parent=11 // pred_region
        _
      $region24: #{_lambda_.2} parent=11 // pred_fallthru
        _
      // Predicated region
      $region25: #{_lambda_.2} parent=11 // pred_check
        %p396 = pneg %p157
      $region26: #{_lambda_.2} parent=11 // pred_check_branch
        %398 = sbr.rel (%p396) target = $region28
      $region27: #{_lambda_.2} parent=11 // pred_region
        _
      $region28: #{_lambda_.2} parent=11 // pred_fallthru
        _
      // Predicated region
      $region29: #{_lambda_.2} parent=11 // pred_check
        %p399 = pneg %p178
      $region30: #{_lambda_.2} parent=11 // pred_check_branch
        %401 = sbr.rel (%p399) target = $region32
      $region31: #{_lambda_.2} parent=11 // pred_region
        _
      $region32: #{_lambda_.2} parent=11 // pred_fallthru
        _
      // Predicated region
      $region33: #{_lambda_.2} parent=11 // pred_check
        %p402 = pneg %p199
      $region34: #{_lambda_.2} parent=11 // pred_check_branch
        %404 = sbr.rel (%p402) target = $region36
      $region35: #{_lambda_.2} parent=11 // pred_region
        _
      $region36: #{_lambda_.2} parent=11 // pred_fallthru
        _
      // Predicated region
      $region37: #{_lambda_.2} parent=11 // pred_check
        %p405 = pneg %p220
      $region38: #{_lambda_.2} parent=11 // pred_check_branch
        %407 = sbr.rel (%p405) target = $region40
      $region39: #{_lambda_.2} parent=11 // pred_region
        _
      $region40: #{_lambda_.2} parent=11 // pred_fallthru
        _
      // Predicated region
      $region41: #{_lambda_.2} parent=11 // pred_check
        %p408 = pneg %p241
      $region42: #{_lambda_.2} parent=11 // pred_check_branch
        %410 = sbr.rel (%p408) target = $region44
      $region43: #{_lambda_.2} parent=11 // pred_region
        _
      $region44: #{_lambda_.2} parent=11 // pred_fallthru
        _
      // Predicated region
      $region45: #{_lambda_.2} parent=11 // pred_check
        %p411 = pneg %p262
      $region46: #{_lambda_.2} parent=11 // pred_check_branch
        %413 = sbr.rel (%p411) target = $region48
      $region47: #{_lambda_.2} parent=11 // pred_region
        _
      $region48: #{_lambda_.2} parent=11 // pred_fallthru
        _
      // Predicated region
      $region49: #{_lambda_.2} parent=11 // pred_check
        %p414 = pneg %p283
      $region50: #{_lambda_.2} parent=11 // pred_check_branch
        %416 = sbr.rel (%p414) target = $region52
      $region51: #{_lambda_.2} parent=11 // pred_region
        _
      $region52: #{_lambda_.2} parent=11 // pred_fallthru
        _
      // Predicated region
      $region53: #{_lambda_.2} parent=11 // pred_check
        %p417 = pneg %p304
      $region54: #{_lambda_.2} parent=11 // pred_check_branch
        %419 = sbr.rel (%p417) target = $region56
      $region55: #{_lambda_.2} parent=11 // pred_region
        _
      $region56: #{_lambda_.2} parent=11 // pred_fallthru
        _
      // Predicated region
      $region57: #{_lambda_.2} parent=11 // pred_check
        %p420 = pneg %p325
      $region58: #{_lambda_.2} parent=11 // pred_check_branch
        %422 = sbr.rel (%p420) target = $region60
      $region59: #{_lambda_.2} parent=11 // pred_region
        _
      $region60: #{_lambda_.2} parent=11 // pred_fallthru
        _
      // Predicated region
      $region61: #{_lambda_.2} parent=11 // pred_check
        %p423 = pneg %p346
      $region62: #{_lambda_.2} parent=11 // pred_check_branch
        %425 = sbr.rel (%p423) target = $region64
      $region63: #{_lambda_.2} parent=11 // pred_region
        _
      $region64: #{_lambda_.2} parent=11 // pred_fallthru
        _
    $region12: #{_lambda_.2} parent=5 // pred_fallthru
      _
    %p426 = scmp.lt.s32.totalorder %s21, 2
    // Predicated region
    $region65: #{_lambda_.2} parent=5 // pred_check
      %p427 = pneg %p426
    $region66: #{_lambda_.2} parent=5 // pred_check_branch
      %429 = sbr.rel (%p427) target = $region68
    $region67: #{_lambda_.2} parent=5 // pred_region
      // Predicated region
      $region69: #{_lambda_.2} parent=67 // pred_check
        %p430 = pneg %p41
      $region70: #{_lambda_.2} parent=67 // pred_check_branch
        %432 = sbr.rel (%p430) target = $region72
      $region71: #{_lambda_.2} parent=67 // pred_region
        %p433 = scmp.lt.s32.totalorder %s21, 1
        %s434 = scalar_select %p433, %s21, 1
        %s435 = smul.addr %s434, 8
        %s436 = scalar_lea.vmem %s0, %s435
      $region72: #{_lambda_.2} parent=67 // pred_fallthru
        _
      // Predicated region
      $region73: #{_lambda_.2} parent=67 // pred_check
        %p437 = pneg %p67
      $region74: #{_lambda_.2} parent=67 // pred_check_branch
        %439 = sbr.rel (%p437) target = $region76
      $region75: #{_lambda_.2} parent=67 // pred_region
        %p440 = scmp.lt.s32.totalorder %s21, 1
        %s441 = scalar_select %p440, %s21, 1
        %s442 = scalar_lea.vmem %s1, %s441
      $region76: #{_lambda_.2} parent=67 // pred_fallthru
        _
    $region68: #{_lambda_.2} parent=5 // pred_fallthru
      _
    %p443 = scmp.le.s32.totalorder 1, %s21
    %p444 = scmp.lt.s32.totalorder %s21, 3
    %p445 = pnand %p443, %p444
    %p446 = pneg %p445
    // Predicated region
    $region77: #{_lambda_.2} parent=5 // pred_check
      _
    $region78: #{_lambda_.2} parent=5 // pred_check_branch
      %448 = sbr.rel (%p445) target = $region80
    $region79: #{_lambda_.2} parent=5 // pred_region
      %s449 = ssub.s32 %s21, 1
      %p450 = scmp.lt.s32.totalorder %s26, 1
      %s451 = scalar_select %p450, %s26, 1
      %s452 = smul.addr %s451, 8
      %s453 = scalar_lea.vmem %s0, %s452
      %p454 = pneg %p47
      %p455 = pneg %p44
      %p456 = scmp.lt.s32.totalorder %s26, 1
      %s457 = scalar_select %p456, %s26, 1
      %s458 = scalar_lea.vmem %s1, %s457
      %p459 = pneg %p73
      %p460 = pneg %p70
      %p461 = pneg %p94
      %p462 = pneg %p91
      %p463 = pneg %p115
      %p464 = pneg %p112
      %p465 = pneg %p136
      %p466 = pneg %p133
      %p467 = pneg %p157
      %p468 = pneg %p154
      %p469 = pneg %p178
      %p470 = pneg %p175
      %p471 = pneg %p199
      %p472 = pneg %p196
      %p473 = pneg %p220
      %p474 = pneg %p217
      %p475 = pneg %p241
      %p476 = pneg %p238
      %p477 = pneg %p262
      %p478 = pneg %p259
      %p479 = pneg %p283
      %p480 = pneg %p280
      %p481 = pneg %p304
      %p482 = pneg %p301
      %p483 = pneg %p325
      %p484 = pneg %p322
      %p485 = pneg %p346
      %p486 = pneg %p343
      %p487 = pneg %p372
      %p488 = pneg %p369
      %p489 = scmp.lt.s32.totalorder %s26, 1
      %s490 = scalar_select %p489, %s26, 1
      %s491 = smul.addr %s490, 8
      %s492 = scalar_lea.vmem %s15, %s491
      %p493 = scmp.lt.s32.totalorder %s26, 1
      %s494 = scalar_select %p493, %s26, 1
      %s495 = smul.addr %s494, 8
      %s496 = scalar_lea.vmem %s0, %s495
      %p497 = scmp.lt.s32.totalorder %s26, 1
      %s498 = scalar_select %p497, %s26, 1
      %s499 = scalar_lea.vmem %s1, %s498
      %p500 = scmp.lt.s32.totalorder %s26, 1
      %s501 = scalar_select %p500, %s26, 1
      %s502 = smul.addr %s501, 8
      %s503 = scalar_lea.vmem %s15, %s502
      %v505 = vld [vmem:[%s496] sm:$0xff]
      %v506 = vld [vmem:[%s499] sm:$0x1]
      %v507 = vmul.f32 %v506, -1e+09
      %v508 = vpack.c.bf16 %v505, %v505
      %v509 = vld [vmem:[%s2] sm:$0xf]
      %v510 = vld [vmem:[%s2 + $0x4] sm:$0xf]
      %v511 = vld [vmem:[%s2 + $0x8] sm:$0xf]
      %v512 = vld [vmem:[%s2 + $0xc] sm:$0xf]
      %v513 = vld [vmem:[%s2 + $0x10] sm:$0xf]
      %v514 = vld [vmem:[%s2 + $0x14] sm:$0xf]
      %v515 = vld [vmem:[%s2 + $0x18] sm:$0xf]
      %v516 = vld [vmem:[%s2 + $0x1c] sm:$0xf]
      %v517 = vld [vmem:[%s2 + $0x20] sm:$0xf]
      %v518 = vld [vmem:[%s2 + $0x24] sm:$0xf]
      %v519 = vld [vmem:[%s2 + $0x28] sm:$0xf]
      %v520 = vld [vmem:[%s2 + $0x2c] sm:$0xf]
      %v521 = vld [vmem:[%s2 + $0x30] sm:$0xf]
      %v522 = vld [vmem:[%s2 + $0x34] sm:$0xf]
      %v523 = vld [vmem:[%s2 + $0x38] sm:$0xf]
      %v524 = vld [vmem:[%s2 + $0x3c] sm:$0xf]
      %v525 = vld [vmem:[%s3] sm:$0xf]
      %v526 = vld [vmem:[%s3 + $0x4] sm:$0xf]
      %v527 = vld [vmem:[%s3 + $0x8] sm:$0xf]
      %v528 = vld [vmem:[%s3 + $0xc] sm:$0xf]
      %v529 = vld [vmem:[%s3 + $0x10] sm:$0xf]
      %v530 = vld [vmem:[%s3 + $0x14] sm:$0xf]
      %v531 = vld [vmem:[%s3 + $0x18] sm:$0xf]
      %v532 = vld [vmem:[%s3 + $0x1c] sm:$0xf]
      %v533 = vld [vmem:[%s3 + $0x20] sm:$0xf]
      %v534 = vld [vmem:[%s3 + $0x24] sm:$0xf]
      %v535 = vld [vmem:[%s3 + $0x28] sm:$0xf]
      %v536 = vld [vmem:[%s3 + $0x2c] sm:$0xf]
      %v537 = vld [vmem:[%s3 + $0x30] sm:$0xf]
      %v538 = vld [vmem:[%s3 + $0x34] sm:$0xf]
      %v539 = vld [vmem:[%s3 + $0x38] sm:$0xf]
      %v540 = vld [vmem:[%s3 + $0x3c] sm:$0xf]
      %v541 = vld [vmem:[%s4] sm:$0xf]
      %v542 = vld [vmem:[%s4 + $0x4] sm:$0xf]
      %v543 = vld [vmem:[%s4 + $0x8] sm:$0xf]
      %v544 = vld [vmem:[%s4 + $0xc] sm:$0xf]
      %v545 = vld [vmem:[%s4 + $0x10] sm:$0xf]
      %v546 = vld [vmem:[%s4 + $0x14] sm:$0xf]
      %v547 = vld [vmem:[%s4 + $0x18] sm:$0xf]
      %v548 = vld [vmem:[%s4 + $0x1c] sm:$0xf]
      %v549 = vld [vmem:[%s4 + $0x20] sm:$0xf]
      %v550 = vld [vmem:[%s4 + $0x24] sm:$0xf]
      %v551 = vld [vmem:[%s4 + $0x28] sm:$0xf]
      %v552 = vld [vmem:[%s4 + $0x2c] sm:$0xf]
      %v553 = vld [vmem:[%s4 + $0x30] sm:$0xf]
      %v554 = vld [vmem:[%s4 + $0x34] sm:$0xf]
      %v555 = vld [vmem:[%s4 + $0x38] sm:$0xf]
      %v556 = vld [vmem:[%s4 + $0x3c] sm:$0xf]
      %v557 = vld [vmem:[%s5] sm:$0xf]
      %v558 = vld [vmem:[%s5 + $0x4] sm:$0xf]
      %v559 = vld [vmem:[%s5 + $0x8] sm:$0xf]
      %v560 = vld [vmem:[%s5 + $0xc] sm:$0xf]
      %v561 = vld [vmem:[%s6] sm:$0x1]
      %v566 = vunpack.c.l.b16 %v509
      %v567 = vunpack.c.l.b16 %v510
      %v568 = vunpack.c.l.b16 %v511
      %v569 = vunpack.c.l.b16 %v512
      %v570 = vpack.c.b16 %v567, %v566
      %v571 = vpack.c.b16 %v569, %v568
      %vm574 = vcmask 261120
      %v576 = vsel %vm574, %v508, 0
      %578 = vmatpush.bf16.msra.mxu0 0
      %579 = vmatpush.bf16.msra.mxu0 0
      %580 = vmatpush.bf16.msra.mxu0 0
      %581 = vmatpush.bf16.msra.mxu0 0
      %582 = vmatpush.bf16.msra.mxu0 0
      %583 = vmatpush.bf16.msra.mxu0 0
      %584 = vmatpush.bf16.msra.mxu0 %v571
      %585 = vmatpush.bf16.msra.mxu0 %v570
      %586 = vmatmul.bf16.gmra.mxu0 %v576
      %v587 = vpop.f32.mrf.mxu0
      %v588 = vadd.f32 0.0, %v587
      %v589 = vpop.f32.mrf.mxu0
      %590 = vdwg.mxu0
      %v595 = vunpack.c.l.b16 %v513
      %v596 = vunpack.c.l.b16 %v514
      %v597 = vunpack.c.l.b16 %v515
      %v598 = vunpack.c.l.b16 %v516
      %v599 = vpack.c.b16 %v596, %v595
      %v600 = vpack.c.b16 %v598, %v597
      %603 = vmatpush.bf16.msra.mxu0 0
      %604 = vmatpush.bf16.msra.mxu0 0
      %605 = vmatpush.bf16.msra.mxu0 0
      %606 = vmatpush.bf16.msra.mxu0 0
      %607 = vmatpush.bf16.msra.mxu0 0
      %608 = vmatpush.bf16.msra.mxu0 0
      %609 = vmatpush.bf16.msra.mxu0 %v600
      %610 = vmatpush.bf16.msra.mxu0 %v599
      %611 = vmatmul.bf16.gmra.mxu0 %v576
      %v612 = vpop.f32.mrf.mxu0
      %v613 = vadd.f32 0.0, %v612
      %v614 = vpop.f32.mrf.mxu0
      %615 = vdwg.mxu0
      %v620 = vunpack.c.l.b16 %v517
      %v621 = vunpack.c.l.b16 %v518
      %v622 = vunpack.c.l.b16 %v519
      %v623 = vunpack.c.l.b16 %v520
      %v624 = vpack.c.b16 %v621, %v620
      %v625 = vpack.c.b16 %v623, %v622
      %628 = vmatpush.bf16.msra.mxu0 0
      %629 = vmatpush.bf16.msra.mxu0 0
      %630 = vmatpush.bf16.msra.mxu0 0
      %631 = vmatpush.bf16.msra.mxu0 0
      %632 = vmatpush.bf16.msra.mxu0 0
      %633 = vmatpush.bf16.msra.mxu0 0
      %634 = vmatpush.bf16.msra.mxu0 %v625
      %635 = vmatpush.bf16.msra.mxu0 %v624
      %636 = vmatmul.bf16.gmra.mxu0 %v576
      %v637 = vpop.f32.mrf.mxu0
      %v638 = vadd.f32 0.0, %v637
      %v639 = vpop.f32.mrf.mxu0
      %640 = vdwg.mxu0
      %v645 = vunpack.c.l.b16 %v521
      %v646 = vunpack.c.l.b16 %v522
      %v647 = vunpack.c.l.b16 %v523
      %v648 = vunpack.c.l.b16 %v524
      %v649 = vpack.c.b16 %v646, %v645
      %v650 = vpack.c.b16 %v648, %v647
      %653 = vmatpush.bf16.msra.mxu0 0
      %654 = vmatpush.bf16.msra.mxu0 0
      %655 = vmatpush.bf16.msra.mxu0 0
      %656 = vmatpush.bf16.msra.mxu0 0
      %657 = vmatpush.bf16.msra.mxu0 0
      %658 = vmatpush.bf16.msra.mxu0 0
      %659 = vmatpush.bf16.msra.mxu0 %v650
      %660 = vmatpush.bf16.msra.mxu0 %v649
      %661 = vmatmul.bf16.gmra.mxu0 %v576
      %v662 = vpop.f32.mrf.mxu0
      %v663 = vadd.f32 0.0, %v662
      %v664 = vpop.f32.mrf.mxu0
      %665 = vdwg.mxu0
      %v670 = vunpack.c.l.b16 %v525
      %v671 = vunpack.c.l.b16 %v526
      %v672 = vunpack.c.l.b16 %v527
      %v673 = vunpack.c.l.b16 %v528
      %v674 = vpack.c.b16 %v671, %v670
      %v675 = vpack.c.b16 %v673, %v672
      %678 = vmatpush.bf16.msra.mxu0 0
      %679 = vmatpush.bf16.msra.mxu0 0
      %680 = vmatpush.bf16.msra.mxu0 0
      %681 = vmatpush.bf16.msra.mxu0 0
      %682 = vmatpush.bf16.msra.mxu0 0
      %683 = vmatpush.bf16.msra.mxu0 0
      %684 = vmatpush.bf16.msra.mxu0 %v675
      %685 = vmatpush.bf16.msra.mxu0 %v674
      %686 = vmatmul.bf16.gmra.mxu0 %v576
      %v687 = vpop.f32.mrf.mxu0
      %v688 = vadd.f32 0.0, %v687
      %v689 = vpop.f32.mrf.mxu0
      %690 = vdwg.mxu0
      %v695 = vunpack.c.l.b16 %v529
      %v696 = vunpack.c.l.b16 %v530
      %v697 = vunpack.c.l.b16 %v531
      %v698 = vunpack.c.l.b16 %v532
      %v699 = vpack.c.b16 %v696, %v695
      %v700 = vpack.c.b16 %v698, %v697
      %703 = vmatpush.bf16.msra.mxu0 0
      %704 = vmatpush.bf16.msra.mxu0 0
      %705 = vmatpush.bf16.msra.mxu0 0
      %706 = vmatpush.bf16.msra.mxu0 0
      %707 = vmatpush.bf16.msra.mxu0 0
      %708 = vmatpush.bf16.msra.mxu0 0
      %709 = vmatpush.bf16.msra.mxu0 %v700
      %710 = vmatpush.bf16.msra.mxu0 %v699
      %711 = vmatmul.bf16.gmra.mxu0 %v576
      %v712 = vpop.f32.mrf.mxu0
      %v713 = vadd.f32 0.0, %v712
      %v714 = vpop.f32.mrf.mxu0
      %715 = vdwg.mxu0
      %v720 = vunpack.c.l.b16 %v533
      %v721 = vunpack.c.l.b16 %v534
      %v722 = vunpack.c.l.b16 %v535
      %v723 = vunpack.c.l.b16 %v536
      %v724 = vpack.c.b16 %v721, %v720
      %v725 = vpack.c.b16 %v723, %v722
      %728 = vmatpush.bf16.msra.mxu0 0
      %729 = vmatpush.bf16.msra.mxu0 0
      %730 = vmatpush.bf16.msra.mxu0 0
      %731 = vmatpush.bf16.msra.mxu0 0
      %732 = vmatpush.bf16.msra.mxu0 0
      %733 = vmatpush.bf16.msra.mxu0 0
      %734 = vmatpush.bf16.msra.mxu0 %v725
      %735 = vmatpush.bf16.msra.mxu0 %v724
      %736 = vmatmul.bf16.gmra.mxu0 %v576
      %v737 = vpop.f32.mrf.mxu0
      %v738 = vadd.f32 0.0, %v737
      %v739 = vpop.f32.mrf.mxu0
      %740 = vdwg.mxu0
      %v745 = vunpack.c.l.b16 %v537
      %v746 = vunpack.c.l.b16 %v538
      %v747 = vunpack.c.l.b16 %v539
      %v748 = vunpack.c.l.b16 %v540
      %v749 = vpack.c.b16 %v746, %v745
      %v750 = vpack.c.b16 %v748, %v747
      %753 = vmatpush.bf16.msra.mxu0 0
      %754 = vmatpush.bf16.msra.mxu0 0
      %755 = vmatpush.bf16.msra.mxu0 0
      %756 = vmatpush.bf16.msra.mxu0 0
      %757 = vmatpush.bf16.msra.mxu0 0
      %758 = vmatpush.bf16.msra.mxu0 0
      %759 = vmatpush.bf16.msra.mxu0 %v750
      %760 = vmatpush.bf16.msra.mxu0 %v749
      %761 = vmatmul.bf16.gmra.mxu0 %v576
      %v762 = vpop.f32.mrf.mxu0
      %v763 = vadd.f32 0.0, %v762
      %v764 = vpop.f32.mrf.mxu0
      %765 = vdwg.mxu0
      %v770 = vunpack.c.l.b16 %v541
      %v771 = vunpack.c.l.b16 %v542
      %v772 = vunpack.c.l.b16 %v543
      %v773 = vunpack.c.l.b16 %v544
      %v774 = vpack.c.b16 %v771, %v770
      %v775 = vpack.c.b16 %v773, %v772
      %778 = vmatpush.bf16.msra.mxu0 0
      %779 = vmatpush.bf16.msra.mxu0 0
      %780 = vmatpush.bf16.msra.mxu0 0
      %781 = vmatpush.bf16.msra.mxu0 0
      %782 = vmatpush.bf16.msra.mxu0 0
      %783 = vmatpush.bf16.msra.mxu0 0
      %784 = vmatpush.bf16.msra.mxu0 %v775
      %785 = vmatpush.bf16.msra.mxu0 %v774
      %786 = vmatmul.bf16.gmra.mxu0 %v576
      %v787 = vpop.f32.mrf.mxu0
      %v788 = vadd.f32 0.0, %v787
      %v789 = vpop.f32.mrf.mxu0
      %790 = vdwg.mxu0
      %v795 = vunpack.c.l.b16 %v545
      %v796 = vunpack.c.l.b16 %v546
      %v797 = vunpack.c.l.b16 %v547
      %v798 = vunpack.c.l.b16 %v548
      %v799 = vpack.c.b16 %v796, %v795
      %v800 = vpack.c.b16 %v798, %v797
      %803 = vmatpush.bf16.msra.mxu0 0
      %804 = vmatpush.bf16.msra.mxu0 0
      %805 = vmatpush.bf16.msra.mxu0 0
      %806 = vmatpush.bf16.msra.mxu0 0
      %807 = vmatpush.bf16.msra.mxu0 0
      %808 = vmatpush.bf16.msra.mxu0 0
      %809 = vmatpush.bf16.msra.mxu0 %v800
      %810 = vmatpush.bf16.msra.mxu0 %v799
      %811 = vmatmul.bf16.gmra.mxu0 %v576
      %v812 = vpop.f32.mrf.mxu0
      %v813 = vadd.f32 0.0, %v812
      %v814 = vpop.f32.mrf.mxu0
      %815 = vdwg.mxu0
      %v820 = vunpack.c.l.b16 %v549
      %v821 = vunpack.c.l.b16 %v550
      %v822 = vunpack.c.l.b16 %v551
      %v823 = vunpack.c.l.b16 %v552
      %v824 = vpack.c.b16 %v821, %v820
      %v825 = vpack.c.b16 %v823, %v822
      %828 = vmatpush.bf16.msra.mxu0 0
      %829 = vmatpush.bf16.msra.mxu0 0
      %830 = vmatpush.bf16.msra.mxu0 0
      %831 = vmatpush.bf16.msra.mxu0 0
      %832 = vmatpush.bf16.msra.mxu0 0
      %833 = vmatpush.bf16.msra.mxu0 0
      %834 = vmatpush.bf16.msra.mxu0 %v825
      %835 = vmatpush.bf16.msra.mxu0 %v824
      %836 = vmatmul.bf16.gmra.mxu0 %v576
      %v837 = vpop.f32.mrf.mxu0
      %v838 = vadd.f32 0.0, %v837
      %v839 = vpop.f32.mrf.mxu0
      %840 = vdwg.mxu0
      %v845 = vunpack.c.l.b16 %v553
      %v846 = vunpack.c.l.b16 %v554
      %v847 = vunpack.c.l.b16 %v555
      %v848 = vunpack.c.l.b16 %v556
      %v849 = vpack.c.b16 %v846, %v845
      %v850 = vpack.c.b16 %v848, %v847
      %853 = vmatpush.bf16.msra.mxu0 0
      %854 = vmatpush.bf16.msra.mxu0 0
      %855 = vmatpush.bf16.msra.mxu0 0
      %856 = vmatpush.bf16.msra.mxu0 0
      %857 = vmatpush.bf16.msra.mxu0 0
      %858 = vmatpush.bf16.msra.mxu0 0
      %859 = vmatpush.bf16.msra.mxu0 %v850
      %860 = vmatpush.bf16.msra.mxu0 %v849
      %861 = vmatmul.bf16.gmra.mxu0 %v576
      %v862 = vpop.f32.mrf.mxu0
      %v863 = vadd.f32 0.0, %v862
      %v864 = vpop.f32.mrf.mxu0
      %865 = vdwg.mxu0
      %v866 = vpack.c.bf16 %v588, %v588
      %v867 = vpack.c.bf16 %v613, %v613
      %v868 = vpack.c.bf16 %v638, %v638
      %v869 = vpack.c.bf16 %v663, %v663
      %v870 = vpack.c.bf16 %v688, %v688
      %v871 = vpack.c.bf16 %v713, %v713
      %v872 = vpack.c.bf16 %v738, %v738
      %v873 = vpack.c.bf16 %v763, %v763
      %v875 = vperm.slane %v507, 0
      %vm877 = vcmask 64512
      %v879 = vsel %vm877, %v866, 0
      %v882 = vsel %vm877, %v870, 0
      %884 = vmatpush.bf16.xpose.msra.mxu0 0
      %885 = vmatpush.bf16.xpose.msra.mxu0 0
      %886 = vmatpush.bf16.xpose.msra.mxu0 0
      %887 = vmatpush.bf16.xpose.msra.mxu0 0
      %888 = vmatpush.bf16.xpose.msra.mxu0 0
      %889 = vmatpush.bf16.xpose.msra.mxu0 0
      %890 = vmatpush.bf16.xpose.msra.mxu0 0
      %891 = vmatpush.bf16.xpose.msra.mxu0 %v882
      %892 = vmatmul.bf16.gmra.mxu0 %v879
      %v893 = vpop.f32.mrf.mxu0
      %v894 = vadd.f32 %v875, %v893
      %v895 = vpop.f32.mrf.mxu0
      %896 = vdwg.mxu0
      %v898 = vsel %vm877, %v867, 0
      %v901 = vsel %vm877, %v871, 0
      %903 = vmatpush.bf16.xpose.msra.mxu0 0
      %904 = vmatpush.bf16.xpose.msra.mxu0 0
      %905 = vmatpush.bf16.xpose.msra.mxu0 0
      %906 = vmatpush.bf16.xpose.msra.mxu0 0
      %907 = vmatpush.bf16.xpose.msra.mxu0 0
      %908 = vmatpush.bf16.xpose.msra.mxu0 0
      %909 = vmatpush.bf16.xpose.msra.mxu0 0
      %910 = vmatpush.bf16.xpose.msra.mxu0 %v901
      %911 = vmatmul.bf16.gmra.mxu0 %v898
      %v912 = vpop.f32.mrf.mxu0
      %v913 = vadd.f32 %v875, %v912
      %v914 = vpop.f32.mrf.mxu0
      %915 = vdwg.mxu0
      %v917 = vsel %vm877, %v868, 0
      %v920 = vsel %vm877, %v872, 0
      %922 = vmatpush.bf16.xpose.msra.mxu0 0
      %923 = vmatpush.bf16.xpose.msra.mxu0 0
      %924 = vmatpush.bf16.xpose.msra.mxu0 0
      %925 = vmatpush.bf16.xpose.msra.mxu0 0
      %926 = vmatpush.bf16.xpose.msra.mxu0 0
      %927 = vmatpush.bf16.xpose.msra.mxu0 0
      %928 = vmatpush.bf16.xpose.msra.mxu0 0
      %929 = vmatpush.bf16.xpose.msra.mxu0 %v920
      %930 = vmatmul.bf16.gmra.mxu0 %v917
      %v931 = vpop.f32.mrf.mxu0
      %v932 = vadd.f32 %v875, %v931
      %v933 = vpop.f32.mrf.mxu0
      %934 = vdwg.mxu0
      %v936 = vsel %vm877, %v869, 0
      %v939 = vsel %vm877, %v873, 0
      %941 = vmatpush.bf16.xpose.msra.mxu0 0
      %942 = vmatpush.bf16.xpose.msra.mxu0 0
      %943 = vmatpush.bf16.xpose.msra.mxu0 0
      %944 = vmatpush.bf16.xpose.msra.mxu0 0
      %945 = vmatpush.bf16.xpose.msra.mxu0 0
      %946 = vmatpush.bf16.xpose.msra.mxu0 0
      %947 = vmatpush.bf16.xpose.msra.mxu0 0
      %948 = vmatpush.bf16.xpose.msra.mxu0 %v939
      %949 = vmatmul.bf16.gmra.mxu0 %v936
      %v950 = vpop.f32.mrf.mxu0
      %v951 = vadd.f32 %v875, %v950
      %v952 = vpop.f32.mrf.mxu0
      %953 = vdwg.mxu0
      %v954 = vsel %vm877, %v894, -inf
      %955 = vmax.xlane.f32.xlu0 %v954
      %v956 = vpop.xlane.xlu0 %955
      %v957 = vsel %vm877, %v913, -inf
      %958 = vmax.xlane.f32.xlu0 %v957
      %v959 = vpop.xlane.xlu0 %958
      %v960 = vsel %vm877, %v932, -inf
      %961 = vmax.xlane.f32.xlu0 %v960
      %v962 = vpop.xlane.xlu0 %961
      %v963 = vsel %vm877, %v951, -inf
      %964 = vmax.xlane.f32.xlu0 %v963
      %v965 = vpop.xlane.xlu0 %964
      %v966 = vsub.f32 %v894, %v956
      %v967 = vsub.f32 %v913, %v959
      %v968 = vsub.f32 %v932, %v962
      %v969 = vsub.f32 %v951, %v965
      %v970 = vmul.f32 %v966, 1.442695
      %v971 = vpow.pop %v970
      %v972 = vmul.f32 %v967, 1.442695
      %v973 = vpow.pop %v972
      %v974 = vmul.f32 %v968, 1.442695
      %v975 = vpow.pop %v974
      %v976 = vmul.f32 %v969, 1.442695
      %v977 = vpow.pop %v976
      %v978 = vsel %vm877, %v971, 0.0
      %979 = vadd.xlane.f32.xlu0 %v978
      %v980 = vpop.xlane.xlu0 %979
      %v981 = vsel %vm877, %v973, 0.0
      %982 = vadd.xlane.f32.xlu0 %v981
      %v983 = vpop.xlane.xlu0 %982
      %v984 = vsel %vm877, %v975, 0.0
      %985 = vadd.xlane.f32.xlu0 %v984
      %v986 = vpop.xlane.xlu0 %985
      %v987 = vsel %vm877, %v977, 0.0
      %988 = vadd.xlane.f32.xlu0 %v987
      %v989 = vpop.xlane.xlu0 %988
      %v990 = vrcp.pop %v980
      %v991 = vmul.f32 %v980, %v990
      %v992 = vsub.f32 1.0, %v991
      %v993 = vmul.f32 %v990, %v992
      %v994 = vadd.f32 %v990, %v993
      %vm995 = vweird.f32 %v980
      %vm996 = vweird.f32 %v990
      %vm997 = vmor %vm995, %vm996
      %v998 = vsel %vm997, %v990, %v994
      %v999 = vand.u32 2147483647, %v980
      %vm1000 = vcmp.eq.f32.partialorder %v999, 8.507059e+37
      %v1001 = vand.u32 %v980, 2147483648
      %v1002 = vor.u32 1.1754944e-38, %v1001
      %v1003 = vsel %vm1000, %v1002, %v998
      %v1004 = vmul.f32 %v971, %v1003
      %v1005 = vrcp.pop %v983
      %v1006 = vmul.f32 %v983, %v1005
      %v1007 = vsub.f32 1.0, %v1006
      %v1008 = vmul.f32 %v1005, %v1007
      %v1009 = vadd.f32 %v1005, %v1008
      %vm1010 = vweird.f32 %v983
      %vm1011 = vweird.f32 %v1005
      %vm1012 = vmor %vm1010, %vm1011
      %v1013 = vsel %vm1012, %v1005, %v1009
      %v1014 = vand.u32 2147483647, %v983
      %vm1015 = vcmp.eq.f32.partialorder %v1014, 8.507059e+37
      %v1016 = vand.u32 %v983, 2147483648
      %v1017 = vor.u32 1.1754944e-38, %v1016
      %v1018 = vsel %vm1015, %v1017, %v1013
      %v1019 = vmul.f32 %v973, %v1018
      %v1020 = vrcp.pop %v986
      %v1021 = vmul.f32 %v986, %v1020
      %v1022 = vsub.f32 1.0, %v1021
      %v1023 = vmul.f32 %v1020, %v1022
      %v1024 = vadd.f32 %v1020, %v1023
      %vm1025 = vweird.f32 %v986
      %vm1026 = vweird.f32 %v1020
      %vm1027 = vmor %vm1025, %vm1026
      %v1028 = vsel %vm1027, %v1020, %v1024
      %v1029 = vand.u32 2147483647, %v986
      %vm1030 = vcmp.eq.f32.partialorder %v1029, 8.507059e+37
      %v1031 = vand.u32 %v986, 2147483648
      %v1032 = vor.u32 1.1754944e-38, %v1031
      %v1033 = vsel %vm1030, %v1032, %v1028
      %v1034 = vmul.f32 %v975, %v1033
      %v1035 = vrcp.pop %v989
      %v1036 = vmul.f32 %v989, %v1035
      %v1037 = vsub.f32 1.0, %v1036
      %v1038 = vmul.f32 %v1035, %v1037
      %v1039 = vadd.f32 %v1035, %v1038
      %vm1040 = vweird.f32 %v989
      %vm1041 = vweird.f32 %v1035
      %vm1042 = vmor %vm1040, %vm1041
      %v1043 = vsel %vm1042, %v1035, %v1039
      %v1044 = vand.u32 2147483647, %v989
      %vm1045 = vcmp.eq.f32.partialorder %v1044, 8.507059e+37
      %v1046 = vand.u32 %v989, 2147483648
      %v1047 = vor.u32 1.1754944e-38, %v1046
      %v1048 = vsel %vm1045, %v1047, %v1043
      %v1049 = vmul.f32 %v977, %v1048
      %v1050 = vpack.c.bf16 %v1004, %v1004
      %v1051 = vpack.c.bf16 %v1019, %v1019
      %v1052 = vpack.c.bf16 %v1034, %v1034
      %v1053 = vpack.c.bf16 %v1049, %v1049
      %v1054 = vpack.c.bf16 %v788, %v788
      %v1055 = vpack.c.bf16 %v813, %v813
      %v1056 = vpack.c.bf16 %v838, %v838
      %v1057 = vpack.c.bf16 %v863, %v863
      %v1059 = vsel %vm877, %v1050, 0
      %vm1061 = vcmask 1043456
      %v1063 = vsel %vm1061, %v1054, 0
      %1065 = vmatpush.bf16.msra.mxu0 0
      %1066 = vmatpush.bf16.msra.mxu0 0
      %1067 = vmatpush.bf16.msra.mxu0 0
      %1068 = vmatpush.bf16.msra.mxu0 0
      %1069 = vmatpush.bf16.msra.mxu0 0
      %1070 = vmatpush.bf16.msra.mxu0 0
      %1071 = vmatpush.bf16.msra.mxu0 0
      %1072 = vmatpush.bf16.msra.mxu0 %v1063
      %1073 = vmatmul.bf16.gmra.mxu0 %v1059
      %v1074 = vpop.f32.mrf.mxu0
      %v1075 = vadd.f32 0.0, %v1074
      %v1076 = vpop.f32.mrf.mxu0
      %1077 = vdwg.mxu0
      %v1079 = vsel %vm877, %v1051, 0
      %v1082 = vsel %vm1061, %v1055, 0
      %1084 = vmatpush.bf16.msra.mxu0 0
      %1085 = vmatpush.bf16.msra.mxu0 0
      %1086 = vmatpush.bf16.msra.mxu0 0
      %1087 = vmatpush.bf16.msra.mxu0 0
      %1088 = vmatpush.bf16.msra.mxu0 0
      %1089 = vmatpush.bf16.msra.mxu0 0
      %1090 = vmatpush.bf16.msra.mxu0 0
      %1091 = vmatpush.bf16.msra.mxu0 %v1082
      %1092 = vmatmul.bf16.gmra.mxu0 %v1079
      %v1093 = vpop.f32.mrf.mxu0
      %v1094 = vadd.f32 0.0, %v1093
      %v1095 = vpop.f32.mrf.mxu0
      %1096 = vdwg.mxu0
      %v1098 = vsel %vm877, %v1052, 0
      %v1101 = vsel %vm1061, %v1056, 0
      %1103 = vmatpush.bf16.msra.mxu0 0
      %1104 = vmatpush.bf16.msra.mxu0 0
      %1105 = vmatpush.bf16.msra.mxu0 0
      %1106 = vmatpush.bf16.msra.mxu0 0
      %1107 = vmatpush.bf16.msra.mxu0 0
      %1108 = vmatpush.bf16.msra.mxu0 0
      %1109 = vmatpush.bf16.msra.mxu0 0
      %1110 = vmatpush.bf16.msra.mxu0 %v1101
      %1111 = vmatmul.bf16.gmra.mxu0 %v1098
      %v1112 = vpop.f32.mrf.mxu0
      %v1113 = vadd.f32 0.0, %v1112
      %v1114 = vpop.f32.mrf.mxu0
      %1115 = vdwg.mxu0
      %v1117 = vsel %vm877, %v1053, 0
      %v1120 = vsel %vm1061, %v1057, 0
      %1122 = vmatpush.bf16.msra.mxu0 0
      %1123 = vmatpush.bf16.msra.mxu0 0
      %1124 = vmatpush.bf16.msra.mxu0 0
      %1125 = vmatpush.bf16.msra.mxu0 0
      %1126 = vmatpush.bf16.msra.mxu0 0
      %1127 = vmatpush.bf16.msra.mxu0 0
      %1128 = vmatpush.bf16.msra.mxu0 0
      %1129 = vmatpush.bf16.msra.mxu0 %v1120
      %1130 = vmatmul.bf16.gmra.mxu0 %v1117
      %v1131 = vpop.f32.mrf.mxu0
      %v1132 = vadd.f32 0.0, %v1131
      %v1133 = vpop.f32.mrf.mxu0
      %1134 = vdwg.mxu0
      %v1135 = vpack.c.bf16 %v1075, %v1075
      %v1136 = vpack.c.bf16 %v1094, %v1094
      %v1137 = vpack.c.bf16 %v1113, %v1113
      %v1138 = vpack.c.bf16 %v1132, %v1132
      %v1140 = vsel %vm877, %v1135, 0
      %v1143 = vsel %vm1061, %v557, 0
      %1145 = vmatpush.bf16.msra.mxu0 0
      %1146 = vmatpush.bf16.msra.mxu0 0
      %1147 = vmatpush.bf16.msra.mxu0 0
      %1148 = vmatpush.bf16.msra.mxu0 0
      %1149 = vmatpush.bf16.msra.mxu0 0
      %1150 = vmatpush.bf16.msra.mxu0 0
      %1151 = vmatpush.bf16.msra.mxu0 0
      %1152 = vmatpush.bf16.msra.mxu0 %v1143
      %1153 = vmatmul.bf16.gmra.mxu0 %v1140
      %v1154 = vpop.f32.mrf.mxu0
      %v1155 = vadd.f32 0.0, %v1154
      %v1156 = vpop.f32.mrf.mxu0
      %1157 = vdwg.mxu0
      %v1159 = vsel %vm877, %v1136, 0
      %v1162 = vsel %vm1061, %v558, 0
      %1164 = vmatpush.bf16.msra.mxu0 0
      %1165 = vmatpush.bf16.msra.mxu0 0
      %1166 = vmatpush.bf16.msra.mxu0 0
      %1167 = vmatpush.bf16.msra.mxu0 0
      %1168 = vmatpush.bf16.msra.mxu0 0
      %1169 = vmatpush.bf16.msra.mxu0 0
      %1170 = vmatpush.bf16.msra.mxu0 0
      %1171 = vmatpush.bf16.msra.mxu0 %v1162
      %1172 = vmatmul.bf16.gmra.mxu0 %v1159
      %v1173 = vpop.f32.mrf.mxu0
      %v1174 = vadd.f32 0.0, %v1173
      %v1175 = vpop.f32.mrf.mxu0
      %1176 = vdwg.mxu0
      %v1178 = vsel %vm877, %v1137, 0
      %v1181 = vsel %vm1061, %v559, 0
      %1183 = vmatpush.bf16.msra.mxu0 0
      %1184 = vmatpush.bf16.msra.mxu0 0
      %1185 = vmatpush.bf16.msra.mxu0 0
      %1186 = vmatpush.bf16.msra.mxu0 0
      %1187 = vmatpush.bf16.msra.mxu0 0
      %1188 = vmatpush.bf16.msra.mxu0 0
      %1189 = vmatpush.bf16.msra.mxu0 0
      %1190 = vmatpush.bf16.msra.mxu0 %v1181
      %1191 = vmatmul.bf16.gmra.mxu0 %v1178
      %v1192 = vpop.f32.mrf.mxu0
      %v1193 = vadd.f32 0.0, %v1192
      %v1194 = vpop.f32.mrf.mxu0
      %1195 = vdwg.mxu0
      %v1197 = vsel %vm877, %v1138, 0
      %v1200 = vsel %vm1061, %v560, 0
      %1202 = vmatpush.bf16.msra.mxu0 0
      %1203 = vmatpush.bf16.msra.mxu0 0
      %1204 = vmatpush.bf16.msra.mxu0 0
      %1205 = vmatpush.bf16.msra.mxu0 0
      %1206 = vmatpush.bf16.msra.mxu0 0
      %1207 = vmatpush.bf16.msra.mxu0 0
      %1208 = vmatpush.bf16.msra.mxu0 0
      %1209 = vmatpush.bf16.msra.mxu0 %v1200
      %1210 = vmatmul.bf16.gmra.mxu0 %v1197
      %v1211 = vpop.f32.mrf.mxu0
      %v1212 = vadd.f32 0.0, %v1211
      %v1213 = vpop.f32.mrf.mxu0
      %1214 = vdwg.mxu0
      %v1215 = vsel %vm574, %v1155, 0.0
      %v1216 = vsel %vm574, %v1174, 0.0
      %v1217 = vadd.f32 %v1215, %v1216
      %v1218 = vsel %vm574, %v1193, 0.0
      %v1219 = vadd.f32 %v1217, %v1218
      %v1220 = vsel %vm574, %v1212, 0.0
      %v1221 = vadd.f32 %v1219, %v1220
      %v1223 = vperm.slane %v561, 0
      %v1225 = vadd.f32 %v1221, %v1223
      %v1226 = vadd.f32 %v1225, %v505
      %v1227 = vld [vmem:[%s7] sm:$0x1]
      %v1228 = vld [vmem:[%s8] sm:$0x1]
      %v1229 = vsel %vm574, %v1226, 0.0
      %1230 = vadd.xlane.f32.xlu0 %v1229
      %v1231 = vpop.xlane.xlu0 %1230
      %v1232 = vrcp.pop 32.0
      %v1233 = vmul.f32 32.0, %v1232
      %v1234 = vsub.f32 1.0, %v1233
      %v1235 = vmul.f32 %v1232, %v1234
      %v1236 = vadd.f32 %v1232, %v1235
      %vm1237 = vweird.f32 %v1232
      %v1238 = vsel %vm1237, %v1232, %v1236
      %v1239 = vmul.f32 %v1231, %v1238
      %v1240 = vsub.f32 %v1226, %v1239
      %v1241 = vmul.f32 %v1240, %v1240
      %v1242 = vsel %vm574, %v1241, 0.0
      %1243 = vadd.xlane.f32.xlu0 %v1242
      %v1244 = vpop.xlane.xlu0 %1243
      %v1245 = vmul.f32 %v1244, %v1238
      %v1246 = vadd.f32 %v1245, 1e-05
      %v1247 = vrsqrt.pop %v1246
      %v1248 = vmul.f32 %v1247, %v1246
      %v1249 = vmul.f32 %v1248, %v1247
      %v1250 = vmul.f32 0.5, %v1249
      %v1251 = vsub.f32 1.5, %v1250
      %v1252 = vmul.f32 %v1247, %v1251
      %vm1253 = vweird.f32 %v1246
      %vm1254 = vweird.f32 %v1247
      %vm1255 = vmor %vm1253, %vm1254
      %v1256 = vsel %vm1255, %v1247, %v1252
      %v1257 = vmul.f32 %v1240, %v1256
      %v1259 = vperm.slane %v1227, 0
      %v1261 = vmul.f32 %v1257, %v1259
      %v1263 = vperm.slane %v1228, 0
      %v1265 = vadd.f32 %v1261, %v1263
      %v1266 = vld [vmem:[%s9] sm:$0xf]
      %v1267 = vld [vmem:[%s9 + $0x4] sm:$0xf]
      %v1268 = vld [vmem:[%s9 + $0x8] sm:$0xf]
      %v1269 = vld [vmem:[%s9 + $0xc] sm:$0xf]
      %v1270 = vld [vmem:[%s10] sm:$0x1]
      %v1271 = vld [vmem:[%s11] sm:$0xf]
      %v1272 = vld [vmem:[%s11 + $0x4] sm:$0xf]
      %v1273 = vld [vmem:[%s11 + $0x8] sm:$0xf]
      %v1274 = vld [vmem:[%s11 + $0xc] sm:$0xf]
      %v1275 = vld [vmem:[%s11 + $0x10] sm:$0xf]
      %v1276 = vld [vmem:[%s11 + $0x14] sm:$0xf]
      %v1277 = vld [vmem:[%s11 + $0x18] sm:$0xf]
      %v1278 = vld [vmem:[%s11 + $0x1c] sm:$0xf]
      %v1279 = vld [vmem:[%s11 + $0x20] sm:$0xf]
      %v1280 = vld [vmem:[%s11 + $0x24] sm:$0xf]
      %v1281 = vld [vmem:[%s11 + $0x28] sm:$0xf]
      %v1282 = vld [vmem:[%s11 + $0x2c] sm:$0xf]
      %v1283 = vld [vmem:[%s11 + $0x30] sm:$0xf]
      %v1284 = vld [vmem:[%s11 + $0x34] sm:$0xf]
      %v1285 = vld [vmem:[%s11 + $0x38] sm:$0xf]
      %v1286 = vld [vmem:[%s11 + $0x3c] sm:$0xf]
      %v1287 = vld [vmem:[%s12] sm:$0x1]
      %v1288 = vpack.c.bf16 %v1265, %v1265
      %v1290 = vperm.slane %v1270, 0
      %v1296 = vunpack.c.l.b16 %v1266
      %v1297 = vunpack.c.l.b16 %v1267
      %v1298 = vunpack.c.l.b16 %v1268
      %v1299 = vunpack.c.l.b16 %v1269
      %v1300 = vpack.c.b16 %v1297, %v1296
      %v1301 = vpack.c.b16 %v1299, %v1298
      %v1305 = vsel %vm574, %v1288, 0
      %1307 = vmatpush.bf16.msra.mxu0 0
      %1308 = vmatpush.bf16.msra.mxu0 0
      %1309 = vmatpush.bf16.msra.mxu0 0
      %1310 = vmatpush.bf16.msra.mxu0 0
      %1311 = vmatpush.bf16.msra.mxu0 0
      %1312 = vmatpush.bf16.msra.mxu0 0
      %1313 = vmatpush.bf16.msra.mxu0 %v1301
      %1314 = vmatpush.bf16.msra.mxu0 %v1300
      %1315 = vmatmul.bf16.gmra.mxu0 %v1305
      %v1316 = vpop.f32.mrf.mxu0
      %v1317 = vadd.f32 %v1290, %v1316
      %v1318 = vpop.f32.mrf.mxu0
      %1319 = vdwg.mxu0
      %v1320 = vmax.f32 %v1317, 0.0
      %v1321 = vpack.c.bf16 %v1320, %v1320
      %v1323 = vperm.slane %v1287, 0
      %v1341 = vunpack.c.l.b16 %v1271
      %v1342 = vunpack.c.l.b16 %v1272
      %v1343 = vunpack.c.l.b16 %v1273
      %v1344 = vunpack.c.l.b16 %v1274
      %v1345 = vunpack.c.l.b16 %v1275
      %v1346 = vunpack.c.l.b16 %v1276
      %v1347 = vunpack.c.l.b16 %v1277
      %v1348 = vunpack.c.l.b16 %v1278
      %v1349 = vunpack.c.l.b16 %v1279
      %v1350 = vunpack.c.l.b16 %v1280
      %v1351 = vunpack.c.l.b16 %v1281
      %v1352 = vunpack.c.l.b16 %v1282
      %v1353 = vunpack.c.l.b16 %v1283
      %v1354 = vunpack.c.l.b16 %v1284
      %v1355 = vunpack.c.l.b16 %v1285
      %v1356 = vunpack.c.l.b16 %v1286
      %v1357 = vpack.c.b16 %v1342, %v1341
      %v1358 = vpack.c.b16 %v1344, %v1343
      %v1359 = vpack.c.b16 %v1346, %v1345
      %v1360 = vpack.c.b16 %v1348, %v1347
      %v1361 = vpack.c.b16 %v1350, %v1349
      %v1362 = vpack.c.b16 %v1352, %v1351
      %v1363 = vpack.c.b16 %v1354, %v1353
      %v1364 = vpack.c.b16 %v1356, %v1355
      %1373 = vmatpush.bf16.msra.mxu0 %v1364
      %1374 = vmatpush.bf16.msra.mxu0 %v1363
      %1375 = vmatpush.bf16.msra.mxu0 %v1362
      %1376 = vmatpush.bf16.msra.mxu0 %v1361
      %1377 = vmatpush.bf16.msra.mxu0 %v1360
      %1378 = vmatpush.bf16.msra.mxu0 %v1359
      %1379 = vmatpush.bf16.msra.mxu0 %v1358
      %1380 = vmatpush.bf16.msra.mxu0 %v1357
      %1381 = vmatmul.bf16.gmra.mxu0 %v1321
      %v1382 = vpop.f32.mrf.mxu0
      %v1383 = vadd.f32 %v1323, %v1382
      %v1384 = vpop.f32.mrf.mxu0
      %1385 = vdwg.mxu0
      %v1386 = vadd.f32 %v1383, %v1265
      %v1387 = vld [vmem:[%s13] sm:$0x1]
      %v1388 = vld [vmem:[%s14] sm:$0x1]
      %v1389 = vsel %vm574, %v1386, 0.0
      %1390 = vadd.xlane.f32.xlu0 %v1389
      %v1391 = vpop.xlane.xlu0 %1390
      %v1392 = vmul.f32 %v1391, %v1238
      %v1393 = vsub.f32 %v1386, %v1392
      %v1394 = vmul.f32 %v1393, %v1393
      %v1395 = vsel %vm574, %v1394, 0.0
      %1396 = vadd.xlane.f32.xlu0 %v1395
      %v1397 = vpop.xlane.xlu0 %1396
      %v1398 = vmul.f32 %v1397, %v1238
      %v1399 = vadd.f32 %v1398, 1e-05
      %v1400 = vrsqrt.pop %v1399
      %v1401 = vmul.f32 %v1400, %v1399
      %v1402 = vmul.f32 %v1401, %v1400
      %v1403 = vmul.f32 0.5, %v1402
      %v1404 = vsub.f32 1.5, %v1403
      %v1405 = vmul.f32 %v1400, %v1404
      %vm1406 = vweird.f32 %v1399
      %vm1407 = vweird.f32 %v1400
      %vm1408 = vmor %vm1406, %vm1407
      %v1409 = vsel %vm1408, %v1400, %v1405
      %v1410 = vmul.f32 %v1393, %v1409
      %v1412 = vperm.slane %v1387, 0
      %v1414 = vmul.f32 %v1410, %v1412
      %v1416 = vperm.slane %v1388, 0
      %v1418 = vadd.f32 %v1414, %v1416
      %v1419 = vpack.c.bf16 %v1418, %v1418
      %s1420 = scalar_lea.vmem %s2, 64
      %v1421 = vld [vmem:[%s1420] sm:$0xf]
      %v1422 = vld [vmem:[%s1420 + $0x4] sm:$0xf]
      %v1423 = vld [vmem:[%s1420 + $0x8] sm:$0xf]
      %v1424 = vld [vmem:[%s1420 + $0xc] sm:$0xf]
      %v1425 = vld [vmem:[%s1420 + $0x10] sm:$0xf]
      %v1426 = vld [vmem:[%s1420 + $0x14] sm:$0xf]
      %v1427 = vld [vmem:[%s1420 + $0x18] sm:$0xf]
      %v1428 = vld [vmem:[%s1420 + $0x1c] sm:$0xf]
      %v1429 = vld [vmem:[%s1420 + $0x20] sm:$0xf]
      %v1430 = vld [vmem:[%s1420 + $0x24] sm:$0xf]
      %v1431 = vld [vmem:[%s1420 + $0x28] sm:$0xf]
      %v1432 = vld [vmem:[%s1420 + $0x2c] sm:$0xf]
      %v1433 = vld [vmem:[%s1420 + $0x30] sm:$0xf]
      %v1434 = vld [vmem:[%s1420 + $0x34] sm:$0xf]
      %v1435 = vld [vmem:[%s1420 + $0x38] sm:$0xf]
      %v1436 = vld [vmem:[%s1420 + $0x3c] sm:$0xf]
      %s1437 = scalar_lea.vmem %s3, 64
      %v1438 = vld [vmem:[%s1437] sm:$0xf]
      %v1439 = vld [vmem:[%s1437 + $0x4] sm:$0xf]
      %v1440 = vld [vmem:[%s1437 + $0x8] sm:$0xf]
      %v1441 = vld [vmem:[%s1437 + $0xc] sm:$0xf]
      %v1442 = vld [vmem:[%s1437 + $0x10] sm:$0xf]
      %v1443 = vld [vmem:[%s1437 + $0x14] sm:$0xf]
      %v1444 = vld [vmem:[%s1437 + $0x18] sm:$0xf]
      %v1445 = vld [vmem:[%s1437 + $0x1c] sm:$0xf]
      %v1446 = vld [vmem:[%s1437 + $0x20] sm:$0xf]
      %v1447 = vld [vmem:[%s1437 + $0x24] sm:$0xf]
      %v1448 = vld [vmem:[%s1437 + $0x28] sm:$0xf]
      %v1449 = vld [vmem:[%s1437 + $0x2c] sm:$0xf]
      %v1450 = vld [vmem:[%s1437 + $0x30] sm:$0xf]
      %v1451 = vld [vmem:[%s1437 + $0x34] sm:$0xf]
      %v1452 = vld [vmem:[%s1437 + $0x38] sm:$0xf]
      %v1453 = vld [vmem:[%s1437 + $0x3c] sm:$0xf]
      %s1454 = scalar_lea.vmem %s4, 64
      %v1455 = vld [vmem:[%s1454] sm:$0xf]
      %v1456 = vld [vmem:[%s1454 + $0x4] sm:$0xf]
      %v1457 = vld [vmem:[%s1454 + $0x8] sm:$0xf]
      %v1458 = vld [vmem:[%s1454 + $0xc] sm:$0xf]
      %v1459 = vld [vmem:[%s1454 + $0x10] sm:$0xf]
      %v1460 = vld [vmem:[%s1454 + $0x14] sm:$0xf]
      %v1461 = vld [vmem:[%s1454 + $0x18] sm:$0xf]
      %v1462 = vld [vmem:[%s1454 + $0x1c] sm:$0xf]
      %v1463 = vld [vmem:[%s1454 + $0x20] sm:$0xf]
      %v1464 = vld [vmem:[%s1454 + $0x24] sm:$0xf]
      %v1465 = vld [vmem:[%s1454 + $0x28] sm:$0xf]
      %v1466 = vld [vmem:[%s1454 + $0x2c] sm:$0xf]
      %v1467 = vld [vmem:[%s1454 + $0x30] sm:$0xf]
      %v1468 = vld [vmem:[%s1454 + $0x34] sm:$0xf]
      %v1469 = vld [vmem:[%s1454 + $0x38] sm:$0xf]
      %v1470 = vld [vmem:[%s1454 + $0x3c] sm:$0xf]
      %s1471 = scalar_lea.vmem %s5, 16
      %v1472 = vld [vmem:[%s1471] sm:$0xf]
      %v1473 = vld [vmem:[%s1471 + $0x4] sm:$0xf]
      %v1474 = vld [vmem:[%s1471 + $0x8] sm:$0xf]
      %v1475 = vld [vmem:[%s1471 + $0xc] sm:$0xf]
      %s1476 = scalar_lea.vmem %s6, 1
      %v1477 = vld [vmem:[%s1476] sm:$0x1]
      %v1482 = vunpack.c.l.b16 %v1421
      %v1483 = vunpack.c.l.b16 %v1422
      %v1484 = vunpack.c.l.b16 %v1423
      %v1485 = vunpack.c.l.b16 %v1424
      %v1486 = vpack.c.b16 %v1483, %v1482
      %v1487 = vpack.c.b16 %v1485, %v1484
      %v1491 = vsel %vm574, %v1419, 0
      %1493 = vmatpush.bf16.msra.mxu0 0
      %1494 = vmatpush.bf16.msra.mxu0 0
      %1495 = vmatpush.bf16.msra.mxu0 0
      %1496 = vmatpush.bf16.msra.mxu0 0
      %1497 = vmatpush.bf16.msra.mxu0 0
      %1498 = vmatpush.bf16.msra.mxu0 0
      %1499 = vmatpush.bf16.msra.mxu0 %v1487
      %1500 = vmatpush.bf16.msra.mxu0 %v1486
      %1501 = vmatmul.bf16.gmra.mxu0 %v1491
      %v1502 = vpop.f32.mrf.mxu0
      %v1503 = vadd.f32 0.0, %v1502
      %v1504 = vpop.f32.mrf.mxu0
      %1505 = vdwg.mxu0
      %v1510 = vunpack.c.l.b16 %v1425
      %v1511 = vunpack.c.l.b16 %v1426
      %v1512 = vunpack.c.l.b16 %v1427
      %v1513 = vunpack.c.l.b16 %v1428
      %v1514 = vpack.c.b16 %v1511, %v1510
      %v1515 = vpack.c.b16 %v1513, %v1512
      %1518 = vmatpush.bf16.msra.mxu0 0
      %1519 = vmatpush.bf16.msra.mxu0 0
      %1520 = vmatpush.bf16.msra.mxu0 0
      %1521 = vmatpush.bf16.msra.mxu0 0
      %1522 = vmatpush.bf16.msra.mxu0 0
      %1523 = vmatpush.bf16.msra.mxu0 0
      %1524 = vmatpush.bf16.msra.mxu0 %v1515
      %1525 = vmatpush.bf16.msra.mxu0 %v1514
      %1526 = vmatmul.bf16.gmra.mxu0 %v1491
      %v1527 = vpop.f32.mrf.mxu0
      %v1528 = vadd.f32 0.0, %v1527
      %v1529 = vpop.f32.mrf.mxu0
      %1530 = vdwg.mxu0
      %v1535 = vunpack.c.l.b16 %v1429
      %v1536 = vunpack.c.l.b16 %v1430
      %v1537 = vunpack.c.l.b16 %v1431
      %v1538 = vunpack.c.l.b16 %v1432
      %v1539 = vpack.c.b16 %v1536, %v1535
      %v1540 = vpack.c.b16 %v1538, %v1537
      %1543 = vmatpush.bf16.msra.mxu0 0
      %1544 = vmatpush.bf16.msra.mxu0 0
      %1545 = vmatpush.bf16.msra.mxu0 0
      %1546 = vmatpush.bf16.msra.mxu0 0
      %1547 = vmatpush.bf16.msra.mxu0 0
      %1548 = vmatpush.bf16.msra.mxu0 0
      %1549 = vmatpush.bf16.msra.mxu0 %v1540
      %1550 = vmatpush.bf16.msra.mxu0 %v1539
      %1551 = vmatmul.bf16.gmra.mxu0 %v1491
      %v1552 = vpop.f32.mrf.mxu0
      %v1553 = vadd.f32 0.0, %v1552
      %v1554 = vpop.f32.mrf.mxu0
      %1555 = vdwg.mxu0
      %v1560 = vunpack.c.l.b16 %v1433
      %v1561 = vunpack.c.l.b16 %v1434
      %v1562 = vunpack.c.l.b16 %v1435
      %v1563 = vunpack.c.l.b16 %v1436
      %v1564 = vpack.c.b16 %v1561, %v1560
      %v1565 = vpack.c.b16 %v1563, %v1562
      %1568 = vmatpush.bf16.msra.mxu0 0
      %1569 = vmatpush.bf16.msra.mxu0 0
      %1570 = vmatpush.bf16.msra.mxu0 0
      %1571 = vmatpush.bf16.msra.mxu0 0
      %1572 = vmatpush.bf16.msra.mxu0 0
      %1573 = vmatpush.bf16.msra.mxu0 0
      %1574 = vmatpush.bf16.msra.mxu0 %v1565
      %1575 = vmatpush.bf16.msra.mxu0 %v1564
      %1576 = vmatmul.bf16.gmra.mxu0 %v1491
      %v1577 = vpop.f32.mrf.mxu0
      %v1578 = vadd.f32 0.0, %v1577
      %v1579 = vpop.f32.mrf.mxu0
      %1580 = vdwg.mxu0
      %v1585 = vunpack.c.l.b16 %v1438
      %v1586 = vunpack.c.l.b16 %v1439
      %v1587 = vunpack.c.l.b16 %v1440
      %v1588 = vunpack.c.l.b16 %v1441
      %v1589 = vpack.c.b16 %v1586, %v1585
      %v1590 = vpack.c.b16 %v1588, %v1587
      %1593 = vmatpush.bf16.msra.mxu0 0
      %1594 = vmatpush.bf16.msra.mxu0 0
      %1595 = vmatpush.bf16.msra.mxu0 0
      %1596 = vmatpush.bf16.msra.mxu0 0
      %1597 = vmatpush.bf16.msra.mxu0 0
      %1598 = vmatpush.bf16.msra.mxu0 0
      %1599 = vmatpush.bf16.msra.mxu0 %v1590
      %1600 = vmatpush.bf16.msra.mxu0 %v1589
      %1601 = vmatmul.bf16.gmra.mxu0 %v1491
      %v1602 = vpop.f32.mrf.mxu0
      %v1603 = vadd.f32 0.0, %v1602
      %v1604 = vpop.f32.mrf.mxu0
      %1605 = vdwg.mxu0
      %v1610 = vunpack.c.l.b16 %v1442
      %v1611 = vunpack.c.l.b16 %v1443
      %v1612 = vunpack.c.l.b16 %v1444
      %v1613 = vunpack.c.l.b16 %v1445
      %v1614 = vpack.c.b16 %v1611, %v1610
      %v1615 = vpack.c.b16 %v1613, %v1612
      %1618 = vmatpush.bf16.msra.mxu0 0
      %1619 = vmatpush.bf16.msra.mxu0 0
      %1620 = vmatpush.bf16.msra.mxu0 0
      %1621 = vmatpush.bf16.msra.mxu0 0
      %1622 = vmatpush.bf16.msra.mxu0 0
      %1623 = vmatpush.bf16.msra.mxu0 0
      %1624 = vmatpush.bf16.msra.mxu0 %v1615
      %1625 = vmatpush.bf16.msra.mxu0 %v1614
      %1626 = vmatmul.bf16.gmra.mxu0 %v1491
      %v1627 = vpop.f32.mrf.mxu0
      %v1628 = vadd.f32 0.0, %v1627
      %v1629 = vpop.f32.mrf.mxu0
      %1630 = vdwg.mxu0
      %v1635 = vunpack.c.l.b16 %v1446
      %v1636 = vunpack.c.l.b16 %v1447
      %v1637 = vunpack.c.l.b16 %v1448
      %v1638 = vunpack.c.l.b16 %v1449
      %v1639 = vpack.c.b16 %v1636, %v1635
      %v1640 = vpack.c.b16 %v1638, %v1637
      %1643 = vmatpush.bf16.msra.mxu0 0
      %1644 = vmatpush.bf16.msra.mxu0 0
      %1645 = vmatpush.bf16.msra.mxu0 0
      %1646 = vmatpush.bf16.msra.mxu0 0
      %1647 = vmatpush.bf16.msra.mxu0 0
      %1648 = vmatpush.bf16.msra.mxu0 0
      %1649 = vmatpush.bf16.msra.mxu0 %v1640
      %1650 = vmatpush.bf16.msra.mxu0 %v1639
      %1651 = vmatmul.bf16.gmra.mxu0 %v1491
      %v1652 = vpop.f32.mrf.mxu0
      %v1653 = vadd.f32 0.0, %v1652
      %v1654 = vpop.f32.mrf.mxu0
      %1655 = vdwg.mxu0
      %v1660 = vunpack.c.l.b16 %v1450
      %v1661 = vunpack.c.l.b16 %v1451
      %v1662 = vunpack.c.l.b16 %v1452
      %v1663 = vunpack.c.l.b16 %v1453
      %v1664 = vpack.c.b16 %v1661, %v1660
      %v1665 = vpack.c.b16 %v1663, %v1662
      %1668 = vmatpush.bf16.msra.mxu0 0
      %1669 = vmatpush.bf16.msra.mxu0 0
      %1670 = vmatpush.bf16.msra.mxu0 0
      %1671 = vmatpush.bf16.msra.mxu0 0
      %1672 = vmatpush.bf16.msra.mxu0 0
      %1673 = vmatpush.bf16.msra.mxu0 0
      %1674 = vmatpush.bf16.msra.mxu0 %v1665
      %1675 = vmatpush.bf16.msra.mxu0 %v1664
      %1676 = vmatmul.bf16.gmra.mxu0 %v1491
      %v1677 = vpop.f32.mrf.mxu0
      %v1678 = vadd.f32 0.0, %v1677
      %v1679 = vpop.f32.mrf.mxu0
      %1680 = vdwg.mxu0
      %v1685 = vunpack.c.l.b16 %v1455
      %v1686 = vunpack.c.l.b16 %v1456
      %v1687 = vunpack.c.l.b16 %v1457
      %v1688 = vunpack.c.l.b16 %v1458
      %v1689 = vpack.c.b16 %v1686, %v1685
      %v1690 = vpack.c.b16 %v1688, %v1687
      %1693 = vmatpush.bf16.msra.mxu0 0
      %1694 = vmatpush.bf16.msra.mxu0 0
      %1695 = vmatpush.bf16.msra.mxu0 0
      %1696 = vmatpush.bf16.msra.mxu0 0
      %1697 = vmatpush.bf16.msra.mxu0 0
      %1698 = vmatpush.bf16.msra.mxu0 0
      %1699 = vmatpush.bf16.msra.mxu0 %v1690
      %1700 = vmatpush.bf16.msra.mxu0 %v1689
      %1701 = vmatmul.bf16.gmra.mxu0 %v1491
      %v1702 = vpop.f32.mrf.mxu0
      %v1703 = vadd.f32 0.0, %v1702
      %v1704 = vpop.f32.mrf.mxu0
      %1705 = vdwg.mxu0
      %v1710 = vunpack.c.l.b16 %v1459
      %v1711 = vunpack.c.l.b16 %v1460
      %v1712 = vunpack.c.l.b16 %v1461
      %v1713 = vunpack.c.l.b16 %v1462
      %v1714 = vpack.c.b16 %v1711, %v1710
      %v1715 = vpack.c.b16 %v1713, %v1712
      %1718 = vmatpush.bf16.msra.mxu0 0
      %1719 = vmatpush.bf16.msra.mxu0 0
      %1720 = vmatpush.bf16.msra.mxu0 0
      %1721 = vmatpush.bf16.msra.mxu0 0
      %1722 = vmatpush.bf16.msra.mxu0 0
      %1723 = vmatpush.bf16.msra.mxu0 0
      %1724 = vmatpush.bf16.msra.mxu0 %v1715
      %1725 = vmatpush.bf16.msra.mxu0 %v1714
      %1726 = vmatmul.bf16.gmra.mxu0 %v1491
      %v1727 = vpop.f32.mrf.mxu0
      %v1728 = vadd.f32 0.0, %v1727
      %v1729 = vpop.f32.mrf.mxu0
      %1730 = vdwg.mxu0
      %v1735 = vunpack.c.l.b16 %v1463
      %v1736 = vunpack.c.l.b16 %v1464
      %v1737 = vunpack.c.l.b16 %v1465
      %v1738 = vunpack.c.l.b16 %v1466
      %v1739 = vpack.c.b16 %v1736, %v1735
      %v1740 = vpack.c.b16 %v1738, %v1737
      %1743 = vmatpush.bf16.msra.mxu0 0
      %1744 = vmatpush.bf16.msra.mxu0 0
      %1745 = vmatpush.bf16.msra.mxu0 0
      %1746 = vmatpush.bf16.msra.mxu0 0
      %1747 = vmatpush.bf16.msra.mxu0 0
      %1748 = vmatpush.bf16.msra.mxu0 0
      %1749 = vmatpush.bf16.msra.mxu0 %v1740
      %1750 = vmatpush.bf16.msra.mxu0 %v1739
      %1751 = vmatmul.bf16.gmra.mxu0 %v1491
      %v1752 = vpop.f32.mrf.mxu0
      %v1753 = vadd.f32 0.0, %v1752
      %v1754 = vpop.f32.mrf.mxu0
      %1755 = vdwg.mxu0
      %v1760 = vunpack.c.l.b16 %v1467
      %v1761 = vunpack.c.l.b16 %v1468
      %v1762 = vunpack.c.l.b16 %v1469
      %v1763 = vunpack.c.l.b16 %v1470
      %v1764 = vpack.c.b16 %v1761, %v1760
      %v1765 = vpack.c.b16 %v1763, %v1762
      %1768 = vmatpush.bf16.msra.mxu0 0
      %1769 = vmatpush.bf16.msra.mxu0 0
      %1770 = vmatpush.bf16.msra.mxu0 0
      %1771 = vmatpush.bf16.msra.mxu0 0
      %1772 = vmatpush.bf16.msra.mxu0 0
      %1773 = vmatpush.bf16.msra.mxu0 0
      %1774 = vmatpush.bf16.msra.mxu0 %v1765
      %1775 = vmatpush.bf16.msra.mxu0 %v1764
      %1776 = vmatmul.bf16.gmra.mxu0 %v1491
      %v1777 = vpop.f32.mrf.mxu0
      %v1778 = vadd.f32 0.0, %v1777
      %v1779 = vpop.f32.mrf.mxu0
      %1780 = vdwg.mxu0
      %v1781 = vpack.c.bf16 %v1503, %v1503
      %v1782 = vpack.c.bf16 %v1528, %v1528
      %v1783 = vpack.c.bf16 %v1553, %v1553
      %v1784 = vpack.c.bf16 %v1578, %v1578
      %v1785 = vpack.c.bf16 %v1603, %v1603
      %v1786 = vpack.c.bf16 %v1628, %v1628
      %v1787 = vpack.c.bf16 %v1653, %v1653
      %v1788 = vpack.c.bf16 %v1678, %v1678
      %v1790 = vsel %vm877, %v1781, 0
      %v1793 = vsel %vm877, %v1785, 0
      %1795 = vmatpush.bf16.xpose.msra.mxu0 0
      %1796 = vmatpush.bf16.xpose.msra.mxu0 0
      %1797 = vmatpush.bf16.xpose.msra.mxu0 0
      %1798 = vmatpush.bf16.xpose.msra.mxu0 0
      %1799 = vmatpush.bf16.xpose.msra.mxu0 0
      %1800 = vmatpush.bf16.xpose.msra.mxu0 0
      %1801 = vmatpush.bf16.xpose.msra.mxu0 0
      %1802 = vmatpush.bf16.xpose.msra.mxu0 %v1793
      %1803 = vmatmul.bf16.gmra.mxu0 %v1790
      %v1804 = vpop.f32.mrf.mxu0
      %v1805 = vadd.f32 %v875, %v1804
      %v1806 = vpop.f32.mrf.mxu0
      %1807 = vdwg.mxu0
      %v1809 = vsel %vm877, %v1782, 0
      %v1812 = vsel %vm877, %v1786, 0
      %1814 = vmatpush.bf16.xpose.msra.mxu0 0
      %1815 = vmatpush.bf16.xpose.msra.mxu0 0
      %1816 = vmatpush.bf16.xpose.msra.mxu0 0
      %1817 = vmatpush.bf16.xpose.msra.mxu0 0
      %1818 = vmatpush.bf16.xpose.msra.mxu0 0
      %1819 = vmatpush.bf16.xpose.msra.mxu0 0
      %1820 = vmatpush.bf16.xpose.msra.mxu0 0
      %1821 = vmatpush.bf16.xpose.msra.mxu0 %v1812
      %1822 = vmatmul.bf16.gmra.mxu0 %v1809
      %v1823 = vpop.f32.mrf.mxu0
      %v1824 = vadd.f32 %v875, %v1823
      %v1825 = vpop.f32.mrf.mxu0
      %1826 = vdwg.mxu0
      %v1828 = vsel %vm877, %v1783, 0
      %v1831 = vsel %vm877, %v1787, 0
      %1833 = vmatpush.bf16.xpose.msra.mxu0 0
      %1834 = vmatpush.bf16.xpose.msra.mxu0 0
      %1835 = vmatpush.bf16.xpose.msra.mxu0 0
      %1836 = vmatpush.bf16.xpose.msra.mxu0 0
      %1837 = vmatpush.bf16.xpose.msra.mxu0 0
      %1838 = vmatpush.bf16.xpose.msra.mxu0 0
      %1839 = vmatpush.bf16.xpose.msra.mxu0 0
      %1840 = vmatpush.bf16.xpose.msra.mxu0 %v1831
      %1841 = vmatmul.bf16.gmra.mxu0 %v1828
      %v1842 = vpop.f32.mrf.mxu0
      %v1843 = vadd.f32 %v875, %v1842
      %v1844 = vpop.f32.mrf.mxu0
      %1845 = vdwg.mxu0
      %v1847 = vsel %vm877, %v1784, 0
      %v1850 = vsel %vm877, %v1788, 0
      %1852 = vmatpush.bf16.xpose.msra.mxu0 0
      %1853 = vmatpush.bf16.xpose.msra.mxu0 0
      %1854 = vmatpush.bf16.xpose.msra.mxu0 0
      %1855 = vmatpush.bf16.xpose.msra.mxu0 0
      %1856 = vmatpush.bf16.xpose.msra.mxu0 0
      %1857 = vmatpush.bf16.xpose.msra.mxu0 0
      %1858 = vmatpush.bf16.xpose.msra.mxu0 0
      %1859 = vmatpush.bf16.xpose.msra.mxu0 %v1850
      %1860 = vmatmul.bf16.gmra.mxu0 %v1847
      %v1861 = vpop.f32.mrf.mxu0
      %v1862 = vadd.f32 %v875, %v1861
      %v1863 = vpop.f32.mrf.mxu0
      %1864 = vdwg.mxu0
      %v1865 = vsel %vm877, %v1805, -inf
      %1866 = vmax.xlane.f32.xlu0 %v1865
      %v1867 = vpop.xlane.xlu0 %1866
      %v1868 = vsel %vm877, %v1824, -inf
      %1869 = vmax.xlane.f32.xlu0 %v1868
      %v1870 = vpop.xlane.xlu0 %1869
      %v1871 = vsel %vm877, %v1843, -inf
      %1872 = vmax.xlane.f32.xlu0 %v1871
      %v1873 = vpop.xlane.xlu0 %1872
      %v1874 = vsel %vm877, %v1862, -inf
      %1875 = vmax.xlane.f32.xlu0 %v1874
      %v1876 = vpop.xlane.xlu0 %1875
      %v1877 = vsub.f32 %v1805, %v1867
      %v1878 = vsub.f32 %v1824, %v1870
      %v1879 = vsub.f32 %v1843, %v1873
      %v1880 = vsub.f32 %v1862, %v1876
      %v1881 = vmul.f32 %v1877, 1.442695
      %v1882 = vpow.pop %v1881
      %v1883 = vmul.f32 %v1878, 1.442695
      %v1884 = vpow.pop %v1883
      %v1885 = vmul.f32 %v1879, 1.442695
      %v1886 = vpow.pop %v1885
      %v1887 = vmul.f32 %v1880, 1.442695
      %v1888 = vpow.pop %v1887
      %v1889 = vsel %vm877, %v1882, 0.0
      %1890 = vadd.xlane.f32.xlu0 %v1889
      %v1891 = vpop.xlane.xlu0 %1890
      %v1892 = vsel %vm877, %v1884, 0.0
      %1893 = vadd.xlane.f32.xlu0 %v1892
      %v1894 = vpop.xlane.xlu0 %1893
      %v1895 = vsel %vm877, %v1886, 0.0
      %1896 = vadd.xlane.f32.xlu0 %v1895
      %v1897 = vpop.xlane.xlu0 %1896
      %v1898 = vsel %vm877, %v1888, 0.0
      %1899 = vadd.xlane.f32.xlu0 %v1898
      %v1900 = vpop.xlane.xlu0 %1899
      %v1901 = vrcp.pop %v1891
      %v1902 = vmul.f32 %v1891, %v1901
      %v1903 = vsub.f32 1.0, %v1902
      %v1904 = vmul.f32 %v1901, %v1903
      %v1905 = vadd.f32 %v1901, %v1904
      %vm1906 = vweird.f32 %v1891
      %vm1907 = vweird.f32 %v1901
      %vm1908 = vmor %vm1906, %vm1907
      %v1909 = vsel %vm1908, %v1901, %v1905
      %v1910 = vand.u32 2147483647, %v1891
      %vm1911 = vcmp.eq.f32.partialorder %v1910, 8.507059e+37
      %v1912 = vand.u32 %v1891, 2147483648
      %v1913 = vor.u32 1.1754944e-38, %v1912
      %v1914 = vsel %vm1911, %v1913, %v1909
      %v1915 = vmul.f32 %v1882, %v1914
      %v1916 = vrcp.pop %v1894
      %v1917 = vmul.f32 %v1894, %v1916
      %v1918 = vsub.f32 1.0, %v1917
      %v1919 = vmul.f32 %v1916, %v1918
      %v1920 = vadd.f32 %v1916, %v1919
      %vm1921 = vweird.f32 %v1894
      %vm1922 = vweird.f32 %v1916
      %vm1923 = vmor %vm1921, %vm1922
      %v1924 = vsel %vm1923, %v1916, %v1920
      %v1925 = vand.u32 2147483647, %v1894
      %vm1926 = vcmp.eq.f32.partialorder %v1925, 8.507059e+37
      %v1927 = vand.u32 %v1894, 2147483648
      %v1928 = vor.u32 1.1754944e-38, %v1927
      %v1929 = vsel %vm1926, %v1928, %v1924
      %v1930 = vmul.f32 %v1884, %v1929
      %v1931 = vrcp.pop %v1897
      %v1932 = vmul.f32 %v1897, %v1931
      %v1933 = vsub.f32 1.0, %v1932
      %v1934 = vmul.f32 %v1931, %v1933
      %v1935 = vadd.f32 %v1931, %v1934
      %vm1936 = vweird.f32 %v1897
      %vm1937 = vweird.f32 %v1931
      %vm1938 = vmor %vm1936, %vm1937
      %v1939 = vsel %vm1938, %v1931, %v1935
      %v1940 = vand.u32 2147483647, %v1897
      %vm1941 = vcmp.eq.f32.partialorder %v1940, 8.507059e+37
      %v1942 = vand.u32 %v1897, 2147483648
      %v1943 = vor.u32 1.1754944e-38, %v1942
      %v1944 = vsel %vm1941, %v1943, %v1939
      %v1945 = vmul.f32 %v1886, %v1944
      %v1946 = vrcp.pop %v1900
      %v1947 = vmul.f32 %v1900, %v1946
      %v1948 = vsub.f32 1.0, %v1947
      %v1949 = vmul.f32 %v1946, %v1948
      %v1950 = vadd.f32 %v1946, %v1949
      %vm1951 = vweird.f32 %v1900
      %vm1952 = vweird.f32 %v1946
      %vm1953 = vmor %vm1951, %vm1952
      %v1954 = vsel %vm1953, %v1946, %v1950
      %v1955 = vand.u32 2147483647, %v1900
      %vm1956 = vcmp.eq.f32.partialorder %v1955, 8.507059e+37
      %v1957 = vand.u32 %v1900, 2147483648
      %v1958 = vor.u32 1.1754944e-38, %v1957
      %v1959 = vsel %vm1956, %v1958, %v1954
      %v1960 = vmul.f32 %v1888, %v1959
      %v1961 = vpack.c.bf16 %v1915, %v1915
      %v1962 = vpack.c.bf16 %v1930, %v1930
      %v1963 = vpack.c.bf16 %v1945, %v1945
      %v1964 = vpack.c.bf16 %v1960, %v1960
      %v1965 = vpack.c.bf16 %v1703, %v1703
      %v1966 = vpack.c.bf16 %v1728, %v1728
      %v1967 = vpack.c.bf16 %v1753, %v1753
      %v1968 = vpack.c.bf16 %v1778, %v1778
      %v1970 = vsel %vm877, %v1961, 0
      %v1973 = vsel %vm1061, %v1965, 0
      %1975 = vmatpush.bf16.msra.mxu0 0
      %1976 = vmatpush.bf16.msra.mxu0 0
      %1977 = vmatpush.bf16.msra.mxu0 0
      %1978 = vmatpush.bf16.msra.mxu0 0
      %1979 = vmatpush.bf16.msra.mxu0 0
      %1980 = vmatpush.bf16.msra.mxu0 0
      %1981 = vmatpush.bf16.msra.mxu0 0
      %1982 = vmatpush.bf16.msra.mxu0 %v1973
      %1983 = vmatmul.bf16.gmra.mxu0 %v1970
      %v1984 = vpop.f32.mrf.mxu0
      %v1985 = vadd.f32 0.0, %v1984
      %v1986 = vpop.f32.mrf.mxu0
      %1987 = vdwg.mxu0
      %v1989 = vsel %vm877, %v1962, 0
      %v1992 = vsel %vm1061, %v1966, 0
      %1994 = vmatpush.bf16.msra.mxu0 0
      %1995 = vmatpush.bf16.msra.mxu0 0
      %1996 = vmatpush.bf16.msra.mxu0 0
      %1997 = vmatpush.bf16.msra.mxu0 0
      %1998 = vmatpush.bf16.msra.mxu0 0
      %1999 = vmatpush.bf16.msra.mxu0 0
      %2000 = vmatpush.bf16.msra.mxu0 0
      %2001 = vmatpush.bf16.msra.mxu0 %v1992
      %2002 = vmatmul.bf16.gmra.mxu0 %v1989
      %v2003 = vpop.f32.mrf.mxu0
      %v2004 = vadd.f32 0.0, %v2003
      %v2005 = vpop.f32.mrf.mxu0
      %2006 = vdwg.mxu0
      %v2008 = vsel %vm877, %v1963, 0
      %v2011 = vsel %vm1061, %v1967, 0
      %2013 = vmatpush.bf16.msra.mxu0 0
      %2014 = vmatpush.bf16.msra.mxu0 0
      %2015 = vmatpush.bf16.msra.mxu0 0
      %2016 = vmatpush.bf16.msra.mxu0 0
      %2017 = vmatpush.bf16.msra.mxu0 0
      %2018 = vmatpush.bf16.msra.mxu0 0
      %2019 = vmatpush.bf16.msra.mxu0 0
      %2020 = vmatpush.bf16.msra.mxu0 %v2011
      %2021 = vmatmul.bf16.gmra.mxu0 %v2008
      %v2022 = vpop.f32.mrf.mxu0
      %v2023 = vadd.f32 0.0, %v2022
      %v2024 = vpop.f32.mrf.mxu0
      %2025 = vdwg.mxu0
      %v2027 = vsel %vm877, %v1964, 0
      %v2030 = vsel %vm1061, %v1968, 0
      %2032 = vmatpush.bf16.msra.mxu0 0
      %2033 = vmatpush.bf16.msra.mxu0 0
      %2034 = vmatpush.bf16.msra.mxu0 0
      %2035 = vmatpush.bf16.msra.mxu0 0
      %2036 = vmatpush.bf16.msra.mxu0 0
      %2037 = vmatpush.bf16.msra.mxu0 0
      %2038 = vmatpush.bf16.msra.mxu0 0
      %2039 = vmatpush.bf16.msra.mxu0 %v2030
      %2040 = vmatmul.bf16.gmra.mxu0 %v2027
      %v2041 = vpop.f32.mrf.mxu0
      %v2042 = vadd.f32 0.0, %v2041
      %v2043 = vpop.f32.mrf.mxu0
      %2044 = vdwg.mxu0
      %v2045 = vpack.c.bf16 %v1985, %v1985
      %v2046 = vpack.c.bf16 %v2004, %v2004
      %v2047 = vpack.c.bf16 %v2023, %v2023
      %v2048 = vpack.c.bf16 %v2042, %v2042
      %v2050 = vsel %vm877, %v2045, 0
      %v2053 = vsel %vm1061, %v1472, 0
      %2055 = vmatpush.bf16.msra.mxu0 0
      %2056 = vmatpush.bf16.msra.mxu0 0
      %2057 = vmatpush.bf16.msra.mxu0 0
      %2058 = vmatpush.bf16.msra.mxu0 0
      %2059 = vmatpush.bf16.msra.mxu0 0
      %2060 = vmatpush.bf16.msra.mxu0 0
      %2061 = vmatpush.bf16.msra.mxu0 0
      %2062 = vmatpush.bf16.msra.mxu0 %v2053
      %2063 = vmatmul.bf16.gmra.mxu0 %v2050
      %v2064 = vpop.f32.mrf.mxu0
      %v2065 = vadd.f32 0.0, %v2064
      %v2066 = vpop.f32.mrf.mxu0
      %2067 = vdwg.mxu0
      %v2069 = vsel %vm877, %v2046, 0
      %v2072 = vsel %vm1061, %v1473, 0
      %2074 = vmatpush.bf16.msra.mxu0 0
      %2075 = vmatpush.bf16.msra.mxu0 0
      %2076 = vmatpush.bf16.msra.mxu0 0
      %2077 = vmatpush.bf16.msra.mxu0 0
      %2078 = vmatpush.bf16.msra.mxu0 0
      %2079 = vmatpush.bf16.msra.mxu0 0
      %2080 = vmatpush.bf16.msra.mxu0 0
      %2081 = vmatpush.bf16.msra.mxu0 %v2072
      %2082 = vmatmul.bf16.gmra.mxu0 %v2069
      %v2083 = vpop.f32.mrf.mxu0
      %v2084 = vadd.f32 0.0, %v2083
      %v2085 = vpop.f32.mrf.mxu0
      %2086 = vdwg.mxu0
      %v2088 = vsel %vm877, %v2047, 0
      %v2091 = vsel %vm1061, %v1474, 0
      %2093 = vmatpush.bf16.msra.mxu0 0
      %2094 = vmatpush.bf16.msra.mxu0 0
      %2095 = vmatpush.bf16.msra.mxu0 0
      %2096 = vmatpush.bf16.msra.mxu0 0
      %2097 = vmatpush.bf16.msra.mxu0 0
      %2098 = vmatpush.bf16.msra.mxu0 0
      %2099 = vmatpush.bf16.msra.mxu0 0
      %2100 = vmatpush.bf16.msra.mxu0 %v2091
      %2101 = vmatmul.bf16.gmra.mxu0 %v2088
      %v2102 = vpop.f32.mrf.mxu0
      %v2103 = vadd.f32 0.0, %v2102
      %v2104 = vpop.f32.mrf.mxu0
      %2105 = vdwg.mxu0
      %v2107 = vsel %vm877, %v2048, 0
      %v2110 = vsel %vm1061, %v1475, 0
      %2112 = vmatpush.bf16.msra.mxu0 0
      %2113 = vmatpush.bf16.msra.mxu0 0
      %2114 = vmatpush.bf16.msra.mxu0 0
      %2115 = vmatpush.bf16.msra.mxu0 0
      %2116 = vmatpush.bf16.msra.mxu0 0
      %2117 = vmatpush.bf16.msra.mxu0 0
      %2118 = vmatpush.bf16.msra.mxu0 0
      %2119 = vmatpush.bf16.msra.mxu0 %v2110
      %2120 = vmatmul.bf16.gmra.mxu0 %v2107
      %v2121 = vpop.f32.mrf.mxu0
      %v2122 = vadd.f32 0.0, %v2121
      %v2123 = vpop.f32.mrf.mxu0
      %2124 = vdwg.mxu0
      %v2125 = vsel %vm574, %v2065, 0.0
      %v2126 = vsel %vm574, %v2084, 0.0
      %v2127 = vadd.f32 %v2125, %v2126
      %v2128 = vsel %vm574, %v2103, 0.0
      %v2129 = vadd.f32 %v2127, %v2128
      %v2130 = vsel %vm574, %v2122, 0.0
      %v2131 = vadd.f32 %v2129, %v2130
      %v2133 = vperm.slane %v1477, 0
      %v2135 = vadd.f32 %v2131, %v2133
      %v2136 = vadd.f32 %v2135, %v1418
      %s2137 = scalar_lea.vmem %s7, 1
      %v2138 = vld [vmem:[%s2137] sm:$0x1]
      %s2139 = scalar_lea.vmem %s8, 1
      %v2140 = vld [vmem:[%s2139] sm:$0x1]
      %v2141 = vsel %vm574, %v2136, 0.0
      %2142 = vadd.xlane.f32.xlu0 %v2141
      %v2143 = vpop.xlane.xlu0 %2142
      %v2144 = vmul.f32 %v2143, %v1238
      %v2145 = vsub.f32 %v2136, %v2144
      %v2146 = vmul.f32 %v2145, %v2145
      %v2147 = vsel %vm574, %v2146, 0.0
      %2148 = vadd.xlane.f32.xlu0 %v2147
      %v2149 = vpop.xlane.xlu0 %2148
      %v2150 = vmul.f32 %v2149, %v1238
      %v2151 = vadd.f32 %v2150, 1e-05
      %v2152 = vrsqrt.pop %v2151
      %v2153 = vmul.f32 %v2152, %v2151
      %v2154 = vmul.f32 %v2153, %v2152
      %v2155 = vmul.f32 0.5, %v2154
      %v2156 = vsub.f32 1.5, %v2155
      %v2157 = vmul.f32 %v2152, %v2156
      %vm2158 = vweird.f32 %v2151
      %vm2159 = vweird.f32 %v2152
      %vm2160 = vmor %vm2158, %vm2159
      %v2161 = vsel %vm2160, %v2152, %v2157
      %v2162 = vmul.f32 %v2145, %v2161
      %v2164 = vperm.slane %v2138, 0
      %v2166 = vmul.f32 %v2162, %v2164
      %v2168 = vperm.slane %v2140, 0
      %v2170 = vadd.f32 %v2166, %v2168
      %s2171 = scalar_lea.vmem %s9, 16
      %v2172 = vld [vmem:[%s2171] sm:$0xf]
      %v2173 = vld [vmem:[%s2171 + $0x4] sm:$0xf]
      %v2174 = vld [vmem:[%s2171 + $0x8] sm:$0xf]
      %v2175 = vld [vmem:[%s2171 + $0xc] sm:$0xf]
      %s2176 = scalar_lea.vmem %s10, 1
      %v2177 = vld [vmem:[%s2176] sm:$0x1]
      %s2178 = scalar_lea.vmem %s11, 64
      %v2179 = vld [vmem:[%s2178] sm:$0xf]
      %v2180 = vld [vmem:[%s2178 + $0x4] sm:$0xf]
      %v2181 = vld [vmem:[%s2178 + $0x8] sm:$0xf]
      %v2182 = vld [vmem:[%s2178 + $0xc] sm:$0xf]
      %v2183 = vld [vmem:[%s2178 + $0x10] sm:$0xf]
      %v2184 = vld [vmem:[%s2178 + $0x14] sm:$0xf]
      %v2185 = vld [vmem:[%s2178 + $0x18] sm:$0xf]
      %v2186 = vld [vmem:[%s2178 + $0x1c] sm:$0xf]
      %v2187 = vld [vmem:[%s2178 + $0x20] sm:$0xf]
      %v2188 = vld [vmem:[%s2178 + $0x24] sm:$0xf]
      %v2189 = vld [vmem:[%s2178 + $0x28] sm:$0xf]
      %v2190 = vld [vmem:[%s2178 + $0x2c] sm:$0xf]
      %v2191 = vld [vmem:[%s2178 + $0x30] sm:$0xf]
      %v2192 = vld [vmem:[%s2178 + $0x34] sm:$0xf]
      %v2193 = vld [vmem:[%s2178 + $0x38] sm:$0xf]
      %v2194 = vld [vmem:[%s2178 + $0x3c] sm:$0xf]
      %s2195 = scalar_lea.vmem %s12, 1
      %v2196 = vld [vmem:[%s2195] sm:$0x1]
      %v2197 = vpack.c.bf16 %v2170, %v2170
      %v2199 = vperm.slane %v2177, 0
      %v2205 = vunpack.c.l.b16 %v2172
      %v2206 = vunpack.c.l.b16 %v2173
      %v2207 = vunpack.c.l.b16 %v2174
      %v2208 = vunpack.c.l.b16 %v2175
      %v2209 = vpack.c.b16 %v2206, %v2205
      %v2210 = vpack.c.b16 %v2208, %v2207
      %v2214 = vsel %vm574, %v2197, 0
      %2216 = vmatpush.bf16.msra.mxu0 0
      %2217 = vmatpush.bf16.msra.mxu0 0
      %2218 = vmatpush.bf16.msra.mxu0 0
      %2219 = vmatpush.bf16.msra.mxu0 0
      %2220 = vmatpush.bf16.msra.mxu0 0
      %2221 = vmatpush.bf16.msra.mxu0 0
      %2222 = vmatpush.bf16.msra.mxu0 %v2210
      %2223 = vmatpush.bf16.msra.mxu0 %v2209
      %2224 = vmatmul.bf16.gmra.mxu0 %v2214
      %v2225 = vpop.f32.mrf.mxu0
      %v2226 = vadd.f32 %v2199, %v2225
      %v2227 = vpop.f32.mrf.mxu0
      %2228 = vdwg.mxu0
      %v2229 = vmax.f32 %v2226, 0.0
      %v2230 = vpack.c.bf16 %v2229, %v2229
      %v2232 = vperm.slane %v2196, 0
      %v2250 = vunpack.c.l.b16 %v2179
      %v2251 = vunpack.c.l.b16 %v2180
      %v2252 = vunpack.c.l.b16 %v2181
      %v2253 = vunpack.c.l.b16 %v2182
      %v2254 = vunpack.c.l.b16 %v2183
      %v2255 = vunpack.c.l.b16 %v2184
      %v2256 = vunpack.c.l.b16 %v2185
      %v2257 = vunpack.c.l.b16 %v2186
      %v2258 = vunpack.c.l.b16 %v2187
      %v2259 = vunpack.c.l.b16 %v2188
      %v2260 = vunpack.c.l.b16 %v2189
      %v2261 = vunpack.c.l.b16 %v2190
      %v2262 = vunpack.c.l.b16 %v2191
      %v2263 = vunpack.c.l.b16 %v2192
      %v2264 = vunpack.c.l.b16 %v2193
      %v2265 = vunpack.c.l.b16 %v2194
      %v2266 = vpack.c.b16 %v2251, %v2250
      %v2267 = vpack.c.b16 %v2253, %v2252
      %v2268 = vpack.c.b16 %v2255, %v2254
      %v2269 = vpack.c.b16 %v2257, %v2256
      %v2270 = vpack.c.b16 %v2259, %v2258
      %v2271 = vpack.c.b16 %v2261, %v2260
      %v2272 = vpack.c.b16 %v2263, %v2262
      %v2273 = vpack.c.b16 %v2265, %v2264
      %2282 = vmatpush.bf16.msra.mxu0 %v2273
      %2283 = vmatpush.bf16.msra.mxu0 %v2272
      %2284 = vmatpush.bf16.msra.mxu0 %v2271
      %2285 = vmatpush.bf16.msra.mxu0 %v2270
      %2286 = vmatpush.bf16.msra.mxu0 %v2269
      %2287 = vmatpush.bf16.msra.mxu0 %v2268
      %2288 = vmatpush.bf16.msra.mxu0 %v2267
      %2289 = vmatpush.bf16.msra.mxu0 %v2266
      %2290 = vmatmul.bf16.gmra.mxu0 %v2230
      %v2291 = vpop.f32.mrf.mxu0
      %v2292 = vadd.f32 %v2232, %v2291
      %v2293 = vpop.f32.mrf.mxu0
      %2294 = vdwg.mxu0
      %v2295 = vadd.f32 %v2292, %v2170
      %s2296 = scalar_lea.vmem %s13, 1
      %v2297 = vld [vmem:[%s2296] sm:$0x1]
      %s2298 = scalar_lea.vmem %s14, 1
      %v2299 = vld [vmem:[%s2298] sm:$0x1]
      %v2300 = vsel %vm574, %v2295, 0.0
      %2301 = vadd.xlane.f32.xlu0 %v2300
      %v2302 = vpop.xlane.xlu0 %2301
      %v2303 = vmul.f32 %v2302, %v1238
      %v2304 = vsub.f32 %v2295, %v2303
      %v2305 = vmul.f32 %v2304, %v2304
      %v2306 = vsel %vm574, %v2305, 0.0
      %2307 = vadd.xlane.f32.xlu0 %v2306
      %v2308 = vpop.xlane.xlu0 %2307
      %v2309 = vmul.f32 %v2308, %v1238
      %v2310 = vadd.f32 %v2309, 1e-05
      %v2311 = vrsqrt.pop %v2310
      %v2312 = vmul.f32 %v2311, %v2310
      %v2313 = vmul.f32 %v2312, %v2311
      %v2314 = vmul.f32 0.5, %v2313
      %v2315 = vsub.f32 1.5, %v2314
      %v2316 = vmul.f32 %v2311, %v2315
      %vm2317 = vweird.f32 %v2310
      %vm2318 = vweird.f32 %v2311
      %vm2319 = vmor %vm2317, %vm2318
      %v2320 = vsel %vm2319, %v2311, %v2316
      %v2321 = vmul.f32 %v2304, %v2320
      %v2323 = vperm.slane %v2297, 0
      %v2325 = vmul.f32 %v2321, %v2323
      %v2327 = vperm.slane %v2299, 0
      %v2329 = vadd.f32 %v2325, %v2327
      %2330 = vst.msk [vmem:[%s503] sm:$0xff] %vm574, %v2329
      %p2331 = scmp.lt.s32.totalorder %s26, 1
      %s2332 = scalar_select %p2331, %s26, 1
      %s2333 = smul.addr %s2332, 8
      %s2334 = scalar_lea.vmem %s15, %s2333
      // Predicated region
      $region81: #{_lambda_.2} parent=79 // pred_check
        %p2335 = pneg %p369
      $region82: #{_lambda_.2} parent=79 // pred_check_branch
        %2337 = sbr.rel (%p2335) target = $region84
      $region83: #{_lambda_.2} parent=79 // pred_region
        _
      $region84: #{_lambda_.2} parent=79 // pred_fallthru
        _
    $region80: #{_lambda_.2} parent=5 // pred_fallthru
      _
    %p2338 = scmp.le.s32.totalorder 2, %s21
    // Predicated region
    $region85: #{_lambda_.2} parent=5 // pred_check
      %p2339 = pneg %p2338
    $region86: #{_lambda_.2} parent=5 // pred_check_branch
      %2341 = sbr.rel (%p2339) target = $region88
    $region87: #{_lambda_.2} parent=5 // pred_region
      %s2342 = ssub.s32 %s21, 2
      // Predicated region
      $region89: #{_lambda_.2} parent=87 // pred_check
        %p2343 = pneg %p375
      $region90: #{_lambda_.2} parent=87 // pred_check_branch
        %2345 = sbr.rel (%p2343) target = $region92
      $region91: #{_lambda_.2} parent=87 // pred_region
        %p2346 = scmp.lt.s32.totalorder %s27, 1
        %s2347 = scalar_select %p2346, %s27, 1
        %s2348 = smul.addr %s2347, 8
        %s2349 = scalar_lea.vmem %s15, %s2348
      $region92: #{_lambda_.2} parent=87 // pred_fallthru
        _
    $region88: #{_lambda_.2} parent=5 // pred_fallthru
      _
  $region6: #{_lambda_.2} parent=0 // loop_footer
    %s25 = sadd.s32 1, %s21
  $region7: #{_lambda_.2} parent=0 // loop_footer_branch
    %20 = sbr.rel target = $region3
  $region8: #{_lambda_.2} parent=0 // loop_exit
    _

// kernel: _lambda_.3
$region0: #{_lambda_.3}
  #allocation0 [shape = 'u32[]', space=smem, size = 0x4, offset = 0x4, fixed_abs, tag = 'smem constant byte address 0x4 - core index']
  #allocation1 [shape = 'u32[72,128]{1,0:T(1,128)}', space=vmem, size = 0x9000, scoped, tag = 'internal scratch']
  %s0 = inlined_call_operand.vmem [shape: f32[2,8,32], index: 0, kind: input, shape index: {}]
  %s1 = inlined_call_operand.vmem [shape: f32[2,8,32], index: 1, kind: input, shape index: {}]
  %s2 = inlined_call_operand.vmem [shape: f32[2,1,8], index: 2, kind: input, shape index: {}]
  %s3 = inlined_call_operand.vmem [shape: f32[8,8], index: 3, kind: input, shape index: {}]
  %s4 = inlined_call_operand.vmem [shape: bf16[2,4,32,8], index: 4, kind: input, shape index: {}]
  %s5 = inlined_call_operand.vmem [shape: bf16[2,4,32,8], index: 5, kind: input, shape index: {}]
  %s6 = inlined_call_operand.vmem [shape: bf16[2,4,32,8], index: 6, kind: input, shape index: {}]
  %s7 = inlined_call_operand.vmem [shape: bf16[2,4,8,32], index: 7, kind: input, shape index: {}]
  %s8 = inlined_call_operand.vmem [shape: f32[2,1,32], index: 8, kind: input, shape index: {}]
  %s9 = inlined_call_operand.vmem [shape: f32[2,1,32], index: 9, kind: input, shape index: {}]
  %s10 = inlined_call_operand.vmem [shape: f32[2,1,32], index: 10, kind: input, shape index: {}]
  %s11 = inlined_call_operand.vmem [shape: bf16[2,4,32,8], index: 11, kind: input, shape index: {}]
  %s12 = inlined_call_operand.vmem [shape: bf16[2,4,32,8], index: 12, kind: input, shape index: {}]
  %s13 = inlined_call_operand.vmem [shape: bf16[2,4,32,8], index: 13, kind: input, shape index: {}]
  %s14 = inlined_call_operand.vmem [shape: bf16[2,4,8,32], index: 14, kind: input, shape index: {}]
  %s15 = inlined_call_operand.vmem [shape: f32[2,1,32], index: 15, kind: input, shape index: {}]
  %s16 = inlined_call_operand.vmem [shape: f32[2,1,32], index: 16, kind: input, shape index: {}]
  %s17 = inlined_call_operand.vmem [shape: f32[2,1,32], index: 17, kind: input, shape index: {}]
  %s18 = inlined_call_operand.vmem [shape: bf16[2,32,128], index: 18, kind: input, shape index: {}]
  %s19 = inlined_call_operand.vmem [shape: f32[2,1,128], index: 19, kind: input, shape index: {}]
  %s20 = inlined_call_operand.vmem [shape: bf16[2,128,32], index: 20, kind: input, shape index: {}]
  %s21 = inlined_call_operand.vmem [shape: f32[2,1,32], index: 21, kind: input, shape index: {}]
  %s22 = inlined_call_operand.vmem [shape: f32[2,1,32], index: 22, kind: input, shape index: {}]
  %s23 = inlined_call_operand.vmem [shape: f32[2,1,32], index: 23, kind: input, shape index: {}]
  %s24 = inlined_call_operand.vmem [shape: bf16[32,64], index: 24, kind: input, shape index: {}]
  %s25 = inlined_call_operand.vmem [shape: f32[1,64], index: 25, kind: input, shape index: {}]
  %s26 = inlined_call_operand.hbm [shape: f32[2,8,64], index: 26, kind: output, shape index: {}]
  %s27 = sld [smem:[#allocation0]]
  $region137: #{_lambda_.3} parent=0
    _
  %s29 = ssub.s32 1, %s27
  %s30 = scalar_select 0, %s29, %s27
  $region1: #{_lambda_.3} parent=0
    #allocation2 [shape = 'u8[8192]{0}', space=vmem, size = 0x2000, scoped, tag = 'output window, operand 0']
    #allocation3 [shape = 's32[2]{0}', space=sflag, size = 0x8, scoped, tag = 'scoped memory for _lambda_.3']
    %31 = vsyncpa [#allocation3], 0
    %s32 = scalar_lea.sflag [#allocation3], 1
    %33 = vsyncpa %s32, 0
    loop: start=0, step=1, limit=4
    $region2: #{_lambda_.3} parent=1 // loop_pre_header
      _
    $region3: #{_lambda_.3} parent=1 // loop_header
      %s35 = sphi 0, %s39
      %p36 = scmp.ge.s32.totalorder %s35, 4
      %s45 = sphi 0, %s47
      %s48 = sphi 0, %s45
      %s49 = sphi 0, %s48
      %s65 = sphi 0, %s49
      %s71 = sphi 0, %s73
      %s74 = sphi 0, %s71
      %s75 = sphi 0, %s74
      %s91 = sphi 0, %s75
      %s97 = sphi 0, %s99
      %s100 = sphi 0, %s97
      %s101 = sphi 0, %s100
      %s117 = sphi 0, %s101
      %s121 = sphi 0, %s121
      %s123 = sphi 0, %s121
      %s124 = sphi 0, %s123
      %s138 = sphi 0, %s124
      %s142 = sphi 0, %s142
      %s144 = sphi 0, %s142
      %s145 = sphi 0, %s144
      %s159 = sphi 0, %s145
      %s163 = sphi 0, %s163
      %s165 = sphi 0, %s163
      %s166 = sphi 0, %s165
      %s180 = sphi 0, %s166
      %s184 = sphi 0, %s184
      %s186 = sphi 0, %s184
      %s187 = sphi 0, %s186
      %s201 = sphi 0, %s187
      %s205 = sphi 0, %s205
      %s207 = sphi 0, %s205
      %s208 = sphi 0, %s207
      %s222 = sphi 0, %s208
      %s226 = sphi 0, %s226
      %s228 = sphi 0, %s226
      %s229 = sphi 0, %s228
      %s243 = sphi 0, %s229
      %s247 = sphi 0, %s247
      %s249 = sphi 0, %s247
      %s250 = sphi 0, %s249
      %s264 = sphi 0, %s250
      %s268 = sphi 0, %s268
      %s270 = sphi 0, %s268
      %s271 = sphi 0, %s270
      %s285 = sphi 0, %s271
      %s289 = sphi 0, %s289
      %s291 = sphi 0, %s289
      %s292 = sphi 0, %s291
      %s306 = sphi 0, %s292
      %s310 = sphi 0, %s310
      %s312 = sphi 0, %s310
      %s313 = sphi 0, %s312
      %s327 = sphi 0, %s313
      %s331 = sphi 0, %s331
      %s333 = sphi 0, %s331
      %s334 = sphi 0, %s333
      %s348 = sphi 0, %s334
      %s352 = sphi 0, %s352
      %s354 = sphi 0, %s352
      %s355 = sphi 0, %s354
      %s369 = sphi 0, %s355
      %s373 = sphi 0, %s373
      %s375 = sphi 0, %s373
      %s376 = sphi 0, %s375
      %s390 = sphi 0, %s376
      %s394 = sphi 0, %s394
      %s396 = sphi 0, %s394
      %s397 = sphi 0, %s396
      %s411 = sphi 0, %s397
      %s415 = sphi 0, %s415
      %s417 = sphi 0, %s415
      %s418 = sphi 0, %s417
      %s432 = sphi 0, %s418
      %s436 = sphi 0, %s436
      %s438 = sphi 0, %s436
      %s439 = sphi 0, %s438
      %s453 = sphi 0, %s439
      %s457 = sphi 0, %s457
      %s459 = sphi 0, %s457
      %s460 = sphi 0, %s459
      %s474 = sphi 0, %s460
      %s478 = sphi 0, %s478
      %s480 = sphi 0, %s478
      %s481 = sphi 0, %s480
      %s495 = sphi 0, %s481
      %s499 = sphi 0, %s499
      %s501 = sphi 0, %s499
      %s502 = sphi 0, %s501
      %s516 = sphi 0, %s502
      %s520 = sphi 0, %s520
      %s522 = sphi 0, %s520
      %s523 = sphi 0, %s522
      %s537 = sphi 0, %s523
      %s541 = sphi 0, %s541
      %s543 = sphi 0, %s541
      %s544 = sphi 0, %s543
      %s558 = sphi 0, %s544
      %s562 = sphi 0, %s562
      %s564 = sphi 0, %s562
      %s565 = sphi 0, %s564
      %s579 = sphi 0, %s565
      %s583 = sphi 0, %s583
      %s585 = sphi 0, %s583
      %s586 = sphi 0, %s585
      %s600 = sphi 0, %s586
      %s606 = sphi 0, %s608
      %s609 = sphi 0, %s606
      %s610 = sphi 0, %s609
      %s626 = sphi 0, %s610
    $region4: #{_lambda_.3} parent=1 // loop_header_branch
      %38 = sbr.rel (%p36) target = $region8
    $region5: #{_lambda_.3} parent=1 // loop_body
      %s40 = ssub.s32 %s35, 1
      %s41 = ssub.s32 %s35, 2
      %s42 = sadd.s32 %s35, 1
      %s43 = ssub.s32 %s35, %s42
      %p44 = scmp.eq.s32.totalorder %s43, 0
      %s46 = sadd.s32 %s45, 1
      %s47 = scalar_select %p44, %s45, %s46
      %p50 = pneg %p44
      %p51 = scmp.eq.s32.totalorder %s35, 1
      %p52 = por %p50, %p51
      %p53 = scmp.ne.s32.totalorder %s45, %s48
      %p54 = scmp.eq.s32.totalorder %s35, 0
      %p55 = por %p53, %p54
      %p56 = scmp.ne.s32.totalorder %s45, %s48
      %p57 = scmp.eq.s32.totalorder %s40, 1
      %p58 = por %p56, %p57
      %p59 = scmp.ne.s32.totalorder %s48, %s49
      %p60 = scmp.eq.s32.totalorder %s40, 0
      %p61 = por %p59, %p60
      %p62 = scmp.ne.s32.totalorder %s48, %s49
      %p63 = scmp.eq.s32.totalorder %s41, 1
      %p64 = por %p62, %p63
      %p66 = scmp.ne.s32.totalorder %s49, %s65
      %p67 = scmp.eq.s32.totalorder %s41, 0
      %p68 = por %p66, %p67
      %s69 = ssub.s32 %s35, %s42
      %p70 = scmp.eq.s32.totalorder %s69, 0
      %s72 = sadd.s32 %s71, 1
      %s73 = scalar_select %p70, %s71, %s72
      %p76 = pneg %p70
      %p77 = scmp.eq.s32.totalorder %s35, 1
      %p78 = por %p76, %p77
      %p79 = scmp.ne.s32.totalorder %s71, %s74
      %p80 = scmp.eq.s32.totalorder %s35, 0
      %p81 = por %p79, %p80
      %p82 = scmp.ne.s32.totalorder %s71, %s74
      %p83 = scmp.eq.s32.totalorder %s40, 1
      %p84 = por %p82, %p83
      %p85 = scmp.ne.s32.totalorder %s74, %s75
      %p86 = scmp.eq.s32.totalorder %s40, 0
      %p87 = por %p85, %p86
      %p88 = scmp.ne.s32.totalorder %s74, %s75
      %p89 = scmp.eq.s32.totalorder %s41, 1
      %p90 = por %p88, %p89
      %p92 = scmp.ne.s32.totalorder %s75, %s91
      %p93 = scmp.eq.s32.totalorder %s41, 0
      %p94 = por %p92, %p93
      %s95 = ssub.s32 %s35, %s42
      %p96 = scmp.eq.s32.totalorder %s95, 0
      %s98 = sadd.s32 %s97, 1
      %s99 = scalar_select %p96, %s97, %s98
      %p102 = pneg %p96
      %p103 = scmp.eq.s32.totalorder %s35, 1
      %p104 = por %p102, %p103
      %p105 = scmp.ne.s32.totalorder %s97, %s100
      %p106 = scmp.eq.s32.totalorder %s35, 0
      %p107 = por %p105, %p106
      %p108 = scmp.ne.s32.totalorder %s97, %s100
      %p109 = scmp.eq.s32.totalorder %s40, 1
      %p110 = por %p108, %p109
      %p111 = scmp.ne.s32.totalorder %s100, %s101
      %p112 = scmp.eq.s32.totalorder %s40, 0
      %p113 = por %p111, %p112
      %p114 = scmp.ne.s32.totalorder %s100, %s101
      %p115 = scmp.eq.s32.totalorder %s41, 1
      %p116 = por %p114, %p115
      %p118 = scmp.ne.s32.totalorder %s101, %s117
      %p119 = scmp.eq.s32.totalorder %s41, 0
      %p120 = por %p118, %p119
      %s122 = sadd.s32 %s121, 1
      %p125 = scmp.eq.s32.totalorder %s35, 1
      %p126 = scmp.ne.s32.totalorder %s121, %s123
      %p127 = scmp.eq.s32.totalorder %s35, 0
      %p128 = por %p126, %p127
      %p129 = scmp.ne.s32.totalorder %s121, %s123
      %p130 = scmp.eq.s32.totalorder %s40, 1
      %p131 = por %p129, %p130
      %p132 = scmp.ne.s32.totalorder %s123, %s124
      %p133 = scmp.eq.s32.totalorder %s40, 0
      %p134 = por %p132, %p133
      %p135 = scmp.ne.s32.totalorder %s123, %s124
      %p136 = scmp.eq.s32.totalorder %s41, 1
      %p137 = por %p135, %p136
      %p139 = scmp.ne.s32.totalorder %s124, %s138
      %p140 = scmp.eq.s32.totalorder %s41, 0
      %p141 = por %p139, %p140
      %s143 = sadd.s32 %s142, 1
      %p146 = scmp.eq.s32.totalorder %s35, 1
      %p147 = scmp.ne.s32.totalorder %s142, %s144
      %p148 = scmp.eq.s32.totalorder %s35, 0
      %p149 = por %p147, %p148
      %p150 = scmp.ne.s32.totalorder %s142, %s144
      %p151 = scmp.eq.s32.totalorder %s40, 1
      %p152 = por %p150, %p151
      %p153 = scmp.ne.s32.totalorder %s144, %s145
      %p154 = scmp.eq.s32.totalorder %s40, 0
      %p155 = por %p153, %p154
      %p156 = scmp.ne.s32.totalorder %s144, %s145
      %p157 = scmp.eq.s32.totalorder %s41, 1
      %p158 = por %p156, %p157
      %p160 = scmp.ne.s32.totalorder %s145, %s159
      %p161 = scmp.eq.s32.totalorder %s41, 0
      %p162 = por %p160, %p161
      %s164 = sadd.s32 %s163, 1
      %p167 = scmp.eq.s32.totalorder %s35, 1
      %p168 = scmp.ne.s32.totalorder %s163, %s165
      %p169 = scmp.eq.s32.totalorder %s35, 0
      %p170 = por %p168, %p169
      %p171 = scmp.ne.s32.totalorder %s163, %s165
      %p172 = scmp.eq.s32.totalorder %s40, 1
      %p173 = por %p171, %p172
      %p174 = scmp.ne.s32.totalorder %s165, %s166
      %p175 = scmp.eq.s32.totalorder %s40, 0
      %p176 = por %p174, %p175
      %p177 = scmp.ne.s32.totalorder %s165, %s166
      %p178 = scmp.eq.s32.totalorder %s41, 1
      %p179 = por %p177, %p178
      %p181 = scmp.ne.s32.totalorder %s166, %s180
      %p182 = scmp.eq.s32.totalorder %s41, 0
      %p183 = por %p181, %p182
      %s185 = sadd.s32 %s184, 1
      %p188 = scmp.eq.s32.totalorder %s35, 1
      %p189 = scmp.ne.s32.totalorder %s184, %s186
      %p190 = scmp.eq.s32.totalorder %s35, 0
      %p191 = por %p189, %p190
      %p192 = scmp.ne.s32.totalorder %s184, %s186
      %p193 = scmp.eq.s32.totalorder %s40, 1
      %p194 = por %p192, %p193
      %p195 = scmp.ne.s32.totalorder %s186, %s187
      %p196 = scmp.eq.s32.totalorder %s40, 0
      %p197 = por %p195, %p196
      %p198 = scmp.ne.s32.totalorder %s186, %s187
      %p199 = scmp.eq.s32.totalorder %s41, 1
      %p200 = por %p198, %p199
      %p202 = scmp.ne.s32.totalorder %s187, %s201
      %p203 = scmp.eq.s32.totalorder %s41, 0
      %p204 = por %p202, %p203
      %s206 = sadd.s32 %s205, 1
      %p209 = scmp.eq.s32.totalorder %s35, 1
      %p210 = scmp.ne.s32.totalorder %s205, %s207
      %p211 = scmp.eq.s32.totalorder %s35, 0
      %p212 = por %p210, %p211
      %p213 = scmp.ne.s32.totalorder %s205, %s207
      %p214 = scmp.eq.s32.totalorder %s40, 1
      %p215 = por %p213, %p214
      %p216 = scmp.ne.s32.totalorder %s207, %s208
      %p217 = scmp.eq.s32.totalorder %s40, 0
      %p218 = por %p216, %p217
      %p219 = scmp.ne.s32.totalorder %s207, %s208
      %p220 = scmp.eq.s32.totalorder %s41, 1
      %p221 = por %p219, %p220
      %p223 = scmp.ne.s32.totalorder %s208, %s222
      %p224 = scmp.eq.s32.totalorder %s41, 0
      %p225 = por %p223, %p224
      %s227 = sadd.s32 %s226, 1
      %p230 = scmp.eq.s32.totalorder %s35, 1
      %p231 = scmp.ne.s32.totalorder %s226, %s228
      %p232 = scmp.eq.s32.totalorder %s35, 0
      %p233 = por %p231, %p232
      %p234 = scmp.ne.s32.totalorder %s226, %s228
      %p235 = scmp.eq.s32.totalorder %s40, 1
      %p236 = por %p234, %p235
      %p237 = scmp.ne.s32.totalorder %s228, %s229
      %p238 = scmp.eq.s32.totalorder %s40, 0
      %p239 = por %p237, %p238
      %p240 = scmp.ne.s32.totalorder %s228, %s229
      %p241 = scmp.eq.s32.totalorder %s41, 1
      %p242 = por %p240, %p241
      %p244 = scmp.ne.s32.totalorder %s229, %s243
      %p245 = scmp.eq.s32.totalorder %s41, 0
      %p246 = por %p244, %p245
      %s248 = sadd.s32 %s247, 1
      %p251 = scmp.eq.s32.totalorder %s35, 1
      %p252 = scmp.ne.s32.totalorder %s247, %s249
      %p253 = scmp.eq.s32.totalorder %s35, 0
      %p254 = por %p252, %p253
      %p255 = scmp.ne.s32.totalorder %s247, %s249
      %p256 = scmp.eq.s32.totalorder %s40, 1
      %p257 = por %p255, %p256
      %p258 = scmp.ne.s32.totalorder %s249, %s250
      %p259 = scmp.eq.s32.totalorder %s40, 0
      %p260 = por %p258, %p259
      %p261 = scmp.ne.s32.totalorder %s249, %s250
      %p262 = scmp.eq.s32.totalorder %s41, 1
      %p263 = por %p261, %p262
      %p265 = scmp.ne.s32.totalorder %s250, %s264
      %p266 = scmp.eq.s32.totalorder %s41, 0
      %p267 = por %p265, %p266
      %s269 = sadd.s32 %s268, 1
      %p272 = scmp.eq.s32.totalorder %s35, 1
      %p273 = scmp.ne.s32.totalorder %s268, %s270
      %p274 = scmp.eq.s32.totalorder %s35, 0
      %p275 = por %p273, %p274
      %p276 = scmp.ne.s32.totalorder %s268, %s270
      %p277 = scmp.eq.s32.totalorder %s40, 1
      %p278 = por %p276, %p277
      %p279 = scmp.ne.s32.totalorder %s270, %s271
      %p280 = scmp.eq.s32.totalorder %s40, 0
      %p281 = por %p279, %p280
      %p282 = scmp.ne.s32.totalorder %s270, %s271
      %p283 = scmp.eq.s32.totalorder %s41, 1
      %p284 = por %p282, %p283
      %p286 = scmp.ne.s32.totalorder %s271, %s285
      %p287 = scmp.eq.s32.totalorder %s41, 0
      %p288 = por %p286, %p287
      %s290 = sadd.s32 %s289, 1
      %p293 = scmp.eq.s32.totalorder %s35, 1
      %p294 = scmp.ne.s32.totalorder %s289, %s291
      %p295 = scmp.eq.s32.totalorder %s35, 0
      %p296 = por %p294, %p295
      %p297 = scmp.ne.s32.totalorder %s289, %s291
      %p298 = scmp.eq.s32.totalorder %s40, 1
      %p299 = por %p297, %p298
      %p300 = scmp.ne.s32.totalorder %s291, %s292
      %p301 = scmp.eq.s32.totalorder %s40, 0
      %p302 = por %p300, %p301
      %p303 = scmp.ne.s32.totalorder %s291, %s292
      %p304 = scmp.eq.s32.totalorder %s41, 1
      %p305 = por %p303, %p304
      %p307 = scmp.ne.s32.totalorder %s292, %s306
      %p308 = scmp.eq.s32.totalorder %s41, 0
      %p309 = por %p307, %p308
      %s311 = sadd.s32 %s310, 1
      %p314 = scmp.eq.s32.totalorder %s35, 1
      %p315 = scmp.ne.s32.totalorder %s310, %s312
      %p316 = scmp.eq.s32.totalorder %s35, 0
      %p317 = por %p315, %p316
      %p318 = scmp.ne.s32.totalorder %s310, %s312
      %p319 = scmp.eq.s32.totalorder %s40, 1
      %p320 = por %p318, %p319
      %p321 = scmp.ne.s32.totalorder %s312, %s313
      %p322 = scmp.eq.s32.totalorder %s40, 0
      %p323 = por %p321, %p322
      %p324 = scmp.ne.s32.totalorder %s312, %s313
      %p325 = scmp.eq.s32.totalorder %s41, 1
      %p326 = por %p324, %p325
      %p328 = scmp.ne.s32.totalorder %s313, %s327
      %p329 = scmp.eq.s32.totalorder %s41, 0
      %p330 = por %p328, %p329
      %s332 = sadd.s32 %s331, 1
      %p335 = scmp.eq.s32.totalorder %s35, 1
      %p336 = scmp.ne.s32.totalorder %s331, %s333
      %p337 = scmp.eq.s32.totalorder %s35, 0
      %p338 = por %p336, %p337
      %p339 = scmp.ne.s32.totalorder %s331, %s333
      %p340 = scmp.eq.s32.totalorder %s40, 1
      %p341 = por %p339, %p340
      %p342 = scmp.ne.s32.totalorder %s333, %s334
      %p343 = scmp.eq.s32.totalorder %s40, 0
      %p344 = por %p342, %p343
      %p345 = scmp.ne.s32.totalorder %s333, %s334
      %p346 = scmp.eq.s32.totalorder %s41, 1
      %p347 = por %p345, %p346
      %p349 = scmp.ne.s32.totalorder %s334, %s348
      %p350 = scmp.eq.s32.totalorder %s41, 0
      %p351 = por %p349, %p350
      %s353 = sadd.s32 %s352, 1
      %p356 = scmp.eq.s32.totalorder %s35, 1
      %p357 = scmp.ne.s32.totalorder %s352, %s354
      %p358 = scmp.eq.s32.totalorder %s35, 0
      %p359 = por %p357, %p358
      %p360 = scmp.ne.s32.totalorder %s352, %s354
      %p361 = scmp.eq.s32.totalorder %s40, 1
      %p362 = por %p360, %p361
      %p363 = scmp.ne.s32.totalorder %s354, %s355
      %p364 = scmp.eq.s32.totalorder %s40, 0
      %p365 = por %p363, %p364
      %p366 = scmp.ne.s32.totalorder %s354, %s355
      %p367 = scmp.eq.s32.totalorder %s41, 1
      %p368 = por %p366, %p367
      %p370 = scmp.ne.s32.totalorder %s355, %s369
      %p371 = scmp.eq.s32.totalorder %s41, 0
      %p372 = por %p370, %p371
      %s374 = sadd.s32 %s373, 1
      %p377 = scmp.eq.s32.totalorder %s35, 1
      %p378 = scmp.ne.s32.totalorder %s373, %s375
      %p379 = scmp.eq.s32.totalorder %s35, 0
      %p380 = por %p378, %p379
      %p381 = scmp.ne.s32.totalorder %s373, %s375
      %p382 = scmp.eq.s32.totalorder %s40, 1
      %p383 = por %p381, %p382
      %p384 = scmp.ne.s32.totalorder %s375, %s376
      %p385 = scmp.eq.s32.totalorder %s40, 0
      %p386 = por %p384, %p385
      %p387 = scmp.ne.s32.totalorder %s375, %s376
      %p388 = scmp.eq.s32.totalorder %s41, 1
      %p389 = por %p387, %p388
      %p391 = scmp.ne.s32.totalorder %s376, %s390
      %p392 = scmp.eq.s32.totalorder %s41, 0
      %p393 = por %p391, %p392
      %s395 = sadd.s32 %s394, 1
      %p398 = scmp.eq.s32.totalorder %s35, 1
      %p399 = scmp.ne.s32.totalorder %s394, %s396
      %p400 = scmp.eq.s32.totalorder %s35, 0
      %p401 = por %p399, %p400
      %p402 = scmp.ne.s32.totalorder %s394, %s396
      %p403 = scmp.eq.s32.totalorder %s40, 1
      %p404 = por %p402, %p403
      %p405 = scmp.ne.s32.totalorder %s396, %s397
      %p406 = scmp.eq.s32.totalorder %s40, 0
      %p407 = por %p405, %p406
      %p408 = scmp.ne.s32.totalorder %s396, %s397
      %p409 = scmp.eq.s32.totalorder %s41, 1
      %p410 = por %p408, %p409
      %p412 = scmp.ne.s32.totalorder %s397, %s411
      %p413 = scmp.eq.s32.totalorder %s41, 0
      %p414 = por %p412, %p413
      %s416 = sadd.s32 %s415, 1
      %p419 = scmp.eq.s32.totalorder %s35, 1
      %p420 = scmp.ne.s32.totalorder %s415, %s417
      %p421 = scmp.eq.s32.totalorder %s35, 0
      %p422 = por %p420, %p421
      %p423 = scmp.ne.s32.totalorder %s415, %s417
      %p424 = scmp.eq.s32.totalorder %s40, 1
      %p425 = por %p423, %p424
      %p426 = scmp.ne.s32.totalorder %s417, %s418
      %p427 = scmp.eq.s32.totalorder %s40, 0
      %p428 = por %p426, %p427
      %p429 = scmp.ne.s32.totalorder %s417, %s418
      %p430 = scmp.eq.s32.totalorder %s41, 1
      %p431 = por %p429, %p430
      %p433 = scmp.ne.s32.totalorder %s418, %s432
      %p434 = scmp.eq.s32.totalorder %s41, 0
      %p435 = por %p433, %p434
      %s437 = sadd.s32 %s436, 1
      %p440 = scmp.eq.s32.totalorder %s35, 1
      %p441 = scmp.ne.s32.totalorder %s436, %s438
      %p442 = scmp.eq.s32.totalorder %s35, 0
      %p443 = por %p441, %p442
      %p444 = scmp.ne.s32.totalorder %s436, %s438
      %p445 = scmp.eq.s32.totalorder %s40, 1
      %p446 = por %p444, %p445
      %p447 = scmp.ne.s32.totalorder %s438, %s439
      %p448 = scmp.eq.s32.totalorder %s40, 0
      %p449 = por %p447, %p448
      %p450 = scmp.ne.s32.totalorder %s438, %s439
      %p451 = scmp.eq.s32.totalorder %s41, 1
      %p452 = por %p450, %p451
      %p454 = scmp.ne.s32.totalorder %s439, %s453
      %p455 = scmp.eq.s32.totalorder %s41, 0
      %p456 = por %p454, %p455
      %s458 = sadd.s32 %s457, 1
      %p461 = scmp.eq.s32.totalorder %s35, 1
      %p462 = scmp.ne.s32.totalorder %s457, %s459
      %p463 = scmp.eq.s32.totalorder %s35, 0
      %p464 = por %p462, %p463
      %p465 = scmp.ne.s32.totalorder %s457, %s459
      %p466 = scmp.eq.s32.totalorder %s40, 1
      %p467 = por %p465, %p466
      %p468 = scmp.ne.s32.totalorder %s459, %s460
      %p469 = scmp.eq.s32.totalorder %s40, 0
      %p470 = por %p468, %p469
      %p471 = scmp.ne.s32.totalorder %s459, %s460
      %p472 = scmp.eq.s32.totalorder %s41, 1
      %p473 = por %p471, %p472
      %p475 = scmp.ne.s32.totalorder %s460, %s474
      %p476 = scmp.eq.s32.totalorder %s41, 0
      %p477 = por %p475, %p476
      %s479 = sadd.s32 %s478, 1
      %p482 = scmp.eq.s32.totalorder %s35, 1
      %p483 = scmp.ne.s32.totalorder %s478, %s480
      %p484 = scmp.eq.s32.totalorder %s35, 0
      %p485 = por %p483, %p484
      %p486 = scmp.ne.s32.totalorder %s478, %s480
      %p487 = scmp.eq.s32.totalorder %s40, 1
      %p488 = por %p486, %p487
      %p489 = scmp.ne.s32.totalorder %s480, %s481
      %p490 = scmp.eq.s32.totalorder %s40, 0
      %p491 = por %p489, %p490
      %p492 = scmp.ne.s32.totalorder %s480, %s481
      %p493 = scmp.eq.s32.totalorder %s41, 1
      %p494 = por %p492, %p493
      %p496 = scmp.ne.s32.totalorder %s481, %s495
      %p497 = scmp.eq.s32.totalorder %s41, 0
      %p498 = por %p496, %p497
      %s500 = sadd.s32 %s499, 1
      %p503 = scmp.eq.s32.totalorder %s35, 1
      %p504 = scmp.ne.s32.totalorder %s499, %s501
      %p505 = scmp.eq.s32.totalorder %s35, 0
      %p506 = por %p504, %p505
      %p507 = scmp.ne.s32.totalorder %s499, %s501
      %p508 = scmp.eq.s32.totalorder %s40, 1
      %p509 = por %p507, %p508
      %p510 = scmp.ne.s32.totalorder %s501, %s502
      %p511 = scmp.eq.s32.totalorder %s40, 0
      %p512 = por %p510, %p511
      %p513 = scmp.ne.s32.totalorder %s501, %s502
      %p514 = scmp.eq.s32.totalorder %s41, 1
      %p515 = por %p513, %p514
      %p517 = scmp.ne.s32.totalorder %s502, %s516
      %p518 = scmp.eq.s32.totalorder %s41, 0
      %p519 = por %p517, %p518
      %s521 = sadd.s32 %s520, 1
      %p524 = scmp.eq.s32.totalorder %s35, 1
      %p525 = scmp.ne.s32.totalorder %s520, %s522
      %p526 = scmp.eq.s32.totalorder %s35, 0
      %p527 = por %p525, %p526
      %p528 = scmp.ne.s32.totalorder %s520, %s522
      %p529 = scmp.eq.s32.totalorder %s40, 1
      %p530 = por %p528, %p529
      %p531 = scmp.ne.s32.totalorder %s522, %s523
      %p532 = scmp.eq.s32.totalorder %s40, 0
      %p533 = por %p531, %p532
      %p534 = scmp.ne.s32.totalorder %s522, %s523
      %p535 = scmp.eq.s32.totalorder %s41, 1
      %p536 = por %p534, %p535
      %p538 = scmp.ne.s32.totalorder %s523, %s537
      %p539 = scmp.eq.s32.totalorder %s41, 0
      %p540 = por %p538, %p539
      %s542 = sadd.s32 %s541, 1
      %p545 = scmp.eq.s32.totalorder %s35, 1
      %p546 = scmp.ne.s32.totalorder %s541, %s543
      %p547 = scmp.eq.s32.totalorder %s35, 0
      %p548 = por %p546, %p547
      %p549 = scmp.ne.s32.totalorder %s541, %s543
      %p550 = scmp.eq.s32.totalorder %s40, 1
      %p551 = por %p549, %p550
      %p552 = scmp.ne.s32.totalorder %s543, %s544
      %p553 = scmp.eq.s32.totalorder %s40, 0
      %p554 = por %p552, %p553
      %p555 = scmp.ne.s32.totalorder %s543, %s544
      %p556 = scmp.eq.s32.totalorder %s41, 1
      %p557 = por %p555, %p556
      %p559 = scmp.ne.s32.totalorder %s544, %s558
      %p560 = scmp.eq.s32.totalorder %s41, 0
      %p561 = por %p559, %p560
      %s563 = sadd.s32 %s562, 1
      %p566 = scmp.eq.s32.totalorder %s35, 1
      %p567 = scmp.ne.s32.totalorder %s562, %s564
      %p568 = scmp.eq.s32.totalorder %s35, 0
      %p569 = por %p567, %p568
      %p570 = scmp.ne.s32.totalorder %s562, %s564
      %p571 = scmp.eq.s32.totalorder %s40, 1
      %p572 = por %p570, %p571
      %p573 = scmp.ne.s32.totalorder %s564, %s565
      %p574 = scmp.eq.s32.totalorder %s40, 0
      %p575 = por %p573, %p574
      %p576 = scmp.ne.s32.totalorder %s564, %s565
      %p577 = scmp.eq.s32.totalorder %s41, 1
      %p578 = por %p576, %p577
      %p580 = scmp.ne.s32.totalorder %s565, %s579
      %p581 = scmp.eq.s32.totalorder %s41, 0
      %p582 = por %p580, %p581
      %s584 = sadd.s32 %s583, 1
      %p587 = scmp.eq.s32.totalorder %s35, 1
      %p588 = scmp.ne.s32.totalorder %s583, %s585
      %p589 = scmp.eq.s32.totalorder %s35, 0
      %p590 = por %p588, %p589
      %p591 = scmp.ne.s32.totalorder %s583, %s585
      %p592 = scmp.eq.s32.totalorder %s40, 1
      %p593 = por %p591, %p592
      %p594 = scmp.ne.s32.totalorder %s585, %s586
      %p595 = scmp.eq.s32.totalorder %s40, 0
      %p596 = por %p594, %p595
      %p597 = scmp.ne.s32.totalorder %s585, %s586
      %p598 = scmp.eq.s32.totalorder %s41, 1
      %p599 = por %p597, %p598
      %p601 = scmp.ne.s32.totalorder %s586, %s600
      %p602 = scmp.eq.s32.totalorder %s41, 0
      %p603 = por %p601, %p602
      %s604 = ssub.s32 %s35, %s42
      %p605 = scmp.eq.s32.totalorder %s604, 0
      %s607 = sadd.s32 %s606, 1
      %s608 = scalar_select %p605, %s606, %s607
      %p611 = pneg %p605
      %p612 = scmp.eq.s32.totalorder %s35, 1
      %p613 = por %p611, %p612
      %p614 = scmp.ne.s32.totalorder %s606, %s609
      %p615 = scmp.eq.s32.totalorder %s35, 0
      %p616 = por %p614, %p615
      %p617 = scmp.ne.s32.totalorder %s606, %s609
      %p618 = scmp.eq.s32.totalorder %s40, 1
      %p619 = por %p617, %p618
      %p620 = scmp.ne.s32.totalorder %s609, %s610
      %p621 = scmp.eq.s32.totalorder %s40, 0
      %p622 = por %p620, %p621
      %p623 = scmp.ne.s32.totalorder %s609, %s610
      %p624 = scmp.eq.s32.totalorder %s41, 1
      %p625 = por %p623, %p624
      %p627 = scmp.ne.s32.totalorder %s610, %s626
      %p628 = scmp.eq.s32.totalorder %s41, 0
      %p629 = por %p627, %p628
      %p630 = scmp.le.s32.totalorder 1, %s35
      %p631 = scmp.lt.s32.totalorder %s35, 3
      %p632 = pnand %p630, %p631
      %p633 = pneg %p632
      // Predicated region
      $region9: #{_lambda_.3} parent=5 // pred_check
        _
      $region10: #{_lambda_.3} parent=5 // pred_check_branch
        %635 = sbr.rel (%p632) target = $region12
      $region11: #{_lambda_.3} parent=5 // pred_region
        %s636 = ssub.s32 %s35, 1
        // Predicated region
        $region13: #{_lambda_.3} parent=11 // pred_check
          %p637 = pneg %p134
        $region14: #{_lambda_.3} parent=11 // pred_check_branch
          %639 = sbr.rel (%p637) target = $region16
        $region15: #{_lambda_.3} parent=11 // pred_region
          _
        $region16: #{_lambda_.3} parent=11 // pred_fallthru
          _
        // Predicated region
        $region17: #{_lambda_.3} parent=11 // pred_check
          %p640 = pneg %p155
        $region18: #{_lambda_.3} parent=11 // pred_check_branch
          %642 = sbr.rel (%p640) target = $region20
        $region19: #{_lambda_.3} parent=11 // pred_region
          _
        $region20: #{_lambda_.3} parent=11 // pred_fallthru
          _
        // Predicated region
        $region21: #{_lambda_.3} parent=11 // pred_check
          %p643 = pneg %p176
        $region22: #{_lambda_.3} parent=11 // pred_check_branch
          %645 = sbr.rel (%p643) target = $region24
        $region23: #{_lambda_.3} parent=11 // pred_region
          _
        $region24: #{_lambda_.3} parent=11 // pred_fallthru
          _
        // Predicated region
        $region25: #{_lambda_.3} parent=11 // pred_check
          %p646 = pneg %p197
        $region26: #{_lambda_.3} parent=11 // pred_check_branch
          %648 = sbr.rel (%p646) target = $region28
        $region27: #{_lambda_.3} parent=11 // pred_region
          _
        $region28: #{_lambda_.3} parent=11 // pred_fallthru
          _
        // Predicated region
        $region29: #{_lambda_.3} parent=11 // pred_check
          %p649 = pneg %p218
        $region30: #{_lambda_.3} parent=11 // pred_check_branch
          %651 = sbr.rel (%p649) target = $region32
        $region31: #{_lambda_.3} parent=11 // pred_region
          _
        $region32: #{_lambda_.3} parent=11 // pred_fallthru
          _
        // Predicated region
        $region33: #{_lambda_.3} parent=11 // pred_check
          %p652 = pneg %p239
        $region34: #{_lambda_.3} parent=11 // pred_check_branch
          %654 = sbr.rel (%p652) target = $region36
        $region35: #{_lambda_.3} parent=11 // pred_region
          _
        $region36: #{_lambda_.3} parent=11 // pred_fallthru
          _
        // Predicated region
        $region37: #{_lambda_.3} parent=11 // pred_check
          %p655 = pneg %p260
        $region38: #{_lambda_.3} parent=11 // pred_check_branch
          %657 = sbr.rel (%p655) target = $region40
        $region39: #{_lambda_.3} parent=11 // pred_region
          _
        $region40: #{_lambda_.3} parent=11 // pred_fallthru
          _
        // Predicated region
        $region41: #{_lambda_.3} parent=11 // pred_check
          %p658 = pneg %p281
        $region42: #{_lambda_.3} parent=11 // pred_check_branch
          %660 = sbr.rel (%p658) target = $region44
        $region43: #{_lambda_.3} parent=11 // pred_region
          _
        $region44: #{_lambda_.3} parent=11 // pred_fallthru
          _
        // Predicated region
        $region45: #{_lambda_.3} parent=11 // pred_check
          %p661 = pneg %p302
        $region46: #{_lambda_.3} parent=11 // pred_check_branch
          %663 = sbr.rel (%p661) target = $region48
        $region47: #{_lambda_.3} parent=11 // pred_region
          _
        $region48: #{_lambda_.3} parent=11 // pred_fallthru
          _
        // Predicated region
        $region49: #{_lambda_.3} parent=11 // pred_check
          %p664 = pneg %p323
        $region50: #{_lambda_.3} parent=11 // pred_check_branch
          %666 = sbr.rel (%p664) target = $region52
        $region51: #{_lambda_.3} parent=11 // pred_region
          _
        $region52: #{_lambda_.3} parent=11 // pred_fallthru
          _
        // Predicated region
        $region53: #{_lambda_.3} parent=11 // pred_check
          %p667 = pneg %p344
        $region54: #{_lambda_.3} parent=11 // pred_check_branch
          %669 = sbr.rel (%p667) target = $region56
        $region55: #{_lambda_.3} parent=11 // pred_region
          _
        $region56: #{_lambda_.3} parent=11 // pred_fallthru
          _
        // Predicated region
        $region57: #{_lambda_.3} parent=11 // pred_check
          %p670 = pneg %p365
        $region58: #{_lambda_.3} parent=11 // pred_check_branch
          %672 = sbr.rel (%p670) target = $region60
        $region59: #{_lambda_.3} parent=11 // pred_region
          _
        $region60: #{_lambda_.3} parent=11 // pred_fallthru
          _
        // Predicated region
        $region61: #{_lambda_.3} parent=11 // pred_check
          %p673 = pneg %p386
        $region62: #{_lambda_.3} parent=11 // pred_check_branch
          %675 = sbr.rel (%p673) target = $region64
        $region63: #{_lambda_.3} parent=11 // pred_region
          _
        $region64: #{_lambda_.3} parent=11 // pred_fallthru
          _
        // Predicated region
        $region65: #{_lambda_.3} parent=11 // pred_check
          %p676 = pneg %p407
        $region66: #{_lambda_.3} parent=11 // pred_check_branch
          %678 = sbr.rel (%p676) target = $region68
        $region67: #{_lambda_.3} parent=11 // pred_region
          _
        $region68: #{_lambda_.3} parent=11 // pred_fallthru
          _
        // Predicated region
        $region69: #{_lambda_.3} parent=11 // pred_check
          %p679 = pneg %p428
        $region70: #{_lambda_.3} parent=11 // pred_check_branch
          %681 = sbr.rel (%p679) target = $region72
        $region71: #{_lambda_.3} parent=11 // pred_region
          _
        $region72: #{_lambda_.3} parent=11 // pred_fallthru
          _
        // Predicated region
        $region73: #{_lambda_.3} parent=11 // pred_check
          %p682 = pneg %p449
        $region74: #{_lambda_.3} parent=11 // pred_check_branch
          %684 = sbr.rel (%p682) target = $region76
        $region75: #{_lambda_.3} parent=11 // pred_region
          _
        $region76: #{_lambda_.3} parent=11 // pred_fallthru
          _
        // Predicated region
        $region77: #{_lambda_.3} parent=11 // pred_check
          %p685 = pneg %p470
        $region78: #{_lambda_.3} parent=11 // pred_check_branch
          %687 = sbr.rel (%p685) target = $region80
        $region79: #{_lambda_.3} parent=11 // pred_region
          _
        $region80: #{_lambda_.3} parent=11 // pred_fallthru
          _
        // Predicated region
        $region81: #{_lambda_.3} parent=11 // pred_check
          %p688 = pneg %p491
        $region82: #{_lambda_.3} parent=11 // pred_check_branch
          %690 = sbr.rel (%p688) target = $region84
        $region83: #{_lambda_.3} parent=11 // pred_region
          _
        $region84: #{_lambda_.3} parent=11 // pred_fallthru
          _
        // Predicated region
        $region85: #{_lambda_.3} parent=11 // pred_check
          %p691 = pneg %p512
        $region86: #{_lambda_.3} parent=11 // pred_check_branch
          %693 = sbr.rel (%p691) target = $region88
        $region87: #{_lambda_.3} parent=11 // pred_region
          _
        $region88: #{_lambda_.3} parent=11 // pred_fallthru
          _
        // Predicated region
        $region89: #{_lambda_.3} parent=11 // pred_check
          %p694 = pneg %p533
        $region90: #{_lambda_.3} parent=11 // pred_check_branch
          %696 = sbr.rel (%p694) target = $region92
        $region91: #{_lambda_.3} parent=11 // pred_region
          _
        $region92: #{_lambda_.3} parent=11 // pred_fallthru
          _
        // Predicated region
        $region93: #{_lambda_.3} parent=11 // pred_check
          %p697 = pneg %p554
        $region94: #{_lambda_.3} parent=11 // pred_check_branch
          %699 = sbr.rel (%p697) target = $region96
        $region95: #{_lambda_.3} parent=11 // pred_region
          _
        $region96: #{_lambda_.3} parent=11 // pred_fallthru
          _
        // Predicated region
        $region97: #{_lambda_.3} parent=11 // pred_check
          %p700 = pneg %p575
        $region98: #{_lambda_.3} parent=11 // pred_check_branch
          %702 = sbr.rel (%p700) target = $region100
        $region99: #{_lambda_.3} parent=11 // pred_region
          _
        $region100: #{_lambda_.3} parent=11 // pred_fallthru
          _
        // Predicated region
        $region101: #{_lambda_.3} parent=11 // pred_check
          %p703 = pneg %p596
        $region102: #{_lambda_.3} parent=11 // pred_check_branch
          %705 = sbr.rel (%p703) target = $region104
        $region103: #{_lambda_.3} parent=11 // pred_region
          _
        $region104: #{_lambda_.3} parent=11 // pred_fallthru
          _
      $region12: #{_lambda_.3} parent=5 // pred_fallthru
        _
      %p706 = scmp.lt.s32.totalorder %s35, 2
      // Predicated region
      $region105: #{_lambda_.3} parent=5 // pred_check
        %p707 = pneg %p706
      $region106: #{_lambda_.3} parent=5 // pred_check_branch
        %709 = sbr.rel (%p707) target = $region108
      $region107: #{_lambda_.3} parent=5 // pred_region
        // Predicated region
        $region109: #{_lambda_.3} parent=107 // pred_check
          %p710 = pneg %p55
        $region110: #{_lambda_.3} parent=107 // pred_check_branch
          %712 = sbr.rel (%p710) target = $region112
        $region111: #{_lambda_.3} parent=107 // pred_region
          %p713 = scmp.lt.s32.totalorder %s35, 1
          %s714 = scalar_select %p713, %s35, 1
          %s715 = smul.addr %s714, 8
          %s716 = scalar_lea.vmem %s0, %s715
        $region112: #{_lambda_.3} parent=107 // pred_fallthru
          _
        // Predicated region
        $region113: #{_lambda_.3} parent=107 // pred_check
          %p717 = pneg %p81
        $region114: #{_lambda_.3} parent=107 // pred_check_branch
          %719 = sbr.rel (%p717) target = $region116
        $region115: #{_lambda_.3} parent=107 // pred_region
          %p720 = scmp.lt.s32.totalorder %s35, 1
          %s721 = scalar_select %p720, %s35, 1
          %s722 = smul.addr %s721, 8
          %s723 = scalar_lea.vmem %s1, %s722
        $region116: #{_lambda_.3} parent=107 // pred_fallthru
          _
        // Predicated region
        $region117: #{_lambda_.3} parent=107 // pred_check
          %p724 = pneg %p107
        $region118: #{_lambda_.3} parent=107 // pred_check_branch
          %726 = sbr.rel (%p724) target = $region120
        $region119: #{_lambda_.3} parent=107 // pred_region
          %p727 = scmp.lt.s32.totalorder %s35, 1
          %s728 = scalar_select %p727, %s35, 1
          %s729 = scalar_lea.vmem %s2, %s728
        $region120: #{_lambda_.3} parent=107 // pred_fallthru
          _
      $region108: #{_lambda_.3} parent=5 // pred_fallthru
        _
      %p730 = scmp.le.s32.totalorder 1, %s35
      %p731 = scmp.lt.s32.totalorder %s35, 3
      %p732 = pnand %p730, %p731
      %p733 = pneg %p732
      // Predicated region
      $region121: #{_lambda_.3} parent=5 // pred_check
        _
      $region122: #{_lambda_.3} parent=5 // pred_check_branch
        %735 = sbr.rel (%p732) target = $region124
      $region123: #{_lambda_.3} parent=5 // pred_region
        %s736 = ssub.s32 %s35, 1
        %p737 = scmp.lt.s32.totalorder %s40, 1
        %s738 = scalar_select %p737, %s40, 1
        %s739 = smul.addr %s738, 8
        %s740 = scalar_lea.vmem %s0, %s739
        %p741 = pneg %p61
        %p742 = pneg %p58
        %p743 = scmp.lt.s32.totalorder %s40, 1
        %s744 = scalar_select %p743, %s40, 1
        %s745 = smul.addr %s744, 8
        %s746 = scalar_lea.vmem %s1, %s745
        %p747 = pneg %p87
        %p748 = pneg %p84
        %p749 = scmp.lt.s32.totalorder %s40, 1
        %s750 = scalar_select %p749, %s40, 1
        %s751 = scalar_lea.vmem %s2, %s750
        %p752 = pneg %p113
        %p753 = pneg %p110
        %p754 = pneg %p134
        %p755 = pneg %p131
        %p756 = pneg %p155
        %p757 = pneg %p152
        %p758 = pneg %p176
        %p759 = pneg %p173
        %p760 = pneg %p197
        %p761 = pneg %p194
        %p762 = pneg %p218
        %p763 = pneg %p215
        %p764 = pneg %p239
        %p765 = pneg %p236
        %p766 = pneg %p260
        %p767 = pneg %p257
        %p768 = pneg %p281
        %p769 = pneg %p278
        %p770 = pneg %p302
        %p771 = pneg %p299
        %p772 = pneg %p323
        %p773 = pneg %p320
        %p774 = pneg %p344
        %p775 = pneg %p341
        %p776 = pneg %p365
        %p777 = pneg %p362
        %p778 = pneg %p386
        %p779 = pneg %p383
        %p780 = pneg %p407
        %p781 = pneg %p404
        %p782 = pneg %p428
        %p783 = pneg %p425
        %p784 = pneg %p449
        %p785 = pneg %p446
        %p786 = pneg %p470
        %p787 = pneg %p467
        %p788 = pneg %p491
        %p789 = pneg %p488
        %p790 = pneg %p512
        %p791 = pneg %p509
        %p792 = pneg %p533
        %p793 = pneg %p530
        %p794 = pneg %p554
        %p795 = pneg %p551
        %p796 = pneg %p575
        %p797 = pneg %p572
        %p798 = pneg %p596
        %p799 = pneg %p593
        %p800 = pneg %p622
        %p801 = pneg %p619
        %s802 = sand.u32 %s609, 1
        %s803 = scalar_lea.sflag [#allocation3], %s802
        %s804 = sand.u32 %s609, 1
        %s805 = smul.addr %s804, 8
        %s806 = scalar_lea.vmem [#allocation2], %s805
        %p807 = scmp.lt.s32.totalorder %s40, 1
        %s808 = scalar_select %p807, %s40, 1
        %s809 = smul.addr %s808, 8
        %s810 = scalar_lea.vmem %s0, %s809
        %p811 = scmp.lt.s32.totalorder %s40, 1
        %s812 = scalar_select %p811, %s40, 1
        %s813 = smul.addr %s812, 8
        %s814 = scalar_lea.vmem %s1, %s813
        %p815 = scmp.lt.s32.totalorder %s40, 1
        %s816 = scalar_select %p815, %s40, 1
        %s817 = scalar_lea.vmem %s2, %s816
        %v819 = vld [vmem:[%s810] sm:$0xff]
        %v820 = vld [vmem:[%s814] sm:$0xff]
        %v821 = vpack.c.bf16 %v820, %v820
        %v822 = vld [vmem:[%s3] sm:$0xff]
        %v823 = vmul.f32 %v822, -1e+09
        %v824 = vld [vmem:[%s817] sm:$0x1]
        %v825 = vmul.f32 %v824, -1e+09
        %v826 = vpack.c.bf16 %v819, %v819
        %v827 = vld [vmem:[%s4] sm:$0xf]
        %v828 = vld [vmem:[%s4 + $0x4] sm:$0xf]
        %v829 = vld [vmem:[%s4 + $0x8] sm:$0xf]
        %v830 = vld [vmem:[%s4 + $0xc] sm:$0xf]
        %v831 = vld [vmem:[%s4 + $0x10] sm:$0xf]
        %v832 = vld [vmem:[%s4 + $0x14] sm:$0xf]
        %v833 = vld [vmem:[%s4 + $0x18] sm:$0xf]
        %v834 = vld [vmem:[%s4 + $0x1c] sm:$0xf]
        %v835 = vld [vmem:[%s4 + $0x20] sm:$0xf]
        %v836 = vld [vmem:[%s4 + $0x24] sm:$0xf]
        %v837 = vld [vmem:[%s4 + $0x28] sm:$0xf]
        %v838 = vld [vmem:[%s4 + $0x2c] sm:$0xf]
        %v839 = vld [vmem:[%s4 + $0x30] sm:$0xf]
        %v840 = vld [vmem:[%s4 + $0x34] sm:$0xf]
        %v841 = vld [vmem:[%s4 + $0x38] sm:$0xf]
        %v842 = vld [vmem:[%s4 + $0x3c] sm:$0xf]
        %v843 = vld [vmem:[%s5] sm:$0xf]
        %v844 = vld [vmem:[%s5 + $0x4] sm:$0xf]
        %v845 = vld [vmem:[%s5 + $0x8] sm:$0xf]
        %v846 = vld [vmem:[%s5 + $0xc] sm:$0xf]
        %v847 = vld [vmem:[%s5 + $0x10] sm:$0xf]
        %v848 = vld [vmem:[%s5 + $0x14] sm:$0xf]
        %v849 = vld [vmem:[%s5 + $0x18] sm:$0xf]
        %v850 = vld [vmem:[%s5 + $0x1c] sm:$0xf]
        %v851 = vld [vmem:[%s5 + $0x20] sm:$0xf]
        %v852 = vld [vmem:[%s5 + $0x24] sm:$0xf]
        %v853 = vld [vmem:[%s5 + $0x28] sm:$0xf]
        %v854 = vld [vmem:[%s5 + $0x2c] sm:$0xf]
        %v855 = vld [vmem:[%s5 + $0x30] sm:$0xf]
        %v856 = vld [vmem:[%s5 + $0x34] sm:$0xf]
        %v857 = vld [vmem:[%s5 + $0x38] sm:$0xf]
        %v858 = vld [vmem:[%s5 + $0x3c] sm:$0xf]
        %v859 = vld [vmem:[%s6] sm:$0xf]
        %v860 = vld [vmem:[%s6 + $0x4] sm:$0xf]
        %v861 = vld [vmem:[%s6 + $0x8] sm:$0xf]
        %v862 = vld [vmem:[%s6 + $0xc] sm:$0xf]
        %v863 = vld [vmem:[%s6 + $0x10] sm:$0xf]
        %v864 = vld [vmem:[%s6 + $0x14] sm:$0xf]
        %v865 = vld [vmem:[%s6 + $0x18] sm:$0xf]
        %v866 = vld [vmem:[%s6 + $0x1c] sm:$0xf]
        %v867 = vld [vmem:[%s6 + $0x20] sm:$0xf]
        %v868 = vld [vmem:[%s6 + $0x24] sm:$0xf]
        %v869 = vld [vmem:[%s6 + $0x28] sm:$0xf]
        %v870 = vld [vmem:[%s6 + $0x2c] sm:$0xf]
        %v871 = vld [vmem:[%s6 + $0x30] sm:$0xf]
        %v872 = vld [vmem:[%s6 + $0x34] sm:$0xf]
        %v873 = vld [vmem:[%s6 + $0x38] sm:$0xf]
        %v874 = vld [vmem:[%s6 + $0x3c] sm:$0xf]
        %v875 = vld [vmem:[%s7] sm:$0xf]
        %v876 = vld [vmem:[%s7 + $0x4] sm:$0xf]
        %v877 = vld [vmem:[%s7 + $0x8] sm:$0xf]
        %v878 = vld [vmem:[%s7 + $0xc] sm:$0xf]
        %v879 = vld [vmem:[%s8] sm:$0x1]
        %v884 = vunpack.c.l.b16 %v827
        %v885 = vunpack.c.l.b16 %v828
        %v886 = vunpack.c.l.b16 %v829
        %v887 = vunpack.c.l.b16 %v830
        %v888 = vpack.c.b16 %v885, %v884
        %v889 = vpack.c.b16 %v887, %v886
        %vm892 = vcmask 261120
        %v894 = vsel %vm892, %v826, 0
        %896 = vmatpush.bf16.msra.mxu0 0
        %897 = vmatpush.bf16.msra.mxu0 0
        %898 = vmatpush.bf16.msra.mxu0 0
        %899 = vmatpush.bf16.msra.mxu0 0
        %900 = vmatpush.bf16.msra.mxu0 0
        %901 = vmatpush.bf16.msra.mxu0 0
        %902 = vmatpush.bf16.msra.mxu0 %v889
        %903 = vmatpush.bf16.msra.mxu0 %v888
        %904 = vmatmul.bf16.gmra.mxu0 %v894
        %v905 = vpop.f32.mrf.mxu0
        %v906 = vadd.f32 0.0, %v905
        %v907 = vpop.f32.mrf.mxu0
        %908 = vdwg.mxu0
        %v913 = vunpack.c.l.b16 %v831
        %v914 = vunpack.c.l.b16 %v832
        %v915 = vunpack.c.l.b16 %v833
        %v916 = vunpack.c.l.b16 %v834
        %v917 = vpack.c.b16 %v914, %v913
        %v918 = vpack.c.b16 %v916, %v915
        %921 = vmatpush.bf16.msra.mxu0 0
        %922 = vmatpush.bf16.msra.mxu0 0
        %923 = vmatpush.bf16.msra.mxu0 0
        %924 = vmatpush.bf16.msra.mxu0 0
        %925 = vmatpush.bf16.msra.mxu0 0
        %926 = vmatpush.bf16.msra.mxu0 0
        %927 = vmatpush.bf16.msra.mxu0 %v918
        %928 = vmatpush.bf16.msra.mxu0 %v917
        %929 = vmatmul.bf16.gmra.mxu0 %v894
        %v930 = vpop.f32.mrf.mxu0
        %v931 = vadd.f32 0.0, %v930
        %v932 = vpop.f32.mrf.mxu0
        %933 = vdwg.mxu0
        %v938 = vunpack.c.l.b16 %v835
        %v939 = vunpack.c.l.b16 %v836
        %v940 = vunpack.c.l.b16 %v837
        %v941 = vunpack.c.l.b16 %v838
        %v942 = vpack.c.b16 %v939, %v938
        %v943 = vpack.c.b16 %v941, %v940
        %946 = vmatpush.bf16.msra.mxu0 0
        %947 = vmatpush.bf16.msra.mxu0 0
        %948 = vmatpush.bf16.msra.mxu0 0
        %949 = vmatpush.bf16.msra.mxu0 0
        %950 = vmatpush.bf16.msra.mxu0 0
        %951 = vmatpush.bf16.msra.mxu0 0
        %952 = vmatpush.bf16.msra.mxu0 %v943
        %953 = vmatpush.bf16.msra.mxu0 %v942
        %954 = vmatmul.bf16.gmra.mxu0 %v894
        %v955 = vpop.f32.mrf.mxu0
        %v956 = vadd.f32 0.0, %v955
        %v957 = vpop.f32.mrf.mxu0
        %958 = vdwg.mxu0
        %v963 = vunpack.c.l.b16 %v839
        %v964 = vunpack.c.l.b16 %v840
        %v965 = vunpack.c.l.b16 %v841
        %v966 = vunpack.c.l.b16 %v842
        %v967 = vpack.c.b16 %v964, %v963
        %v968 = vpack.c.b16 %v966, %v965
        %971 = vmatpush.bf16.msra.mxu0 0
        %972 = vmatpush.bf16.msra.mxu0 0
        %973 = vmatpush.bf16.msra.mxu0 0
        %974 = vmatpush.bf16.msra.mxu0 0
        %975 = vmatpush.bf16.msra.mxu0 0
        %976 = vmatpush.bf16.msra.mxu0 0
        %977 = vmatpush.bf16.msra.mxu0 %v968
        %978 = vmatpush.bf16.msra.mxu0 %v967
        %979 = vmatmul.bf16.gmra.mxu0 %v894
        %v980 = vpop.f32.mrf.mxu0
        %v981 = vadd.f32 0.0, %v980
        %v982 = vpop.f32.mrf.mxu0
        %983 = vdwg.mxu0
        %v988 = vunpack.c.l.b16 %v843
        %v989 = vunpack.c.l.b16 %v844
        %v990 = vunpack.c.l.b16 %v845
        %v991 = vunpack.c.l.b16 %v846
        %v992 = vpack.c.b16 %v989, %v988
        %v993 = vpack.c.b16 %v991, %v990
        %996 = vmatpush.bf16.msra.mxu0 0
        %997 = vmatpush.bf16.msra.mxu0 0
        %998 = vmatpush.bf16.msra.mxu0 0
        %999 = vmatpush.bf16.msra.mxu0 0
        %1000 = vmatpush.bf16.msra.mxu0 0
        %1001 = vmatpush.bf16.msra.mxu0 0
        %1002 = vmatpush.bf16.msra.mxu0 %v993
        %1003 = vmatpush.bf16.msra.mxu0 %v992
        %1004 = vmatmul.bf16.gmra.mxu0 %v894
        %v1005 = vpop.f32.mrf.mxu0
        %v1006 = vadd.f32 0.0, %v1005
        %v1007 = vpop.f32.mrf.mxu0
        %1008 = vdwg.mxu0
        %v1013 = vunpack.c.l.b16 %v847
        %v1014 = vunpack.c.l.b16 %v848
        %v1015 = vunpack.c.l.b16 %v849
        %v1016 = vunpack.c.l.b16 %v850
        %v1017 = vpack.c.b16 %v1014, %v1013
        %v1018 = vpack.c.b16 %v1016, %v1015
        %1021 = vmatpush.bf16.msra.mxu0 0
        %1022 = vmatpush.bf16.msra.mxu0 0
        %1023 = vmatpush.bf16.msra.mxu0 0
        %1024 = vmatpush.bf16.msra.mxu0 0
        %1025 = vmatpush.bf16.msra.mxu0 0
        %1026 = vmatpush.bf16.msra.mxu0 0
        %1027 = vmatpush.bf16.msra.mxu0 %v1018
        %1028 = vmatpush.bf16.msra.mxu0 %v1017
        %1029 = vmatmul.bf16.gmra.mxu0 %v894
        %v1030 = vpop.f32.mrf.mxu0
        %v1031 = vadd.f32 0.0, %v1030
        %v1032 = vpop.f32.mrf.mxu0
        %1033 = vdwg.mxu0
        %v1038 = vunpack.c.l.b16 %v851
        %v1039 = vunpack.c.l.b16 %v852
        %v1040 = vunpack.c.l.b16 %v853
        %v1041 = vunpack.c.l.b16 %v854
        %v1042 = vpack.c.b16 %v1039, %v1038
        %v1043 = vpack.c.b16 %v1041, %v1040
        %1046 = vmatpush.bf16.msra.mxu0 0
        %1047 = vmatpush.bf16.msra.mxu0 0
        %1048 = vmatpush.bf16.msra.mxu0 0
        %1049 = vmatpush.bf16.msra.mxu0 0
        %1050 = vmatpush.bf16.msra.mxu0 0
        %1051 = vmatpush.bf16.msra.mxu0 0
        %1052 = vmatpush.bf16.msra.mxu0 %v1043
        %1053 = vmatpush.bf16.msra.mxu0 %v1042
        %1054 = vmatmul.bf16.gmra.mxu0 %v894
        %v1055 = vpop.f32.mrf.mxu0
        %v1056 = vadd.f32 0.0, %v1055
        %v1057 = vpop.f32.mrf.mxu0
        %1058 = vdwg.mxu0
        %v1063 = vunpack.c.l.b16 %v855
        %v1064 = vunpack.c.l.b16 %v856
        %v1065 = vunpack.c.l.b16 %v857
        %v1066 = vunpack.c.l.b16 %v858
        %v1067 = vpack.c.b16 %v1064, %v1063
        %v1068 = vpack.c.b16 %v1066, %v1065
        %1071 = vmatpush.bf16.msra.mxu0 0
        %1072 = vmatpush.bf16.msra.mxu0 0
        %1073 = vmatpush.bf16.msra.mxu0 0
        %1074 = vmatpush.bf16.msra.mxu0 0
        %1075 = vmatpush.bf16.msra.mxu0 0
        %1076 = vmatpush.bf16.msra.mxu0 0
        %1077 = vmatpush.bf16.msra.mxu0 %v1068
        %1078 = vmatpush.bf16.msra.mxu0 %v1067
        %1079 = vmatmul.bf16.gmra.mxu0 %v894
        %v1080 = vpop.f32.mrf.mxu0
        %v1081 = vadd.f32 0.0, %v1080
        %v1082 = vpop.f32.mrf.mxu0
        %1083 = vdwg.mxu0
        %v1088 = vunpack.c.l.b16 %v859
        %v1089 = vunpack.c.l.b16 %v860
        %v1090 = vunpack.c.l.b16 %v861
        %v1091 = vunpack.c.l.b16 %v862
        %v1092 = vpack.c.b16 %v1089, %v1088
        %v1093 = vpack.c.b16 %v1091, %v1090
        %1096 = vmatpush.bf16.msra.mxu0 0
        %1097 = vmatpush.bf16.msra.mxu0 0
        %1098 = vmatpush.bf16.msra.mxu0 0
        %1099 = vmatpush.bf16.msra.mxu0 0
        %1100 = vmatpush.bf16.msra.mxu0 0
        %1101 = vmatpush.bf16.msra.mxu0 0
        %1102 = vmatpush.bf16.msra.mxu0 %v1093
        %1103 = vmatpush.bf16.msra.mxu0 %v1092
        %1104 = vmatmul.bf16.gmra.mxu0 %v894
        %v1105 = vpop.f32.mrf.mxu0
        %v1106 = vadd.f32 0.0, %v1105
        %v1107 = vpop.f32.mrf.mxu0
        %1108 = vdwg.mxu0
        %v1113 = vunpack.c.l.b16 %v863
        %v1114 = vunpack.c.l.b16 %v864
        %v1115 = vunpack.c.l.b16 %v865
        %v1116 = vunpack.c.l.b16 %v866
        %v1117 = vpack.c.b16 %v1114, %v1113
        %v1118 = vpack.c.b16 %v1116, %v1115
        %1121 = vmatpush.bf16.msra.mxu0 0
        %1122 = vmatpush.bf16.msra.mxu0 0
        %1123 = vmatpush.bf16.msra.mxu0 0
        %1124 = vmatpush.bf16.msra.mxu0 0
        %1125 = vmatpush.bf16.msra.mxu0 0
        %1126 = vmatpush.bf16.msra.mxu0 0
        %1127 = vmatpush.bf16.msra.mxu0 %v1118
        %1128 = vmatpush.bf16.msra.mxu0 %v1117
        %1129 = vmatmul.bf16.gmra.mxu0 %v894
        %v1130 = vpop.f32.mrf.mxu0
        %v1131 = vadd.f32 0.0, %v1130
        %v1132 = vpop.f32.mrf.mxu0
        %1133 = vdwg.mxu0
        %v1138 = vunpack.c.l.b16 %v867
        %v1139 = vunpack.c.l.b16 %v868
        %v1140 = vunpack.c.l.b16 %v869
        %v1141 = vunpack.c.l.b16 %v870
        %v1142 = vpack.c.b16 %v1139, %v1138
        %v1143 = vpack.c.b16 %v1141, %v1140
        %1146 = vmatpush.bf16.msra.mxu0 0
        %1147 = vmatpush.bf16.msra.mxu0 0
        %1148 = vmatpush.bf16.msra.mxu0 0
        %1149 = vmatpush.bf16.msra.mxu0 0
        %1150 = vmatpush.bf16.msra.mxu0 0
        %1151 = vmatpush.bf16.msra.mxu0 0
        %1152 = vmatpush.bf16.msra.mxu0 %v1143
        %1153 = vmatpush.bf16.msra.mxu0 %v1142
        %1154 = vmatmul.bf16.gmra.mxu0 %v894
        %v1155 = vpop.f32.mrf.mxu0
        %v1156 = vadd.f32 0.0, %v1155
        %v1157 = vpop.f32.mrf.mxu0
        %1158 = vdwg.mxu0
        %v1163 = vunpack.c.l.b16 %v871
        %v1164 = vunpack.c.l.b16 %v872
        %v1165 = vunpack.c.l.b16 %v873
        %v1166 = vunpack.c.l.b16 %v874
        %v1167 = vpack.c.b16 %v1164, %v1163
        %v1168 = vpack.c.b16 %v1166, %v1165
        %1171 = vmatpush.bf16.msra.mxu0 0
        %1172 = vmatpush.bf16.msra.mxu0 0
        %1173 = vmatpush.bf16.msra.mxu0 0
        %1174 = vmatpush.bf16.msra.mxu0 0
        %1175 = vmatpush.bf16.msra.mxu0 0
        %1176 = vmatpush.bf16.msra.mxu0 0
        %1177 = vmatpush.bf16.msra.mxu0 %v1168
        %1178 = vmatpush.bf16.msra.mxu0 %v1167
        %1179 = vmatmul.bf16.gmra.mxu0 %v894
        %v1180 = vpop.f32.mrf.mxu0
        %v1181 = vadd.f32 0.0, %v1180
        %v1182 = vpop.f32.mrf.mxu0
        %1183 = vdwg.mxu0
        %v1184 = vpack.c.bf16 %v906, %v906
        %v1185 = vpack.c.bf16 %v931, %v931
        %v1186 = vpack.c.bf16 %v956, %v956
        %v1187 = vpack.c.bf16 %v981, %v981
        %v1188 = vpack.c.bf16 %v1006, %v1006
        %v1189 = vpack.c.bf16 %v1031, %v1031
        %v1190 = vpack.c.bf16 %v1056, %v1056
        %v1191 = vpack.c.bf16 %v1081, %v1081
        %vm1192 = vcmask 64512
        %v1194 = vsel %vm1192, %v1184, 0
        %v1197 = vsel %vm1192, %v1188, 0
        %1199 = vmatpush.bf16.xpose.msra.mxu0 0
        %1200 = vmatpush.bf16.xpose.msra.mxu0 0
        %1201 = vmatpush.bf16.xpose.msra.mxu0 0
        %1202 = vmatpush.bf16.xpose.msra.mxu0 0
        %1203 = vmatpush.bf16.xpose.msra.mxu0 0
        %1204 = vmatpush.bf16.xpose.msra.mxu0 0
        %1205 = vmatpush.bf16.xpose.msra.mxu0 0
        %1206 = vmatpush.bf16.xpose.msra.mxu0 %v1197
        %1207 = vmatmul.bf16.gmra.mxu0 %v1194
        %v1208 = vpop.f32.mrf.mxu0
        %v1209 = vadd.f32 %v823, %v1208
        %v1210 = vpop.f32.mrf.mxu0
        %1211 = vdwg.mxu0
        %v1213 = vsel %vm1192, %v1185, 0
        %v1216 = vsel %vm1192, %v1189, 0
        %1218 = vmatpush.bf16.xpose.msra.mxu0 0
        %1219 = vmatpush.bf16.xpose.msra.mxu0 0
        %1220 = vmatpush.bf16.xpose.msra.mxu0 0
        %1221 = vmatpush.bf16.xpose.msra.mxu0 0
        %1222 = vmatpush.bf16.xpose.msra.mxu0 0
        %1223 = vmatpush.bf16.xpose.msra.mxu0 0
        %1224 = vmatpush.bf16.xpose.msra.mxu0 0
        %1225 = vmatpush.bf16.xpose.msra.mxu0 %v1216
        %1226 = vmatmul.bf16.gmra.mxu0 %v1213
        %v1227 = vpop.f32.mrf.mxu0
        %v1228 = vadd.f32 %v823, %v1227
        %v1229 = vpop.f32.mrf.mxu0
        %1230 = vdwg.mxu0
        %v1232 = vsel %vm1192, %v1186, 0
        %v1235 = vsel %vm1192, %v1190, 0
        %1237 = vmatpush.bf16.xpose.msra.mxu0 0
        %1238 = vmatpush.bf16.xpose.msra.mxu0 0
        %1239 = vmatpush.bf16.xpose.msra.mxu0 0
        %1240 = vmatpush.bf16.xpose.msra.mxu0 0
        %1241 = vmatpush.bf16.xpose.msra.mxu0 0
        %1242 = vmatpush.bf16.xpose.msra.mxu0 0
        %1243 = vmatpush.bf16.xpose.msra.mxu0 0
        %1244 = vmatpush.bf16.xpose.msra.mxu0 %v1235
        %1245 = vmatmul.bf16.gmra.mxu0 %v1232
        %v1246 = vpop.f32.mrf.mxu0
        %v1247 = vadd.f32 %v823, %v1246
        %v1248 = vpop.f32.mrf.mxu0
        %1249 = vdwg.mxu0
        %v1251 = vsel %vm1192, %v1187, 0
        %v1254 = vsel %vm1192, %v1191, 0
        %1256 = vmatpush.bf16.xpose.msra.mxu0 0
        %1257 = vmatpush.bf16.xpose.msra.mxu0 0
        %1258 = vmatpush.bf16.xpose.msra.mxu0 0
        %1259 = vmatpush.bf16.xpose.msra.mxu0 0
        %1260 = vmatpush.bf16.xpose.msra.mxu0 0
        %1261 = vmatpush.bf16.xpose.msra.mxu0 0
        %1262 = vmatpush.bf16.xpose.msra.mxu0 0
        %1263 = vmatpush.bf16.xpose.msra.mxu0 %v1254
        %1264 = vmatmul.bf16.gmra.mxu0 %v1251
        %v1265 = vpop.f32.mrf.mxu0
        %v1266 = vadd.f32 %v823, %v1265
        %v1267 = vpop.f32.mrf.mxu0
        %1268 = vdwg.mxu0
        %v1269 = vsel %vm1192, %v1209, -inf
        %1270 = vmax.xlane.f32.xlu0 %v1269
        %v1271 = vpop.xlane.xlu0 %1270
        %v1272 = vsel %vm1192, %v1228, -inf
        %1273 = vmax.xlane.f32.xlu0 %v1272
        %v1274 = vpop.xlane.xlu0 %1273
        %v1275 = vsel %vm1192, %v1247, -inf
        %1276 = vmax.xlane.f32.xlu0 %v1275
        %v1277 = vpop.xlane.xlu0 %1276
        %v1278 = vsel %vm1192, %v1266, -inf
        %1279 = vmax.xlane.f32.xlu0 %v1278
        %v1280 = vpop.xlane.xlu0 %1279
        %v1281 = vsub.f32 %v1209, %v1271
        %v1282 = vsub.f32 %v1228, %v1274
        %v1283 = vsub.f32 %v1247, %v1277
        %v1284 = vsub.f32 %v1266, %v1280
        %v1285 = vmul.f32 %v1281, 1.442695
        %v1286 = vpow.pop %v1285
        %v1287 = vmul.f32 %v1282, 1.442695
        %v1288 = vpow.pop %v1287
        %v1289 = vmul.f32 %v1283, 1.442695
        %v1290 = vpow.pop %v1289
        %v1291 = vmul.f32 %v1284, 1.442695
        %v1292 = vpow.pop %v1291
        %v1293 = vsel %vm1192, %v1286, 0.0
        %1294 = vadd.xlane.f32.xlu0 %v1293
        %v1295 = vpop.xlane.xlu0 %1294
        %v1296 = vsel %vm1192, %v1288, 0.0
        %1297 = vadd.xlane.f32.xlu0 %v1296
        %v1298 = vpop.xlane.xlu0 %1297
        %v1299 = vsel %vm1192, %v1290, 0.0
        %1300 = vadd.xlane.f32.xlu0 %v1299
        %v1301 = vpop.xlane.xlu0 %1300
        %v1302 = vsel %vm1192, %v1292, 0.0
        %1303 = vadd.xlane.f32.xlu0 %v1302
        %v1304 = vpop.xlane.xlu0 %1303
        %v1305 = vrcp.pop %v1295
        %v1306 = vmul.f32 %v1295, %v1305
        %v1307 = vsub.f32 1.0, %v1306
        %v1308 = vmul.f32 %v1305, %v1307
        %v1309 = vadd.f32 %v1305, %v1308
        %vm1310 = vweird.f32 %v1295
        %vm1311 = vweird.f32 %v1305
        %vm1312 = vmor %vm1310, %vm1311
        %v1313 = vsel %vm1312, %v1305, %v1309
        %v1314 = vand.u32 2147483647, %v1295
        %vm1315 = vcmp.eq.f32.partialorder %v1314, 8.507059e+37
        %v1316 = vand.u32 %v1295, 2147483648
        %v1317 = vor.u32 1.1754944e-38, %v1316
        %v1318 = vsel %vm1315, %v1317, %v1313
        %v1319 = vmul.f32 %v1286, %v1318
        %v1320 = vrcp.pop %v1298
        %v1321 = vmul.f32 %v1298, %v1320
        %v1322 = vsub.f32 1.0, %v1321
        %v1323 = vmul.f32 %v1320, %v1322
        %v1324 = vadd.f32 %v1320, %v1323
        %vm1325 = vweird.f32 %v1298
        %vm1326 = vweird.f32 %v1320
        %vm1327 = vmor %vm1325, %vm1326
        %v1328 = vsel %vm1327, %v1320, %v1324
        %v1329 = vand.u32 2147483647, %v1298
        %vm1330 = vcmp.eq.f32.partialorder %v1329, 8.507059e+37
        %v1331 = vand.u32 %v1298, 2147483648
        %v1332 = vor.u32 1.1754944e-38, %v1331
        %v1333 = vsel %vm1330, %v1332, %v1328
        %v1334 = vmul.f32 %v1288, %v1333
        %v1335 = vrcp.pop %v1301
        %v1336 = vmul.f32 %v1301, %v1335
        %v1337 = vsub.f32 1.0, %v1336
        %v1338 = vmul.f32 %v1335, %v1337
        %v1339 = vadd.f32 %v1335, %v1338
        %vm1340 = vweird.f32 %v1301
        %vm1341 = vweird.f32 %v1335
        %vm1342 = vmor %vm1340, %vm1341
        %v1343 = vsel %vm1342, %v1335, %v1339
        %v1344 = vand.u32 2147483647, %v1301
        %vm1345 = vcmp.eq.f32.partialorder %v1344, 8.507059e+37
        %v1346 = vand.u32 %v1301, 2147483648
        %v1347 = vor.u32 1.1754944e-38, %v1346
        %v1348 = vsel %vm1345, %v1347, %v1343
        %v1349 = vmul.f32 %v1290, %v1348
        %v1350 = vrcp.pop %v1304
        %v1351 = vmul.f32 %v1304, %v1350
        %v1352 = vsub.f32 1.0, %v1351
        %v1353 = vmul.f32 %v1350, %v1352
        %v1354 = vadd.f32 %v1350, %v1353
        %vm1355 = vweird.f32 %v1304
        %vm1356 = vweird.f32 %v1350
        %vm1357 = vmor %vm1355, %vm1356
        %v1358 = vsel %vm1357, %v1350, %v1354
        %v1359 = vand.u32 2147483647, %v1304
        %vm1360 = vcmp.eq.f32.partialorder %v1359, 8.507059e+37
        %v1361 = vand.u32 %v1304, 2147483648
        %v1362 = vor.u32 1.1754944e-38, %v1361
        %v1363 = vsel %vm1360, %v1362, %v1358
        %v1364 = vmul.f32 %v1292, %v1363
        %v1365 = vpack.c.bf16 %v1319, %v1319
        %v1366 = vpack.c.bf16 %v1334, %v1334
        %v1367 = vpack.c.bf16 %v1349, %v1349
        %v1368 = vpack.c.bf16 %v1364, %v1364
        %v1369 = vpack.c.bf16 %v1106, %v1106
        %v1370 = vpack.c.bf16 %v1131, %v1131
        %v1371 = vpack.c.bf16 %v1156, %v1156
        %v1372 = vpack.c.bf16 %v1181, %v1181
        %v1374 = vsel %vm1192, %v1365, 0
        %vm1376 = vcmask 1043456
        %v1378 = vsel %vm1376, %v1369, 0
        %1380 = vmatpush.bf16.msra.mxu0 0
        %1381 = vmatpush.bf16.msra.mxu0 0
        %1382 = vmatpush.bf16.msra.mxu0 0
        %1383 = vmatpush.bf16.msra.mxu0 0
        %1384 = vmatpush.bf16.msra.mxu0 0
        %1385 = vmatpush.bf16.msra.mxu0 0
        %1386 = vmatpush.bf16.msra.mxu0 0
        %1387 = vmatpush.bf16.msra.mxu0 %v1378
        %1388 = vmatmul.bf16.gmra.mxu0 %v1374
        %v1389 = vpop.f32.mrf.mxu0
        %v1390 = vadd.f32 0.0, %v1389
        %v1391 = vpop.f32.mrf.mxu0
        %1392 = vdwg.mxu0
        %v1394 = vsel %vm1192, %v1366, 0
        %v1397 = vsel %vm1376, %v1370, 0
        %1399 = vmatpush.bf16.msra.mxu0 0
        %1400 = vmatpush.bf16.msra.mxu0 0
        %1401 = vmatpush.bf16.msra.mxu0 0
        %1402 = vmatpush.bf16.msra.mxu0 0
        %1403 = vmatpush.bf16.msra.mxu0 0
        %1404 = vmatpush.bf16.msra.mxu0 0
        %1405 = vmatpush.bf16.msra.mxu0 0
        %1406 = vmatpush.bf16.msra.mxu0 %v1397
        %1407 = vmatmul.bf16.gmra.mxu0 %v1394
        %v1408 = vpop.f32.mrf.mxu0
        %v1409 = vadd.f32 0.0, %v1408
        %v1410 = vpop.f32.mrf.mxu0
        %1411 = vdwg.mxu0
        %v1413 = vsel %vm1192, %v1367, 0
        %v1416 = vsel %vm1376, %v1371, 0
        %1418 = vmatpush.bf16.msra.mxu0 0
        %1419 = vmatpush.bf16.msra.mxu0 0
        %1420 = vmatpush.bf16.msra.mxu0 0
        %1421 = vmatpush.bf16.msra.mxu0 0
        %1422 = vmatpush.bf16.msra.mxu0 0
        %1423 = vmatpush.bf16.msra.mxu0 0
        %1424 = vmatpush.bf16.msra.mxu0 0
        %1425 = vmatpush.bf16.msra.mxu0 %v1416
        %1426 = vmatmul.bf16.gmra.mxu0 %v1413
        %v1427 = vpop.f32.mrf.mxu0
        %v1428 = vadd.f32 0.0, %v1427
        %v1429 = vpop.f32.mrf.mxu0
        %1430 = vdwg.mxu0
        %v1432 = vsel %vm1192, %v1368, 0
        %v1435 = vsel %vm1376, %v1372, 0
        %1437 = vmatpush.bf16.msra.mxu0 0
        %1438 = vmatpush.bf16.msra.mxu0 0
        %1439 = vmatpush.bf16.msra.mxu0 0
        %1440 = vmatpush.bf16.msra.mxu0 0
        %1441 = vmatpush.bf16.msra.mxu0 0
        %1442 = vmatpush.bf16.msra.mxu0 0
        %1443 = vmatpush.bf16.msra.mxu0 0
        %1444 = vmatpush.bf16.msra.mxu0 %v1435
        %1445 = vmatmul.bf16.gmra.mxu0 %v1432
        %v1446 = vpop.f32.mrf.mxu0
        %v1447 = vadd.f32 0.0, %v1446
        %v1448 = vpop.f32.mrf.mxu0
        %1449 = vdwg.mxu0
        %v1450 = vpack.c.bf16 %v1390, %v1390
        %v1451 = vpack.c.bf16 %v1409, %v1409
        %v1452 = vpack.c.bf16 %v1428, %v1428
        %v1453 = vpack.c.bf16 %v1447, %v1447
        %v1455 = vsel %vm1192, %v1450, 0
        %v1458 = vsel %vm1376, %v875, 0
        %1460 = vmatpush.bf16.msra.mxu0 0
        %1461 = vmatpush.bf16.msra.mxu0 0
        %1462 = vmatpush.bf16.msra.mxu0 0
        %1463 = vmatpush.bf16.msra.mxu0 0
        %1464 = vmatpush.bf16.msra.mxu0 0
        %1465 = vmatpush.bf16.msra.mxu0 0
        %1466 = vmatpush.bf16.msra.mxu0 0
        %1467 = vmatpush.bf16.msra.mxu0 %v1458
        %1468 = vmatmul.bf16.gmra.mxu0 %v1455
        %v1469 = vpop.f32.mrf.mxu0
        %v1470 = vadd.f32 0.0, %v1469
        %v1471 = vpop.f32.mrf.mxu0
        %1472 = vdwg.mxu0
        %v1474 = vsel %vm1192, %v1451, 0
        %v1477 = vsel %vm1376, %v876, 0
        %1479 = vmatpush.bf16.msra.mxu0 0
        %1480 = vmatpush.bf16.msra.mxu0 0
        %1481 = vmatpush.bf16.msra.mxu0 0
        %1482 = vmatpush.bf16.msra.mxu0 0
        %1483 = vmatpush.bf16.msra.mxu0 0
        %1484 = vmatpush.bf16.msra.mxu0 0
        %1485 = vmatpush.bf16.msra.mxu0 0
        %1486 = vmatpush.bf16.msra.mxu0 %v1477
        %1487 = vmatmul.bf16.gmra.mxu0 %v1474
        %v1488 = vpop.f32.mrf.mxu0
        %v1489 = vadd.f32 0.0, %v1488
        %v1490 = vpop.f32.mrf.mxu0
        %1491 = vdwg.mxu0
        %v1493 = vsel %vm1192, %v1452, 0
        %v1496 = vsel %vm1376, %v877, 0
        %1498 = vmatpush.bf16.msra.mxu0 0
        %1499 = vmatpush.bf16.msra.mxu0 0
        %1500 = vmatpush.bf16.msra.mxu0 0
        %1501 = vmatpush.bf16.msra.mxu0 0
        %1502 = vmatpush.bf16.msra.mxu0 0
        %1503 = vmatpush.bf16.msra.mxu0 0
        %1504 = vmatpush.bf16.msra.mxu0 0
        %1505 = vmatpush.bf16.msra.mxu0 %v1496
        %1506 = vmatmul.bf16.gmra.mxu0 %v1493
        %v1507 = vpop.f32.mrf.mxu0
        %v1508 = vadd.f32 0.0, %v1507
        %v1509 = vpop.f32.mrf.mxu0
        %1510 = vdwg.mxu0
        %v1512 = vsel %vm1192, %v1453, 0
        %v1515 = vsel %vm1376, %v878, 0
        %1517 = vmatpush.bf16.msra.mxu0 0
        %1518 = vmatpush.bf16.msra.mxu0 0
        %1519 = vmatpush.bf16.msra.mxu0 0
        %1520 = vmatpush.bf16.msra.mxu0 0
        %1521 = vmatpush.bf16.msra.mxu0 0
        %1522 = vmatpush.bf16.msra.mxu0 0
        %1523 = vmatpush.bf16.msra.mxu0 0
        %1524 = vmatpush.bf16.msra.mxu0 %v1515
        %1525 = vmatmul.bf16.gmra.mxu0 %v1512
        %v1526 = vpop.f32.mrf.mxu0
        %v1527 = vadd.f32 0.0, %v1526
        %v1528 = vpop.f32.mrf.mxu0
        %1529 = vdwg.mxu0
        %v1530 = vsel %vm892, %v1470, 0.0
        %v1531 = vsel %vm892, %v1489, 0.0
        %v1532 = vadd.f32 %v1530, %v1531
        %v1533 = vsel %vm892, %v1508, 0.0
        %v1534 = vadd.f32 %v1532, %v1533
        %v1535 = vsel %vm892, %v1527, 0.0
        %v1536 = vadd.f32 %v1534, %v1535
        %v1538 = vperm.slane %v879, 0
        %v1540 = vadd.f32 %v1536, %v1538
        %v1541 = vadd.f32 %v1540, %v819
        %v1542 = vld [vmem:[%s9] sm:$0x1]
        %v1543 = vld [vmem:[%s10] sm:$0x1]
        %v1544 = vsel %vm892, %v1541, 0.0
        %1545 = vadd.xlane.f32.xlu0 %v1544
        %v1546 = vpop.xlane.xlu0 %1545
        %v1547 = vrcp.pop 32.0
        %v1548 = vmul.f32 32.0, %v1547
        %v1549 = vsub.f32 1.0, %v1548
        %v1550 = vmul.f32 %v1547, %v1549
        %v1551 = vadd.f32 %v1547, %v1550
        %vm1552 = vweird.f32 %v1547
        %v1553 = vsel %vm1552, %v1547, %v1551
        %v1554 = vmul.f32 %v1546, %v1553
        %v1555 = vsub.f32 %v1541, %v1554
        %v1556 = vmul.f32 %v1555, %v1555
        %v1557 = vsel %vm892, %v1556, 0.0
        %1558 = vadd.xlane.f32.xlu0 %v1557
        %v1559 = vpop.xlane.xlu0 %1558
        %v1560 = vmul.f32 %v1559, %v1553
        %v1561 = vadd.f32 %v1560, 1e-05
        %v1562 = vrsqrt.pop %v1561
        %v1563 = vmul.f32 %v1562, %v1561
        %v1564 = vmul.f32 %v1563, %v1562
        %v1565 = vmul.f32 0.5, %v1564
        %v1566 = vsub.f32 1.5, %v1565
        %v1567 = vmul.f32 %v1562, %v1566
        %vm1568 = vweird.f32 %v1561
        %vm1569 = vweird.f32 %v1562
        %vm1570 = vmor %vm1568, %vm1569
        %v1571 = vsel %vm1570, %v1562, %v1567
        %v1572 = vmul.f32 %v1555, %v1571
        %v1574 = vperm.slane %v1542, 0
        %v1576 = vmul.f32 %v1572, %v1574
        %v1578 = vperm.slane %v1543, 0
        %v1580 = vadd.f32 %v1576, %v1578
        %v1581 = vld [vmem:[%s11] sm:$0xf]
        %v1582 = vld [vmem:[%s11 + $0x4] sm:$0xf]
        %v1583 = vld [vmem:[%s11 + $0x8] sm:$0xf]
        %v1584 = vld [vmem:[%s11 + $0xc] sm:$0xf]
        %v1585 = vld [vmem:[%s11 + $0x10] sm:$0xf]
        %v1586 = vld [vmem:[%s11 + $0x14] sm:$0xf]
        %v1587 = vld [vmem:[%s11 + $0x18] sm:$0xf]
        %v1588 = vld [vmem:[%s11 + $0x1c] sm:$0xf]
        %v1589 = vld [vmem:[%s11 + $0x20] sm:$0xf]
        %v1590 = vld [vmem:[%s11 + $0x24] sm:$0xf]
        %v1591 = vld [vmem:[%s11 + $0x28] sm:$0xf]
        %v1592 = vld [vmem:[%s11 + $0x2c] sm:$0xf]
        %v1593 = vld [vmem:[%s11 + $0x30] sm:$0xf]
        %v1594 = vld [vmem:[%s11 + $0x34] sm:$0xf]
        %v1595 = vld [vmem:[%s11 + $0x38] sm:$0xf]
        %v1596 = vld [vmem:[%s11 + $0x3c] sm:$0xf]
        %v1597 = vld [vmem:[%s12] sm:$0xf]
        %v1598 = vld [vmem:[%s12 + $0x4] sm:$0xf]
        %v1599 = vld [vmem:[%s12 + $0x8] sm:$0xf]
        %v1600 = vld [vmem:[%s12 + $0xc] sm:$0xf]
        %v1601 = vld [vmem:[%s12 + $0x10] sm:$0xf]
        %v1602 = vld [vmem:[%s12 + $0x14] sm:$0xf]
        %v1603 = vld [vmem:[%s12 + $0x18] sm:$0xf]
        %v1604 = vld [vmem:[%s12 + $0x1c] sm:$0xf]
        %v1605 = vld [vmem:[%s12 + $0x20] sm:$0xf]
        %v1606 = vld [vmem:[%s12 + $0x24] sm:$0xf]
        %v1607 = vld [vmem:[%s12 + $0x28] sm:$0xf]
        %v1608 = vld [vmem:[%s12 + $0x2c] sm:$0xf]
        %v1609 = vld [vmem:[%s12 + $0x30] sm:$0xf]
        %v1610 = vld [vmem:[%s12 + $0x34] sm:$0xf]
        %v1611 = vld [vmem:[%s12 + $0x38] sm:$0xf]
        %v1612 = vld [vmem:[%s12 + $0x3c] sm:$0xf]
        %v1613 = vld [vmem:[%s13] sm:$0xf]
        %v1614 = vld [vmem:[%s13 + $0x4] sm:$0xf]
        %v1615 = vld [vmem:[%s13 + $0x8] sm:$0xf]
        %v1616 = vld [vmem:[%s13 + $0xc] sm:$0xf]
        %v1617 = vld [vmem:[%s13 + $0x10] sm:$0xf]
        %v1618 = vld [vmem:[%s13 + $0x14] sm:$0xf]
        %v1619 = vld [vmem:[%s13 + $0x18] sm:$0xf]
        %v1620 = vld [vmem:[%s13 + $0x1c] sm:$0xf]
        %v1621 = vld [vmem:[%s13 + $0x20] sm:$0xf]
        %v1622 = vld [vmem:[%s13 + $0x24] sm:$0xf]
        %v1623 = vld [vmem:[%s13 + $0x28] sm:$0xf]
        %v1624 = vld [vmem:[%s13 + $0x2c] sm:$0xf]
        %v1625 = vld [vmem:[%s13 + $0x30] sm:$0xf]
        %v1626 = vld [vmem:[%s13 + $0x34] sm:$0xf]
        %v1627 = vld [vmem:[%s13 + $0x38] sm:$0xf]
        %v1628 = vld [vmem:[%s13 + $0x3c] sm:$0xf]
        %v1629 = vld [vmem:[%s14] sm:$0xf]
        %v1630 = vld [vmem:[%s14 + $0x4] sm:$0xf]
        %v1631 = vld [vmem:[%s14 + $0x8] sm:$0xf]
        %v1632 = vld [vmem:[%s14 + $0xc] sm:$0xf]
        %v1633 = vld [vmem:[%s15] sm:$0x1]
        %v1634 = vpack.c.bf16 %v1580, %v1580
        %v1639 = vunpack.c.l.b16 %v1581
        %v1640 = vunpack.c.l.b16 %v1582
        %v1641 = vunpack.c.l.b16 %v1583
        %v1642 = vunpack.c.l.b16 %v1584
        %v1643 = vpack.c.b16 %v1640, %v1639
        %v1644 = vpack.c.b16 %v1642, %v1641
        %v1648 = vsel %vm892, %v1634, 0
        %1650 = vmatpush.bf16.msra.mxu0 0
        %1651 = vmatpush.bf16.msra.mxu0 0
        %1652 = vmatpush.bf16.msra.mxu0 0
        %1653 = vmatpush.bf16.msra.mxu0 0
        %1654 = vmatpush.bf16.msra.mxu0 0
        %1655 = vmatpush.bf16.msra.mxu0 0
        %1656 = vmatpush.bf16.msra.mxu0 %v1644
        %1657 = vmatpush.bf16.msra.mxu0 %v1643
        %1658 = vmatmul.bf16.gmra.mxu0 %v1648
        %v1659 = vpop.f32.mrf.mxu0
        %v1660 = vadd.f32 0.0, %v1659
        %v1661 = vpop.f32.mrf.mxu0
        %1662 = vdwg.mxu0
        %v1667 = vunpack.c.l.b16 %v1585
        %v1668 = vunpack.c.l.b16 %v1586
        %v1669 = vunpack.c.l.b16 %v1587
        %v1670 = vunpack.c.l.b16 %v1588
        %v1671 = vpack.c.b16 %v1668, %v1667
        %v1672 = vpack.c.b16 %v1670, %v1669
        %1675 = vmatpush.bf16.msra.mxu0 0
        %1676 = vmatpush.bf16.msra.mxu0 0
        %1677 = vmatpush.bf16.msra.mxu0 0
        %1678 = vmatpush.bf16.msra.mxu0 0
        %1679 = vmatpush.bf16.msra.mxu0 0
        %1680 = vmatpush.bf16.msra.mxu0 0
        %1681 = vmatpush.bf16.msra.mxu0 %v1672
        %1682 = vmatpush.bf16.msra.mxu0 %v1671
        %1683 = vmatmul.bf16.gmra.mxu0 %v1648
        %v1684 = vpop.f32.mrf.mxu0
        %v1685 = vadd.f32 0.0, %v1684
        %v1686 = vpop.f32.mrf.mxu0
        %1687 = vdwg.mxu0
        %v1692 = vunpack.c.l.b16 %v1589
        %v1693 = vunpack.c.l.b16 %v1590
        %v1694 = vunpack.c.l.b16 %v1591
        %v1695 = vunpack.c.l.b16 %v1592
        %v1696 = vpack.c.b16 %v1693, %v1692
        %v1697 = vpack.c.b16 %v1695, %v1694
        %1700 = vmatpush.bf16.msra.mxu0 0
        %1701 = vmatpush.bf16.msra.mxu0 0
        %1702 = vmatpush.bf16.msra.mxu0 0
        %1703 = vmatpush.bf16.msra.mxu0 0
        %1704 = vmatpush.bf16.msra.mxu0 0
        %1705 = vmatpush.bf16.msra.mxu0 0
        %1706 = vmatpush.bf16.msra.mxu0 %v1697
        %1707 = vmatpush.bf16.msra.mxu0 %v1696
        %1708 = vmatmul.bf16.gmra.mxu0 %v1648
        %v1709 = vpop.f32.mrf.mxu0
        %v1710 = vadd.f32 0.0, %v1709
        %v1711 = vpop.f32.mrf.mxu0
        %1712 = vdwg.mxu0
        %v1717 = vunpack.c.l.b16 %v1593
        %v1718 = vunpack.c.l.b16 %v1594
        %v1719 = vunpack.c.l.b16 %v1595
        %v1720 = vunpack.c.l.b16 %v1596
        %v1721 = vpack.c.b16 %v1718, %v1717
        %v1722 = vpack.c.b16 %v1720, %v1719
        %1725 = vmatpush.bf16.msra.mxu0 0
        %1726 = vmatpush.bf16.msra.mxu0 0
        %1727 = vmatpush.bf16.msra.mxu0 0
        %1728 = vmatpush.bf16.msra.mxu0 0
        %1729 = vmatpush.bf16.msra.mxu0 0
        %1730 = vmatpush.bf16.msra.mxu0 0
        %1731 = vmatpush.bf16.msra.mxu0 %v1722
        %1732 = vmatpush.bf16.msra.mxu0 %v1721
        %1733 = vmatmul.bf16.gmra.mxu0 %v1648
        %v1734 = vpop.f32.mrf.mxu0
        %v1735 = vadd.f32 0.0, %v1734
        %v1736 = vpop.f32.mrf.mxu0
        %1737 = vdwg.mxu0
        %v1742 = vunpack.c.l.b16 %v1597
        %v1743 = vunpack.c.l.b16 %v1598
        %v1744 = vunpack.c.l.b16 %v1599
        %v1745 = vunpack.c.l.b16 %v1600
        %v1746 = vpack.c.b16 %v1743, %v1742
        %v1747 = vpack.c.b16 %v1745, %v1744
        %v1751 = vsel %vm892, %v821, 0
        %1753 = vmatpush.bf16.msra.mxu0 0
        %1754 = vmatpush.bf16.msra.mxu0 0
        %1755 = vmatpush.bf16.msra.mxu0 0
        %1756 = vmatpush.bf16.msra.mxu0 0
        %1757 = vmatpush.bf16.msra.mxu0 0
        %1758 = vmatpush.bf16.msra.mxu0 0
        %1759 = vmatpush.bf16.msra.mxu0 %v1747
        %1760 = vmatpush.bf16.msra.mxu0 %v1746
        %1761 = vmatmul.bf16.gmra.mxu0 %v1751
        %v1762 = vpop.f32.mrf.mxu0
        %v1763 = vadd.f32 0.0, %v1762
        %v1764 = vpop.f32.mrf.mxu0
        %1765 = vdwg.mxu0
        %v1770 = vunpack.c.l.b16 %v1601
        %v1771 = vunpack.c.l.b16 %v1602
        %v1772 = vunpack.c.l.b16 %v1603
        %v1773 = vunpack.c.l.b16 %v1604
        %v1774 = vpack.c.b16 %v1771, %v1770
        %v1775 = vpack.c.b16 %v1773, %v1772
        %1778 = vmatpush.bf16.msra.mxu0 0
        %1779 = vmatpush.bf16.msra.mxu0 0
        %1780 = vmatpush.bf16.msra.mxu0 0
        %1781 = vmatpush.bf16.msra.mxu0 0
        %1782 = vmatpush.bf16.msra.mxu0 0
        %1783 = vmatpush.bf16.msra.mxu0 0
        %1784 = vmatpush.bf16.msra.mxu0 %v1775
        %1785 = vmatpush.bf16.msra.mxu0 %v1774
        %1786 = vmatmul.bf16.gmra.mxu0 %v1751
        %v1787 = vpop.f32.mrf.mxu0
        %v1788 = vadd.f32 0.0, %v1787
        %v1789 = vpop.f32.mrf.mxu0
        %1790 = vdwg.mxu0
        %v1795 = vunpack.c.l.b16 %v1605
        %v1796 = vunpack.c.l.b16 %v1606
        %v1797 = vunpack.c.l.b16 %v1607
        %v1798 = vunpack.c.l.b16 %v1608
        %v1799 = vpack.c.b16 %v1796, %v1795
        %v1800 = vpack.c.b16 %v1798, %v1797
        %1803 = vmatpush.bf16.msra.mxu0 0
        %1804 = vmatpush.bf16.msra.mxu0 0
        %1805 = vmatpush.bf16.msra.mxu0 0
        %1806 = vmatpush.bf16.msra.mxu0 0
        %1807 = vmatpush.bf16.msra.mxu0 0
        %1808 = vmatpush.bf16.msra.mxu0 0
        %1809 = vmatpush.bf16.msra.mxu0 %v1800
        %1810 = vmatpush.bf16.msra.mxu0 %v1799
        %1811 = vmatmul.bf16.gmra.mxu0 %v1751
        %v1812 = vpop.f32.mrf.mxu0
        %v1813 = vadd.f32 0.0, %v1812
        %v1814 = vpop.f32.mrf.mxu0
        %1815 = vdwg.mxu0
        %v1820 = vunpack.c.l.b16 %v1609
        %v1821 = vunpack.c.l.b16 %v1610
        %v1822 = vunpack.c.l.b16 %v1611
        %v1823 = vunpack.c.l.b16 %v1612
        %v1824 = vpack.c.b16 %v1821, %v1820
        %v1825 = vpack.c.b16 %v1823, %v1822
        %1828 = vmatpush.bf16.msra.mxu0 0
        %1829 = vmatpush.bf16.msra.mxu0 0
        %1830 = vmatpush.bf16.msra.mxu0 0
        %1831 = vmatpush.bf16.msra.mxu0 0
        %1832 = vmatpush.bf16.msra.mxu0 0
        %1833 = vmatpush.bf16.msra.mxu0 0
        %1834 = vmatpush.bf16.msra.mxu0 %v1825
        %1835 = vmatpush.bf16.msra.mxu0 %v1824
        %1836 = vmatmul.bf16.gmra.mxu0 %v1751
        %v1837 = vpop.f32.mrf.mxu0
        %v1838 = vadd.f32 0.0, %v1837
        %v1839 = vpop.f32.mrf.mxu0
        %1840 = vdwg.mxu0
        %v1845 = vunpack.c.l.b16 %v1613
        %v1846 = vunpack.c.l.b16 %v1614
        %v1847 = vunpack.c.l.b16 %v1615
        %v1848 = vunpack.c.l.b16 %v1616
        %v1849 = vpack.c.b16 %v1846, %v1845
        %v1850 = vpack.c.b16 %v1848, %v1847
        %1853 = vmatpush.bf16.msra.mxu0 0
        %1854 = vmatpush.bf16.msra.mxu0 0
        %1855 = vmatpush.bf16.msra.mxu0 0
        %1856 = vmatpush.bf16.msra.mxu0 0
        %1857 = vmatpush.bf16.msra.mxu0 0
        %1858 = vmatpush.bf16.msra.mxu0 0
        %1859 = vmatpush.bf16.msra.mxu0 %v1850
        %1860 = vmatpush.bf16.msra.mxu0 %v1849
        %1861 = vmatmul.bf16.gmra.mxu0 %v1751
        %v1862 = vpop.f32.mrf.mxu0
        %v1863 = vadd.f32 0.0, %v1862
        %v1864 = vpop.f32.mrf.mxu0
        %1865 = vdwg.mxu0
        %v1870 = vunpack.c.l.b16 %v1617
        %v1871 = vunpack.c.l.b16 %v1618
        %v1872 = vunpack.c.l.b16 %v1619
        %v1873 = vunpack.c.l.b16 %v1620
        %v1874 = vpack.c.b16 %v1871, %v1870
        %v1875 = vpack.c.b16 %v1873, %v1872
        %1878 = vmatpush.bf16.msra.mxu0 0
        %1879 = vmatpush.bf16.msra.mxu0 0
        %1880 = vmatpush.bf16.msra.mxu0 0
        %1881 = vmatpush.bf16.msra.mxu0 0
        %1882 = vmatpush.bf16.msra.mxu0 0
        %1883 = vmatpush.bf16.msra.mxu0 0
        %1884 = vmatpush.bf16.msra.mxu0 %v1875
        %1885 = vmatpush.bf16.msra.mxu0 %v1874
        %1886 = vmatmul.bf16.gmra.mxu0 %v1751
        %v1887 = vpop.f32.mrf.mxu0
        %v1888 = vadd.f32 0.0, %v1887
        %v1889 = vpop.f32.mrf.mxu0
        %1890 = vdwg.mxu0
        %v1895 = vunpack.c.l.b16 %v1621
        %v1896 = vunpack.c.l.b16 %v1622
        %v1897 = vunpack.c.l.b16 %v1623
        %v1898 = vunpack.c.l.b16 %v1624
        %v1899 = vpack.c.b16 %v1896, %v1895
        %v1900 = vpack.c.b16 %v1898, %v1897
        %1903 = vmatpush.bf16.msra.mxu0 0
        %1904 = vmatpush.bf16.msra.mxu0 0
        %1905 = vmatpush.bf16.msra.mxu0 0
        %1906 = vmatpush.bf16.msra.mxu0 0
        %1907 = vmatpush.bf16.msra.mxu0 0
        %1908 = vmatpush.bf16.msra.mxu0 0
        %1909 = vmatpush.bf16.msra.mxu0 %v1900
        %1910 = vmatpush.bf16.msra.mxu0 %v1899
        %1911 = vmatmul.bf16.gmra.mxu0 %v1751
        %v1912 = vpop.f32.mrf.mxu0
        %v1913 = vadd.f32 0.0, %v1912
        %v1914 = vpop.f32.mrf.mxu0
        %1915 = vdwg.mxu0
        %v1920 = vunpack.c.l.b16 %v1625
        %v1921 = vunpack.c.l.b16 %v1626
        %v1922 = vunpack.c.l.b16 %v1627
        %v1923 = vunpack.c.l.b16 %v1628
        %v1924 = vpack.c.b16 %v1921, %v1920
        %v1925 = vpack.c.b16 %v1923, %v1922
        %1928 = vmatpush.bf16.msra.mxu0 0
        %1929 = vmatpush.bf16.msra.mxu0 0
        %1930 = vmatpush.bf16.msra.mxu0 0
        %1931 = vmatpush.bf16.msra.mxu0 0
        %1932 = vmatpush.bf16.msra.mxu0 0
        %1933 = vmatpush.bf16.msra.mxu0 0
        %1934 = vmatpush.bf16.msra.mxu0 %v1925
        %1935 = vmatpush.bf16.msra.mxu0 %v1924
        %1936 = vmatmul.bf16.gmra.mxu0 %v1751
        %v1937 = vpop.f32.mrf.mxu0
        %v1938 = vadd.f32 0.0, %v1937
        %v1939 = vpop.f32.mrf.mxu0
        %1940 = vdwg.mxu0
        %v1941 = vpack.c.bf16 %v1660, %v1660
        %v1942 = vpack.c.bf16 %v1685, %v1685
        %v1943 = vpack.c.bf16 %v1710, %v1710
        %v1944 = vpack.c.bf16 %v1735, %v1735
        %v1945 = vpack.c.bf16 %v1763, %v1763
        %v1946 = vpack.c.bf16 %v1788, %v1788
        %v1947 = vpack.c.bf16 %v1813, %v1813
        %v1948 = vpack.c.bf16 %v1838, %v1838
        %v1950 = vperm.slane %v825, 0
        %v1953 = vsel %vm1192, %v1941, 0
        %v1956 = vsel %vm1192, %v1945, 0
        %1958 = vmatpush.bf16.xpose.msra.mxu0 0
        %1959 = vmatpush.bf16.xpose.msra.mxu0 0
        %1960 = vmatpush.bf16.xpose.msra.mxu0 0
        %1961 = vmatpush.bf16.xpose.msra.mxu0 0
        %1962 = vmatpush.bf16.xpose.msra.mxu0 0
        %1963 = vmatpush.bf16.xpose.msra.mxu0 0
        %1964 = vmatpush.bf16.xpose.msra.mxu0 0
        %1965 = vmatpush.bf16.xpose.msra.mxu0 %v1956
        %1966 = vmatmul.bf16.gmra.mxu0 %v1953
        %v1967 = vpop.f32.mrf.mxu0
        %v1968 = vadd.f32 %v1950, %v1967
        %v1969 = vpop.f32.mrf.mxu0
        %1970 = vdwg.mxu0
        %v1972 = vsel %vm1192, %v1942, 0
        %v1975 = vsel %vm1192, %v1946, 0
        %1977 = vmatpush.bf16.xpose.msra.mxu0 0
        %1978 = vmatpush.bf16.xpose.msra.mxu0 0
        %1979 = vmatpush.bf16.xpose.msra.mxu0 0
        %1980 = vmatpush.bf16.xpose.msra.mxu0 0
        %1981 = vmatpush.bf16.xpose.msra.mxu0 0
        %1982 = vmatpush.bf16.xpose.msra.mxu0 0
        %1983 = vmatpush.bf16.xpose.msra.mxu0 0
        %1984 = vmatpush.bf16.xpose.msra.mxu0 %v1975
        %1985 = vmatmul.bf16.gmra.mxu0 %v1972
        %v1986 = vpop.f32.mrf.mxu0
        %v1987 = vadd.f32 %v1950, %v1986
        %v1988 = vpop.f32.mrf.mxu0
        %1989 = vdwg.mxu0
        %v1991 = vsel %vm1192, %v1943, 0
        %v1994 = vsel %vm1192, %v1947, 0
        %1996 = vmatpush.bf16.xpose.msra.mxu0 0
        %1997 = vmatpush.bf16.xpose.msra.mxu0 0
        %1998 = vmatpush.bf16.xpose.msra.mxu0 0
        %1999 = vmatpush.bf16.xpose.msra.mxu0 0
        %2000 = vmatpush.bf16.xpose.msra.mxu0 0
        %2001 = vmatpush.bf16.xpose.msra.mxu0 0
        %2002 = vmatpush.bf16.xpose.msra.mxu0 0
        %2003 = vmatpush.bf16.xpose.msra.mxu0 %v1994
        %2004 = vmatmul.bf16.gmra.mxu0 %v1991
        %v2005 = vpop.f32.mrf.mxu0
        %v2006 = vadd.f32 %v1950, %v2005
        %v2007 = vpop.f32.mrf.mxu0
        %2008 = vdwg.mxu0
        %v2010 = vsel %vm1192, %v1944, 0
        %v2013 = vsel %vm1192, %v1948, 0
        %2015 = vmatpush.bf16.xpose.msra.mxu0 0
        %2016 = vmatpush.bf16.xpose.msra.mxu0 0
        %2017 = vmatpush.bf16.xpose.msra.mxu0 0
        %2018 = vmatpush.bf16.xpose.msra.mxu0 0
        %2019 = vmatpush.bf16.xpose.msra.mxu0 0
        %2020 = vmatpush.bf16.xpose.msra.mxu0 0
        %2021 = vmatpush.bf16.xpose.msra.mxu0 0
        %2022 = vmatpush.bf16.xpose.msra.mxu0 %v2013
        %2023 = vmatmul.bf16.gmra.mxu0 %v2010
        %v2024 = vpop.f32.mrf.mxu0
        %v2025 = vadd.f32 %v1950, %v2024
        %v2026 = vpop.f32.mrf.mxu0
        %2027 = vdwg.mxu0
        %v2028 = vsel %vm1192, %v1968, -inf
        %2029 = vmax.xlane.f32.xlu0 %v2028
        %v2030 = vpop.xlane.xlu0 %2029
        %v2031 = vsel %vm1192, %v1987, -inf
        %2032 = vmax.xlane.f32.xlu0 %v2031
        %v2033 = vpop.xlane.xlu0 %2032
        %v2034 = vsel %vm1192, %v2006, -inf
        %2035 = vmax.xlane.f32.xlu0 %v2034
        %v2036 = vpop.xlane.xlu0 %2035
        %v2037 = vsel %vm1192, %v2025, -inf
        %2038 = vmax.xlane.f32.xlu0 %v2037
        %v2039 = vpop.xlane.xlu0 %2038
        %v2040 = vsub.f32 %v1968, %v2030
        %v2041 = vsub.f32 %v1987, %v2033
        %v2042 = vsub.f32 %v2006, %v2036
        %v2043 = vsub.f32 %v2025, %v2039
        %v2044 = vmul.f32 %v2040, 1.442695
        %v2045 = vpow.pop %v2044
        %v2046 = vmul.f32 %v2041, 1.442695
        %v2047 = vpow.pop %v2046
        %v2048 = vmul.f32 %v2042, 1.442695
        %v2049 = vpow.pop %v2048
        %v2050 = vmul.f32 %v2043, 1.442695
        %v2051 = vpow.pop %v2050
        %v2052 = vsel %vm1192, %v2045, 0.0
        %2053 = vadd.xlane.f32.xlu0 %v2052
        %v2054 = vpop.xlane.xlu0 %2053
        %v2055 = vsel %vm1192, %v2047, 0.0
        %2056 = vadd.xlane.f32.xlu0 %v2055
        %v2057 = vpop.xlane.xlu0 %2056
        %v2058 = vsel %vm1192, %v2049, 0.0
        %2059 = vadd.xlane.f32.xlu0 %v2058
        %v2060 = vpop.xlane.xlu0 %2059
        %v2061 = vsel %vm1192, %v2051, 0.0
        %2062 = vadd.xlane.f32.xlu0 %v2061
        %v2063 = vpop.xlane.xlu0 %2062
        %v2064 = vrcp.pop %v2054
        %v2065 = vmul.f32 %v2054, %v2064
        %v2066 = vsub.f32 1.0, %v2065
        %v2067 = vmul.f32 %v2064, %v2066
        %v2068 = vadd.f32 %v2064, %v2067
        %vm2069 = vweird.f32 %v2054
        %vm2070 = vweird.f32 %v2064
        %vm2071 = vmor %vm2069, %vm2070
        %v2072 = vsel %vm2071, %v2064, %v2068
        %v2073 = vand.u32 2147483647, %v2054
        %vm2074 = vcmp.eq.f32.partialorder %v2073, 8.507059e+37
        %v2075 = vand.u32 %v2054, 2147483648
        %v2076 = vor.u32 1.1754944e-38, %v2075
        %v2077 = vsel %vm2074, %v2076, %v2072
        %v2078 = vmul.f32 %v2045, %v2077
        %v2079 = vrcp.pop %v2057
        %v2080 = vmul.f32 %v2057, %v2079
        %v2081 = vsub.f32 1.0, %v2080
        %v2082 = vmul.f32 %v2079, %v2081
        %v2083 = vadd.f32 %v2079, %v2082
        %vm2084 = vweird.f32 %v2057
        %vm2085 = vweird.f32 %v2079
        %vm2086 = vmor %vm2084, %vm2085
        %v2087 = vsel %vm2086, %v2079, %v2083
        %v2088 = vand.u32 2147483647, %v2057
        %vm2089 = vcmp.eq.f32.partialorder %v2088, 8.507059e+37
        %v2090 = vand.u32 %v2057, 2147483648
        %v2091 = vor.u32 1.1754944e-38, %v2090
        %v2092 = vsel %vm2089, %v2091, %v2087
        %v2093 = vmul.f32 %v2047, %v2092
        %v2094 = vrcp.pop %v2060
        %v2095 = vmul.f32 %v2060, %v2094
        %v2096 = vsub.f32 1.0, %v2095
        %v2097 = vmul.f32 %v2094, %v2096
        %v2098 = vadd.f32 %v2094, %v2097
        %vm2099 = vweird.f32 %v2060
        %vm2100 = vweird.f32 %v2094
        %vm2101 = vmor %vm2099, %vm2100
        %v2102 = vsel %vm2101, %v2094, %v2098
        %v2103 = vand.u32 2147483647, %v2060
        %vm2104 = vcmp.eq.f32.partialorder %v2103, 8.507059e+37
        %v2105 = vand.u32 %v2060, 2147483648
        %v2106 = vor.u32 1.1754944e-38, %v2105
        %v2107 = vsel %vm2104, %v2106, %v2102
        %v2108 = vmul.f32 %v2049, %v2107
        %v2109 = vrcp.pop %v2063
        %v2110 = vmul.f32 %v2063, %v2109
        %v2111 = vsub.f32 1.0, %v2110
        %v2112 = vmul.f32 %v2109, %v2111
        %v2113 = vadd.f32 %v2109, %v2112
        %vm2114 = vweird.f32 %v2063
        %vm2115 = vweird.f32 %v2109
        %vm2116 = vmor %vm2114, %vm2115
        %v2117 = vsel %vm2116, %v2109, %v2113
        %v2118 = vand.u32 2147483647, %v2063
        %vm2119 = vcmp.eq.f32.partialorder %v2118, 8.507059e+37
        %v2120 = vand.u32 %v2063, 2147483648
        %v2121 = vor.u32 1.1754944e-38, %v2120
        %v2122 = vsel %vm2119, %v2121, %v2117
        %v2123 = vmul.f32 %v2051, %v2122
        %v2124 = vpack.c.bf16 %v2078, %v2078
        %v2125 = vpack.c.bf16 %v2093, %v2093
        %v2126 = vpack.c.bf16 %v2108, %v2108
        %v2127 = vpack.c.bf16 %v2123, %v2123
        %v2128 = vpack.c.bf16 %v1863, %v1863
        %v2129 = vpack.c.bf16 %v1888, %v1888
        %v2130 = vpack.c.bf16 %v1913, %v1913
        %v2131 = vpack.c.bf16 %v1938, %v1938
        %v2133 = vsel %vm1192, %v2124, 0
        %v2136 = vsel %vm1376, %v2128, 0
        %2138 = vmatpush.bf16.msra.mxu0 0
        %2139 = vmatpush.bf16.msra.mxu0 0
        %2140 = vmatpush.bf16.msra.mxu0 0
        %2141 = vmatpush.bf16.msra.mxu0 0
        %2142 = vmatpush.bf16.msra.mxu0 0
        %2143 = vmatpush.bf16.msra.mxu0 0
        %2144 = vmatpush.bf16.msra.mxu0 0
        %2145 = vmatpush.bf16.msra.mxu0 %v2136
        %2146 = vmatmul.bf16.gmra.mxu0 %v2133
        %v2147 = vpop.f32.mrf.mxu0
        %v2148 = vadd.f32 0.0, %v2147
        %v2149 = vpop.f32.mrf.mxu0
        %2150 = vdwg.mxu0
        %v2152 = vsel %vm1192, %v2125, 0
        %v2155 = vsel %vm1376, %v2129, 0
        %2157 = vmatpush.bf16.msra.mxu0 0
        %2158 = vmatpush.bf16.msra.mxu0 0
        %2159 = vmatpush.bf16.msra.mxu0 0
        %2160 = vmatpush.bf16.msra.mxu0 0
        %2161 = vmatpush.bf16.msra.mxu0 0
        %2162 = vmatpush.bf16.msra.mxu0 0
        %2163 = vmatpush.bf16.msra.mxu0 0
        %2164 = vmatpush.bf16.msra.mxu0 %v2155
        %2165 = vmatmul.bf16.gmra.mxu0 %v2152
        %v2166 = vpop.f32.mrf.mxu0
        %v2167 = vadd.f32 0.0, %v2166
        %v2168 = vpop.f32.mrf.mxu0
        %2169 = vdwg.mxu0
        %v2171 = vsel %vm1192, %v2126, 0
        %v2174 = vsel %vm1376, %v2130, 0
        %2176 = vmatpush.bf16.msra.mxu0 0
        %2177 = vmatpush.bf16.msra.mxu0 0
        %2178 = vmatpush.bf16.msra.mxu0 0
        %2179 = vmatpush.bf16.msra.mxu0 0
        %2180 = vmatpush.bf16.msra.mxu0 0
        %2181 = vmatpush.bf16.msra.mxu0 0
        %2182 = vmatpush.bf16.msra.mxu0 0
        %2183 = vmatpush.bf16.msra.mxu0 %v2174
        %2184 = vmatmul.bf16.gmra.mxu0 %v2171
        %v2185 = vpop.f32.mrf.mxu0
        %v2186 = vadd.f32 0.0, %v2185
        %v2187 = vpop.f32.mrf.mxu0
        %2188 = vdwg.mxu0
        %v2190 = vsel %vm1192, %v2127, 0
        %v2193 = vsel %vm1376, %v2131, 0
        %2195 = vmatpush.bf16.msra.mxu0 0
        %2196 = vmatpush.bf16.msra.mxu0 0
        %2197 = vmatpush.bf16.msra.mxu0 0
        %2198 = vmatpush.bf16.msra.mxu0 0
        %2199 = vmatpush.bf16.msra.mxu0 0
        %2200 = vmatpush.bf16.msra.mxu0 0
        %2201 = vmatpush.bf16.msra.mxu0 0
        %2202 = vmatpush.bf16.msra.mxu0 %v2193
        %2203 = vmatmul.bf16.gmra.mxu0 %v2190
        %v2204 = vpop.f32.mrf.mxu0
        %v2205 = vadd.f32 0.0, %v2204
        %v2206 = vpop.f32.mrf.mxu0
        %2207 = vdwg.mxu0
        %v2208 = vpack.c.bf16 %v2148, %v2148
        %v2209 = vpack.c.bf16 %v2167, %v2167
        %v2210 = vpack.c.bf16 %v2186, %v2186
        %v2211 = vpack.c.bf16 %v2205, %v2205
        %v2213 = vsel %vm1192, %v2208, 0
        %v2216 = vsel %vm1376, %v1629, 0
        %2218 = vmatpush.bf16.msra.mxu0 0
        %2219 = vmatpush.bf16.msra.mxu0 0
        %2220 = vmatpush.bf16.msra.mxu0 0
        %2221 = vmatpush.bf16.msra.mxu0 0
        %2222 = vmatpush.bf16.msra.mxu0 0
        %2223 = vmatpush.bf16.msra.mxu0 0
        %2224 = vmatpush.bf16.msra.mxu0 0
        %2225 = vmatpush.bf16.msra.mxu0 %v2216
        %2226 = vmatmul.bf16.gmra.mxu0 %v2213
        %v2227 = vpop.f32.mrf.mxu0
        %v2228 = vadd.f32 0.0, %v2227
        %v2229 = vpop.f32.mrf.mxu0
        %2230 = vdwg.mxu0
        %v2232 = vsel %vm1192, %v2209, 0
        %v2235 = vsel %vm1376, %v1630, 0
        %2237 = vmatpush.bf16.msra.mxu0 0
        %2238 = vmatpush.bf16.msra.mxu0 0
        %2239 = vmatpush.bf16.msra.mxu0 0
        %2240 = vmatpush.bf16.msra.mxu0 0
        %2241 = vmatpush.bf16.msra.mxu0 0
        %2242 = vmatpush.bf16.msra.mxu0 0
        %2243 = vmatpush.bf16.msra.mxu0 0
        %2244 = vmatpush.bf16.msra.mxu0 %v2235
        %2245 = vmatmul.bf16.gmra.mxu0 %v2232
        %v2246 = vpop.f32.mrf.mxu0
        %v2247 = vadd.f32 0.0, %v2246
        %v2248 = vpop.f32.mrf.mxu0
        %2249 = vdwg.mxu0
        %v2251 = vsel %vm1192, %v2210, 0
        %v2254 = vsel %vm1376, %v1631, 0
        %2256 = vmatpush.bf16.msra.mxu0 0
        %2257 = vmatpush.bf16.msra.mxu0 0
        %2258 = vmatpush.bf16.msra.mxu0 0
        %2259 = vmatpush.bf16.msra.mxu0 0
        %2260 = vmatpush.bf16.msra.mxu0 0
        %2261 = vmatpush.bf16.msra.mxu0 0
        %2262 = vmatpush.bf16.msra.mxu0 0
        %2263 = vmatpush.bf16.msra.mxu0 %v2254
        %2264 = vmatmul.bf16.gmra.mxu0 %v2251
        %v2265 = vpop.f32.mrf.mxu0
        %v2266 = vadd.f32 0.0, %v2265
        %v2267 = vpop.f32.mrf.mxu0
        %2268 = vdwg.mxu0
        %v2270 = vsel %vm1192, %v2211, 0
        %v2273 = vsel %vm1376, %v1632, 0
        %2275 = vmatpush.bf16.msra.mxu0 0
        %2276 = vmatpush.bf16.msra.mxu0 0
        %2277 = vmatpush.bf16.msra.mxu0 0
        %2278 = vmatpush.bf16.msra.mxu0 0
        %2279 = vmatpush.bf16.msra.mxu0 0
        %2280 = vmatpush.bf16.msra.mxu0 0
        %2281 = vmatpush.bf16.msra.mxu0 0
        %2282 = vmatpush.bf16.msra.mxu0 %v2273
        %2283 = vmatmul.bf16.gmra.mxu0 %v2270
        %v2284 = vpop.f32.mrf.mxu0
        %v2285 = vadd.f32 0.0, %v2284
        %v2286 = vpop.f32.mrf.mxu0
        %2287 = vdwg.mxu0
        %v2288 = vsel %vm892, %v2228, 0.0
        %v2289 = vsel %vm892, %v2247, 0.0
        %v2290 = vadd.f32 %v2288, %v2289
        %v2291 = vsel %vm892, %v2266, 0.0
        %v2292 = vadd.f32 %v2290, %v2291
        %v2293 = vsel %vm892, %v2285, 0.0
        %v2294 = vadd.f32 %v2292, %v2293
        %v2296 = vperm.slane %v1633, 0
        %v2298 = vadd.f32 %v2294, %v2296
        %v2299 = vadd.f32 %v2298, %v1580
        %v2300 = vld [vmem:[%s16] sm:$0x1]
        %v2301 = vld [vmem:[%s17] sm:$0x1]
        %v2302 = vsel %vm892, %v2299, 0.0
        %2303 = vadd.xlane.f32.xlu0 %v2302
        %v2304 = vpop.xlane.xlu0 %2303
        %v2305 = vmul.f32 %v2304, %v1553
        %v2306 = vsub.f32 %v2299, %v2305
        %v2307 = vmul.f32 %v2306, %v2306
        %v2308 = vsel %vm892, %v2307, 0.0
        %2309 = vadd.xlane.f32.xlu0 %v2308
        %v2310 = vpop.xlane.xlu0 %2309
        %v2311 = vmul.f32 %v2310, %v1553
        %v2312 = vadd.f32 %v2311, 1e-05
        %v2313 = vrsqrt.pop %v2312
        %v2314 = vmul.f32 %v2313, %v2312
        %v2315 = vmul.f32 %v2314, %v2313
        %v2316 = vmul.f32 0.5, %v2315
        %v2317 = vsub.f32 1.5, %v2316
        %v2318 = vmul.f32 %v2313, %v2317
        %vm2319 = vweird.f32 %v2312
        %vm2320 = vweird.f32 %v2313
        %vm2321 = vmor %vm2319, %vm2320
        %v2322 = vsel %vm2321, %v2313, %v2318
        %v2323 = vmul.f32 %v2306, %v2322
        %v2325 = vperm.slane %v2300, 0
        %v2327 = vmul.f32 %v2323, %v2325
        %v2329 = vperm.slane %v2301, 0
        %v2331 = vadd.f32 %v2327, %v2329
        %v2332 = vld [vmem:[%s18] sm:$0xf]
        %v2333 = vld [vmem:[%s18 + $0x4] sm:$0xf]
        %v2334 = vld [vmem:[%s18 + $0x8] sm:$0xf]
        %v2335 = vld [vmem:[%s18 + $0xc] sm:$0xf]
        %v2336 = vld [vmem:[%s19] sm:$0x1]
        %v2337 = vld [vmem:[%s20] sm:$0xf]
        %v2338 = vld [vmem:[%s20 + $0x4] sm:$0xf]
        %v2339 = vld [vmem:[%s20 + $0x8] sm:$0xf]
        %v2340 = vld [vmem:[%s20 + $0xc] sm:$0xf]
        %v2341 = vld [vmem:[%s20 + $0x10] sm:$0xf]
        %v2342 = vld [vmem:[%s20 + $0x14] sm:$0xf]
        %v2343 = vld [vmem:[%s20 + $0x18] sm:$0xf]
        %v2344 = vld [vmem:[%s20 + $0x1c] sm:$0xf]
        %v2345 = vld [vmem:[%s20 + $0x20] sm:$0xf]
        %v2346 = vld [vmem:[%s20 + $0x24] sm:$0xf]
        %v2347 = vld [vmem:[%s20 + $0x28] sm:$0xf]
        %v2348 = vld [vmem:[%s20 + $0x2c] sm:$0xf]
        %v2349 = vld [vmem:[%s20 + $0x30] sm:$0xf]
        %v2350 = vld [vmem:[%s20 + $0x34] sm:$0xf]
        %v2351 = vld [vmem:[%s20 + $0x38] sm:$0xf]
        %v2352 = vld [vmem:[%s20 + $0x3c] sm:$0xf]
        %v2353 = vld [vmem:[%s21] sm:$0x1]
        %v2354 = vpack.c.bf16 %v2331, %v2331
        %v2356 = vperm.slane %v2336, 0
        %v2362 = vunpack.c.l.b16 %v2332
        %v2363 = vunpack.c.l.b16 %v2333
        %v2364 = vunpack.c.l.b16 %v2334
        %v2365 = vunpack.c.l.b16 %v2335
        %v2366 = vpack.c.b16 %v2363, %v2362
        %v2367 = vpack.c.b16 %v2365, %v2364
        %v2371 = vsel %vm892, %v2354, 0
        %2373 = vmatpush.bf16.msra.mxu0 0
        %2374 = vmatpush.bf16.msra.mxu0 0
        %2375 = vmatpush.bf16.msra.mxu0 0
        %2376 = vmatpush.bf16.msra.mxu0 0
        %2377 = vmatpush.bf16.msra.mxu0 0
        %2378 = vmatpush.bf16.msra.mxu0 0
        %2379 = vmatpush.bf16.msra.mxu0 %v2367
        %2380 = vmatpush.bf16.msra.mxu0 %v2366
        %2381 = vmatmul.bf16.gmra.mxu0 %v2371
        %v2382 = vpop.f32.mrf.mxu0
        %v2383 = vadd.f32 %v2356, %v2382
        %v2384 = vpop.f32.mrf.mxu0
        %2385 = vdwg.mxu0
        %v2386 = vmax.f32 %v2383, 0.0
        %v2387 = vpack.c.bf16 %v2386, %v2386
        %v2389 = vperm.slane %v2353, 0
        %v2407 = vunpack.c.l.b16 %v2337
        %v2408 = vunpack.c.l.b16 %v2338
        %v2409 = vunpack.c.l.b16 %v2339
        %v2410 = vunpack.c.l.b16 %v2340
        %v2411 = vunpack.c.l.b16 %v2341
        %v2412 = vunpack.c.l.b16 %v2342
        %v2413 = vunpack.c.l.b16 %v2343
        %v2414 = vunpack.c.l.b16 %v2344
        %v2415 = vunpack.c.l.b16 %v2345
        %v2416 = vunpack.c.l.b16 %v2346
        %v2417 = vunpack.c.l.b16 %v2347
        %v2418 = vunpack.c.l.b16 %v2348
        %v2419 = vunpack.c.l.b16 %v2349
        %v2420 = vunpack.c.l.b16 %v2350
        %v2421 = vunpack.c.l.b16 %v2351
        %v2422 = vunpack.c.l.b16 %v2352
        %v2423 = vpack.c.b16 %v2408, %v2407
        %v2424 = vpack.c.b16 %v2410, %v2409
        %v2425 = vpack.c.b16 %v2412, %v2411
        %v2426 = vpack.c.b16 %v2414, %v2413
        %v2427 = vpack.c.b16 %v2416, %v2415
        %v2428 = vpack.c.b16 %v2418, %v2417
        %v2429 = vpack.c.b16 %v2420, %v2419
        %v2430 = vpack.c.b16 %v2422, %v2421
        %2439 = vmatpush.bf16.msra.mxu0 %v2430
        %2440 = vmatpush.bf16.msra.mxu0 %v2429
        %2441 = vmatpush.bf16.msra.mxu0 %v2428
        %2442 = vmatpush.bf16.msra.mxu0 %v2427
        %2443 = vmatpush.bf16.msra.mxu0 %v2426
        %2444 = vmatpush.bf16.msra.mxu0 %v2425
        %2445 = vmatpush.bf16.msra.mxu0 %v2424
        %2446 = vmatpush.bf16.msra.mxu0 %v2423
        %2447 = vmatmul.bf16.gmra.mxu0 %v2387
        %v2448 = vpop.f32.mrf.mxu0
        %v2449 = vadd.f32 %v2389, %v2448
        %v2450 = vpop.f32.mrf.mxu0
        %2451 = vdwg.mxu0
        %v2452 = vadd.f32 %v2449, %v2331
        %v2453 = vld [vmem:[%s22] sm:$0x1]
        %v2454 = vld [vmem:[%s23] sm:$0x1]
        %v2455 = vsel %vm892, %v2452, 0.0
        %2456 = vadd.xlane.f32.xlu0 %v2455
        %v2457 = vpop.xlane.xlu0 %2456
        %v2458 = vmul.f32 %v2457, %v1553
        %v2459 = vsub.f32 %v2452, %v2458
        %v2460 = vmul.f32 %v2459, %v2459
        %v2461 = vsel %vm892, %v2460, 0.0
        %2462 = vadd.xlane.f32.xlu0 %v2461
        %v2463 = vpop.xlane.xlu0 %2462
        %v2464 = vmul.f32 %v2463, %v1553
        %v2465 = vadd.f32 %v2464, 1e-05
        %v2466 = vrsqrt.pop %v2465
        %v2467 = vmul.f32 %v2466, %v2465
        %v2468 = vmul.f32 %v2467, %v2466
        %v2469 = vmul.f32 0.5, %v2468
        %v2470 = vsub.f32 1.5, %v2469
        %v2471 = vmul.f32 %v2466, %v2470
        %vm2472 = vweird.f32 %v2465
        %vm2473 = vweird.f32 %v2466
        %vm2474 = vmor %vm2472, %vm2473
        %v2475 = vsel %vm2474, %v2466, %v2471
        %v2476 = vmul.f32 %v2459, %v2475
        %v2478 = vperm.slane %v2453, 0
        %v2480 = vmul.f32 %v2476, %v2478
        %v2482 = vperm.slane %v2454, 0
        %v2484 = vadd.f32 %v2480, %v2482
        %v2485 = vpack.c.bf16 %v2484, %v2484
        %s2486 = scalar_lea.vmem %s4, 64
        %v2487 = vld [vmem:[%s2486] sm:$0xf]
        %v2488 = vld [vmem:[%s2486 + $0x4] sm:$0xf]
        %v2489 = vld [vmem:[%s2486 + $0x8] sm:$0xf]
        %v2490 = vld [vmem:[%s2486 + $0xc] sm:$0xf]
        %v2491 = vld [vmem:[%s2486 + $0x10] sm:$0xf]
        %v2492 = vld [vmem:[%s2486 + $0x14] sm:$0xf]
        %v2493 = vld [vmem:[%s2486 + $0x18] sm:$0xf]
        %v2494 = vld [vmem:[%s2486 + $0x1c] sm:$0xf]
        %v2495 = vld [vmem:[%s2486 + $0x20] sm:$0xf]
        %v2496 = vld [vmem:[%s2486 + $0x24] sm:$0xf]
        %v2497 = vld [vmem:[%s2486 + $0x28] sm:$0xf]
        %v2498 = vld [vmem:[%s2486 + $0x2c] sm:$0xf]
        %v2499 = vld [vmem:[%s2486 + $0x30] sm:$0xf]
        %v2500 = vld [vmem:[%s2486 + $0x34] sm:$0xf]
        %v2501 = vld [vmem:[%s2486 + $0x38] sm:$0xf]
        %v2502 = vld [vmem:[%s2486 + $0x3c] sm:$0xf]
        %s2503 = scalar_lea.vmem %s5, 64
        %v2504 = vld [vmem:[%s2503] sm:$0xf]
        %v2505 = vld [vmem:[%s2503 + $0x4] sm:$0xf]
        %v2506 = vld [vmem:[%s2503 + $0x8] sm:$0xf]
        %v2507 = vld [vmem:[%s2503 + $0xc] sm:$0xf]
        %v2508 = vld [vmem:[%s2503 + $0x10] sm:$0xf]
        %v2509 = vld [vmem:[%s2503 + $0x14] sm:$0xf]
        %v2510 = vld [vmem:[%s2503 + $0x18] sm:$0xf]
        %v2511 = vld [vmem:[%s2503 + $0x1c] sm:$0xf]
        %v2512 = vld [vmem:[%s2503 + $0x20] sm:$0xf]
        %v2513 = vld [vmem:[%s2503 + $0x24] sm:$0xf]
        %v2514 = vld [vmem:[%s2503 + $0x28] sm:$0xf]
        %v2515 = vld [vmem:[%s2503 + $0x2c] sm:$0xf]
        %v2516 = vld [vmem:[%s2503 + $0x30] sm:$0xf]
        %v2517 = vld [vmem:[%s2503 + $0x34] sm:$0xf]
        %v2518 = vld [vmem:[%s2503 + $0x38] sm:$0xf]
        %v2519 = vld [vmem:[%s2503 + $0x3c] sm:$0xf]
        %s2520 = scalar_lea.vmem %s6, 64
        %v2521 = vld [vmem:[%s2520] sm:$0xf]
        %v2522 = vld [vmem:[%s2520 + $0x4] sm:$0xf]
        %v2523 = vld [vmem:[%s2520 + $0x8] sm:$0xf]
        %v2524 = vld [vmem:[%s2520 + $0xc] sm:$0xf]
        %v2525 = vld [vmem:[%s2520 + $0x10] sm:$0xf]
        %v2526 = vld [vmem:[%s2520 + $0x14] sm:$0xf]
        %v2527 = vld [vmem:[%s2520 + $0x18] sm:$0xf]
        %v2528 = vld [vmem:[%s2520 + $0x1c] sm:$0xf]
        %v2529 = vld [vmem:[%s2520 + $0x20] sm:$0xf]
        %v2530 = vld [vmem:[%s2520 + $0x24] sm:$0xf]
        %v2531 = vld [vmem:[%s2520 + $0x28] sm:$0xf]
        %v2532 = vld [vmem:[%s2520 + $0x2c] sm:$0xf]
        %v2533 = vld [vmem:[%s2520 + $0x30] sm:$0xf]
        %v2534 = vld [vmem:[%s2520 + $0x34] sm:$0xf]
        %v2535 = vld [vmem:[%s2520 + $0x38] sm:$0xf]
        %v2536 = vld [vmem:[%s2520 + $0x3c] sm:$0xf]
        %s2537 = scalar_lea.vmem %s7, 16
        %v2538 = vld [vmem:[%s2537] sm:$0xf]
        %v2539 = vld [vmem:[%s2537 + $0x4] sm:$0xf]
        %v2540 = vld [vmem:[%s2537 + $0x8] sm:$0xf]
        %v2541 = vld [vmem:[%s2537 + $0xc] sm:$0xf]
        %s2542 = scalar_lea.vmem %s8, 1
        %v2543 = vld [vmem:[%s2542] sm:$0x1]
        %v2548 = vunpack.c.l.b16 %v2487
        %v2549 = vunpack.c.l.b16 %v2488
        %v2550 = vunpack.c.l.b16 %v2489
        %v2551 = vunpack.c.l.b16 %v2490
        %v2552 = vpack.c.b16 %v2549, %v2548
        %v2553 = vpack.c.b16 %v2551, %v2550
        %v2557 = vsel %vm892, %v2485, 0
        %2559 = vmatpush.bf16.msra.mxu0 0
        %2560 = vmatpush.bf16.msra.mxu0 0
        %2561 = vmatpush.bf16.msra.mxu0 0
        %2562 = vmatpush.bf16.msra.mxu0 0
        %2563 = vmatpush.bf16.msra.mxu0 0
        %2564 = vmatpush.bf16.msra.mxu0 0
        %2565 = vmatpush.bf16.msra.mxu0 %v2553
        %2566 = vmatpush.bf16.msra.mxu0 %v2552
        %2567 = vmatmul.bf16.gmra.mxu0 %v2557
        %v2568 = vpop.f32.mrf.mxu0
        %v2569 = vadd.f32 0.0, %v2568
        %v2570 = vpop.f32.mrf.mxu0
        %2571 = vdwg.mxu0
        %v2576 = vunpack.c.l.b16 %v2491
        %v2577 = vunpack.c.l.b16 %v2492
        %v2578 = vunpack.c.l.b16 %v2493
        %v2579 = vunpack.c.l.b16 %v2494
        %v2580 = vpack.c.b16 %v2577, %v2576
        %v2581 = vpack.c.b16 %v2579, %v2578
        %2584 = vmatpush.bf16.msra.mxu0 0
        %2585 = vmatpush.bf16.msra.mxu0 0
        %2586 = vmatpush.bf16.msra.mxu0 0
        %2587 = vmatpush.bf16.msra.mxu0 0
        %2588 = vmatpush.bf16.msra.mxu0 0
        %2589 = vmatpush.bf16.msra.mxu0 0
        %2590 = vmatpush.bf16.msra.mxu0 %v2581
        %2591 = vmatpush.bf16.msra.mxu0 %v2580
        %2592 = vmatmul.bf16.gmra.mxu0 %v2557
        %v2593 = vpop.f32.mrf.mxu0
        %v2594 = vadd.f32 0.0, %v2593
        %v2595 = vpop.f32.mrf.mxu0
        %2596 = vdwg.mxu0
        %v2601 = vunpack.c.l.b16 %v2495
        %v2602 = vunpack.c.l.b16 %v2496
        %v2603 = vunpack.c.l.b16 %v2497
        %v2604 = vunpack.c.l.b16 %v2498
        %v2605 = vpack.c.b16 %v2602, %v2601
        %v2606 = vpack.c.b16 %v2604, %v2603
        %2609 = vmatpush.bf16.msra.mxu0 0
        %2610 = vmatpush.bf16.msra.mxu0 0
        %2611 = vmatpush.bf16.msra.mxu0 0
        %2612 = vmatpush.bf16.msra.mxu0 0
        %2613 = vmatpush.bf16.msra.mxu0 0
        %2614 = vmatpush.bf16.msra.mxu0 0
        %2615 = vmatpush.bf16.msra.mxu0 %v2606
        %2616 = vmatpush.bf16.msra.mxu0 %v2605
        %2617 = vmatmul.bf16.gmra.mxu0 %v2557
        %v2618 = vpop.f32.mrf.mxu0
        %v2619 = vadd.f32 0.0, %v2618
        %v2620 = vpop.f32.mrf.mxu0
        %2621 = vdwg.mxu0
        %v2626 = vunpack.c.l.b16 %v2499
        %v2627 = vunpack.c.l.b16 %v2500
        %v2628 = vunpack.c.l.b16 %v2501
        %v2629 = vunpack.c.l.b16 %v2502
        %v2630 = vpack.c.b16 %v2627, %v2626
        %v2631 = vpack.c.b16 %v2629, %v2628
        %2634 = vmatpush.bf16.msra.mxu0 0
        %2635 = vmatpush.bf16.msra.mxu0 0
        %2636 = vmatpush.bf16.msra.mxu0 0
        %2637 = vmatpush.bf16.msra.mxu0 0
        %2638 = vmatpush.bf16.msra.mxu0 0
        %2639 = vmatpush.bf16.msra.mxu0 0
        %2640 = vmatpush.bf16.msra.mxu0 %v2631
        %2641 = vmatpush.bf16.msra.mxu0 %v2630
        %2642 = vmatmul.bf16.gmra.mxu0 %v2557
        %v2643 = vpop.f32.mrf.mxu0
        %v2644 = vadd.f32 0.0, %v2643
        %v2645 = vpop.f32.mrf.mxu0
        %2646 = vdwg.mxu0
        %v2651 = vunpack.c.l.b16 %v2504
        %v2652 = vunpack.c.l.b16 %v2505
        %v2653 = vunpack.c.l.b16 %v2506
        %v2654 = vunpack.c.l.b16 %v2507
        %v2655 = vpack.c.b16 %v2652, %v2651
        %v2656 = vpack.c.b16 %v2654, %v2653
        %2659 = vmatpush.bf16.msra.mxu0 0
        %2660 = vmatpush.bf16.msra.mxu0 0
        %2661 = vmatpush.bf16.msra.mxu0 0
        %2662 = vmatpush.bf16.msra.mxu0 0
        %2663 = vmatpush.bf16.msra.mxu0 0
        %2664 = vmatpush.bf16.msra.mxu0 0
        %2665 = vmatpush.bf16.msra.mxu0 %v2656
        %2666 = vmatpush.bf16.msra.mxu0 %v2655
        %2667 = vmatmul.bf16.gmra.mxu0 %v2557
        %v2668 = vpop.f32.mrf.mxu0
        %v2669 = vadd.f32 0.0, %v2668
        %v2670 = vpop.f32.mrf.mxu0
        %2671 = vdwg.mxu0
        %v2676 = vunpack.c.l.b16 %v2508
        %v2677 = vunpack.c.l.b16 %v2509
        %v2678 = vunpack.c.l.b16 %v2510
        %v2679 = vunpack.c.l.b16 %v2511
        %v2680 = vpack.c.b16 %v2677, %v2676
        %v2681 = vpack.c.b16 %v2679, %v2678
        %2684 = vmatpush.bf16.msra.mxu0 0
        %2685 = vmatpush.bf16.msra.mxu0 0
        %2686 = vmatpush.bf16.msra.mxu0 0
        %2687 = vmatpush.bf16.msra.mxu0 0
        %2688 = vmatpush.bf16.msra.mxu0 0
        %2689 = vmatpush.bf16.msra.mxu0 0
        %2690 = vmatpush.bf16.msra.mxu0 %v2681
        %2691 = vmatpush.bf16.msra.mxu0 %v2680
        %2692 = vmatmul.bf16.gmra.mxu0 %v2557
        %v2693 = vpop.f32.mrf.mxu0
        %v2694 = vadd.f32 0.0, %v2693
        %v2695 = vpop.f32.mrf.mxu0
        %2696 = vdwg.mxu0
        %v2701 = vunpack.c.l.b16 %v2512
        %v2702 = vunpack.c.l.b16 %v2513
        %v2703 = vunpack.c.l.b16 %v2514
        %v2704 = vunpack.c.l.b16 %v2515
        %v2705 = vpack.c.b16 %v2702, %v2701
        %v2706 = vpack.c.b16 %v2704, %v2703
        %2709 = vmatpush.bf16.msra.mxu0 0
        %2710 = vmatpush.bf16.msra.mxu0 0
        %2711 = vmatpush.bf16.msra.mxu0 0
        %2712 = vmatpush.bf16.msra.mxu0 0
        %2713 = vmatpush.bf16.msra.mxu0 0
        %2714 = vmatpush.bf16.msra.mxu0 0
        %2715 = vmatpush.bf16.msra.mxu0 %v2706
        %2716 = vmatpush.bf16.msra.mxu0 %v2705
        %2717 = vmatmul.bf16.gmra.mxu0 %v2557
        %v2718 = vpop.f32.mrf.mxu0
        %v2719 = vadd.f32 0.0, %v2718
        %v2720 = vpop.f32.mrf.mxu0
        %2721 = vdwg.mxu0
        %v2726 = vunpack.c.l.b16 %v2516
        %v2727 = vunpack.c.l.b16 %v2517
        %v2728 = vunpack.c.l.b16 %v2518
        %v2729 = vunpack.c.l.b16 %v2519
        %v2730 = vpack.c.b16 %v2727, %v2726
        %v2731 = vpack.c.b16 %v2729, %v2728
        %2734 = vmatpush.bf16.msra.mxu0 0
        %2735 = vmatpush.bf16.msra.mxu0 0
        %2736 = vmatpush.bf16.msra.mxu0 0
        %2737 = vmatpush.bf16.msra.mxu0 0
        %2738 = vmatpush.bf16.msra.mxu0 0
        %2739 = vmatpush.bf16.msra.mxu0 0
        %2740 = vmatpush.bf16.msra.mxu0 %v2731
        %2741 = vmatpush.bf16.msra.mxu0 %v2730
        %2742 = vmatmul.bf16.gmra.mxu0 %v2557
        %v2743 = vpop.f32.mrf.mxu0
        %v2744 = vadd.f32 0.0, %v2743
        %v2745 = vpop.f32.mrf.mxu0
        %2746 = vdwg.mxu0
        %v2751 = vunpack.c.l.b16 %v2521
        %v2752 = vunpack.c.l.b16 %v2522
        %v2753 = vunpack.c.l.b16 %v2523
        %v2754 = vunpack.c.l.b16 %v2524
        %v2755 = vpack.c.b16 %v2752, %v2751
        %v2756 = vpack.c.b16 %v2754, %v2753
        %2759 = vmatpush.bf16.msra.mxu0 0
        %2760 = vmatpush.bf16.msra.mxu0 0
        %2761 = vmatpush.bf16.msra.mxu0 0
        %2762 = vmatpush.bf16.msra.mxu0 0
        %2763 = vmatpush.bf16.msra.mxu0 0
        %2764 = vmatpush.bf16.msra.mxu0 0
        %2765 = vmatpush.bf16.msra.mxu0 %v2756
        %2766 = vmatpush.bf16.msra.mxu0 %v2755
        %2767 = vmatmul.bf16.gmra.mxu0 %v2557
        %v2768 = vpop.f32.mrf.mxu0
        %v2769 = vadd.f32 0.0, %v2768
        %v2770 = vpop.f32.mrf.mxu0
        %2771 = vdwg.mxu0
        %v2776 = vunpack.c.l.b16 %v2525
        %v2777 = vunpack.c.l.b16 %v2526
        %v2778 = vunpack.c.l.b16 %v2527
        %v2779 = vunpack.c.l.b16 %v2528
        %v2780 = vpack.c.b16 %v2777, %v2776
        %v2781 = vpack.c.b16 %v2779, %v2778
        %2784 = vmatpush.bf16.msra.mxu0 0
        %2785 = vmatpush.bf16.msra.mxu0 0
        %2786 = vmatpush.bf16.msra.mxu0 0
        %2787 = vmatpush.bf16.msra.mxu0 0
        %2788 = vmatpush.bf16.msra.mxu0 0
        %2789 = vmatpush.bf16.msra.mxu0 0
        %2790 = vmatpush.bf16.msra.mxu0 %v2781
        %2791 = vmatpush.bf16.msra.mxu0 %v2780
        %2792 = vmatmul.bf16.gmra.mxu0 %v2557
        %v2793 = vpop.f32.mrf.mxu0
        %v2794 = vadd.f32 0.0, %v2793
        %v2795 = vpop.f32.mrf.mxu0
        %2796 = vdwg.mxu0
        %v2801 = vunpack.c.l.b16 %v2529
        %v2802 = vunpack.c.l.b16 %v2530
        %v2803 = vunpack.c.l.b16 %v2531
        %v2804 = vunpack.c.l.b16 %v2532
        %v2805 = vpack.c.b16 %v2802, %v2801
        %v2806 = vpack.c.b16 %v2804, %v2803
        %2809 = vmatpush.bf16.msra.mxu0 0
        %2810 = vmatpush.bf16.msra.mxu0 0
        %2811 = vmatpush.bf16.msra.mxu0 0
        %2812 = vmatpush.bf16.msra.mxu0 0
        %2813 = vmatpush.bf16.msra.mxu0 0
        %2814 = vmatpush.bf16.msra.mxu0 0
        %2815 = vmatpush.bf16.msra.mxu0 %v2806
        %2816 = vmatpush.bf16.msra.mxu0 %v2805
        %2817 = vmatmul.bf16.gmra.mxu0 %v2557
        %v2818 = vpop.f32.mrf.mxu0
        %v2819 = vadd.f32 0.0, %v2818
        %v2820 = vpop.f32.mrf.mxu0
        %2821 = vdwg.mxu0
        %v2826 = vunpack.c.l.b16 %v2533
        %v2827 = vunpack.c.l.b16 %v2534
        %v2828 = vunpack.c.l.b16 %v2535
        %v2829 = vunpack.c.l.b16 %v2536
        %v2830 = vpack.c.b16 %v2827, %v2826
        %v2831 = vpack.c.b16 %v2829, %v2828
        %2834 = vmatpush.bf16.msra.mxu0 0
        %2835 = vmatpush.bf16.msra.mxu0 0
        %2836 = vmatpush.bf16.msra.mxu0 0
        %2837 = vmatpush.bf16.msra.mxu0 0
        %2838 = vmatpush.bf16.msra.mxu0 0
        %2839 = vmatpush.bf16.msra.mxu0 0
        %2840 = vmatpush.bf16.msra.mxu0 %v2831
        %2841 = vmatpush.bf16.msra.mxu0 %v2830
        %2842 = vmatmul.bf16.gmra.mxu0 %v2557
        %v2843 = vpop.f32.mrf.mxu0
        %v2844 = vadd.f32 0.0, %v2843
        %v2845 = vpop.f32.mrf.mxu0
        %2846 = vdwg.mxu0
        %v2847 = vpack.c.bf16 %v2569, %v2569
        %v2848 = vpack.c.bf16 %v2594, %v2594
        %v2849 = vpack.c.bf16 %v2619, %v2619
        %v2850 = vpack.c.bf16 %v2644, %v2644
        %v2851 = vpack.c.bf16 %v2669, %v2669
        %v2852 = vpack.c.bf16 %v2694, %v2694
        %v2853 = vpack.c.bf16 %v2719, %v2719
        %v2854 = vpack.c.bf16 %v2744, %v2744
        %v2856 = vsel %vm1192, %v2847, 0
        %v2859 = vsel %vm1192, %v2851, 0
        %2861 = vmatpush.bf16.xpose.msra.mxu0 0
        %2862 = vmatpush.bf16.xpose.msra.mxu0 0
        %2863 = vmatpush.bf16.xpose.msra.mxu0 0
        %2864 = vmatpush.bf16.xpose.msra.mxu0 0
        %2865 = vmatpush.bf16.xpose.msra.mxu0 0
        %2866 = vmatpush.bf16.xpose.msra.mxu0 0
        %2867 = vmatpush.bf16.xpose.msra.mxu0 0
        %2868 = vmatpush.bf16.xpose.msra.mxu0 %v2859
        %2869 = vmatmul.bf16.gmra.mxu0 %v2856
        %v2870 = vpop.f32.mrf.mxu0
        %v2871 = vadd.f32 %v823, %v2870
        %v2872 = vpop.f32.mrf.mxu0
        %2873 = vdwg.mxu0
        %v2875 = vsel %vm1192, %v2848, 0
        %v2878 = vsel %vm1192, %v2852, 0
        %2880 = vmatpush.bf16.xpose.msra.mxu0 0
        %2881 = vmatpush.bf16.xpose.msra.mxu0 0
        %2882 = vmatpush.bf16.xpose.msra.mxu0 0
        %2883 = vmatpush.bf16.xpose.msra.mxu0 0
        %2884 = vmatpush.bf16.xpose.msra.mxu0 0
        %2885 = vmatpush.bf16.xpose.msra.mxu0 0
        %2886 = vmatpush.bf16.xpose.msra.mxu0 0
        %2887 = vmatpush.bf16.xpose.msra.mxu0 %v2878
        %2888 = vmatmul.bf16.gmra.mxu0 %v2875
        %v2889 = vpop.f32.mrf.mxu0
        %v2890 = vadd.f32 %v823, %v2889
        %v2891 = vpop.f32.mrf.mxu0
        %2892 = vdwg.mxu0
        %v2894 = vsel %vm1192, %v2849, 0
        %v2897 = vsel %vm1192, %v2853, 0
        %2899 = vmatpush.bf16.xpose.msra.mxu0 0
        %2900 = vmatpush.bf16.xpose.msra.mxu0 0
        %2901 = vmatpush.bf16.xpose.msra.mxu0 0
        %2902 = vmatpush.bf16.xpose.msra.mxu0 0
        %2903 = vmatpush.bf16.xpose.msra.mxu0 0
        %2904 = vmatpush.bf16.xpose.msra.mxu0 0
        %2905 = vmatpush.bf16.xpose.msra.mxu0 0
        %2906 = vmatpush.bf16.xpose.msra.mxu0 %v2897
        %2907 = vmatmul.bf16.gmra.mxu0 %v2894
        %v2908 = vpop.f32.mrf.mxu0
        %v2909 = vadd.f32 %v823, %v2908
        %v2910 = vpop.f32.mrf.mxu0
        %2911 = vdwg.mxu0
        %v2913 = vsel %vm1192, %v2850, 0
        %v2916 = vsel %vm1192, %v2854, 0
        %2918 = vmatpush.bf16.xpose.msra.mxu0 0
        %2919 = vmatpush.bf16.xpose.msra.mxu0 0
        %2920 = vmatpush.bf16.xpose.msra.mxu0 0
        %2921 = vmatpush.bf16.xpose.msra.mxu0 0
        %2922 = vmatpush.bf16.xpose.msra.mxu0 0
        %2923 = vmatpush.bf16.xpose.msra.mxu0 0
        %2924 = vmatpush.bf16.xpose.msra.mxu0 0
        %2925 = vmatpush.bf16.xpose.msra.mxu0 %v2916
        %2926 = vmatmul.bf16.gmra.mxu0 %v2913
        %v2927 = vpop.f32.mrf.mxu0
        %v2928 = vadd.f32 %v823, %v2927
        %v2929 = vpop.f32.mrf.mxu0
        %2930 = vdwg.mxu0
        %v2931 = vsel %vm1192, %v2871, -inf
        %2932 = vmax.xlane.f32.xlu0 %v2931
        %v2933 = vpop.xlane.xlu0 %2932
        %v2934 = vsel %vm1192, %v2890, -inf
        %2935 = vmax.xlane.f32.xlu0 %v2934
        %v2936 = vpop.xlane.xlu0 %2935
        %v2937 = vsel %vm1192, %v2909, -inf
        %2938 = vmax.xlane.f32.xlu0 %v2937
        %v2939 = vpop.xlane.xlu0 %2938
        %v2940 = vsel %vm1192, %v2928, -inf
        %2941 = vmax.xlane.f32.xlu0 %v2940
        %v2942 = vpop.xlane.xlu0 %2941
        %v2943 = vsub.f32 %v2871, %v2933
        %v2944 = vsub.f32 %v2890, %v2936
        %v2945 = vsub.f32 %v2909, %v2939
        %v2946 = vsub.f32 %v2928, %v2942
        %v2947 = vmul.f32 %v2943, 1.442695
        %v2948 = vpow.pop %v2947
        %v2949 = vmul.f32 %v2944, 1.442695
        %v2950 = vpow.pop %v2949
        %v2951 = vmul.f32 %v2945, 1.442695
        %v2952 = vpow.pop %v2951
        %v2953 = vmul.f32 %v2946, 1.442695
        %v2954 = vpow.pop %v2953
        %v2955 = vsel %vm1192, %v2948, 0.0
        %2956 = vadd.xlane.f32.xlu0 %v2955
        %v2957 = vpop.xlane.xlu0 %2956
        %v2958 = vsel %vm1192, %v2950, 0.0
        %2959 = vadd.xlane.f32.xlu0 %v2958
        %v2960 = vpop.xlane.xlu0 %2959
        %v2961 = vsel %vm1192, %v2952, 0.0
        %2962 = vadd.xlane.f32.xlu0 %v2961
        %v2963 = vpop.xlane.xlu0 %2962
        %v2964 = vsel %vm1192, %v2954, 0.0
        %2965 = vadd.xlane.f32.xlu0 %v2964
        %v2966 = vpop.xlane.xlu0 %2965
        %v2967 = vrcp.pop %v2957
        %v2968 = vmul.f32 %v2957, %v2967
        %v2969 = vsub.f32 1.0, %v2968
        %v2970 = vmul.f32 %v2967, %v2969
        %v2971 = vadd.f32 %v2967, %v2970
        %vm2972 = vweird.f32 %v2957
        %vm2973 = vweird.f32 %v2967
        %vm2974 = vmor %vm2972, %vm2973
        %v2975 = vsel %vm2974, %v2967, %v2971
        %v2976 = vand.u32 2147483647, %v2957
        %vm2977 = vcmp.eq.f32.partialorder %v2976, 8.507059e+37
        %v2978 = vand.u32 %v2957, 2147483648
        %v2979 = vor.u32 1.1754944e-38, %v2978
        %v2980 = vsel %vm2977, %v2979, %v2975
        %v2981 = vmul.f32 %v2948, %v2980
        %v2982 = vrcp.pop %v2960
        %v2983 = vmul.f32 %v2960, %v2982
        %v2984 = vsub.f32 1.0, %v2983
        %v2985 = vmul.f32 %v2982, %v2984
        %v2986 = vadd.f32 %v2982, %v2985
        %vm2987 = vweird.f32 %v2960
        %vm2988 = vweird.f32 %v2982
        %vm2989 = vmor %vm2987, %vm2988
        %v2990 = vsel %vm2989, %v2982, %v2986
        %v2991 = vand.u32 2147483647, %v2960
        %vm2992 = vcmp.eq.f32.partialorder %v2991, 8.507059e+37
        %v2993 = vand.u32 %v2960, 2147483648
        %v2994 = vor.u32 1.1754944e-38, %v2993
        %v2995 = vsel %vm2992, %v2994, %v2990
        %v2996 = vmul.f32 %v2950, %v2995
        %v2997 = vrcp.pop %v2963
        %v2998 = vmul.f32 %v2963, %v2997
        %v2999 = vsub.f32 1.0, %v2998
        %v3000 = vmul.f32 %v2997, %v2999
        %v3001 = vadd.f32 %v2997, %v3000
        %vm3002 = vweird.f32 %v2963
        %vm3003 = vweird.f32 %v2997
        %vm3004 = vmor %vm3002, %vm3003
        %v3005 = vsel %vm3004, %v2997, %v3001
        %v3006 = vand.u32 2147483647, %v2963
        %vm3007 = vcmp.eq.f32.partialorder %v3006, 8.507059e+37
        %v3008 = vand.u32 %v2963, 2147483648
        %v3009 = vor.u32 1.1754944e-38, %v3008
        %v3010 = vsel %vm3007, %v3009, %v3005
        %v3011 = vmul.f32 %v2952, %v3010
        %v3012 = vrcp.pop %v2966
        %v3013 = vmul.f32 %v2966, %v3012
        %v3014 = vsub.f32 1.0, %v3013
        %v3015 = vmul.f32 %v3012, %v3014
        %v3016 = vadd.f32 %v3012, %v3015
        %vm3017 = vweird.f32 %v2966
        %vm3018 = vweird.f32 %v3012
        %vm3019 = vmor %vm3017, %vm3018
        %v3020 = vsel %vm3019, %v3012, %v3016
        %v3021 = vand.u32 2147483647, %v2966
        %vm3022 = vcmp.eq.f32.partialorder %v3021, 8.507059e+37
        %v3023 = vand.u32 %v2966, 2147483648
        %v3024 = vor.u32 1.1754944e-38, %v3023
        %v3025 = vsel %vm3022, %v3024, %v3020
        %v3026 = vmul.f32 %v2954, %v3025
        %v3027 = vpack.c.bf16 %v2981, %v2981
        %v3028 = vpack.c.bf16 %v2996, %v2996
        %v3029 = vpack.c.bf16 %v3011, %v3011
        %v3030 = vpack.c.bf16 %v3026, %v3026
        %v3031 = vpack.c.bf16 %v2769, %v2769
        %v3032 = vpack.c.bf16 %v2794, %v2794
        %v3033 = vpack.c.bf16 %v2819, %v2819
        %v3034 = vpack.c.bf16 %v2844, %v2844
        %v3036 = vsel %vm1192, %v3027, 0
        %v3039 = vsel %vm1376, %v3031, 0
        %3041 = vmatpush.bf16.msra.mxu0 0
        %3042 = vmatpush.bf16.msra.mxu0 0
        %3043 = vmatpush.bf16.msra.mxu0 0
        %3044 = vmatpush.bf16.msra.mxu0 0
        %3045 = vmatpush.bf16.msra.mxu0 0
        %3046 = vmatpush.bf16.msra.mxu0 0
        %3047 = vmatpush.bf16.msra.mxu0 0
        %3048 = vmatpush.bf16.msra.mxu0 %v3039
        %3049 = vmatmul.bf16.gmra.mxu0 %v3036
        %v3050 = vpop.f32.mrf.mxu0
        %v3051 = vadd.f32 0.0, %v3050
        %v3052 = vpop.f32.mrf.mxu0
        %3053 = vdwg.mxu0
        %v3055 = vsel %vm1192, %v3028, 0
        %v3058 = vsel %vm1376, %v3032, 0
        %3060 = vmatpush.bf16.msra.mxu0 0
        %3061 = vmatpush.bf16.msra.mxu0 0
        %3062 = vmatpush.bf16.msra.mxu0 0
        %3063 = vmatpush.bf16.msra.mxu0 0
        %3064 = vmatpush.bf16.msra.mxu0 0
        %3065 = vmatpush.bf16.msra.mxu0 0
        %3066 = vmatpush.bf16.msra.mxu0 0
        %3067 = vmatpush.bf16.msra.mxu0 %v3058
        %3068 = vmatmul.bf16.gmra.mxu0 %v3055
        %v3069 = vpop.f32.mrf.mxu0
        %v3070 = vadd.f32 0.0, %v3069
        %v3071 = vpop.f32.mrf.mxu0
        %3072 = vdwg.mxu0
        %v3074 = vsel %vm1192, %v3029, 0
        %v3077 = vsel %vm1376, %v3033, 0
        %3079 = vmatpush.bf16.msra.mxu0 0
        %3080 = vmatpush.bf16.msra.mxu0 0
        %3081 = vmatpush.bf16.msra.mxu0 0
        %3082 = vmatpush.bf16.msra.mxu0 0
        %3083 = vmatpush.bf16.msra.mxu0 0
        %3084 = vmatpush.bf16.msra.mxu0 0
        %3085 = vmatpush.bf16.msra.mxu0 0
        %3086 = vmatpush.bf16.msra.mxu0 %v3077
        %3087 = vmatmul.bf16.gmra.mxu0 %v3074
        %v3088 = vpop.f32.mrf.mxu0
        %v3089 = vadd.f32 0.0, %v3088
        %v3090 = vpop.f32.mrf.mxu0
        %3091 = vdwg.mxu0
        %v3093 = vsel %vm1192, %v3030, 0
        %v3096 = vsel %vm1376, %v3034, 0
        %3098 = vmatpush.bf16.msra.mxu0 0
        %3099 = vmatpush.bf16.msra.mxu0 0
        %3100 = vmatpush.bf16.msra.mxu0 0
        %3101 = vmatpush.bf16.msra.mxu0 0
        %3102 = vmatpush.bf16.msra.mxu0 0
        %3103 = vmatpush.bf16.msra.mxu0 0
        %3104 = vmatpush.bf16.msra.mxu0 0
        %3105 = vmatpush.bf16.msra.mxu0 %v3096
        %3106 = vmatmul.bf16.gmra.mxu0 %v3093
        %v3107 = vpop.f32.mrf.mxu0
        %v3108 = vadd.f32 0.0, %v3107
        %v3109 = vpop.f32.mrf.mxu0
        %3110 = vdwg.mxu0
        %v3111 = vpack.c.bf16 %v3051, %v3051
        %v3112 = vpack.c.bf16 %v3070, %v3070
        %v3113 = vpack.c.bf16 %v3089, %v3089
        %v3114 = vpack.c.bf16 %v3108, %v3108
        %v3116 = vsel %vm1192, %v3111, 0
        %v3119 = vsel %vm1376, %v2538, 0
        %3121 = vmatpush.bf16.msra.mxu0 0
        %3122 = vmatpush.bf16.msra.mxu0 0
        %3123 = vmatpush.bf16.msra.mxu0 0
        %3124 = vmatpush.bf16.msra.mxu0 0
        %3125 = vmatpush.bf16.msra.mxu0 0
        %3126 = vmatpush.bf16.msra.mxu0 0
        %3127 = vmatpush.bf16.msra.mxu0 0
        %3128 = vmatpush.bf16.msra.mxu0 %v3119
        %3129 = vmatmul.bf16.gmra.mxu0 %v3116
        %v3130 = vpop.f32.mrf.mxu0
        %v3131 = vadd.f32 0.0, %v3130
        %v3132 = vpop.f32.mrf.mxu0
        %3133 = vdwg.mxu0
        %v3135 = vsel %vm1192, %v3112, 0
        %v3138 = vsel %vm1376, %v2539, 0
        %3140 = vmatpush.bf16.msra.mxu0 0
        %3141 = vmatpush.bf16.msra.mxu0 0
        %3142 = vmatpush.bf16.msra.mxu0 0
        %3143 = vmatpush.bf16.msra.mxu0 0
        %3144 = vmatpush.bf16.msra.mxu0 0
        %3145 = vmatpush.bf16.msra.mxu0 0
        %3146 = vmatpush.bf16.msra.mxu0 0
        %3147 = vmatpush.bf16.msra.mxu0 %v3138
        %3148 = vmatmul.bf16.gmra.mxu0 %v3135
        %v3149 = vpop.f32.mrf.mxu0
        %v3150 = vadd.f32 0.0, %v3149
        %v3151 = vpop.f32.mrf.mxu0
        %3152 = vdwg.mxu0
        %v3154 = vsel %vm1192, %v3113, 0
        %v3157 = vsel %vm1376, %v2540, 0
        %3159 = vmatpush.bf16.msra.mxu0 0
        %3160 = vmatpush.bf16.msra.mxu0 0
        %3161 = vmatpush.bf16.msra.mxu0 0
        %3162 = vmatpush.bf16.msra.mxu0 0
        %3163 = vmatpush.bf16.msra.mxu0 0
        %3164 = vmatpush.bf16.msra.mxu0 0
        %3165 = vmatpush.bf16.msra.mxu0 0
        %3166 = vmatpush.bf16.msra.mxu0 %v3157
        %3167 = vmatmul.bf16.gmra.mxu0 %v3154
        %v3168 = vpop.f32.mrf.mxu0
        %v3169 = vadd.f32 0.0, %v3168
        %v3170 = vpop.f32.mrf.mxu0
        %3171 = vdwg.mxu0
        %v3173 = vsel %vm1192, %v3114, 0
        %v3176 = vsel %vm1376, %v2541, 0
        %3178 = vmatpush.bf16.msra.mxu0 0
        %3179 = vmatpush.bf16.msra.mxu0 0
        %3180 = vmatpush.bf16.msra.mxu0 0
        %3181 = vmatpush.bf16.msra.mxu0 0
        %3182 = vmatpush.bf16.msra.mxu0 0
        %3183 = vmatpush.bf16.msra.mxu0 0
        %3184 = vmatpush.bf16.msra.mxu0 0
        %3185 = vmatpush.bf16.msra.mxu0 %v3176
        %3186 = vmatmul.bf16.gmra.mxu0 %v3173
        %v3187 = vpop.f32.mrf.mxu0
        %v3188 = vadd.f32 0.0, %v3187
        %v3189 = vpop.f32.mrf.mxu0
        %3190 = vdwg.mxu0
        %v3191 = vsel %vm892, %v3131, 0.0
        %v3192 = vsel %vm892, %v3150, 0.0
        %v3193 = vadd.f32 %v3191, %v3192
        %v3194 = vsel %vm892, %v3169, 0.0
        %v3195 = vadd.f32 %v3193, %v3194
        %v3196 = vsel %vm892, %v3188, 0.0
        %v3197 = vadd.f32 %v3195, %v3196
        %v3199 = vperm.slane %v2543, 0
        %v3201 = vadd.f32 %v3197, %v3199
        %v3202 = vadd.f32 %v3201, %v2484
        %s3203 = scalar_lea.vmem %s9, 1
        %v3204 = vld [vmem:[%s3203] sm:$0x1]
        %s3205 = scalar_lea.vmem %s10, 1
        %v3206 = vld [vmem:[%s3205] sm:$0x1]
        %v3207 = vsel %vm892, %v3202, 0.0
        %3208 = vadd.xlane.f32.xlu0 %v3207
        %v3209 = vpop.xlane.xlu0 %3208
        %v3210 = vmul.f32 %v3209, %v1553
        %v3211 = vsub.f32 %v3202, %v3210
        %v3212 = vmul.f32 %v3211, %v3211
        %v3213 = vsel %vm892, %v3212, 0.0
        %3214 = vadd.xlane.f32.xlu0 %v3213
        %v3215 = vpop.xlane.xlu0 %3214
        %v3216 = vmul.f32 %v3215, %v1553
        %v3217 = vadd.f32 %v3216, 1e-05
        %v3218 = vrsqrt.pop %v3217
        %v3219 = vmul.f32 %v3218, %v3217
        %v3220 = vmul.f32 %v3219, %v3218
        %v3221 = vmul.f32 0.5, %v3220
        %v3222 = vsub.f32 1.5, %v3221
        %v3223 = vmul.f32 %v3218, %v3222
        %vm3224 = vweird.f32 %v3217
        %vm3225 = vweird.f32 %v3218
        %vm3226 = vmor %vm3224, %vm3225
        %v3227 = vsel %vm3226, %v3218, %v3223
        %v3228 = vmul.f32 %v3211, %v3227
        %v3230 = vperm.slane %v3204, 0
        %v3232 = vmul.f32 %v3228, %v3230
        %v3234 = vperm.slane %v3206, 0
        %v3236 = vadd.f32 %v3232, %v3234
        %s3237 = scalar_lea.vmem %s11, 64
        %v3238 = vld [vmem:[%s3237] sm:$0xf]
        %v3239 = vld [vmem:[%s3237 + $0x4] sm:$0xf]
        %v3240 = vld [vmem:[%s3237 + $0x8] sm:$0xf]
        %v3241 = vld [vmem:[%s3237 + $0xc] sm:$0xf]
        %v3242 = vld [vmem:[%s3237 + $0x10] sm:$0xf]
        %v3243 = vld [vmem:[%s3237 + $0x14] sm:$0xf]
        %v3244 = vld [vmem:[%s3237 + $0x18] sm:$0xf]
        %v3245 = vld [vmem:[%s3237 + $0x1c] sm:$0xf]
        %v3246 = vld [vmem:[%s3237 + $0x20] sm:$0xf]
        %v3247 = vld [vmem:[%s3237 + $0x24] sm:$0xf]
        %v3248 = vld [vmem:[%s3237 + $0x28] sm:$0xf]
        %v3249 = vld [vmem:[%s3237 + $0x2c] sm:$0xf]
        %v3250 = vld [vmem:[%s3237 + $0x30] sm:$0xf]
        %v3251 = vld [vmem:[%s3237 + $0x34] sm:$0xf]
        %v3252 = vld [vmem:[%s3237 + $0x38] sm:$0xf]
        %v3253 = vld [vmem:[%s3237 + $0x3c] sm:$0xf]
        %s3254 = scalar_lea.vmem %s12, 64
        %v3255 = vld [vmem:[%s3254] sm:$0xf]
        %v3256 = vld [vmem:[%s3254 + $0x4] sm:$0xf]
        %v3257 = vld [vmem:[%s3254 + $0x8] sm:$0xf]
        %v3258 = vld [vmem:[%s3254 + $0xc] sm:$0xf]
        %v3259 = vld [vmem:[%s3254 + $0x10] sm:$0xf]
        %v3260 = vld [vmem:[%s3254 + $0x14] sm:$0xf]
        %v3261 = vld [vmem:[%s3254 + $0x18] sm:$0xf]
        %v3262 = vld [vmem:[%s3254 + $0x1c] sm:$0xf]
        %v3263 = vld [vmem:[%s3254 + $0x20] sm:$0xf]
        %v3264 = vld [vmem:[%s3254 + $0x24] sm:$0xf]
        %v3265 = vld [vmem:[%s3254 + $0x28] sm:$0xf]
        %v3266 = vld [vmem:[%s3254 + $0x2c] sm:$0xf]
        %v3267 = vld [vmem:[%s3254 + $0x30] sm:$0xf]
        %v3268 = vld [vmem:[%s3254 + $0x34] sm:$0xf]
        %v3269 = vld [vmem:[%s3254 + $0x38] sm:$0xf]
        %v3270 = vld [vmem:[%s3254 + $0x3c] sm:$0xf]
        %s3271 = scalar_lea.vmem %s13, 64
        %v3272 = vld [vmem:[%s3271] sm:$0xf]
        %v3273 = vld [vmem:[%s3271 + $0x4] sm:$0xf]
        %v3274 = vld [vmem:[%s3271 + $0x8] sm:$0xf]
        %v3275 = vld [vmem:[%s3271 + $0xc] sm:$0xf]
        %v3276 = vld [vmem:[%s3271 + $0x10] sm:$0xf]
        %v3277 = vld [vmem:[%s3271 + $0x14] sm:$0xf]
        %v3278 = vld [vmem:[%s3271 + $0x18] sm:$0xf]
        %v3279 = vld [vmem:[%s3271 + $0x1c] sm:$0xf]
        %v3280 = vld [vmem:[%s3271 + $0x20] sm:$0xf]
        %v3281 = vld [vmem:[%s3271 + $0x24] sm:$0xf]
        %v3282 = vld [vmem:[%s3271 + $0x28] sm:$0xf]
        %v3283 = vld [vmem:[%s3271 + $0x2c] sm:$0xf]
        %v3284 = vld [vmem:[%s3271 + $0x30] sm:$0xf]
        %v3285 = vld [vmem:[%s3271 + $0x34] sm:$0xf]
        %v3286 = vld [vmem:[%s3271 + $0x38] sm:$0xf]
        %v3287 = vld [vmem:[%s3271 + $0x3c] sm:$0xf]
        %s3288 = scalar_lea.vmem %s14, 16
        %v3289 = vld [vmem:[%s3288] sm:$0xf]
        %v3290 = vld [vmem:[%s3288 + $0x4] sm:$0xf]
        %v3291 = vld [vmem:[%s3288 + $0x8] sm:$0xf]
        %v3292 = vld [vmem:[%s3288 + $0xc] sm:$0xf]
        %s3293 = scalar_lea.vmem %s15, 1
        %v3294 = vld [vmem:[%s3293] sm:$0x1]
        %v3295 = vpack.c.bf16 %v3236, %v3236
        %v3300 = vunpack.c.l.b16 %v3238
        %v3301 = vunpack.c.l.b16 %v3239
        %v3302 = vunpack.c.l.b16 %v3240
        %v3303 = vunpack.c.l.b16 %v3241
        %v3304 = vpack.c.b16 %v3301, %v3300
        %v3305 = vpack.c.b16 %v3303, %v3302
        %v3309 = vsel %vm892, %v3295, 0
        %3311 = vmatpush.bf16.msra.mxu0 0
        %3312 = vmatpush.bf16.msra.mxu0 0
        %3313 = vmatpush.bf16.msra.mxu0 0
        %3314 = vmatpush.bf16.msra.mxu0 0
        %3315 = vmatpush.bf16.msra.mxu0 0
        %3316 = vmatpush.bf16.msra.mxu0 0
        %3317 = vmatpush.bf16.msra.mxu0 %v3305
        %3318 = vmatpush.bf16.msra.mxu0 %v3304
        %3319 = vmatmul.bf16.gmra.mxu0 %v3309
        %v3320 = vpop.f32.mrf.mxu0
        %v3321 = vadd.f32 0.0, %v3320
        %v3322 = vpop.f32.mrf.mxu0
        %3323 = vdwg.mxu0
        %v3328 = vunpack.c.l.b16 %v3242
        %v3329 = vunpack.c.l.b16 %v3243
        %v3330 = vunpack.c.l.b16 %v3244
        %v3331 = vunpack.c.l.b16 %v3245
        %v3332 = vpack.c.b16 %v3329, %v3328
        %v3333 = vpack.c.b16 %v3331, %v3330
        %3336 = vmatpush.bf16.msra.mxu0 0
        %3337 = vmatpush.bf16.msra.mxu0 0
        %3338 = vmatpush.bf16.msra.mxu0 0
        %3339 = vmatpush.bf16.msra.mxu0 0
        %3340 = vmatpush.bf16.msra.mxu0 0
        %3341 = vmatpush.bf16.msra.mxu0 0
        %3342 = vmatpush.bf16.msra.mxu0 %v3333
        %3343 = vmatpush.bf16.msra.mxu0 %v3332
        %3344 = vmatmul.bf16.gmra.mxu0 %v3309
        %v3345 = vpop.f32.mrf.mxu0
        %v3346 = vadd.f32 0.0, %v3345
        %v3347 = vpop.f32.mrf.mxu0
        %3348 = vdwg.mxu0
        %v3353 = vunpack.c.l.b16 %v3246
        %v3354 = vunpack.c.l.b16 %v3247
        %v3355 = vunpack.c.l.b16 %v3248
        %v3356 = vunpack.c.l.b16 %v3249
        %v3357 = vpack.c.b16 %v3354, %v3353
        %v3358 = vpack.c.b16 %v3356, %v3355
        %3361 = vmatpush.bf16.msra.mxu0 0
        %3362 = vmatpush.bf16.msra.mxu0 0
        %3363 = vmatpush.bf16.msra.mxu0 0
        %3364 = vmatpush.bf16.msra.mxu0 0
        %3365 = vmatpush.bf16.msra.mxu0 0
        %3366 = vmatpush.bf16.msra.mxu0 0
        %3367 = vmatpush.bf16.msra.mxu0 %v3358
        %3368 = vmatpush.bf16.msra.mxu0 %v3357
        %3369 = vmatmul.bf16.gmra.mxu0 %v3309
        %v3370 = vpop.f32.mrf.mxu0
        %v3371 = vadd.f32 0.0, %v3370
        %v3372 = vpop.f32.mrf.mxu0
        %3373 = vdwg.mxu0
        %v3378 = vunpack.c.l.b16 %v3250
        %v3379 = vunpack.c.l.b16 %v3251
        %v3380 = vunpack.c.l.b16 %v3252
        %v3381 = vunpack.c.l.b16 %v3253
        %v3382 = vpack.c.b16 %v3379, %v3378
        %v3383 = vpack.c.b16 %v3381, %v3380
        %3386 = vmatpush.bf16.msra.mxu0 0
        %3387 = vmatpush.bf16.msra.mxu0 0
        %3388 = vmatpush.bf16.msra.mxu0 0
        %3389 = vmatpush.bf16.msra.mxu0 0
        %3390 = vmatpush.bf16.msra.mxu0 0
        %3391 = vmatpush.bf16.msra.mxu0 0
        %3392 = vmatpush.bf16.msra.mxu0 %v3383
        %3393 = vmatpush.bf16.msra.mxu0 %v3382
        %3394 = vmatmul.bf16.gmra.mxu0 %v3309
        %v3395 = vpop.f32.mrf.mxu0
        %v3396 = vadd.f32 0.0, %v3395
        %v3397 = vpop.f32.mrf.mxu0
        %3398 = vdwg.mxu0
        %v3403 = vunpack.c.l.b16 %v3255
        %v3404 = vunpack.c.l.b16 %v3256
        %v3405 = vunpack.c.l.b16 %v3257
        %v3406 = vunpack.c.l.b16 %v3258
        %v3407 = vpack.c.b16 %v3404, %v3403
        %v3408 = vpack.c.b16 %v3406, %v3405
        %3411 = vmatpush.bf16.msra.mxu0 0
        %3412 = vmatpush.bf16.msra.mxu0 0
        %3413 = vmatpush.bf16.msra.mxu0 0
        %3414 = vmatpush.bf16.msra.mxu0 0
        %3415 = vmatpush.bf16.msra.mxu0 0
        %3416 = vmatpush.bf16.msra.mxu0 0
        %3417 = vmatpush.bf16.msra.mxu0 %v3408
        %3418 = vmatpush.bf16.msra.mxu0 %v3407
        %3419 = vmatmul.bf16.gmra.mxu0 %v1751
        %v3420 = vpop.f32.mrf.mxu0
        %v3421 = vadd.f32 0.0, %v3420
        %v3422 = vpop.f32.mrf.mxu0
        %3423 = vdwg.mxu0
        %v3428 = vunpack.c.l.b16 %v3259
        %v3429 = vunpack.c.l.b16 %v3260
        %v3430 = vunpack.c.l.b16 %v3261
        %v3431 = vunpack.c.l.b16 %v3262
        %v3432 = vpack.c.b16 %v3429, %v3428
        %v3433 = vpack.c.b16 %v3431, %v3430
        %3436 = vmatpush.bf16.msra.mxu0 0
        %3437 = vmatpush.bf16.msra.mxu0 0
        %3438 = vmatpush.bf16.msra.mxu0 0
        %3439 = vmatpush.bf16.msra.mxu0 0
        %3440 = vmatpush.bf16.msra.mxu0 0
        %3441 = vmatpush.bf16.msra.mxu0 0
        %3442 = vmatpush.bf16.msra.mxu0 %v3433
        %3443 = vmatpush.bf16.msra.mxu0 %v3432
        %3444 = vmatmul.bf16.gmra.mxu0 %v1751
        %v3445 = vpop.f32.mrf.mxu0
        %v3446 = vadd.f32 0.0, %v3445
        %v3447 = vpop.f32.mrf.mxu0
        %3448 = vdwg.mxu0
        %v3453 = vunpack.c.l.b16 %v3263
        %v3454 = vunpack.c.l.b16 %v3264
        %v3455 = vunpack.c.l.b16 %v3265
        %v3456 = vunpack.c.l.b16 %v3266
        %v3457 = vpack.c.b16 %v3454, %v3453
        %v3458 = vpack.c.b16 %v3456, %v3455
        %3461 = vmatpush.bf16.msra.mxu0 0
        %3462 = vmatpush.bf16.msra.mxu0 0
        %3463 = vmatpush.bf16.msra.mxu0 0
        %3464 = vmatpush.bf16.msra.mxu0 0
        %3465 = vmatpush.bf16.msra.mxu0 0
        %3466 = vmatpush.bf16.msra.mxu0 0
        %3467 = vmatpush.bf16.msra.mxu0 %v3458
        %3468 = vmatpush.bf16.msra.mxu0 %v3457
        %3469 = vmatmul.bf16.gmra.mxu0 %v1751
        %v3470 = vpop.f32.mrf.mxu0
        %v3471 = vadd.f32 0.0, %v3470
        %v3472 = vpop.f32.mrf.mxu0
        %3473 = vdwg.mxu0
        %v3478 = vunpack.c.l.b16 %v3267
        %v3479 = vunpack.c.l.b16 %v3268
        %v3480 = vunpack.c.l.b16 %v3269
        %v3481 = vunpack.c.l.b16 %v3270
        %v3482 = vpack.c.b16 %v3479, %v3478
        %v3483 = vpack.c.b16 %v3481, %v3480
        %3486 = vmatpush.bf16.msra.mxu0 0
        %3487 = vmatpush.bf16.msra.mxu0 0
        %3488 = vmatpush.bf16.msra.mxu0 0
        %3489 = vmatpush.bf16.msra.mxu0 0
        %3490 = vmatpush.bf16.msra.mxu0 0
        %3491 = vmatpush.bf16.msra.mxu0 0
        %3492 = vmatpush.bf16.msra.mxu0 %v3483
        %3493 = vmatpush.bf16.msra.mxu0 %v3482
        %3494 = vmatmul.bf16.gmra.mxu0 %v1751
        %v3495 = vpop.f32.mrf.mxu0
        %v3496 = vadd.f32 0.0, %v3495
        %v3497 = vpop.f32.mrf.mxu0
        %3498 = vdwg.mxu0
        %v3503 = vunpack.c.l.b16 %v3272
        %v3504 = vunpack.c.l.b16 %v3273
        %v3505 = vunpack.c.l.b16 %v3274
        %v3506 = vunpack.c.l.b16 %v3275
        %v3507 = vpack.c.b16 %v3504, %v3503
        %v3508 = vpack.c.b16 %v3506, %v3505
        %3511 = vmatpush.bf16.msra.mxu0 0
        %3512 = vmatpush.bf16.msra.mxu0 0
        %3513 = vmatpush.bf16.msra.mxu0 0
        %3514 = vmatpush.bf16.msra.mxu0 0
        %3515 = vmatpush.bf16.msra.mxu0 0
        %3516 = vmatpush.bf16.msra.mxu0 0
        %3517 = vmatpush.bf16.msra.mxu0 %v3508
        %3518 = vmatpush.bf16.msra.mxu0 %v3507
        %3519 = vmatmul.bf16.gmra.mxu0 %v1751
        %v3520 = vpop.f32.mrf.mxu0
        %v3521 = vadd.f32 0.0, %v3520
        %v3522 = vpop.f32.mrf.mxu0
        %3523 = vdwg.mxu0
        %v3528 = vunpack.c.l.b16 %v3276
        %v3529 = vunpack.c.l.b16 %v3277
        %v3530 = vunpack.c.l.b16 %v3278
        %v3531 = vunpack.c.l.b16 %v3279
        %v3532 = vpack.c.b16 %v3529, %v3528
        %v3533 = vpack.c.b16 %v3531, %v3530
        %3536 = vmatpush.bf16.msra.mxu0 0
        %3537 = vmatpush.bf16.msra.mxu0 0
        %3538 = vmatpush.bf16.msra.mxu0 0
        %3539 = vmatpush.bf16.msra.mxu0 0
        %3540 = vmatpush.bf16.msra.mxu0 0
        %3541 = vmatpush.bf16.msra.mxu0 0
        %3542 = vmatpush.bf16.msra.mxu0 %v3533
        %3543 = vmatpush.bf16.msra.mxu0 %v3532
        %3544 = vmatmul.bf16.gmra.mxu0 %v1751
        %v3545 = vpop.f32.mrf.mxu0
        %v3546 = vadd.f32 0.0, %v3545
        %v3547 = vpop.f32.mrf.mxu0
        %3548 = vdwg.mxu0
        %v3553 = vunpack.c.l.b16 %v3280
        %v3554 = vunpack.c.l.b16 %v3281
        %v3555 = vunpack.c.l.b16 %v3282
        %v3556 = vunpack.c.l.b16 %v3283
        %v3557 = vpack.c.b16 %v3554, %v3553
        %v3558 = vpack.c.b16 %v3556, %v3555
        %3561 = vmatpush.bf16.msra.mxu0 0
        %3562 = vmatpush.bf16.msra.mxu0 0
        %3563 = vmatpush.bf16.msra.mxu0 0
        %3564 = vmatpush.bf16.msra.mxu0 0
        %3565 = vmatpush.bf16.msra.mxu0 0
        %3566 = vmatpush.bf16.msra.mxu0 0
        %3567 = vmatpush.bf16.msra.mxu0 %v3558
        %3568 = vmatpush.bf16.msra.mxu0 %v3557
        %3569 = vmatmul.bf16.gmra.mxu0 %v1751
        %v3570 = vpop.f32.mrf.mxu0
        %v3571 = vadd.f32 0.0, %v3570
        %v3572 = vpop.f32.mrf.mxu0
        %3573 = vdwg.mxu0
        %v3578 = vunpack.c.l.b16 %v3284
        %v3579 = vunpack.c.l.b16 %v3285
        %v3580 = vunpack.c.l.b16 %v3286
        %v3581 = vunpack.c.l.b16 %v3287
        %v3582 = vpack.c.b16 %v3579, %v3578
        %v3583 = vpack.c.b16 %v3581, %v3580
        %3586 = vmatpush.bf16.msra.mxu0 0
        %3587 = vmatpush.bf16.msra.mxu0 0
        %3588 = vmatpush.bf16.msra.mxu0 0
        %3589 = vmatpush.bf16.msra.mxu0 0
        %3590 = vmatpush.bf16.msra.mxu0 0
        %3591 = vmatpush.bf16.msra.mxu0 0
        %3592 = vmatpush.bf16.msra.mxu0 %v3583
        %3593 = vmatpush.bf16.msra.mxu0 %v3582
        %3594 = vmatmul.bf16.gmra.mxu0 %v1751
        %v3595 = vpop.f32.mrf.mxu0
        %v3596 = vadd.f32 0.0, %v3595
        %v3597 = vpop.f32.mrf.mxu0
        %3598 = vdwg.mxu0
        %v3599 = vpack.c.bf16 %v3321, %v3321
        %v3600 = vpack.c.bf16 %v3346, %v3346
        %v3601 = vpack.c.bf16 %v3371, %v3371
        %v3602 = vpack.c.bf16 %v3396, %v3396
        %v3603 = vpack.c.bf16 %v3421, %v3421
        %v3604 = vpack.c.bf16 %v3446, %v3446
        %v3605 = vpack.c.bf16 %v3471, %v3471
        %v3606 = vpack.c.bf16 %v3496, %v3496
        %v3608 = vsel %vm1192, %v3599, 0
        %v3611 = vsel %vm1192, %v3603, 0
        %3613 = vmatpush.bf16.xpose.msra.mxu0 0
        %3614 = vmatpush.bf16.xpose.msra.mxu0 0
        %3615 = vmatpush.bf16.xpose.msra.mxu0 0
        %3616 = vmatpush.bf16.xpose.msra.mxu0 0
        %3617 = vmatpush.bf16.xpose.msra.mxu0 0
        %3618 = vmatpush.bf16.xpose.msra.mxu0 0
        %3619 = vmatpush.bf16.xpose.msra.mxu0 0
        %3620 = vmatpush.bf16.xpose.msra.mxu0 %v3611
        %3621 = vmatmul.bf16.gmra.mxu0 %v3608
        %v3622 = vpop.f32.mrf.mxu0
        %v3623 = vadd.f32 %v1950, %v3622
        %v3624 = vpop.f32.mrf.mxu0
        %3625 = vdwg.mxu0
        %v3627 = vsel %vm1192, %v3600, 0
        %v3630 = vsel %vm1192, %v3604, 0
        %3632 = vmatpush.bf16.xpose.msra.mxu0 0
        %3633 = vmatpush.bf16.xpose.msra.mxu0 0
        %3634 = vmatpush.bf16.xpose.msra.mxu0 0
        %3635 = vmatpush.bf16.xpose.msra.mxu0 0
        %3636 = vmatpush.bf16.xpose.msra.mxu0 0
        %3637 = vmatpush.bf16.xpose.msra.mxu0 0
        %3638 = vmatpush.bf16.xpose.msra.mxu0 0
        %3639 = vmatpush.bf16.xpose.msra.mxu0 %v3630
        %3640 = vmatmul.bf16.gmra.mxu0 %v3627
        %v3641 = vpop.f32.mrf.mxu0
        %v3642 = vadd.f32 %v1950, %v3641
        %v3643 = vpop.f32.mrf.mxu0
        %3644 = vdwg.mxu0
        %v3646 = vsel %vm1192, %v3601, 0
        %v3649 = vsel %vm1192, %v3605, 0
        %3651 = vmatpush.bf16.xpose.msra.mxu0 0
        %3652 = vmatpush.bf16.xpose.msra.mxu0 0
        %3653 = vmatpush.bf16.xpose.msra.mxu0 0
        %3654 = vmatpush.bf16.xpose.msra.mxu0 0
        %3655 = vmatpush.bf16.xpose.msra.mxu0 0
        %3656 = vmatpush.bf16.xpose.msra.mxu0 0
        %3657 = vmatpush.bf16.xpose.msra.mxu0 0
        %3658 = vmatpush.bf16.xpose.msra.mxu0 %v3649
        %3659 = vmatmul.bf16.gmra.mxu0 %v3646
        %v3660 = vpop.f32.mrf.mxu0
        %v3661 = vadd.f32 %v1950, %v3660
        %v3662 = vpop.f32.mrf.mxu0
        %3663 = vdwg.mxu0
        %v3665 = vsel %vm1192, %v3602, 0
        %v3668 = vsel %vm1192, %v3606, 0
        %3670 = vmatpush.bf16.xpose.msra.mxu0 0
        %3671 = vmatpush.bf16.xpose.msra.mxu0 0
        %3672 = vmatpush.bf16.xpose.msra.mxu0 0
        %3673 = vmatpush.bf16.xpose.msra.mxu0 0
        %3674 = vmatpush.bf16.xpose.msra.mxu0 0
        %3675 = vmatpush.bf16.xpose.msra.mxu0 0
        %3676 = vmatpush.bf16.xpose.msra.mxu0 0
        %3677 = vmatpush.bf16.xpose.msra.mxu0 %v3668
        %3678 = vmatmul.bf16.gmra.mxu0 %v3665
        %v3679 = vpop.f32.mrf.mxu0
        %v3680 = vadd.f32 %v1950, %v3679
        %v3681 = vpop.f32.mrf.mxu0
        %3682 = vdwg.mxu0
        %v3683 = vsel %vm1192, %v3623, -inf
        %3684 = vmax.xlane.f32.xlu0 %v3683
        %v3685 = vpop.xlane.xlu0 %3684
        %v3686 = vsel %vm1192, %v3642, -inf
        %3687 = vmax.xlane.f32.xlu0 %v3686
        %v3688 = vpop.xlane.xlu0 %3687
        %v3689 = vsel %vm1192, %v3661, -inf
        %3690 = vmax.xlane.f32.xlu0 %v3689
        %v3691 = vpop.xlane.xlu0 %3690
        %v3692 = vsel %vm1192, %v3680, -inf
        %3693 = vmax.xlane.f32.xlu0 %v3692
        %v3694 = vpop.xlane.xlu0 %3693
        %v3695 = vsub.f32 %v3623, %v3685
        %v3696 = vsub.f32 %v3642, %v3688
        %v3697 = vsub.f32 %v3661, %v3691
        %v3698 = vsub.f32 %v3680, %v3694
        %v3699 = vmul.f32 %v3695, 1.442695
        %v3700 = vpow.pop %v3699
        %v3701 = vmul.f32 %v3696, 1.442695
        %v3702 = vpow.pop %v3701
        %v3703 = vmul.f32 %v3697, 1.442695
        %v3704 = vpow.pop %v3703
        %v3705 = vmul.f32 %v3698, 1.442695
        %v3706 = vpow.pop %v3705
        %v3707 = vsel %vm1192, %v3700, 0.0
        %3708 = vadd.xlane.f32.xlu0 %v3707
        %v3709 = vpop.xlane.xlu0 %3708
        %v3710 = vsel %vm1192, %v3702, 0.0
        %3711 = vadd.xlane.f32.xlu0 %v3710
        %v3712 = vpop.xlane.xlu0 %3711
        %v3713 = vsel %vm1192, %v3704, 0.0
        %3714 = vadd.xlane.f32.xlu0 %v3713
        %v3715 = vpop.xlane.xlu0 %3714
        %v3716 = vsel %vm1192, %v3706, 0.0
        %3717 = vadd.xlane.f32.xlu0 %v3716
        %v3718 = vpop.xlane.xlu0 %3717
        %v3719 = vrcp.pop %v3709
        %v3720 = vmul.f32 %v3709, %v3719
        %v3721 = vsub.f32 1.0, %v3720
        %v3722 = vmul.f32 %v3719, %v3721
        %v3723 = vadd.f32 %v3719, %v3722
        %vm3724 = vweird.f32 %v3709
        %vm3725 = vweird.f32 %v3719
        %vm3726 = vmor %vm3724, %vm3725
        %v3727 = vsel %vm3726, %v3719, %v3723
        %v3728 = vand.u32 2147483647, %v3709
        %vm3729 = vcmp.eq.f32.partialorder %v3728, 8.507059e+37
        %v3730 = vand.u32 %v3709, 2147483648
        %v3731 = vor.u32 1.1754944e-38, %v3730
        %v3732 = vsel %vm3729, %v3731, %v3727
        %v3733 = vmul.f32 %v3700, %v3732
        %v3734 = vrcp.pop %v3712
        %v3735 = vmul.f32 %v3712, %v3734
        %v3736 = vsub.f32 1.0, %v3735
        %v3737 = vmul.f32 %v3734, %v3736
        %v3738 = vadd.f32 %v3734, %v3737
        %vm3739 = vweird.f32 %v3712
        %vm3740 = vweird.f32 %v3734
        %vm3741 = vmor %vm3739, %vm3740
        %v3742 = vsel %vm3741, %v3734, %v3738
        %v3743 = vand.u32 2147483647, %v3712
        %vm3744 = vcmp.eq.f32.partialorder %v3743, 8.507059e+37
        %v3745 = vand.u32 %v3712, 2147483648
        %v3746 = vor.u32 1.1754944e-38, %v3745
        %v3747 = vsel %vm3744, %v3746, %v3742
        %v3748 = vmul.f32 %v3702, %v3747
        %v3749 = vrcp.pop %v3715
        %v3750 = vmul.f32 %v3715, %v3749
        %v3751 = vsub.f32 1.0, %v3750
        %v3752 = vmul.f32 %v3749, %v3751
        %v3753 = vadd.f32 %v3749, %v3752
        %vm3754 = vweird.f32 %v3715
        %vm3755 = vweird.f32 %v3749
        %vm3756 = vmor %vm3754, %vm3755
        %v3757 = vsel %vm3756, %v3749, %v3753
        %v3758 = vand.u32 2147483647, %v3715
        %vm3759 = vcmp.eq.f32.partialorder %v3758, 8.507059e+37
        %v3760 = vand.u32 %v3715, 2147483648
        %v3761 = vor.u32 1.1754944e-38, %v3760
        %v3762 = vsel %vm3759, %v3761, %v3757
        %v3763 = vmul.f32 %v3704, %v3762
        %v3764 = vrcp.pop %v3718
        %v3765 = vmul.f32 %v3718, %v3764
        %v3766 = vsub.f32 1.0, %v3765
        %v3767 = vmul.f32 %v3764, %v3766
        %v3768 = vadd.f32 %v3764, %v3767
        %vm3769 = vweird.f32 %v3718
        %vm3770 = vweird.f32 %v3764
        %vm3771 = vmor %vm3769, %vm3770
        %v3772 = vsel %vm3771, %v3764, %v3768
        %v3773 = vand.u32 2147483647, %v3718
        %vm3774 = vcmp.eq.f32.partialorder %v3773, 8.507059e+37
        %v3775 = vand.u32 %v3718, 2147483648
        %v3776 = vor.u32 1.1754944e-38, %v3775
        %v3777 = vsel %vm3774, %v3776, %v3772
        %v3778 = vmul.f32 %v3706, %v3777
        %v3779 = vpack.c.bf16 %v3733, %v3733
        %v3780 = vpack.c.bf16 %v3748, %v3748
        %v3781 = vpack.c.bf16 %v3763, %v3763
        %v3782 = vpack.c.bf16 %v3778, %v3778
        %v3783 = vpack.c.bf16 %v3521, %v3521
        %v3784 = vpack.c.bf16 %v3546, %v3546
        %v3785 = vpack.c.bf16 %v3571, %v3571
        %v3786 = vpack.c.bf16 %v3596, %v3596
        %v3788 = vsel %vm1192, %v3779, 0
        %v3791 = vsel %vm1376, %v3783, 0
        %3793 = vmatpush.bf16.msra.mxu0 0
        %3794 = vmatpush.bf16.msra.mxu0 0
        %3795 = vmatpush.bf16.msra.mxu0 0
        %3796 = vmatpush.bf16.msra.mxu0 0
        %3797 = vmatpush.bf16.msra.mxu0 0
        %3798 = vmatpush.bf16.msra.mxu0 0
        %3799 = vmatpush.bf16.msra.mxu0 0
        %3800 = vmatpush.bf16.msra.mxu0 %v3791
        %3801 = vmatmul.bf16.gmra.mxu0 %v3788
        %v3802 = vpop.f32.mrf.mxu0
        %v3803 = vadd.f32 0.0, %v3802
        %v3804 = vpop.f32.mrf.mxu0
        %3805 = vdwg.mxu0
        %v3807 = vsel %vm1192, %v3780, 0
        %v3810 = vsel %vm1376, %v3784, 0
        %3812 = vmatpush.bf16.msra.mxu0 0
        %3813 = vmatpush.bf16.msra.mxu0 0
        %3814 = vmatpush.bf16.msra.mxu0 0
        %3815 = vmatpush.bf16.msra.mxu0 0
        %3816 = vmatpush.bf16.msra.mxu0 0
        %3817 = vmatpush.bf16.msra.mxu0 0
        %3818 = vmatpush.bf16.msra.mxu0 0
        %3819 = vmatpush.bf16.msra.mxu0 %v3810
        %3820 = vmatmul.bf16.gmra.mxu0 %v3807
        %v3821 = vpop.f32.mrf.mxu0
        %v3822 = vadd.f32 0.0, %v3821
        %v3823 = vpop.f32.mrf.mxu0
        %3824 = vdwg.mxu0
        %v3826 = vsel %vm1192, %v3781, 0
        %v3829 = vsel %vm1376, %v3785, 0
        %3831 = vmatpush.bf16.msra.mxu0 0
        %3832 = vmatpush.bf16.msra.mxu0 0
        %3833 = vmatpush.bf16.msra.mxu0 0
        %3834 = vmatpush.bf16.msra.mxu0 0
        %3835 = vmatpush.bf16.msra.mxu0 0
        %3836 = vmatpush.bf16.msra.mxu0 0
        %3837 = vmatpush.bf16.msra.mxu0 0
        %3838 = vmatpush.bf16.msra.mxu0 %v3829
        %3839 = vmatmul.bf16.gmra.mxu0 %v3826
        %v3840 = vpop.f32.mrf.mxu0
        %v3841 = vadd.f32 0.0, %v3840
        %v3842 = vpop.f32.mrf.mxu0
        %3843 = vdwg.mxu0
        %v3845 = vsel %vm1192, %v3782, 0
        %v3848 = vsel %vm1376, %v3786, 0
        %3850 = vmatpush.bf16.msra.mxu0 0
        %3851 = vmatpush.bf16.msra.mxu0 0
        %3852 = vmatpush.bf16.msra.mxu0 0
        %3853 = vmatpush.bf16.msra.mxu0 0
        %3854 = vmatpush.bf16.msra.mxu0 0
        %3855 = vmatpush.bf16.msra.mxu0 0
        %3856 = vmatpush.bf16.msra.mxu0 0
        %3857 = vmatpush.bf16.msra.mxu0 %v3848
        %3858 = vmatmul.bf16.gmra.mxu0 %v3845
        %v3859 = vpop.f32.mrf.mxu0
        %v3860 = vadd.f32 0.0, %v3859
        %v3861 = vpop.f32.mrf.mxu0
        %3862 = vdwg.mxu0
        %v3863 = vpack.c.bf16 %v3803, %v3803
        %v3864 = vpack.c.bf16 %v3822, %v3822
        %v3865 = vpack.c.bf16 %v3841, %v3841
        %v3866 = vpack.c.bf16 %v3860, %v3860
        %v3868 = vsel %vm1192, %v3863, 0
        %v3871 = vsel %vm1376, %v3289, 0
        %3873 = vmatpush.bf16.msra.mxu0 0
        %3874 = vmatpush.bf16.msra.mxu0 0
        %3875 = vmatpush.bf16.msra.mxu0 0
        %3876 = vmatpush.bf16.msra.mxu0 0
        %3877 = vmatpush.bf16.msra.mxu0 0
        %3878 = vmatpush.bf16.msra.mxu0 0
        %3879 = vmatpush.bf16.msra.mxu0 0
        %3880 = vmatpush.bf16.msra.mxu0 %v3871
        %3881 = vmatmul.bf16.gmra.mxu0 %v3868
        %v3882 = vpop.f32.mrf.mxu0
        %v3883 = vadd.f32 0.0, %v3882
        %v3884 = vpop.f32.mrf.mxu0
        %3885 = vdwg.mxu0
        %v3887 = vsel %vm1192, %v3864, 0
        %v3890 = vsel %vm1376, %v3290, 0
        %3892 = vmatpush.bf16.msra.mxu0 0
        %3893 = vmatpush.bf16.msra.mxu0 0
        %3894 = vmatpush.bf16.msra.mxu0 0
        %3895 = vmatpush.bf16.msra.mxu0 0
        %3896 = vmatpush.bf16.msra.mxu0 0
        %3897 = vmatpush.bf16.msra.mxu0 0
        %3898 = vmatpush.bf16.msra.mxu0 0
        %3899 = vmatpush.bf16.msra.mxu0 %v3890
        %3900 = vmatmul.bf16.gmra.mxu0 %v3887
        %v3901 = vpop.f32.mrf.mxu0
        %v3902 = vadd.f32 0.0, %v3901
        %v3903 = vpop.f32.mrf.mxu0
        %3904 = vdwg.mxu0
        %v3906 = vsel %vm1192, %v3865, 0
        %v3909 = vsel %vm1376, %v3291, 0
        %3911 = vmatpush.bf16.msra.mxu0 0
        %3912 = vmatpush.bf16.msra.mxu0 0
        %3913 = vmatpush.bf16.msra.mxu0 0
        %3914 = vmatpush.bf16.msra.mxu0 0
        %3915 = vmatpush.bf16.msra.mxu0 0
        %3916 = vmatpush.bf16.msra.mxu0 0
        %3917 = vmatpush.bf16.msra.mxu0 0
        %3918 = vmatpush.bf16.msra.mxu0 %v3909
        %3919 = vmatmul.bf16.gmra.mxu0 %v3906
        %v3920 = vpop.f32.mrf.mxu0
        %v3921 = vadd.f32 0.0, %v3920
        %v3922 = vpop.f32.mrf.mxu0
        %3923 = vdwg.mxu0
        %v3925 = vsel %vm1192, %v3866, 0
        %v3928 = vsel %vm1376, %v3292, 0
        %3930 = vmatpush.bf16.msra.mxu0 0
        %3931 = vmatpush.bf16.msra.mxu0 0
        %3932 = vmatpush.bf16.msra.mxu0 0
        %3933 = vmatpush.bf16.msra.mxu0 0
        %3934 = vmatpush.bf16.msra.mxu0 0
        %3935 = vmatpush.bf16.msra.mxu0 0
        %3936 = vmatpush.bf16.msra.mxu0 0
        %3937 = vmatpush.bf16.msra.mxu0 %v3928
        %3938 = vmatmul.bf16.gmra.mxu0 %v3925
        %v3939 = vpop.f32.mrf.mxu0
        %v3940 = vadd.f32 0.0, %v3939
        %v3941 = vpop.f32.mrf.mxu0
        %3942 = vdwg.mxu0
        %v3943 = vsel %vm892, %v3883, 0.0
        %v3944 = vsel %vm892, %v3902, 0.0
        %v3945 = vadd.f32 %v3943, %v3944
        %v3946 = vsel %vm892, %v3921, 0.0
        %v3947 = vadd.f32 %v3945, %v3946
        %v3948 = vsel %vm892, %v3940, 0.0
        %v3949 = vadd.f32 %v3947, %v3948
        %v3951 = vperm.slane %v3294, 0
        %v3953 = vadd.f32 %v3949, %v3951
        %v3954 = vadd.f32 %v3953, %v3236
        %s3955 = scalar_lea.vmem %s16, 1
        %v3956 = vld [vmem:[%s3955] sm:$0x1]
        %s3957 = scalar_lea.vmem %s17, 1
        %v3958 = vld [vmem:[%s3957] sm:$0x1]
        %v3959 = vsel %vm892, %v3954, 0.0
        %3960 = vadd.xlane.f32.xlu0 %v3959
        %v3961 = vpop.xlane.xlu0 %3960
        %v3962 = vmul.f32 %v3961, %v1553
        %v3963 = vsub.f32 %v3954, %v3962
        %v3964 = vmul.f32 %v3963, %v3963
        %v3965 = vsel %vm892, %v3964, 0.0
        %3966 = vadd.xlane.f32.xlu0 %v3965
        %v3967 = vpop.xlane.xlu0 %3966
        %v3968 = vmul.f32 %v3967, %v1553
        %v3969 = vadd.f32 %v3968, 1e-05
        %v3970 = vrsqrt.pop %v3969
        %v3971 = vmul.f32 %v3970, %v3969
        %v3972 = vmul.f32 %v3971, %v3970
        %v3973 = vmul.f32 0.5, %v3972
        %v3974 = vsub.f32 1.5, %v3973
        %v3975 = vmul.f32 %v3970, %v3974
        %vm3976 = vweird.f32 %v3969
        %vm3977 = vweird.f32 %v3970
        %vm3978 = vmor %vm3976, %vm3977
        %v3979 = vsel %vm3978, %v3970, %v3975
        %v3980 = vmul.f32 %v3963, %v3979
        %v3982 = vperm.slane %v3956, 0
        %v3984 = vmul.f32 %v3980, %v3982
        %v3986 = vperm.slane %v3958, 0
        %v3988 = vadd.f32 %v3984, %v3986
        %s3989 = scalar_lea.vmem %s18, 16
        %v3990 = vld [vmem:[%s3989] sm:$0xf]
        %v3991 = vld [vmem:[%s3989 + $0x4] sm:$0xf]
        %v3992 = vld [vmem:[%s3989 + $0x8] sm:$0xf]
        %v3993 = vld [vmem:[%s3989 + $0xc] sm:$0xf]
        %s3994 = scalar_lea.vmem %s19, 1
        %v3995 = vld [vmem:[%s3994] sm:$0x1]
        %s3996 = scalar_lea.vmem %s20, 64
        %v3997 = vld [vmem:[%s3996] sm:$0xf]
        %v3998 = vld [vmem:[%s3996 + $0x4] sm:$0xf]
        %v3999 = vld [vmem:[%s3996 + $0x8] sm:$0xf]
        %v4000 = vld [vmem:[%s3996 + $0xc] sm:$0xf]
        %v4001 = vld [vmem:[%s3996 + $0x10] sm:$0xf]
        %v4002 = vld [vmem:[%s3996 + $0x14] sm:$0xf]
        %v4003 = vld [vmem:[%s3996 + $0x18] sm:$0xf]
        %v4004 = vld [vmem:[%s3996 + $0x1c] sm:$0xf]
        %v4005 = vld [vmem:[%s3996 + $0x20] sm:$0xf]
        %v4006 = vld [vmem:[%s3996 + $0x24] sm:$0xf]
        %v4007 = vld [vmem:[%s3996 + $0x28] sm:$0xf]
        %v4008 = vld [vmem:[%s3996 + $0x2c] sm:$0xf]
        %v4009 = vld [vmem:[%s3996 + $0x30] sm:$0xf]
        %v4010 = vld [vmem:[%s3996 + $0x34] sm:$0xf]
        %v4011 = vld [vmem:[%s3996 + $0x38] sm:$0xf]
        %v4012 = vld [vmem:[%s3996 + $0x3c] sm:$0xf]
        %s4013 = scalar_lea.vmem %s21, 1
        %v4014 = vld [vmem:[%s4013] sm:$0x1]
        %v4015 = vpack.c.bf16 %v3988, %v3988
        %v4017 = vperm.slane %v3995, 0
        %v4023 = vunpack.c.l.b16 %v3990
        %v4024 = vunpack.c.l.b16 %v3991
        %v4025 = vunpack.c.l.b16 %v3992
        %v4026 = vunpack.c.l.b16 %v3993
        %v4027 = vpack.c.b16 %v4024, %v4023
        %v4028 = vpack.c.b16 %v4026, %v4025
        %v4032 = vsel %vm892, %v4015, 0
        %4034 = vmatpush.bf16.msra.mxu0 0
        %4035 = vmatpush.bf16.msra.mxu0 0
        %4036 = vmatpush.bf16.msra.mxu0 0
        %4037 = vmatpush.bf16.msra.mxu0 0
        %4038 = vmatpush.bf16.msra.mxu0 0
        %4039 = vmatpush.bf16.msra.mxu0 0
        %4040 = vmatpush.bf16.msra.mxu0 %v4028
        %4041 = vmatpush.bf16.msra.mxu0 %v4027
        %4042 = vmatmul.bf16.gmra.mxu0 %v4032
        %v4043 = vpop.f32.mrf.mxu0
        %v4044 = vadd.f32 %v4017, %v4043
        %v4045 = vpop.f32.mrf.mxu0
        %4046 = vdwg.mxu0
        %v4047 = vmax.f32 %v4044, 0.0
        %v4048 = vpack.c.bf16 %v4047, %v4047
        %v4050 = vperm.slane %v4014, 0
        %v4068 = vunpack.c.l.b16 %v3997
        %v4069 = vunpack.c.l.b16 %v3998
        %v4070 = vunpack.c.l.b16 %v3999
        %v4071 = vunpack.c.l.b16 %v4000
        %v4072 = vunpack.c.l.b16 %v4001
        %v4073 = vunpack.c.l.b16 %v4002
        %v4074 = vunpack.c.l.b16 %v4003
        %v4075 = vunpack.c.l.b16 %v4004
        %v4076 = vunpack.c.l.b16 %v4005
        %v4077 = vunpack.c.l.b16 %v4006
        %v4078 = vunpack.c.l.b16 %v4007
        %v4079 = vunpack.c.l.b16 %v4008
        %v4080 = vunpack.c.l.b16 %v4009
        %v4081 = vunpack.c.l.b16 %v4010
        %v4082 = vunpack.c.l.b16 %v4011
        %v4083 = vunpack.c.l.b16 %v4012
        %v4084 = vpack.c.b16 %v4069, %v4068
        %v4085 = vpack.c.b16 %v4071, %v4070
        %v4086 = vpack.c.b16 %v4073, %v4072
        %v4087 = vpack.c.b16 %v4075, %v4074
        %v4088 = vpack.c.b16 %v4077, %v4076
        %v4089 = vpack.c.b16 %v4079, %v4078
        %v4090 = vpack.c.b16 %v4081, %v4080
        %v4091 = vpack.c.b16 %v4083, %v4082
        %4100 = vmatpush.bf16.msra.mxu0 %v4091
        %4101 = vmatpush.bf16.msra.mxu0 %v4090
        %4102 = vmatpush.bf16.msra.mxu0 %v4089
        %4103 = vmatpush.bf16.msra.mxu0 %v4088
        %4104 = vmatpush.bf16.msra.mxu0 %v4087
        %4105 = vmatpush.bf16.msra.mxu0 %v4086
        %4106 = vmatpush.bf16.msra.mxu0 %v4085
        %4107 = vmatpush.bf16.msra.mxu0 %v4084
        %4108 = vmatmul.bf16.gmra.mxu0 %v4048
        %v4109 = vpop.f32.mrf.mxu0
        %v4110 = vadd.f32 %v4050, %v4109
        %v4111 = vpop.f32.mrf.mxu0
        %4112 = vdwg.mxu0
        %v4113 = vadd.f32 %v4110, %v3988
        %s4114 = scalar_lea.vmem %s22, 1
        %v4115 = vld [vmem:[%s4114] sm:$0x1]
        %s4116 = scalar_lea.vmem %s23, 1
        %v4117 = vld [vmem:[%s4116] sm:$0x1]
        %v4118 = vsel %vm892, %v4113, 0.0
        %4119 = vadd.xlane.f32.xlu0 %v4118
        %v4120 = vpop.xlane.xlu0 %4119
        %v4121 = vmul.f32 %v4120, %v1553
        %v4122 = vsub.f32 %v4113, %v4121
        %v4123 = vmul.f32 %v4122, %v4122
        %v4124 = vsel %vm892, %v4123, 0.0
        %4125 = vadd.xlane.f32.xlu0 %v4124
        %v4126 = vpop.xlane.xlu0 %4125
        %v4127 = vmul.f32 %v4126, %v1553
        %v4128 = vadd.f32 %v4127, 1e-05
        %v4129 = vrsqrt.pop %v4128
        %v4130 = vmul.f32 %v4129, %v4128
        %v4131 = vmul.f32 %v4130, %v4129
        %v4132 = vmul.f32 0.5, %v4131
        %v4133 = vsub.f32 1.5, %v4132
        %v4134 = vmul.f32 %v4129, %v4133
        %vm4135 = vweird.f32 %v4128
        %vm4136 = vweird.f32 %v4129
        %vm4137 = vmor %vm4135, %vm4136
        %v4138 = vsel %vm4137, %v4129, %v4134
        %v4139 = vmul.f32 %v4122, %v4138
        %v4141 = vperm.slane %v4115, 0
        %v4143 = vmul.f32 %v4139, %v4141
        %v4145 = vperm.slane %v4117, 0
        %v4147 = vadd.f32 %v4143, %v4145
        %v4148 = vpack.c.bf16 %v4147, %v4147
        %v4149 = vld [vmem:[%s24] sm:$0xf]
        %v4150 = vld [vmem:[%s24 + $0x4] sm:$0xf]
        %v4151 = vld [vmem:[%s24 + $0x8] sm:$0xf]
        %v4152 = vld [vmem:[%s24 + $0xc] sm:$0xf]
        %v4153 = vld [vmem:[%s25] sm:$0x1]
        %v4155 = vperm.slane %v4153, 0
        %v4161 = vunpack.c.l.b16 %v4149
        %v4162 = vunpack.c.l.b16 %v4150
        %v4163 = vunpack.c.l.b16 %v4151
        %v4164 = vunpack.c.l.b16 %v4152
        %v4165 = vpack.c.b16 %v4162, %v4161
        %v4166 = vpack.c.b16 %v4164, %v4163
        %v4170 = vsel %vm892, %v4148, 0
        %4172 = vmatpush.bf16.msra.mxu0 0
        %4173 = vmatpush.bf16.msra.mxu0 0
        %4174 = vmatpush.bf16.msra.mxu0 0
        %4175 = vmatpush.bf16.msra.mxu0 0
        %4176 = vmatpush.bf16.msra.mxu0 0
        %4177 = vmatpush.bf16.msra.mxu0 0
        %4178 = vmatpush.bf16.msra.mxu0 %v4166
        %4179 = vmatpush.bf16.msra.mxu0 %v4165
        %4180 = vmatmul.bf16.gmra.mxu0 %v4170
        %v4181 = vpop.f32.mrf.mxu0
        %v4182 = vadd.f32 %v4155, %v4181
        %v4183 = vpop.f32.mrf.mxu0
        %4184 = vdwg.mxu0
        %vm4185 = vcmask 523264
        %4186 = vst.msk [vmem:[%s806] sm:$0xff] %vm4185, %v4182
        %s4187 = sand.u32 %s609, 1
        %s4188 = scalar_lea.sflag [#allocation3], %s4187
        %s4189 = sand.u32 %s609, 1
        %s4190 = smul.addr %s4189, 8
        %s4191 = scalar_lea.vmem [#allocation2], %s4190
        // Predicated region
        $region125: #{_lambda_.3} parent=123 // pred_check
          %p4192 = pneg %p619
        $region126: #{_lambda_.3} parent=123 // pred_check_branch
          %4194 = sbr.rel (%p4192) target = $region128
        $region127: #{_lambda_.3} parent=123 // pred_region
          %4196 = vsyncadd %s4188, 0
          %s4197 = smul.addr %s40, 8
          %s4198 = scalar_lea.hbm %s26, %s4197
          %s4200 = sshll.u32 %s4191, 4
          %s4201 = int_to_ptr.vmem [resolvable:$true] %s4200
          %s4202 = sshll.u32 %s4198, 4
          %s4203 = int_to_ptr.hbm [resolvable:$true] %s4202
          %4205 = dma.vmem_to_hbm [thread:$0]  %s4201, 128, %s4203, %s4188
        $region128: #{_lambda_.3} parent=123 // pred_fallthru
          _
      $region124: #{_lambda_.3} parent=5 // pred_fallthru
        _
      %p4206 = scmp.le.s32.totalorder 2, %s35
      // Predicated region
      $region129: #{_lambda_.3} parent=5 // pred_check
        %p4207 = pneg %p4206
      $region130: #{_lambda_.3} parent=5 // pred_check_branch
        %4209 = sbr.rel (%p4207) target = $region132
      $region131: #{_lambda_.3} parent=5 // pred_region
        %s4210 = ssub.s32 %s35, 2
        // Predicated region
        $region133: #{_lambda_.3} parent=131 // pred_check
          %p4211 = pneg %p625
        $region134: #{_lambda_.3} parent=131 // pred_check_branch
          %4213 = sbr.rel (%p4211) target = $region136
        $region135: #{_lambda_.3} parent=131 // pred_region
          %s4214 = sand.u32 %s610, 1
          %s4215 = scalar_lea.sflag [#allocation3], %s4214
          %s4216 = sand.u32 %s610, 1
          %s4217 = smul.addr %s4216, 8
          %s4218 = scalar_lea.vmem [#allocation2], %s4217
          %4220 = dma.done %s4215, 128
        $region136: #{_lambda_.3} parent=131 // pred_fallthru
          _
      $region132: #{_lambda_.3} parent=5 // pred_fallthru
        _
    $region6: #{_lambda_.3} parent=1 // loop_footer
      %s39 = sadd.s32 1, %s35
    $region7: #{_lambda_.3} parent=1 // loop_footer_branch
      %34 = sbr.rel target = $region3
    $region8: #{_lambda_.3} parent=1 // loop_exit
      _
    %4221 = vsyncpa [#allocation3], 1
    %s4222 = scalar_lea.sflag [#allocation3], 1
    %4223 = vsyncpa %s4222, 1

</llo_original>
